<compile_context>
chip_gen: v6e
topology: v6e:2x2x1
jax: 0.10.0
libtpu: 0.0.40
codegen_flags: <defaults>
</compile_context>

<pallas_src>
import functools

import jax
import jax.numpy as jnp
import numpy as np
from jax import lax
from jax.experimental import pallas as pl
from jax.experimental.pallas import tpu as pltpu

EPS = 1e-6   # ldm Normalize: nn.GroupNorm(32, C, eps=1e-6, affine=True)
G = 32       # number of GroupNorm groups


# ---------------------------------------------------------------------------
# Fused kernel: ResBlock -> AttnBlock -> head concat  (grid = (bs // nb,))
# ---------------------------------------------------------------------------
def satellite_head_kernel(x_ref, tail_ref, mask_ref, vec_ref, gmat_ref, w_ref,
                          out_ref, *, H, W, nb, cin, cout):
    f32 = jnp.float32
    bf16 = jnp.bfloat16
    hw = H * W
    nhw = nb * hw

    mask = mask_ref[...]                                    # (nb*hw, 9) f32
    xf = x_ref[...]                                         # (nb*hw, cin) f32

    # ---- packed (1, C) constants: static row slices of one small operand ----
    def vec(r, c):
        return vec_ref[r:r + 1, 0:c]                        # (1, c)

    gn1_g, gn1_b = vec(0, cin), vec(1, cin)
    b1 = vec(2, cout)
    gn2_g, gn2_b = vec(3, cout), vec(4, cout)
    b2, bsc = vec(5, cout), vec(6, cout)
    agn_g, agn_b = vec(7, cout), vec(8, cout)
    bq, bk, bv, bp = vec(9, cout), vec(10, cout), vec(11, cout), vec(12, cout)

    # ---- packed matmul weights: static row offsets (all multiples of 32) ----
    o_w1 = 0
    o_w2 = o_w1 + 9 * cin
    o_wsc = o_w2 + 9 * cout
    o_wq = o_wsc + cin
    o_wk = o_wq + cout
    o_wv = o_wk + cout
    o_wp = o_wv + cout

    def groupnorm(a, gamma, beta, c, m_off, mt_off):
        """Per-batch-element GroupNorm(G) over a stacked (nb*hw, c) f32 slab."""
        if c != G:
            m = gmat_ref[m_off:m_off + c, 0:G]              # (c, G) membership
            mt = gmat_ref[mt_off:mt_off + G, 0:c]           # (G, c) = m.T
        inv_n = 1.0 / float(hw * (c // G))
        outs = []
        for j in range(nb):
            aj = a[j * hw:(j + 1) * hw, :]                  # (hw, c)
            s1 = jnp.sum(aj, axis=0, keepdims=True)         # (1, c)
            s2 = jnp.sum(aj * aj, axis=0, keepdims=True)    # (1, c)
            if c == G:
                # group size 1: per-channel stats == per-group stats -> skip MXU
                mean_c = s1 * inv_n
                var_c = s2 * inv_n - mean_c * mean_c
                inv_c = lax.rsqrt(var_c + EPS)
            else:
                s = jnp.concatenate([s1, s2], axis=0)                     # (2, c)
                gs = jnp.dot(s, m, preferred_element_type=f32)            # (2, G)
                mean_g = gs[0:1] * inv_n
                var_g = gs[1:2] * inv_n - mean_g * mean_g
                inv_g = lax.rsqrt(var_g + EPS)
                stat = jnp.concatenate([mean_g, inv_g], axis=0)           # (2, G)
                stat_c = jnp.dot(stat, mt, preferred_element_type=f32)    # (2, c)
                mean_c, inv_c = stat_c[0:1], stat_c[1:2]
            scale = inv_c * gamma
            shift = beta - mean_c * scale
            outs.append(aj * scale + shift)
        return outs[0] if nb == 1 else jnp.concatenate(outs, axis=0)

    def conv3x3(a, w_off, c_in, bias):
        """3x3 'same' conv on the stacked flat (nb*hw, c_in) slab.

        9-tap MXU accumulation; cross-batch wraps of the flat roll are exactly
        the out-of-image taps and are zeroed by the mask."""
        acc = None
        for t in range(9):
            dy, dx = t // 3 - 1, t % 3 - 1
            s = dy * W + dx                    # flat-index shift of this tap
            if s == 0:
                tap = a                        # center tap: always valid
            else:
                # tap[p] = a[p + s], wrap / out-of-image positions zeroed
                tap = pltpu.roll(a, (-s) % nhw, axis=0) * mask[:, t:t + 1]
            wt = w_ref[w_off + t * c_in:w_off + (t + 1) * c_in, :]   # (c_in, cout)
            d = jnp.dot(tap.astype(bf16), wt, preferred_element_type=f32)
            acc = d if acc is None else acc + d
        return acc + bias

    # ---------------- ResBlock ----------------
    h = groupnorm(xf, gn1_g, gn1_b, cin, 0, cin + cout)
    h = h * jax.nn.sigmoid(h)                               # SiLU (f32, EUP)
    h = conv3x3(h, o_w1, cin, b1)
    h = groupnorm(h, gn2_g, gn2_b, cout, cin, cin + cout + G)
    h = h * jax.nn.sigmoid(h)
    h = conv3x3(h, o_w2, cout, b2)
    xsc = jnp.dot(xf.astype(bf16), w_ref[o_wsc:o_wsc + cin, :],
                  preferred_element_type=f32) + bsc
    r = xsc + h                                             # (nb*hw, cout)

    # ---------------- AttnBlock ----------------
    hn = groupnorm(r, agn_g, agn_b, cout, cin, cin + cout + G)
    hn_bf = hn.astype(bf16)                                 # single cast, reused 3x
    q = jnp.dot(hn_bf, w_ref[o_wq:o_wq + cout, :], preferred_element_type=f32) + bq
    k = jnp.dot(hn_bf, w_ref[o_wk:o_wk + cout, :], preferred_element_type=f32) + bk
    v = jnp.dot(hn_bf, w_ref[o_wv:o_wv + cout, :], preferred_element_type=f32) + bv
    q_bf, k_bf, v_bf = q.astype(bf16), k.astype(bf16), v.astype(bf16)
    sm_scale = float(cout) ** -0.5
    att_slabs = []
    for j in range(nb):                                     # softmax is per batch elem
        lo, hi = j * hw, (j + 1) * hw
        logits = lax.dot_general(q_bf[lo:hi, :], k_bf[lo:hi, :],
                                 (((1,), (1,)), ((), ())),
                                 preferred_element_type=f32) * sm_scale   # (hw, hw)
        mmax = jnp.max(logits, axis=-1, keepdims=True)
        pj = jnp.exp(logits - mmax)
        pj = pj * pl.reciprocal(jnp.sum(pj, axis=-1, keepdims=True), approx=True)
        att_slabs.append(jnp.dot(pj.astype(bf16), v_bf[lo:hi, :],
                                 preferred_element_type=f32))             # (hw, cout)
    att = att_slabs[0] if nb == 1 else jnp.concatenate(att_slabs, axis=0)
    proj = jnp.dot(att.astype(bf16), w_ref[o_wp:o_wp + cout, :],
                   preferred_element_type=f32) + bp

    # ---- head output: rows 0..hw-1 spatial, rows hw / hw+1 = lat / lng ----
    final = r + proj                                        # (nb*hw, cout)
    for j in range(nb):
        out_ref[j, 0:hw, :] = final[j * hw:(j + 1) * hw, :]
        out_ref[j, hw:hw + 2, :] = tail_ref[j]


# ---------------------------------------------------------------------------
# Wrapper (layout glue, operand packing, BlockSpecs)
# ---------------------------------------------------------------------------
def _tap_masks(H, W):
    """(HW, 9) f32 validity mask for each of the 9 conv taps."""
    ii, jj = np.meshgrid(np.arange(H), np.arange(W), indexing='ij')
    cols = []
    for t in range(9):
        dy, dx = t // 3 - 1, t % 3 - 1
        valid = (ii + dy >= 0) & (ii + dy < H) & (jj + dx >= 0) & (jj + dx < W)
        cols.append(valid.reshape(H * W).astype(np.float32))
    return np.stack(cols, axis=1)


def _group_matrix(c):
    gsz = c // G
    return (np.arange(c)[:, None] // gsz == np.arange(G)[None, :]).astype(np.float32)


def satellite_head(sat_emb, lat_emb, lng_emb, p, nb=None):
    bs, cin, H, W = sat_emb.shape
    cout = p['cout']
    hw = H * W
    assert cin % G == 0 and cout % G == 0, "GroupNorm(32) requires C % 32 == 0"

    # Batch stacking along M (bigger MXU tiles, fewer grid steps), while keeping
    # >= 2 grid steps when possible so ("parallel",) still shards v7x megacore.
    if nb is None:
        if bs % 4 == 0 and bs >= 8:
            nb = 4
        elif bs % 2 == 0 and bs >= 4:
            nb = 2
        else:
            nb = 1
    assert bs % nb == 0

    # NCHW -> (bs*HW, C) flat activations (flat index i*W + j); this matches
    # torch's se.reshape(bs, C, h*w).permute(0, 2, 1) exactly.
    x = jnp.transpose(sat_emb, (0, 2, 3, 1)).reshape(bs * hw, cin).astype(jnp.float32)
    tail = jnp.stack([lat_emb, lng_emb], axis=1).astype(jnp.float32)     # (bs, 2, C)

    cmax = max(cin, cout)

    # --- consolidated constant #1: all (1, C) vectors -> (13, cmax) f32 ---
    def row(v):
        v = jnp.asarray(v, jnp.float32).reshape(1, -1)
        return jnp.pad(v, ((0, 0), (0, cmax - v.shape[1])))

    vecs = jnp.concatenate([row(p['gn1_g']), row(p['gn1_b']), row(p['b1']),
                            row(p['gn2_g']), row(p['gn2_b']), row(p['b2']),
                            row(p['bsc']), row(p['agn_g']), row(p['agn_b']),
                            row(p['bq']), row(p['bk']), row(p['bv']), row(p['bp'])],
                           axis=0)                                       # (13, cmax)

    # --- consolidated constant #2: group membership matrices (f32) ---
    m_in, m_out = _group_matrix(cin), _group_matrix(cout)

    def mat(mx):
        return np.pad(np.asarray(mx, np.float32),
                      ((0, 0), (0, cmax - mx.shape[1])))

    gmat = jnp.asarray(np.concatenate(
        [mat(m_in), mat(m_out), mat(m_in.T), mat(m_out.T)], axis=0))     # (cin+cout+2G, cmax)

    # --- consolidated constant #3: all matmul weights, bf16, lane width cout ---
    wpack = jnp.concatenate(
        [p['w1_hwio'].reshape(9 * cin, cout),     # rows t*cin:(t+1)*cin = tap t
         p['w2_hwio'].reshape(9 * cout, cout),
         p['wsc'], p['wq'], p['wk'], p['wv'], p['wp']],
        axis=0).astype(jnp.bfloat16)              # (10*cin + 13*cout, cout)

    mask = jnp.asarray(np.tile(_tap_masks(H, W), (nb, 1)))               # (nb*hw, 9)

    # advisory cost estimate (tiny custom call; helps XLA schedule around it)
    flops = int(bs * (2 * hw * (9 * cin + 9 * cout + cin + 4 * cout) * cout
                      + 4 * hw * hw * cout + 60 * hw * cmax))
    transcendentals = int(bs * (hw * (cin + cout) + hw * hw))
    bytes_accessed = int(4 * (x.size + tail.size + mask.size + vecs.size + gmat.size
                              + bs * (hw + 2) * cout) + 2 * wpack.size)

    kernel = functools.partial(satellite_head_kernel,
                               H=H, W=W, nb=nb, cin=cin, cout=cout)
    return pl.pallas_call(
        kernel,
        out_shape=jax.ShapeDtypeStruct((bs, hw + 2, cout), jnp.float32),
        grid=(bs // nb,),
        in_specs=[
            pl.BlockSpec((nb * hw, cin), lambda b: (b, 0)),
            pl.BlockSpec((nb, 2, cout), lambda b: (b, 0, 0)),
            pl.BlockSpec(mask.shape, lambda b: (0, 0)),
            pl.BlockSpec(vecs.shape, lambda b: (0, 0)),
            pl.BlockSpec(gmat.shape, lambda b: (0, 0)),
            pl.BlockSpec(wpack.shape, lambda b: (0, 0)),
        ],
        out_specs=pl.BlockSpec((nb, hw + 2, cout), lambda b: (b, 0, 0)),
        compiler_params=pltpu.CompilerParams(dimension_semantics=("parallel",)),
        cost_estimate=pl.CostEstimate(flops=flops, transcendentals=transcendentals,
                                      bytes_accessed=bytes_accessed),
    )(x, tail, mask, vecs, gmat, wpack)


# ---------------------------------------------------------------------------
# Parameters (deterministic synthetic init; shapes from __init__)
# ---------------------------------------------------------------------------
def init_params(key, cin, cout):
    ks = jax.random.split(key, 14)

    def nrm(k, shape, scale=0.05):
        return scale * jax.random.normal(k, shape, jnp.float32)

    p = dict(
        cin=cin, cout=cout,
        gn1_g=1.0 + nrm(ks[0], (1, cin), 0.1), gn1_b=nrm(ks[1], (1, cin), 0.1),
        w1_hwio=nrm(ks[2], (3, 3, cin, cout)), b1=nrm(ks[3], (1, cout), 0.1),
        gn2_g=1.0 + nrm(ks[4], (1, cout), 0.1), gn2_b=nrm(ks[5], (1, cout), 0.1),
        w2_hwio=nrm(ks[6], (3, 3, cout, cout)), b2=nrm(ks[7], (1, cout), 0.1),
        wsc=nrm(ks[8], (cin, cout)), bsc=nrm(ks[9], (1, cout), 0.1),   # nin_shortcut
        agn_g=1.0 + nrm(ks[10], (1, cout), 0.1), agn_b=nrm(ks[11], (1, cout), 0.1),
    )
    kq, kk, kv, kp = jax.random.split(ks[12], 4)
    kbq, kbk, kbv, kbp = jax.random.split(ks[13], 4)
    # 1x1 conv weights stored in right-multiply form (C_in, C_out) = W_torch[:,:,0,0].T
    p.update(wq=nrm(kq, (cout, cout)), bq=nrm(kbq, (1, cout), 0.1),
             wk=nrm(kk, (cout, cout)), bk=nrm(kbk, (1, cout), 0.1),
             wv=nrm(kv, (cout, cout)), bv=nrm(kbv, (1, cout), 0.1),
             wp=nrm(kp, (cout, cout)), bp=nrm(kbp, (1, cout), 0.1))
    return p


# ---------------------------------------------------------------------------
# Pure-JAX f32 reference (semantics check against the PyTorch forward)
# ---------------------------------------------------------------------------
def _silu(x):
    return x * jax.nn.sigmoid(x)


def _groupnorm_ref(x, gamma, beta):
    bs, H, W, c = x.shape
    gsz = c // G
    xg = x.reshape(bs, H, W, G, gsz)
    mean = xg.mean(axis=(1, 2, 4), keepdims=True)
    var = ((xg - mean) ** 2).mean(axis=(1, 2, 4), keepdims=True)
    xn = (xg - mean) * lax.rsqrt(var + EPS)
    return xn.reshape(bs, H, W, c) * gamma.reshape(1, 1, 1, c) + beta.reshape(1, 1, 1, c)


def _conv3x3_ref(x, w_hwio, b):
    y = lax.conv_general_dilated(x, w_hwio, (1, 1), 'SAME',
                                 dimension_numbers=('NHWC', 'HWIO', 'NHWC'))
    return y + b.reshape(1, 1, 1, -1)


def satellite_head_ref(sat_nchw, lat, lng, p):
    bs, cin, H, W = sat_nchw.shape
    cout = p['cout']
    x = jnp.transpose(sat_nchw, (0, 2, 3, 1)).astype(jnp.float32)
    h = _silu(_groupnorm_ref(x, p['gn1_g'], p['gn1_b']))
    h = _conv3x3_ref(h, p['w1_hwio'], p['b1'])
    h = _silu(_groupnorm_ref(h, p['gn2_g'], p['gn2_b']))
    h = _conv3x3_ref(h, p['w2_hwio'], p['b2'])
    xsc = jnp.einsum('bhwc,cd->bhwd', x, p['wsc']) + p['bsc'].reshape(1, 1, 1, cout)
    r = xsc + h                                                    # ResBlock out (NHWC)
    hn = _groupnorm_ref(r, p['agn_g'], p['agn_b'])
    flat = hn.reshape(bs, H * W, cout)
    q = flat @ p['wq'] + p['bq']
    k = flat @ p['wk'] + p['bk']
    v = flat @ p['wv'] + p['bv']
    logits = jnp.einsum('bic,bjc->bij', q, k) * (float(cout) ** -0.5)
    attw = jax.nn.softmax(logits, axis=-1)
    att = jnp.einsum('bij,bjc->bic', attw, v)
    proj = att @ p['wp'] + p['bp']
    res = r.reshape(bs, H * W, cout) + proj                        # == se.permute(0,2,1)
    return jnp.concatenate([res, lat[:, None, :], lng[:, None, :]], axis=1)


if __name__ == "__main__":
    key = jax.random.PRNGKey(0)
    # bs=4 exercises the nb=2 batch-stacking path while keeping 2 grid steps.
    bs, cin, cout, H, W = 4, 32, 64, 8, 8   # GroupNorm(32) requires C % 32 == 0
    k_inp, k_par = jax.random.split(key)
    k1, k2, k3 = jax.random.split(k_inp, 3)
    sat_emb = jax.random.normal(k1, (bs, cin, H, W), jnp.float32)   # NCHW, as in PyTorch
    lat_emb = jax.random.normal(k2, (bs, cout), jnp.float32)
    lng_emb = jax.random.normal(k3, (bs, cout), jnp.float32)
    params = init_params(k_par, cin, cout)

    out = satellite_head(sat_emb, lat_emb, lng_emb, params)
    out = jax.block_until_ready(out)
    assert out.shape == (bs, H * W + 2, cout)

    ref = satellite_head_ref(sat_emb, lat_emb, lng_emb, params)
    # Kernel uses bf16 MXU operands (f32 accumulation) + approximate EUP
    # reciprocal for the softmax denominator; the reference is pure f32.
    # Tolerance tightened from the previous 3e-2 per the review while keeping
    # margin for bf16 operand rounding through the GN/conv/attention chain.
    np.testing.assert_allclose(np.asarray(out), np.asarray(ref), rtol=2e-2, atol=2.5e-2)
    print("KERNEL_OK")
</pallas_src>

<mosaic_0001>
module attributes {stable_mosaic.version = 11 : i64} {
  func.func @satellite_head_kernel(%arg0: i32, %arg1: memref<128x32xf32, #tpu.memory_space<vmem>>, %arg2: memref<2x2x64xf32, #tpu.memory_space<vmem>>, %arg3: memref<128x9xf32, #tpu.memory_space<vmem>>, %arg4: memref<13x64xf32, #tpu.memory_space<vmem>>, %arg5: memref<160x64xf32, #tpu.memory_space<vmem>>, %arg6: memref<1152x64xbf16, #tpu.memory_space<vmem>>, %arg7: memref<2x66x64xf32, #tpu.memory_space<vmem>>) attributes {dimension_semantics = [#tpu.dimension_semantics<parallel>], iteration_bounds = array<i64: 2>, scalar_prefetch = 0 : i64, scratch_operands = 0 : i64, tpu.core_type = #tpu.core_type<tc>, window_params = [{transform_indices = @transform_0, window_bounds = array<i64: 128, 32>}, {transform_indices = @transform_1, window_bounds = array<i64: 2, 2, 64>}, {pipeline_mode = #tpu.pipeline_mode<synchronous>, transform_indices = @transform_2, window_bounds = array<i64: 128, 9>}, {pipeline_mode = #tpu.pipeline_mode<synchronous>, transform_indices = @transform_3, window_bounds = array<i64: 13, 64>}, {pipeline_mode = #tpu.pipeline_mode<synchronous>, transform_indices = @transform_4, window_bounds = array<i64: 160, 64>}, {pipeline_mode = #tpu.pipeline_mode<synchronous>, transform_indices = @transform_5, window_bounds = array<i64: 1152, 64>}, {transform_indices = @transform_6, window_bounds = array<i64: 2, 66, 64>}]} {
    %c0 = arith.constant 0 : index
    %c0_0 = arith.constant 0 : index
    %0 = vector.load %arg3[%c0, %c0_0] : memref<128x9xf32, #tpu.memory_space<vmem>>, vector<128x9xf32>
    %c0_1 = arith.constant 0 : index
    %c0_2 = arith.constant 0 : index
    %1 = vector.load %arg1[%c0_1, %c0_2] : memref<128x32xf32, #tpu.memory_space<vmem>>, vector<128x32xf32>
    %c0_3 = arith.constant 0 : index
    %c0_4 = arith.constant 0 : index
    %2 = vector.load %arg4[%c0_3, %c0_4] : memref<13x64xf32, #tpu.memory_space<vmem>>, vector<1x32xf32>
    %c1 = arith.constant 1 : index
    %c0_5 = arith.constant 0 : index
    %3 = vector.load %arg4[%c1, %c0_5] : memref<13x64xf32, #tpu.memory_space<vmem>>, vector<1x32xf32>
    %c2 = arith.constant 2 : index
    %c0_6 = arith.constant 0 : index
    %4 = vector.load %arg4[%c2, %c0_6] : memref<13x64xf32, #tpu.memory_space<vmem>>, vector<1x64xf32>
    %c3 = arith.constant 3 : index
    %c0_7 = arith.constant 0 : index
    %5 = vector.load %arg4[%c3, %c0_7] : memref<13x64xf32, #tpu.memory_space<vmem>>, vector<1x64xf32>
    %c4 = arith.constant 4 : index
    %c0_8 = arith.constant 0 : index
    %6 = vector.load %arg4[%c4, %c0_8] : memref<13x64xf32, #tpu.memory_space<vmem>>, vector<1x64xf32>
    %c5 = arith.constant 5 : index
    %c0_9 = arith.constant 0 : index
    %7 = vector.load %arg4[%c5, %c0_9] : memref<13x64xf32, #tpu.memory_space<vmem>>, vector<1x64xf32>
    %c6 = arith.constant 6 : index
    %c0_10 = arith.constant 0 : index
    %8 = vector.load %arg4[%c6, %c0_10] : memref<13x64xf32, #tpu.memory_space<vmem>>, vector<1x64xf32>
    %c7 = arith.constant 7 : index
    %c0_11 = arith.constant 0 : index
    %9 = vector.load %arg4[%c7, %c0_11] : memref<13x64xf32, #tpu.memory_space<vmem>>, vector<1x64xf32>
    %c8 = arith.constant 8 : index
    %c0_12 = arith.constant 0 : index
    %10 = vector.load %arg4[%c8, %c0_12] : memref<13x64xf32, #tpu.memory_space<vmem>>, vector<1x64xf32>
    %c9 = arith.constant 9 : index
    %c0_13 = arith.constant 0 : index
    %11 = vector.load %arg4[%c9, %c0_13] : memref<13x64xf32, #tpu.memory_space<vmem>>, vector<1x64xf32>
    %c10 = arith.constant 10 : index
    %c0_14 = arith.constant 0 : index
    %12 = vector.load %arg4[%c10, %c0_14] : memref<13x64xf32, #tpu.memory_space<vmem>>, vector<1x64xf32>
    %c11 = arith.constant 11 : index
    %c0_15 = arith.constant 0 : index
    %13 = vector.load %arg4[%c11, %c0_15] : memref<13x64xf32, #tpu.memory_space<vmem>>, vector<1x64xf32>
    %c12 = arith.constant 12 : index
    %c0_16 = arith.constant 0 : index
    %14 = vector.load %arg4[%c12, %c0_16] : memref<13x64xf32, #tpu.memory_space<vmem>>, vector<1x64xf32>
    %15 = vector.extract_strided_slice %1 {offsets = [0, 0], sizes = [64, 32], strides = [1, 1]} : vector<128x32xf32> to vector<64x32xf32>
    %cst = arith.constant dense<0.000000e+00> : vector<32xf32>
    %16 = vector.multi_reduction <add>, %15, %cst [0] : vector<64x32xf32> to vector<32xf32>
    %17 = vector.shape_cast %16 : vector<32xf32> to vector<1x32xf32>
    %18 = arith.mulf %15, %15 : vector<64x32xf32>
    %cst_17 = arith.constant dense<0.000000e+00> : vector<32xf32>
    %19 = vector.multi_reduction <add>, %18, %cst_17 [0] : vector<64x32xf32> to vector<32xf32>
    %20 = vector.shape_cast %19 : vector<32xf32> to vector<1x32xf32>
    %cst_18 = arith.constant 1.562500e-02 : f32
    %21 = vector.broadcast %cst_18 : f32 to vector<1x32xf32>
    %22 = arith.mulf %17, %21 : vector<1x32xf32>
    %cst_19 = arith.constant 1.562500e-02 : f32
    %23 = vector.broadcast %cst_19 : f32 to vector<1x32xf32>
    %24 = arith.mulf %20, %23 : vector<1x32xf32>
    %25 = arith.mulf %22, %22 : vector<1x32xf32>
    %26 = arith.subf %24, %25 : vector<1x32xf32>
    %cst_20 = arith.constant 9.99999997E-7 : f32
    %27 = vector.broadcast %cst_20 : f32 to vector<1x32xf32>
    %28 = arith.addf %26, %27 : vector<1x32xf32>
    %29 = math.rsqrt %28 : vector<1x32xf32>
    %30 = arith.mulf %29, %2 : vector<1x32xf32>
    %31 = arith.mulf %22, %30 : vector<1x32xf32>
    %32 = arith.subf %3, %31 : vector<1x32xf32>
    %33 = vector.broadcast %30 : vector<1x32xf32> to vector<64x32xf32>
    %34 = arith.mulf %15, %33 : vector<64x32xf32>
    %35 = vector.broadcast %32 : vector<1x32xf32> to vector<64x32xf32>
    %36 = arith.addf %34, %35 : vector<64x32xf32>
    %37 = vector.extract_strided_slice %1 {offsets = [64, 0], sizes = [64, 32], strides = [1, 1]} : vector<128x32xf32> to vector<64x32xf32>
    %cst_21 = arith.constant dense<0.000000e+00> : vector<32xf32>
    %38 = vector.multi_reduction <add>, %37, %cst_21 [0] : vector<64x32xf32> to vector<32xf32>
    %39 = vector.shape_cast %38 : vector<32xf32> to vector<1x32xf32>
    %40 = arith.mulf %37, %37 : vector<64x32xf32>
    %cst_22 = arith.constant dense<0.000000e+00> : vector<32xf32>
    %41 = vector.multi_reduction <add>, %40, %cst_22 [0] : vector<64x32xf32> to vector<32xf32>
    %42 = vector.shape_cast %41 : vector<32xf32> to vector<1x32xf32>
    %cst_23 = arith.constant 1.562500e-02 : f32
    %43 = vector.broadcast %cst_23 : f32 to vector<1x32xf32>
    %44 = arith.mulf %39, %43 : vector<1x32xf32>
    %cst_24 = arith.constant 1.562500e-02 : f32
    %45 = vector.broadcast %cst_24 : f32 to vector<1x32xf32>
    %46 = arith.mulf %42, %45 : vector<1x32xf32>
    %47 = arith.mulf %44, %44 : vector<1x32xf32>
    %48 = arith.subf %46, %47 : vector<1x32xf32>
    %cst_25 = arith.constant 9.99999997E-7 : f32
    %49 = vector.broadcast %cst_25 : f32 to vector<1x32xf32>
    %50 = arith.addf %48, %49 : vector<1x32xf32>
    %51 = math.rsqrt %50 : vector<1x32xf32>
    %52 = arith.mulf %51, %2 : vector<1x32xf32>
    %53 = arith.mulf %44, %52 : vector<1x32xf32>
    %54 = arith.subf %3, %53 : vector<1x32xf32>
    %55 = vector.broadcast %52 : vector<1x32xf32> to vector<64x32xf32>
    %56 = arith.mulf %37, %55 : vector<64x32xf32>
    %57 = vector.broadcast %54 : vector<1x32xf32> to vector<64x32xf32>
    %58 = arith.addf %56, %57 : vector<64x32xf32>
    %59 = tpu.concatenate %36, %58 in 0 : vector<64x32xf32>, vector<64x32xf32> -> vector<128x32xf32>
    %60 = arith.negf %59 : vector<128x32xf32>
    %61 = math.exp %60 : vector<128x32xf32>
    %cst_26 = arith.constant 1.000000e+00 : f32
    %62 = vector.broadcast %cst_26 : f32 to vector<128x32xf32>
    %63 = arith.addf %62, %61 : vector<128x32xf32>
    %64 = arith.divf %62, %63 : vector<128x32xf32>
    %65 = arith.mulf %59, %64 : vector<128x32xf32>
    %c9_i32 = arith.constant 9 : i32
    %66 = tpu.dynamic_rotate %65 by %c9_i32 dim 0 : vector<128x32xf32>, i32 -> vector<128x32xf32>
    %67 = vector.extract_strided_slice %0 {offsets = [0, 0], sizes = [128, 1], strides = [1, 1]} : vector<128x9xf32> to vector<128x1xf32>
    %68 = vector.broadcast %67 : vector<128x1xf32> to vector<128x32xf32>
    %69 = arith.mulf %66, %68 : vector<128x32xf32>
    %c0_27 = arith.constant 0 : index
    %c0_28 = arith.constant 0 : index
    %70 = vector.load %arg6[%c0_27, %c0_28] : memref<1152x64xbf16, #tpu.memory_space<vmem>>, vector<32x64xbf16>
    %71 = arith.truncf %69 : vector<128x32xf32> to vector<128x32xbf16>
    %cst_29 = arith.constant dense<0.000000e+00> : vector<128x64xf32>
    %72 = tpu.matmul %71, %70, %cst_29 {dimension_numbers = #tpu.dot_dimension_numbers<[1], [0], [0], [1], [0, 0, 1, 1], [], []>} : vector<128x32xbf16>, vector<32x64xbf16>, vector<128x64xf32> -> vector<128x64xf32>
    %c8_i32 = arith.constant 8 : i32
    %73 = tpu.dynamic_rotate %65 by %c8_i32 dim 0 : vector<128x32xf32>, i32 -> vector<128x32xf32>
    %74 = vector.extract_strided_slice %0 {offsets = [0, 1], sizes = [128, 1], strides = [1, 1]} : vector<128x9xf32> to vector<128x1xf32>
    %75 = vector.broadcast %74 : vector<128x1xf32> to vector<128x32xf32>
    %76 = arith.mulf %73, %75 : vector<128x32xf32>
    %c32 = arith.constant 32 : index
    %c0_30 = arith.constant 0 : index
    %77 = vector.load %arg6[%c32, %c0_30] : memref<1152x64xbf16, #tpu.memory_space<vmem>>, vector<32x64xbf16>
    %78 = arith.truncf %76 : vector<128x32xf32> to vector<128x32xbf16>
    %cst_31 = arith.constant dense<0.000000e+00> : vector<128x64xf32>
    %79 = tpu.matmul %78, %77, %cst_31 {dimension_numbers = #tpu.dot_dimension_numbers<[1], [0], [0], [1], [0, 0, 1, 1], [], []>} : vector<128x32xbf16>, vector<32x64xbf16>, vector<128x64xf32> -> vector<128x64xf32>
    %80 = arith.addf %72, %79 : vector<128x64xf32>
    %c7_i32 = arith.constant 7 : i32
    %81 = tpu.dynamic_rotate %65 by %c7_i32 dim 0 : vector<128x32xf32>, i32 -> vector<128x32xf32>
    %82 = vector.extract_strided_slice %0 {offsets = [0, 2], sizes = [128, 1], strides = [1, 1]} : vector<128x9xf32> to vector<128x1xf32>
    %83 = vector.broadcast %82 : vector<128x1xf32> to vector<128x32xf32>
    %84 = arith.mulf %81, %83 : vector<128x32xf32>
    %c64 = arith.constant 64 : index
    %c0_32 = arith.constant 0 : index
    %85 = vector.load %arg6[%c64, %c0_32] : memref<1152x64xbf16, #tpu.memory_space<vmem>>, vector<32x64xbf16>
    %86 = arith.truncf %84 : vector<128x32xf32> to vector<128x32xbf16>
    %cst_33 = arith.constant dense<0.000000e+00> : vector<128x64xf32>
    %87 = tpu.matmul %86, %85, %cst_33 {dimension_numbers = #tpu.dot_dimension_numbers<[1], [0], [0], [1], [0, 0, 1, 1], [], []>} : vector<128x32xbf16>, vector<32x64xbf16>, vector<128x64xf32> -> vector<128x64xf32>
    %88 = arith.addf %80, %87 : vector<128x64xf32>
    %c1_i32 = arith.constant 1 : i32
    %89 = tpu.dynamic_rotate %65 by %c1_i32 dim 0 : vector<128x32xf32>, i32 -> vector<128x32xf32>
    %90 = vector.extract_strided_slice %0 {offsets = [0, 3], sizes = [128, 1], strides = [1, 1]} : vector<128x9xf32> to vector<128x1xf32>
    %91 = vector.broadcast %90 : vector<128x1xf32> to vector<128x32xf32>
    %92 = arith.mulf %89, %91 : vector<128x32xf32>
    %c96 = arith.constant 96 : index
    %c0_34 = arith.constant 0 : index
    %93 = vector.load %arg6[%c96, %c0_34] : memref<1152x64xbf16, #tpu.memory_space<vmem>>, vector<32x64xbf16>
    %94 = arith.truncf %92 : vector<128x32xf32> to vector<128x32xbf16>
    %cst_35 = arith.constant dense<0.000000e+00> : vector<128x64xf32>
    %95 = tpu.matmul %94, %93, %cst_35 {dimension_numbers = #tpu.dot_dimension_numbers<[1], [0], [0], [1], [0, 0, 1, 1], [], []>} : vector<128x32xbf16>, vector<32x64xbf16>, vector<128x64xf32> -> vector<128x64xf32>
    %96 = arith.addf %88, %95 : vector<128x64xf32>
    %c128 = arith.constant 128 : index
    %c0_36 = arith.constant 0 : index
    %97 = vector.load %arg6[%c128, %c0_36] : memref<1152x64xbf16, #tpu.memory_space<vmem>>, vector<32x64xbf16>
    %98 = arith.truncf %65 : vector<128x32xf32> to vector<128x32xbf16>
    %cst_37 = arith.constant dense<0.000000e+00> : vector<128x64xf32>
    %99 = tpu.matmul %98, %97, %cst_37 {dimension_numbers = #tpu.dot_dimension_numbers<[1], [0], [0], [1], [0, 0, 1, 1], [], []>} : vector<128x32xbf16>, vector<32x64xbf16>, vector<128x64xf32> -> vector<128x64xf32>
    %100 = arith.addf %96, %99 : vector<128x64xf32>
    %c127_i32 = arith.constant 127 : i32
    %101 = tpu.dynamic_rotate %65 by %c127_i32 dim 0 : vector<128x32xf32>, i32 -> vector<128x32xf32>
    %102 = vector.extract_strided_slice %0 {offsets = [0, 5], sizes = [128, 1], strides = [1, 1]} : vector<128x9xf32> to vector<128x1xf32>
    %103 = vector.broadcast %102 : vector<128x1xf32> to vector<128x32xf32>
    %104 = arith.mulf %101, %103 : vector<128x32xf32>
    %c160 = arith.constant 160 : index
    %c0_38 = arith.constant 0 : index
    %105 = vector.load %arg6[%c160, %c0_38] : memref<1152x64xbf16, #tpu.memory_space<vmem>>, vector<32x64xbf16>
    %106 = arith.truncf %104 : vector<128x32xf32> to vector<128x32xbf16>
    %cst_39 = arith.constant dense<0.000000e+00> : vector<128x64xf32>
    %107 = tpu.matmul %106, %105, %cst_39 {dimension_numbers = #tpu.dot_dimension_numbers<[1], [0], [0], [1], [0, 0, 1, 1], [], []>} : vector<128x32xbf16>, vector<32x64xbf16>, vector<128x64xf32> -> vector<128x64xf32>
    %108 = arith.addf %100, %107 : vector<128x64xf32>
    %c121_i32 = arith.constant 121 : i32
    %109 = tpu.dynamic_rotate %65 by %c121_i32 dim 0 : vector<128x32xf32>, i32 -> vector<128x32xf32>
    %110 = vector.extract_strided_slice %0 {offsets = [0, 6], sizes = [128, 1], strides = [1, 1]} : vector<128x9xf32> to vector<128x1xf32>
    %111 = vector.broadcast %110 : vector<128x1xf32> to vector<128x32xf32>
    %112 = arith.mulf %109, %111 : vector<128x32xf32>
    %c192 = arith.constant 192 : index
    %c0_40 = arith.constant 0 : index
    %113 = vector.load %arg6[%c192, %c0_40] : memref<1152x64xbf16, #tpu.memory_space<vmem>>, vector<32x64xbf16>
    %114 = arith.truncf %112 : vector<128x32xf32> to vector<128x32xbf16>
    %cst_41 = arith.constant dense<0.000000e+00> : vector<128x64xf32>
    %115 = tpu.matmul %114, %113, %cst_41 {dimension_numbers = #tpu.dot_dimension_numbers<[1], [0], [0], [1], [0, 0, 1, 1], [], []>} : vector<128x32xbf16>, vector<32x64xbf16>, vector<128x64xf32> -> vector<128x64xf32>
    %116 = arith.addf %108, %115 : vector<128x64xf32>
    %c120_i32 = arith.constant 120 : i32
    %117 = tpu.dynamic_rotate %65 by %c120_i32 dim 0 : vector<128x32xf32>, i32 -> vector<128x32xf32>
    %118 = vector.extract_strided_slice %0 {offsets = [0, 7], sizes = [128, 1], strides = [1, 1]} : vector<128x9xf32> to vector<128x1xf32>
    %119 = vector.broadcast %118 : vector<128x1xf32> to vector<128x32xf32>
    %120 = arith.mulf %117, %119 : vector<128x32xf32>
    %c224 = arith.constant 224 : index
    %c0_42 = arith.constant 0 : index
    %121 = vector.load %arg6[%c224, %c0_42] : memref<1152x64xbf16, #tpu.memory_space<vmem>>, vector<32x64xbf16>
    %122 = arith.truncf %120 : vector<128x32xf32> to vector<128x32xbf16>
    %cst_43 = arith.constant dense<0.000000e+00> : vector<128x64xf32>
    %123 = tpu.matmul %122, %121, %cst_43 {dimension_numbers = #tpu.dot_dimension_numbers<[1], [0], [0], [1], [0, 0, 1, 1], [], []>} : vector<128x32xbf16>, vector<32x64xbf16>, vector<128x64xf32> -> vector<128x64xf32>
    %124 = arith.addf %116, %123 : vector<128x64xf32>
    %c119_i32 = arith.constant 119 : i32
    %125 = tpu.dynamic_rotate %65 by %c119_i32 dim 0 : vector<128x32xf32>, i32 -> vector<128x32xf32>
    %126 = vector.extract_strided_slice %0 {offsets = [0, 8], sizes = [128, 1], strides = [1, 1]} : vector<128x9xf32> to vector<128x1xf32>
    %127 = vector.broadcast %126 : vector<128x1xf32> to vector<128x32xf32>
    %128 = arith.mulf %125, %127 : vector<128x32xf32>
    %c256 = arith.constant 256 : index
    %c0_44 = arith.constant 0 : index
    %129 = vector.load %arg6[%c256, %c0_44] : memref<1152x64xbf16, #tpu.memory_space<vmem>>, vector<32x64xbf16>
    %130 = arith.truncf %128 : vector<128x32xf32> to vector<128x32xbf16>
    %cst_45 = arith.constant dense<0.000000e+00> : vector<128x64xf32>
    %131 = tpu.matmul %130, %129, %cst_45 {dimension_numbers = #tpu.dot_dimension_numbers<[1], [0], [0], [1], [0, 0, 1, 1], [], []>} : vector<128x32xbf16>, vector<32x64xbf16>, vector<128x64xf32> -> vector<128x64xf32>
    %132 = arith.addf %124, %131 : vector<128x64xf32>
    %133 = vector.broadcast %4 : vector<1x64xf32> to vector<128x64xf32>
    %134 = arith.addf %132, %133 : vector<128x64xf32>
    %c32_46 = arith.constant 32 : index
    %c0_47 = arith.constant 0 : index
    %135 = vector.load %arg5[%c32_46, %c0_47] : memref<160x64xf32, #tpu.memory_space<vmem>>, vector<64x32xf32>
    %c128_48 = arith.constant 128 : index
    %c0_49 = arith.constant 0 : index
    %136 = vector.load %arg5[%c128_48, %c0_49] : memref<160x64xf32, #tpu.memory_space<vmem>>, vector<32x64xf32>
    %137 = vector.extract_strided_slice %134 {offsets = [0, 0], sizes = [64, 64], strides = [1, 1]} : vector<128x64xf32> to vector<64x64xf32>
    %cst_50 = arith.constant dense<0.000000e+00> : vector<64xf32>
    %138 = vector.multi_reduction <add>, %137, %cst_50 [0] : vector<64x64xf32> to vector<64xf32>
    %139 = vector.shape_cast %138 : vector<64xf32> to vector<1x64xf32>
    %140 = arith.mulf %137, %137 : vector<64x64xf32>
    %cst_51 = arith.constant dense<0.000000e+00> : vector<64xf32>
    %141 = vector.multi_reduction <add>, %140, %cst_51 [0] : vector<64x64xf32> to vector<64xf32>
    %142 = vector.shape_cast %141 : vector<64xf32> to vector<1x64xf32>
    %143 = tpu.concatenate %139, %142 in 0 : vector<1x64xf32>, vector<1x64xf32> -> vector<2x64xf32>
    %cst_52 = arith.constant dense<0.000000e+00> : vector<2x32xf32>
    %144 = tpu.matmul %143, %135, %cst_52 {dimension_numbers = #tpu.dot_dimension_numbers<[1], [0], [0], [1], [0, 0, 1, 1], [], []>} : vector<2x64xf32>, vector<64x32xf32>, vector<2x32xf32> -> vector<2x32xf32>
    %145 = vector.extract_strided_slice %144 {offsets = [0, 0], sizes = [1, 32], strides = [1, 1]} : vector<2x32xf32> to vector<1x32xf32>
    %cst_53 = arith.constant 7.812500e-03 : f32
    %146 = vector.broadcast %cst_53 : f32 to vector<1x32xf32>
    %147 = arith.mulf %145, %146 : vector<1x32xf32>
    %148 = vector.extract_strided_slice %144 {offsets = [1, 0], sizes = [1, 32], strides = [1, 1]} : vector<2x32xf32> to vector<1x32xf32>
    %cst_54 = arith.constant 7.812500e-03 : f32
    %149 = vector.broadcast %cst_54 : f32 to vector<1x32xf32>
    %150 = arith.mulf %148, %149 : vector<1x32xf32>
    %151 = arith.mulf %147, %147 : vector<1x32xf32>
    %152 = arith.subf %150, %151 : vector<1x32xf32>
    %cst_55 = arith.constant 9.99999997E-7 : f32
    %153 = vector.broadcast %cst_55 : f32 to vector<1x32xf32>
    %154 = arith.addf %152, %153 : vector<1x32xf32>
    %155 = math.rsqrt %154 : vector<1x32xf32>
    %156 = tpu.concatenate %147, %155 in 0 : vector<1x32xf32>, vector<1x32xf32> -> vector<2x32xf32>
    %cst_56 = arith.constant dense<0.000000e+00> : vector<2x64xf32>
    %157 = tpu.matmul %156, %136, %cst_56 {dimension_numbers = #tpu.dot_dimension_numbers<[1], [0], [0], [1], [0, 0, 1, 1], [], []>} : vector<2x32xf32>, vector<32x64xf32>, vector<2x64xf32> -> vector<2x64xf32>
    %158 = vector.extract_strided_slice %157 {offsets = [0, 0], sizes = [1, 64], strides = [1, 1]} : vector<2x64xf32> to vector<1x64xf32>
    %159 = vector.extract_strided_slice %157 {offsets = [1, 0], sizes = [1, 64], strides = [1, 1]} : vector<2x64xf32> to vector<1x64xf32>
    %160 = arith.mulf %159, %5 : vector<1x64xf32>
    %161 = arith.mulf %158, %160 : vector<1x64xf32>
    %162 = arith.subf %6, %161 : vector<1x64xf32>
    %163 = vector.broadcast %160 : vector<1x64xf32> to vector<64x64xf32>
    %164 = arith.mulf %137, %163 : vector<64x64xf32>
    %165 = vector.broadcast %162 : vector<1x64xf32> to vector<64x64xf32>
    %166 = arith.addf %164, %165 : vector<64x64xf32>
    %167 = vector.extract_strided_slice %134 {offsets = [64, 0], sizes = [64, 64], strides = [1, 1]} : vector<128x64xf32> to vector<64x64xf32>
    %cst_57 = arith.constant dense<0.000000e+00> : vector<64xf32>
    %168 = vector.multi_reduction <add>, %167, %cst_57 [0] : vector<64x64xf32> to vector<64xf32>
    %169 = vector.shape_cast %168 : vector<64xf32> to vector<1x64xf32>
    %170 = arith.mulf %167, %167 : vector<64x64xf32>
    %cst_58 = arith.constant dense<0.000000e+00> : vector<64xf32>
    %171 = vector.multi_reduction <add>, %170, %cst_58 [0] : vector<64x64xf32> to vector<64xf32>
    %172 = vector.shape_cast %171 : vector<64xf32> to vector<1x64xf32>
    %173 = tpu.concatenate %169, %172 in 0 : vector<1x64xf32>, vector<1x64xf32> -> vector<2x64xf32>
    %cst_59 = arith.constant dense<0.000000e+00> : vector<2x32xf32>
    %174 = tpu.matmul %173, %135, %cst_59 {dimension_numbers = #tpu.dot_dimension_numbers<[1], [0], [0], [1], [0, 0, 1, 1], [], []>} : vector<2x64xf32>, vector<64x32xf32>, vector<2x32xf32> -> vector<2x32xf32>
    %175 = vector.extract_strided_slice %174 {offsets = [0, 0], sizes = [1, 32], strides = [1, 1]} : vector<2x32xf32> to vector<1x32xf32>
    %cst_60 = arith.constant 7.812500e-03 : f32
    %176 = vector.broadcast %cst_60 : f32 to vector<1x32xf32>
    %177 = arith.mulf %175, %176 : vector<1x32xf32>
    %178 = vector.extract_strided_slice %174 {offsets = [1, 0], sizes = [1, 32], strides = [1, 1]} : vector<2x32xf32> to vector<1x32xf32>
    %cst_61 = arith.constant 7.812500e-03 : f32
    %179 = vector.broadcast %cst_61 : f32 to vector<1x32xf32>
    %180 = arith.mulf %178, %179 : vector<1x32xf32>
    %181 = arith.mulf %177, %177 : vector<1x32xf32>
    %182 = arith.subf %180, %181 : vector<1x32xf32>
    %cst_62 = arith.constant 9.99999997E-7 : f32
    %183 = vector.broadcast %cst_62 : f32 to vector<1x32xf32>
    %184 = arith.addf %182, %183 : vector<1x32xf32>
    %185 = math.rsqrt %184 : vector<1x32xf32>
    %186 = tpu.concatenate %177, %185 in 0 : vector<1x32xf32>, vector<1x32xf32> -> vector<2x32xf32>
    %cst_63 = arith.constant dense<0.000000e+00> : vector<2x64xf32>
    %187 = tpu.matmul %186, %136, %cst_63 {dimension_numbers = #tpu.dot_dimension_numbers<[1], [0], [0], [1], [0, 0, 1, 1], [], []>} : vector<2x32xf32>, vector<32x64xf32>, vector<2x64xf32> -> vector<2x64xf32>
    %188 = vector.extract_strided_slice %187 {offsets = [0, 0], sizes = [1, 64], strides = [1, 1]} : vector<2x64xf32> to vector<1x64xf32>
    %189 = vector.extract_strided_slice %187 {offsets = [1, 0], sizes = [1, 64], strides = [1, 1]} : vector<2x64xf32> to vector<1x64xf32>
    %190 = arith.mulf %189, %5 : vector<1x64xf32>
    %191 = arith.mulf %188, %190 : vector<1x64xf32>
    %192 = arith.subf %6, %191 : vector<1x64xf32>
    %193 = vector.broadcast %190 : vector<1x64xf32> to vector<64x64xf32>
    %194 = arith.mulf %167, %193 : vector<64x64xf32>
    %195 = vector.broadcast %192 : vector<1x64xf32> to vector<64x64xf32>
    %196 = arith.addf %194, %195 : vector<64x64xf32>
    %197 = tpu.concatenate %166, %196 in 0 : vector<64x64xf32>, vector<64x64xf32> -> vector<128x64xf32>
    %198 = arith.negf %197 : vector<128x64xf32>
    %199 = math.exp %198 : vector<128x64xf32>
    %cst_64 = arith.constant 1.000000e+00 : f32
    %200 = vector.broadcast %cst_64 : f32 to vector<128x64xf32>
    %201 = arith.addf %200, %199 : vector<128x64xf32>
    %202 = arith.divf %200, %201 : vector<128x64xf32>
    %203 = arith.mulf %197, %202 : vector<128x64xf32>
    %c9_i32_65 = arith.constant 9 : i32
    %204 = tpu.dynamic_rotate %203 by %c9_i32_65 dim 0 : vector<128x64xf32>, i32 -> vector<128x64xf32>
    %205 = vector.extract_strided_slice %0 {offsets = [0, 0], sizes = [128, 1], strides = [1, 1]} : vector<128x9xf32> to vector<128x1xf32>
    %206 = vector.broadcast %205 : vector<128x1xf32> to vector<128x64xf32>
    %207 = arith.mulf %204, %206 : vector<128x64xf32>
    %c288 = arith.constant 288 : index
    %c0_66 = arith.constant 0 : index
    %208 = vector.load %arg6[%c288, %c0_66] : memref<1152x64xbf16, #tpu.memory_space<vmem>>, vector<64x64xbf16>
    %209 = arith.truncf %207 : vector<128x64xf32> to vector<128x64xbf16>
    %cst_67 = arith.constant dense<0.000000e+00> : vector<128x64xf32>
    %210 = tpu.matmul %209, %208, %cst_67 {dimension_numbers = #tpu.dot_dimension_numbers<[1], [0], [0], [1], [0, 0, 1, 1], [], []>} : vector<128x64xbf16>, vector<64x64xbf16>, vector<128x64xf32> -> vector<128x64xf32>
    %c8_i32_68 = arith.constant 8 : i32
    %211 = tpu.dynamic_rotate %203 by %c8_i32_68 dim 0 : vector<128x64xf32>, i32 -> vector<128x64xf32>
    %212 = vector.extract_strided_slice %0 {offsets = [0, 1], sizes = [128, 1], strides = [1, 1]} : vector<128x9xf32> to vector<128x1xf32>
    %213 = vector.broadcast %212 : vector<128x1xf32> to vector<128x64xf32>
    %214 = arith.mulf %211, %213 : vector<128x64xf32>
    %c352 = arith.constant 352 : index
    %c0_69 = arith.constant 0 : index
    %215 = vector.load %arg6[%c352, %c0_69] : memref<1152x64xbf16, #tpu.memory_space<vmem>>, vector<64x64xbf16>
    %216 = arith.truncf %214 : vector<128x64xf32> to vector<128x64xbf16>
    %cst_70 = arith.constant dense<0.000000e+00> : vector<128x64xf32>
    %217 = tpu.matmul %216, %215, %cst_70 {dimension_numbers = #tpu.dot_dimension_numbers<[1], [0], [0], [1], [0, 0, 1, 1], [], []>} : vector<128x64xbf16>, vector<64x64xbf16>, vector<128x64xf32> -> vector<128x64xf32>
    %218 = arith.addf %210, %217 : vector<128x64xf32>
    %c7_i32_71 = arith.constant 7 : i32
    %219 = tpu.dynamic_rotate %203 by %c7_i32_71 dim 0 : vector<128x64xf32>, i32 -> vector<128x64xf32>
    %220 = vector.extract_strided_slice %0 {offsets = [0, 2], sizes = [128, 1], strides = [1, 1]} : vector<128x9xf32> to vector<128x1xf32>
    %221 = vector.broadcast %220 : vector<128x1xf32> to vector<128x64xf32>
    %222 = arith.mulf %219, %221 : vector<128x64xf32>
    %c416 = arith.constant 416 : index
    %c0_72 = arith.constant 0 : index
    %223 = vector.load %arg6[%c416, %c0_72] : memref<1152x64xbf16, #tpu.memory_space<vmem>>, vector<64x64xbf16>
    %224 = arith.truncf %222 : vector<128x64xf32> to vector<128x64xbf16>
    %cst_73 = arith.constant dense<0.000000e+00> : vector<128x64xf32>
    %225 = tpu.matmul %224, %223, %cst_73 {dimension_numbers = #tpu.dot_dimension_numbers<[1], [0], [0], [1], [0, 0, 1, 1], [], []>} : vector<128x64xbf16>, vector<64x64xbf16>, vector<128x64xf32> -> vector<128x64xf32>
    %226 = arith.addf %218, %225 : vector<128x64xf32>
    %c1_i32_74 = arith.constant 1 : i32
    %227 = tpu.dynamic_rotate %203 by %c1_i32_74 dim 0 : vector<128x64xf32>, i32 -> vector<128x64xf32>
    %228 = vector.extract_strided_slice %0 {offsets = [0, 3], sizes = [128, 1], strides = [1, 1]} : vector<128x9xf32> to vector<128x1xf32>
    %229 = vector.broadcast %228 : vector<128x1xf32> to vector<128x64xf32>
    %230 = arith.mulf %227, %229 : vector<128x64xf32>
    %c480 = arith.constant 480 : index
    %c0_75 = arith.constant 0 : index
    %231 = vector.load %arg6[%c480, %c0_75] : memref<1152x64xbf16, #tpu.memory_space<vmem>>, vector<64x64xbf16>
    %232 = arith.truncf %230 : vector<128x64xf32> to vector<128x64xbf16>
    %cst_76 = arith.constant dense<0.000000e+00> : vector<128x64xf32>
    %233 = tpu.matmul %232, %231, %cst_76 {dimension_numbers = #tpu.dot_dimension_numbers<[1], [0], [0], [1], [0, 0, 1, 1], [], []>} : vector<128x64xbf16>, vector<64x64xbf16>, vector<128x64xf32> -> vector<128x64xf32>
    %234 = arith.addf %226, %233 : vector<128x64xf32>
    %c544 = arith.constant 544 : index
    %c0_77 = arith.constant 0 : index
    %235 = vector.load %arg6[%c544, %c0_77] : memref<1152x64xbf16, #tpu.memory_space<vmem>>, vector<64x64xbf16>
    %236 = arith.truncf %203 : vector<128x64xf32> to vector<128x64xbf16>
    %cst_78 = arith.constant dense<0.000000e+00> : vector<128x64xf32>
    %237 = tpu.matmul %236, %235, %cst_78 {dimension_numbers = #tpu.dot_dimension_numbers<[1], [0], [0], [1], [0, 0, 1, 1], [], []>} : vector<128x64xbf16>, vector<64x64xbf16>, vector<128x64xf32> -> vector<128x64xf32>
    %238 = arith.addf %234, %237 : vector<128x64xf32>
    %c127_i32_79 = arith.constant 127 : i32
    %239 = tpu.dynamic_rotate %203 by %c127_i32_79 dim 0 : vector<128x64xf32>, i32 -> vector<128x64xf32>
    %240 = vector.extract_strided_slice %0 {offsets = [0, 5], sizes = [128, 1], strides = [1, 1]} : vector<128x9xf32> to vector<128x1xf32>
    %241 = vector.broadcast %240 : vector<128x1xf32> to vector<128x64xf32>
    %242 = arith.mulf %239, %241 : vector<128x64xf32>
    %c608 = arith.constant 608 : index
    %c0_80 = arith.constant 0 : index
    %243 = vector.load %arg6[%c608, %c0_80] : memref<1152x64xbf16, #tpu.memory_space<vmem>>, vector<64x64xbf16>
    %244 = arith.truncf %242 : vector<128x64xf32> to vector<128x64xbf16>
    %cst_81 = arith.constant dense<0.000000e+00> : vector<128x64xf32>
    %245 = tpu.matmul %244, %243, %cst_81 {dimension_numbers = #tpu.dot_dimension_numbers<[1], [0], [0], [1], [0, 0, 1, 1], [], []>} : vector<128x64xbf16>, vector<64x64xbf16>, vector<128x64xf32> -> vector<128x64xf32>
    %246 = arith.addf %238, %245 : vector<128x64xf32>
    %c121_i32_82 = arith.constant 121 : i32
    %247 = tpu.dynamic_rotate %203 by %c121_i32_82 dim 0 : vector<128x64xf32>, i32 -> vector<128x64xf32>
    %248 = vector.extract_strided_slice %0 {offsets = [0, 6], sizes = [128, 1], strides = [1, 1]} : vector<128x9xf32> to vector<128x1xf32>
    %249 = vector.broadcast %248 : vector<128x1xf32> to vector<128x64xf32>
    %250 = arith.mulf %247, %249 : vector<128x64xf32>
    %c672 = arith.constant 672 : index
    %c0_83 = arith.constant 0 : index
    %251 = vector.load %arg6[%c672, %c0_83] : memref<1152x64xbf16, #tpu.memory_space<vmem>>, vector<64x64xbf16>
    %252 = arith.truncf %250 : vector<128x64xf32> to vector<128x64xbf16>
    %cst_84 = arith.constant dense<0.000000e+00> : vector<128x64xf32>
    %253 = tpu.matmul %252, %251, %cst_84 {dimension_numbers = #tpu.dot_dimension_numbers<[1], [0], [0], [1], [0, 0, 1, 1], [], []>} : vector<128x64xbf16>, vector<64x64xbf16>, vector<128x64xf32> -> vector<128x64xf32>
    %254 = arith.addf %246, %253 : vector<128x64xf32>
    %c120_i32_85 = arith.constant 120 : i32
    %255 = tpu.dynamic_rotate %203 by %c120_i32_85 dim 0 : vector<128x64xf32>, i32 -> vector<128x64xf32>
    %256 = vector.extract_strided_slice %0 {offsets = [0, 7], sizes = [128, 1], strides = [1, 1]} : vector<128x9xf32> to vector<128x1xf32>
    %257 = vector.broadcast %256 : vector<128x1xf32> to vector<128x64xf32>
    %258 = arith.mulf %255, %257 : vector<128x64xf32>
    %c736 = arith.constant 736 : index
    %c0_86 = arith.constant 0 : index
    %259 = vector.load %arg6[%c736, %c0_86] : memref<1152x64xbf16, #tpu.memory_space<vmem>>, vector<64x64xbf16>
    %260 = arith.truncf %258 : vector<128x64xf32> to vector<128x64xbf16>
    %cst_87 = arith.constant dense<0.000000e+00> : vector<128x64xf32>
    %261 = tpu.matmul %260, %259, %cst_87 {dimension_numbers = #tpu.dot_dimension_numbers<[1], [0], [0], [1], [0, 0, 1, 1], [], []>} : vector<128x64xbf16>, vector<64x64xbf16>, vector<128x64xf32> -> vector<128x64xf32>
    %262 = arith.addf %254, %261 : vector<128x64xf32>
    %c119_i32_88 = arith.constant 119 : i32
    %263 = tpu.dynamic_rotate %203 by %c119_i32_88 dim 0 : vector<128x64xf32>, i32 -> vector<128x64xf32>
    %264 = vector.extract_strided_slice %0 {offsets = [0, 8], sizes = [128, 1], strides = [1, 1]} : vector<128x9xf32> to vector<128x1xf32>
    %265 = vector.broadcast %264 : vector<128x1xf32> to vector<128x64xf32>
    %266 = arith.mulf %263, %265 : vector<128x64xf32>
    %c800 = arith.constant 800 : index
    %c0_89 = arith.constant 0 : index
    %267 = vector.load %arg6[%c800, %c0_89] : memref<1152x64xbf16, #tpu.memory_space<vmem>>, vector<64x64xbf16>
    %268 = arith.truncf %266 : vector<128x64xf32> to vector<128x64xbf16>
    %cst_90 = arith.constant dense<0.000000e+00> : vector<128x64xf32>
    %269 = tpu.matmul %268, %267, %cst_90 {dimension_numbers = #tpu.dot_dimension_numbers<[1], [0], [0], [1], [0, 0, 1, 1], [], []>} : vector<128x64xbf16>, vector<64x64xbf16>, vector<128x64xf32> -> vector<128x64xf32>
    %270 = arith.addf %262, %269 : vector<128x64xf32>
    %271 = vector.broadcast %7 : vector<1x64xf32> to vector<128x64xf32>
    %272 = arith.addf %270, %271 : vector<128x64xf32>
    %273 = arith.truncf %1 : vector<128x32xf32> to vector<128x32xbf16>
    %c864 = arith.constant 864 : index
    %c0_91 = arith.constant 0 : index
    %274 = vector.load %arg6[%c864, %c0_91] : memref<1152x64xbf16, #tpu.memory_space<vmem>>, vector<32x64xbf16>
    %cst_92 = arith.constant dense<0.000000e+00> : vector<128x64xf32>
    %275 = tpu.matmul %273, %274, %cst_92 {dimension_numbers = #tpu.dot_dimension_numbers<[1], [0], [0], [1], [0, 0, 1, 1], [], []>} : vector<128x32xbf16>, vector<32x64xbf16>, vector<128x64xf32> -> vector<128x64xf32>
    %276 = vector.broadcast %8 : vector<1x64xf32> to vector<128x64xf32>
    %277 = arith.addf %275, %276 : vector<128x64xf32>
    %278 = arith.addf %277, %272 : vector<128x64xf32>
    %c32_93 = arith.constant 32 : index
    %c0_94 = arith.constant 0 : index
    %279 = vector.load %arg5[%c32_93, %c0_94] : memref<160x64xf32, #tpu.memory_space<vmem>>, vector<64x32xf32>
    %c128_95 = arith.constant 128 : index
    %c0_96 = arith.constant 0 : index
    %280 = vector.load %arg5[%c128_95, %c0_96] : memref<160x64xf32, #tpu.memory_space<vmem>>, vector<32x64xf32>
    %281 = vector.extract_strided_slice %278 {offsets = [0, 0], sizes = [64, 64], strides = [1, 1]} : vector<128x64xf32> to vector<64x64xf32>
    %cst_97 = arith.constant dense<0.000000e+00> : vector<64xf32>
    %282 = vector.multi_reduction <add>, %281, %cst_97 [0] : vector<64x64xf32> to vector<64xf32>
    %283 = vector.shape_cast %282 : vector<64xf32> to vector<1x64xf32>
    %284 = arith.mulf %281, %281 : vector<64x64xf32>
    %cst_98 = arith.constant dense<0.000000e+00> : vector<64xf32>
    %285 = vector.multi_reduction <add>, %284, %cst_98 [0] : vector<64x64xf32> to vector<64xf32>
    %286 = vector.shape_cast %285 : vector<64xf32> to vector<1x64xf32>
    %287 = tpu.concatenate %283, %286 in 0 : vector<1x64xf32>, vector<1x64xf32> -> vector<2x64xf32>
    %cst_99 = arith.constant dense<0.000000e+00> : vector<2x32xf32>
    %288 = tpu.matmul %287, %279, %cst_99 {dimension_numbers = #tpu.dot_dimension_numbers<[1], [0], [0], [1], [0, 0, 1, 1], [], []>} : vector<2x64xf32>, vector<64x32xf32>, vector<2x32xf32> -> vector<2x32xf32>
    %289 = vector.extract_strided_slice %288 {offsets = [0, 0], sizes = [1, 32], strides = [1, 1]} : vector<2x32xf32> to vector<1x32xf32>
    %cst_100 = arith.constant 7.812500e-03 : f32
    %290 = vector.broadcast %cst_100 : f32 to vector<1x32xf32>
    %291 = arith.mulf %289, %290 : vector<1x32xf32>
    %292 = vector.extract_strided_slice %288 {offsets = [1, 0], sizes = [1, 32], strides = [1, 1]} : vector<2x32xf32> to vector<1x32xf32>
    %cst_101 = arith.constant 7.812500e-03 : f32
    %293 = vector.broadcast %cst_101 : f32 to vector<1x32xf32>
    %294 = arith.mulf %292, %293 : vector<1x32xf32>
    %295 = arith.mulf %291, %291 : vector<1x32xf32>
    %296 = arith.subf %294, %295 : vector<1x32xf32>
    %cst_102 = arith.constant 9.99999997E-7 : f32
    %297 = vector.broadcast %cst_102 : f32 to vector<1x32xf32>
    %298 = arith.addf %296, %297 : vector<1x32xf32>
    %299 = math.rsqrt %298 : vector<1x32xf32>
    %300 = tpu.concatenate %291, %299 in 0 : vector<1x32xf32>, vector<1x32xf32> -> vector<2x32xf32>
    %cst_103 = arith.constant dense<0.000000e+00> : vector<2x64xf32>
    %301 = tpu.matmul %300, %280, %cst_103 {dimension_numbers = #tpu.dot_dimension_numbers<[1], [0], [0], [1], [0, 0, 1, 1], [], []>} : vector<2x32xf32>, vector<32x64xf32>, vector<2x64xf32> -> vector<2x64xf32>
    %302 = vector.extract_strided_slice %301 {offsets = [0, 0], sizes = [1, 64], strides = [1, 1]} : vector<2x64xf32> to vector<1x64xf32>
    %303 = vector.extract_strided_slice %301 {offsets = [1, 0], sizes = [1, 64], strides = [1, 1]} : vector<2x64xf32> to vector<1x64xf32>
    %304 = arith.mulf %303, %9 : vector<1x64xf32>
    %305 = arith.mulf %302, %304 : vector<1x64xf32>
    %306 = arith.subf %10, %305 : vector<1x64xf32>
    %307 = vector.broadcast %304 : vector<1x64xf32> to vector<64x64xf32>
    %308 = arith.mulf %281, %307 : vector<64x64xf32>
    %309 = vector.broadcast %306 : vector<1x64xf32> to vector<64x64xf32>
    %310 = arith.addf %308, %309 : vector<64x64xf32>
    %311 = vector.extract_strided_slice %278 {offsets = [64, 0], sizes = [64, 64], strides = [1, 1]} : vector<128x64xf32> to vector<64x64xf32>
    %cst_104 = arith.constant dense<0.000000e+00> : vector<64xf32>
    %312 = vector.multi_reduction <add>, %311, %cst_104 [0] : vector<64x64xf32> to vector<64xf32>
    %313 = vector.shape_cast %312 : vector<64xf32> to vector<1x64xf32>
    %314 = arith.mulf %311, %311 : vector<64x64xf32>
    %cst_105 = arith.constant dense<0.000000e+00> : vector<64xf32>
    %315 = vector.multi_reduction <add>, %314, %cst_105 [0] : vector<64x64xf32> to vector<64xf32>
    %316 = vector.shape_cast %315 : vector<64xf32> to vector<1x64xf32>
    %317 = tpu.concatenate %313, %316 in 0 : vector<1x64xf32>, vector<1x64xf32> -> vector<2x64xf32>
    %cst_106 = arith.constant dense<0.000000e+00> : vector<2x32xf32>
    %318 = tpu.matmul %317, %279, %cst_106 {dimension_numbers = #tpu.dot_dimension_numbers<[1], [0], [0], [1], [0, 0, 1, 1], [], []>} : vector<2x64xf32>, vector<64x32xf32>, vector<2x32xf32> -> vector<2x32xf32>
    %319 = vector.extract_strided_slice %318 {offsets = [0, 0], sizes = [1, 32], strides = [1, 1]} : vector<2x32xf32> to vector<1x32xf32>
    %cst_107 = arith.constant 7.812500e-03 : f32
    %320 = vector.broadcast %cst_107 : f32 to vector<1x32xf32>
    %321 = arith.mulf %319, %320 : vector<1x32xf32>
    %322 = vector.extract_strided_slice %318 {offsets = [1, 0], sizes = [1, 32], strides = [1, 1]} : vector<2x32xf32> to vector<1x32xf32>
    %cst_108 = arith.constant 7.812500e-03 : f32
    %323 = vector.broadcast %cst_108 : f32 to vector<1x32xf32>
    %324 = arith.mulf %322, %323 : vector<1x32xf32>
    %325 = arith.mulf %321, %321 : vector<1x32xf32>
    %326 = arith.subf %324, %325 : vector<1x32xf32>
    %cst_109 = arith.constant 9.99999997E-7 : f32
    %327 = vector.broadcast %cst_109 : f32 to vector<1x32xf32>
    %328 = arith.addf %326, %327 : vector<1x32xf32>
    %329 = math.rsqrt %328 : vector<1x32xf32>
    %330 = tpu.concatenate %321, %329 in 0 : vector<1x32xf32>, vector<1x32xf32> -> vector<2x32xf32>
    %cst_110 = arith.constant dense<0.000000e+00> : vector<2x64xf32>
    %331 = tpu.matmul %330, %280, %cst_110 {dimension_numbers = #tpu.dot_dimension_numbers<[1], [0], [0], [1], [0, 0, 1, 1], [], []>} : vector<2x32xf32>, vector<32x64xf32>, vector<2x64xf32> -> vector<2x64xf32>
    %332 = vector.extract_strided_slice %331 {offsets = [0, 0], sizes = [1, 64], strides = [1, 1]} : vector<2x64xf32> to vector<1x64xf32>
    %333 = vector.extract_strided_slice %331 {offsets = [1, 0], sizes = [1, 64], strides = [1, 1]} : vector<2x64xf32> to vector<1x64xf32>
    %334 = arith.mulf %333, %9 : vector<1x64xf32>
    %335 = arith.mulf %332, %334 : vector<1x64xf32>
    %336 = arith.subf %10, %335 : vector<1x64xf32>
    %337 = vector.broadcast %334 : vector<1x64xf32> to vector<64x64xf32>
    %338 = arith.mulf %311, %337 : vector<64x64xf32>
    %339 = vector.broadcast %336 : vector<1x64xf32> to vector<64x64xf32>
    %340 = arith.addf %338, %339 : vector<64x64xf32>
    %341 = tpu.concatenate %310, %340 in 0 : vector<64x64xf32>, vector<64x64xf32> -> vector<128x64xf32>
    %342 = arith.truncf %341 : vector<128x64xf32> to vector<128x64xbf16>
    %c896 = arith.constant 896 : index
    %c0_111 = arith.constant 0 : index
    %343 = vector.load %arg6[%c896, %c0_111] : memref<1152x64xbf16, #tpu.memory_space<vmem>>, vector<64x64xbf16>
    %cst_112 = arith.constant dense<0.000000e+00> : vector<128x64xf32>
    %344 = tpu.matmul %342, %343, %cst_112 {dimension_numbers = #tpu.dot_dimension_numbers<[1], [0], [0], [1], [0, 0, 1, 1], [], []>} : vector<128x64xbf16>, vector<64x64xbf16>, vector<128x64xf32> -> vector<128x64xf32>
    %345 = vector.broadcast %11 : vector<1x64xf32> to vector<128x64xf32>
    %346 = arith.addf %344, %345 : vector<128x64xf32>
    %c960 = arith.constant 960 : index
    %c0_113 = arith.constant 0 : index
    %347 = vector.load %arg6[%c960, %c0_113] : memref<1152x64xbf16, #tpu.memory_space<vmem>>, vector<64x64xbf16>
    %cst_114 = arith.constant dense<0.000000e+00> : vector<128x64xf32>
    %348 = tpu.matmul %342, %347, %cst_114 {dimension_numbers = #tpu.dot_dimension_numbers<[1], [0], [0], [1], [0, 0, 1, 1], [], []>} : vector<128x64xbf16>, vector<64x64xbf16>, vector<128x64xf32> -> vector<128x64xf32>
    %349 = vector.broadcast %12 : vector<1x64xf32> to vector<128x64xf32>
    %350 = arith.addf %348, %349 : vector<128x64xf32>
    %c1024 = arith.constant 1024 : index
    %c0_115 = arith.constant 0 : index
    %351 = vector.load %arg6[%c1024, %c0_115] : memref<1152x64xbf16, #tpu.memory_space<vmem>>, vector<64x64xbf16>
    %cst_116 = arith.constant dense<0.000000e+00> : vector<128x64xf32>
    %352 = tpu.matmul %342, %351, %cst_116 {dimension_numbers = #tpu.dot_dimension_numbers<[1], [0], [0], [1], [0, 0, 1, 1], [], []>} : vector<128x64xbf16>, vector<64x64xbf16>, vector<128x64xf32> -> vector<128x64xf32>
    %353 = vector.broadcast %13 : vector<1x64xf32> to vector<128x64xf32>
    %354 = arith.addf %352, %353 : vector<128x64xf32>
    %355 = arith.truncf %346 : vector<128x64xf32> to vector<128x64xbf16>
    %356 = arith.truncf %350 : vector<128x64xf32> to vector<128x64xbf16>
    %357 = arith.truncf %354 : vector<128x64xf32> to vector<128x64xbf16>
    %358 = vector.extract_strided_slice %355 {offsets = [0, 0], sizes = [64, 64], strides = [1, 1]} : vector<128x64xbf16> to vector<64x64xbf16>
    %359 = vector.extract_strided_slice %356 {offsets = [0, 0], sizes = [64, 64], strides = [1, 1]} : vector<128x64xbf16> to vector<64x64xbf16>
    %cst_117 = arith.constant dense<0.000000e+00> : vector<64x64xf32>
    %360 = tpu.matmul %358, %359, %cst_117 {dimension_numbers = #tpu.dot_dimension_numbers<[1], [1], [0], [0], [0, 0, 1, 0], [], []>} : vector<64x64xbf16>, vector<64x64xbf16>, vector<64x64xf32> -> vector<64x64xf32>
    %cst_118 = arith.constant 1.250000e-01 : f32
    %361 = vector.broadcast %cst_118 : f32 to vector<64x64xf32>
    %362 = arith.mulf %360, %361 : vector<64x64xf32>
    %cst_119 = arith.constant dense<0xFF800000> : vector<64xf32>
    %363 = vector.multi_reduction <maximumf>, %362, %cst_119 [1] : vector<64x64xf32> to vector<64xf32>
    %364 = vector.shape_cast %363 : vector<64xf32> to vector<64x1xf32>
    %365 = vector.broadcast %364 : vector<64x1xf32> to vector<64x64xf32>
    %366 = arith.subf %362, %365 : vector<64x64xf32>
    %367 = math.exp %366 : vector<64x64xf32>
    %cst_120 = arith.constant dense<0.000000e+00> : vector<64xf32>
    %368 = vector.multi_reduction <add>, %367, %cst_120 [1] : vector<64x64xf32> to vector<64xf32>
    %369 = vector.shape_cast %368 : vector<64xf32> to vector<64x1xf32>
    %370 = tpu.reciprocal %369 {approx = true} : vector<64x1xf32> -> vector<64x1xf32>
    %371 = vector.broadcast %370 : vector<64x1xf32> to vector<64x64xf32>
    %372 = arith.mulf %367, %371 : vector<64x64xf32>
    %373 = arith.truncf %372 : vector<64x64xf32> to vector<64x64xbf16>
    %374 = vector.extract_strided_slice %357 {offsets = [0, 0], sizes = [64, 64], strides = [1, 1]} : vector<128x64xbf16> to vector<64x64xbf16>
    %cst_121 = arith.constant dense<0.000000e+00> : vector<64x64xf32>
    %375 = tpu.matmul %373, %374, %cst_121 {dimension_numbers = #tpu.dot_dimension_numbers<[1], [0], [0], [1], [0, 0, 1, 1], [], []>} : vector<64x64xbf16>, vector<64x64xbf16>, vector<64x64xf32> -> vector<64x64xf32>
    %376 = vector.extract_strided_slice %355 {offsets = [64, 0], sizes = [64, 64], strides = [1, 1]} : vector<128x64xbf16> to vector<64x64xbf16>
    %377 = vector.extract_strided_slice %356 {offsets = [64, 0], sizes = [64, 64], strides = [1, 1]} : vector<128x64xbf16> to vector<64x64xbf16>
    %cst_122 = arith.constant dense<0.000000e+00> : vector<64x64xf32>
    %378 = tpu.matmul %376, %377, %cst_122 {dimension_numbers = #tpu.dot_dimension_numbers<[1], [1], [0], [0], [0, 0, 1, 0], [], []>} : vector<64x64xbf16>, vector<64x64xbf16>, vector<64x64xf32> -> vector<64x64xf32>
    %cst_123 = arith.constant 1.250000e-01 : f32
    %379 = vector.broadcast %cst_123 : f32 to vector<64x64xf32>
    %380 = arith.mulf %378, %379 : vector<64x64xf32>
    %cst_124 = arith.constant dense<0xFF800000> : vector<64xf32>
    %381 = vector.multi_reduction <maximumf>, %380, %cst_124 [1] : vector<64x64xf32> to vector<64xf32>
    %382 = vector.shape_cast %381 : vector<64xf32> to vector<64x1xf32>
    %383 = vector.broadcast %382 : vector<64x1xf32> to vector<64x64xf32>
    %384 = arith.subf %380, %383 : vector<64x64xf32>
    %385 = math.exp %384 : vector<64x64xf32>
    %cst_125 = arith.constant dense<0.000000e+00> : vector<64xf32>
    %386 = vector.multi_reduction <add>, %385, %cst_125 [1] : vector<64x64xf32> to vector<64xf32>
    %387 = vector.shape_cast %386 : vector<64xf32> to vector<64x1xf32>
    %388 = tpu.reciprocal %387 {approx = true} : vector<64x1xf32> -> vector<64x1xf32>
    %389 = vector.broadcast %388 : vector<64x1xf32> to vector<64x64xf32>
    %390 = arith.mulf %385, %389 : vector<64x64xf32>
    %391 = arith.truncf %390 : vector<64x64xf32> to vector<64x64xbf16>
    %392 = vector.extract_strided_slice %357 {offsets = [64, 0], sizes = [64, 64], strides = [1, 1]} : vector<128x64xbf16> to vector<64x64xbf16>
    %cst_126 = arith.constant dense<0.000000e+00> : vector<64x64xf32>
    %393 = tpu.matmul %391, %392, %cst_126 {dimension_numbers = #tpu.dot_dimension_numbers<[1], [0], [0], [1], [0, 0, 1, 1], [], []>} : vector<64x64xbf16>, vector<64x64xbf16>, vector<64x64xf32> -> vector<64x64xf32>
    %394 = tpu.concatenate %375, %393 in 0 : vector<64x64xf32>, vector<64x64xf32> -> vector<128x64xf32>
    %395 = arith.truncf %394 : vector<128x64xf32> to vector<128x64xbf16>
    %c1088 = arith.constant 1088 : index
    %c0_127 = arith.constant 0 : index
    %396 = vector.load %arg6[%c1088, %c0_127] : memref<1152x64xbf16, #tpu.memory_space<vmem>>, vector<64x64xbf16>
    %cst_128 = arith.constant dense<0.000000e+00> : vector<128x64xf32>
    %397 = tpu.matmul %395, %396, %cst_128 {dimension_numbers = #tpu.dot_dimension_numbers<[1], [0], [0], [1], [0, 0, 1, 1], [], []>} : vector<128x64xbf16>, vector<64x64xbf16>, vector<128x64xf32> -> vector<128x64xf32>
    %398 = vector.broadcast %14 : vector<1x64xf32> to vector<128x64xf32>
    %399 = arith.addf %397, %398 : vector<128x64xf32>
    %400 = arith.addf %278, %399 : vector<128x64xf32>
    %401 = vector.extract_strided_slice %400 {offsets = [0, 0], sizes = [64, 64], strides = [1, 1]} : vector<128x64xf32> to vector<64x64xf32>
    %c0_129 = arith.constant 0 : index
    %c0_130 = arith.constant 0 : index
    %c0_131 = arith.constant 0 : index
    %402 = vector.load %arg7[%c0_129, %c0_130, %c0_131] : memref<2x66x64xf32, #tpu.memory_space<vmem>>, vector<1x64x64xf32>
    %403 = vector.shape_cast %402 : vector<1x64x64xf32> to vector<64x64xf32>
    %404 = vector.shape_cast %401 : vector<64x64xf32> to vector<1x64x64xf32>
    tpu.vector_store %arg7[%c0_129, %c0_130, %c0_131], %404 {strides = array<i32>} : memref<2x66x64xf32, #tpu.memory_space<vmem>>, vector<1x64x64xf32>,
    %c0_132 = arith.constant 0 : index
    %c0_133 = arith.constant 0 : index
    %c0_134 = arith.constant 0 : index
    %405 = vector.load %arg2[%c0_132, %c0_133, %c0_134] : memref<2x2x64xf32, #tpu.memory_space<vmem>>, vector<1x2x64xf32>
    %406 = vector.shape_cast %405 : vector<1x2x64xf32> to vector<2x64xf32>
    %c0_135 = arith.constant 0 : index
    %c64_136 = arith.constant 64 : index
    %c0_137 = arith.constant 0 : index
    %407 = vector.load %arg7[%c0_135, %c64_136, %c0_137] : memref<2x66x64xf32, #tpu.memory_space<vmem>>, vector<1x2x64xf32>
    %408 = vector.shape_cast %407 : vector<1x2x64xf32> to vector<2x64xf32>
    %409 = vector.shape_cast %406 : vector<2x64xf32> to vector<1x2x64xf32>
    tpu.vector_store %arg7[%c0_135, %c64_136, %c0_137], %409 {strides = array<i32>} : memref<2x66x64xf32, #tpu.memory_space<vmem>>, vector<1x2x64xf32>,
    %410 = vector.extract_strided_slice %400 {offsets = [64, 0], sizes = [64, 64], strides = [1, 1]} : vector<128x64xf32> to vector<64x64xf32>
    %c1_138 = arith.constant 1 : index
    %c0_139 = arith.constant 0 : index
    %c0_140 = arith.constant 0 : index
    %411 = vector.load %arg7[%c1_138, %c0_139, %c0_140] : memref<2x66x64xf32, #tpu.memory_space<vmem>>, vector<1x64x64xf32>
    %412 = vector.shape_cast %411 : vector<1x64x64xf32> to vector<64x64xf32>
    %413 = vector.shape_cast %410 : vector<64x64xf32> to vector<1x64x64xf32>
    tpu.vector_store %arg7[%c1_138, %c0_139, %c0_140], %413 {strides = array<i32>} : memref<2x66x64xf32, #tpu.memory_space<vmem>>, vector<1x64x64xf32>,
    %c1_141 = arith.constant 1 : index
    %c0_142 = arith.constant 0 : index
    %c0_143 = arith.constant 0 : index
    %414 = vector.load %arg2[%c1_141, %c0_142, %c0_143] : memref<2x2x64xf32, #tpu.memory_space<vmem>>, vector<1x2x64xf32>
    %415 = vector.shape_cast %414 : vector<1x2x64xf32> to vector<2x64xf32>
    %c1_144 = arith.constant 1 : index
    %c64_145 = arith.constant 64 : index
    %c0_146 = arith.constant 0 : index
    %416 = vector.load %arg7[%c1_144, %c64_145, %c0_146] : memref<2x66x64xf32, #tpu.memory_space<vmem>>, vector<1x2x64xf32>
    %417 = vector.shape_cast %416 : vector<1x2x64xf32> to vector<2x64xf32>
    %418 = vector.shape_cast %415 : vector<2x64xf32> to vector<1x2x64xf32>
    tpu.vector_store %arg7[%c1_144, %c64_145, %c0_146], %418 {strides = array<i32>} : memref<2x66x64xf32, #tpu.memory_space<vmem>>, vector<1x2x64xf32>,
    return
  }
  func.func @transform_0(%arg0: i32) -> (i32, i32) {
    %c0_i32 = arith.constant 0 : i32
    %c0_i32_0 = arith.constant 0 : i32
    return %arg0, %c0_i32 : i32, i32
  }
  func.func @transform_1(%arg0: i32) -> (i32, i32, i32) {
    %c0_i32 = arith.constant 0 : i32
    %c0_i32_0 = arith.constant 0 : i32
    %c0_i32_1 = arith.constant 0 : i32
    return %arg0, %c0_i32, %c0_i32_0 : i32, i32, i32
  }
  func.func @transform_2(%arg0: i32) -> (i32, i32) {
    %c0_i32 = arith.constant 0 : i32
    %c0_i32_0 = arith.constant 0 : i32
    %c0_i32_1 = arith.constant 0 : i32
    return %c0_i32, %c0_i32_0 : i32, i32
  }
  func.func @transform_3(%arg0: i32) -> (i32, i32) {
    %c0_i32 = arith.constant 0 : i32
    %c0_i32_0 = arith.constant 0 : i32
    %c0_i32_1 = arith.constant 0 : i32
    return %c0_i32, %c0_i32_0 : i32, i32
  }
  func.func @transform_4(%arg0: i32) -> (i32, i32) {
    %c0_i32 = arith.constant 0 : i32
    %c0_i32_0 = arith.constant 0 : i32
    %c0_i32_1 = arith.constant 0 : i32
    return %c0_i32, %c0_i32_0 : i32, i32
  }
  func.func @transform_5(%arg0: i32) -> (i32, i32) {
    %c0_i32 = arith.constant 0 : i32
    %c0_i32_0 = arith.constant 0 : i32
    %c0_i32_1 = arith.constant 0 : i32
    return %c0_i32, %c0_i32_0 : i32, i32
  }
  func.func @transform_6(%arg0: i32) -> (i32, i32, i32) {
    %c0_i32 = arith.constant 0 : i32
    %c0_i32_0 = arith.constant 0 : i32
    %c0_i32_1 = arith.constant 0 : i32
    return %arg0, %c0_i32, %c0_i32_0 : i32, i32, i32
  }
}

</mosaic_0001>

<llo_original>
// kernel: tpu_custom_call.1
$region0: #{tpu_custom_call.1}
  #allocation0 [shape = 'u32[]', space=smem, size = 0x4, offset = 0x4, fixed_abs, tag = 'smem constant byte address 0x4 - core index']
  #allocation1 [shape = 'u32[144,128]{1,0:T(1,128)}', space=vmem, size = 0x12000, scoped, tag = 'internal scratch']
  %s0 = inlined_call_operand.vmem [shape: f32[256,32], index: 0, kind: input, shape index: {}]
  %s1 = inlined_call_operand.vmem [shape: f32[4,2,64], index: 1, kind: input, shape index: {}]
  %s2 = inlined_call_operand.vmem [shape: f32[128,9], index: 2, kind: input, shape index: {}]
  %s3 = inlined_call_operand.vmem [shape: f32[13,64], index: 3, kind: input, shape index: {}]
  %s4 = inlined_call_operand.vmem [shape: f32[160,64], index: 4, kind: input, shape index: {}]
  %s5 = inlined_call_operand.vmem [shape: bf16[1152,64], index: 5, kind: input, shape index: {}]
  %s6 = inlined_call_operand.vmem [shape: f32[4,66,64], index: 6, kind: output, shape index: {}]
  %s7 = sld [smem:[#allocation0]]
  $region57: #{tpu_custom_call.1} parent=0
    _
  %s9 = ssub.s32 1, %s7
  %s10 = scalar_select 0, %s9, %s7
  loop: start=0, step=1, limit=4
  $region2: #{tpu_custom_call.1} parent=0 // loop_pre_header
    _
  $region3: #{tpu_custom_call.1} parent=0 // loop_header
    %s12 = sphi 0, %s16
    %p13 = scmp.ge.s32.totalorder %s12, 4
    %s22 = sphi 0, %s24
    %s25 = sphi 0, %s22
    %s26 = sphi 0, %s25
    %s42 = sphi 0, %s26
    %s48 = sphi 0, %s50
    %s51 = sphi 0, %s48
    %s52 = sphi 0, %s51
    %s68 = sphi 0, %s52
    %s72 = sphi 0, %s72
    %s74 = sphi 0, %s72
    %s75 = sphi 0, %s74
    %s89 = sphi 0, %s75
    %s93 = sphi 0, %s93
    %s95 = sphi 0, %s93
    %s96 = sphi 0, %s95
    %s110 = sphi 0, %s96
    %s114 = sphi 0, %s114
    %s116 = sphi 0, %s114
    %s117 = sphi 0, %s116
    %s131 = sphi 0, %s117
    %s135 = sphi 0, %s135
    %s137 = sphi 0, %s135
    %s138 = sphi 0, %s137
    %s152 = sphi 0, %s138
    %s158 = sphi 0, %s160
    %s161 = sphi 0, %s158
    %s162 = sphi 0, %s161
    %s178 = sphi 0, %s162
  $region4: #{tpu_custom_call.1} parent=0 // loop_header_branch
    %15 = sbr.rel (%p13) target = $region8
  $region5: #{tpu_custom_call.1} parent=0 // loop_body
    %s17 = ssub.s32 %s12, 1
    %s18 = ssub.s32 %s12, 2
    %s19 = sadd.s32 %s12, 1
    %s20 = ssub.s32 %s12, %s19
    %p21 = scmp.eq.s32.totalorder %s20, 0
    %s23 = sadd.s32 %s22, 1
    %s24 = scalar_select %p21, %s22, %s23
    %p27 = pneg %p21
    %p28 = scmp.eq.s32.totalorder %s12, 1
    %p29 = por %p27, %p28
    %p30 = scmp.ne.s32.totalorder %s22, %s25
    %p31 = scmp.eq.s32.totalorder %s12, 0
    %p32 = por %p30, %p31
    %p33 = scmp.ne.s32.totalorder %s22, %s25
    %p34 = scmp.eq.s32.totalorder %s17, 1
    %p35 = por %p33, %p34
    %p36 = scmp.ne.s32.totalorder %s25, %s26
    %p37 = scmp.eq.s32.totalorder %s17, 0
    %p38 = por %p36, %p37
    %p39 = scmp.ne.s32.totalorder %s25, %s26
    %p40 = scmp.eq.s32.totalorder %s18, 1
    %p41 = por %p39, %p40
    %p43 = scmp.ne.s32.totalorder %s26, %s42
    %p44 = scmp.eq.s32.totalorder %s18, 0
    %p45 = por %p43, %p44
    %s46 = ssub.s32 %s12, %s19
    %p47 = scmp.eq.s32.totalorder %s46, 0
    %s49 = sadd.s32 %s48, 1
    %s50 = scalar_select %p47, %s48, %s49
    %p53 = pneg %p47
    %p54 = scmp.eq.s32.totalorder %s12, 1
    %p55 = por %p53, %p54
    %p56 = scmp.ne.s32.totalorder %s48, %s51
    %p57 = scmp.eq.s32.totalorder %s12, 0
    %p58 = por %p56, %p57
    %p59 = scmp.ne.s32.totalorder %s48, %s51
    %p60 = scmp.eq.s32.totalorder %s17, 1
    %p61 = por %p59, %p60
    %p62 = scmp.ne.s32.totalorder %s51, %s52
    %p63 = scmp.eq.s32.totalorder %s17, 0
    %p64 = por %p62, %p63
    %p65 = scmp.ne.s32.totalorder %s51, %s52
    %p66 = scmp.eq.s32.totalorder %s18, 1
    %p67 = por %p65, %p66
    %p69 = scmp.ne.s32.totalorder %s52, %s68
    %p70 = scmp.eq.s32.totalorder %s18, 0
    %p71 = por %p69, %p70
    %s73 = sadd.s32 %s72, 1
    %p76 = scmp.eq.s32.totalorder %s12, 1
    %p77 = scmp.ne.s32.totalorder %s72, %s74
    %p78 = scmp.eq.s32.totalorder %s12, 0
    %p79 = por %p77, %p78
    %p80 = scmp.ne.s32.totalorder %s72, %s74
    %p81 = scmp.eq.s32.totalorder %s17, 1
    %p82 = por %p80, %p81
    %p83 = scmp.ne.s32.totalorder %s74, %s75
    %p84 = scmp.eq.s32.totalorder %s17, 0
    %p85 = por %p83, %p84
    %p86 = scmp.ne.s32.totalorder %s74, %s75
    %p87 = scmp.eq.s32.totalorder %s18, 1
    %p88 = por %p86, %p87
    %p90 = scmp.ne.s32.totalorder %s75, %s89
    %p91 = scmp.eq.s32.totalorder %s18, 0
    %p92 = por %p90, %p91
    %s94 = sadd.s32 %s93, 1
    %p97 = scmp.eq.s32.totalorder %s12, 1
    %p98 = scmp.ne.s32.totalorder %s93, %s95
    %p99 = scmp.eq.s32.totalorder %s12, 0
    %p100 = por %p98, %p99
    %p101 = scmp.ne.s32.totalorder %s93, %s95
    %p102 = scmp.eq.s32.totalorder %s17, 1
    %p103 = por %p101, %p102
    %p104 = scmp.ne.s32.totalorder %s95, %s96
    %p105 = scmp.eq.s32.totalorder %s17, 0
    %p106 = por %p104, %p105
    %p107 = scmp.ne.s32.totalorder %s95, %s96
    %p108 = scmp.eq.s32.totalorder %s18, 1
    %p109 = por %p107, %p108
    %p111 = scmp.ne.s32.totalorder %s96, %s110
    %p112 = scmp.eq.s32.totalorder %s18, 0
    %p113 = por %p111, %p112
    %s115 = sadd.s32 %s114, 1
    %p118 = scmp.eq.s32.totalorder %s12, 1
    %p119 = scmp.ne.s32.totalorder %s114, %s116
    %p120 = scmp.eq.s32.totalorder %s12, 0
    %p121 = por %p119, %p120
    %p122 = scmp.ne.s32.totalorder %s114, %s116
    %p123 = scmp.eq.s32.totalorder %s17, 1
    %p124 = por %p122, %p123
    %p125 = scmp.ne.s32.totalorder %s116, %s117
    %p126 = scmp.eq.s32.totalorder %s17, 0
    %p127 = por %p125, %p126
    %p128 = scmp.ne.s32.totalorder %s116, %s117
    %p129 = scmp.eq.s32.totalorder %s18, 1
    %p130 = por %p128, %p129
    %p132 = scmp.ne.s32.totalorder %s117, %s131
    %p133 = scmp.eq.s32.totalorder %s18, 0
    %p134 = por %p132, %p133
    %s136 = sadd.s32 %s135, 1
    %p139 = scmp.eq.s32.totalorder %s12, 1
    %p140 = scmp.ne.s32.totalorder %s135, %s137
    %p141 = scmp.eq.s32.totalorder %s12, 0
    %p142 = por %p140, %p141
    %p143 = scmp.ne.s32.totalorder %s135, %s137
    %p144 = scmp.eq.s32.totalorder %s17, 1
    %p145 = por %p143, %p144
    %p146 = scmp.ne.s32.totalorder %s137, %s138
    %p147 = scmp.eq.s32.totalorder %s17, 0
    %p148 = por %p146, %p147
    %p149 = scmp.ne.s32.totalorder %s137, %s138
    %p150 = scmp.eq.s32.totalorder %s18, 1
    %p151 = por %p149, %p150
    %p153 = scmp.ne.s32.totalorder %s138, %s152
    %p154 = scmp.eq.s32.totalorder %s18, 0
    %p155 = por %p153, %p154
    %s156 = ssub.s32 %s12, %s19
    %p157 = scmp.eq.s32.totalorder %s156, 0
    %s159 = sadd.s32 %s158, 1
    %s160 = scalar_select %p157, %s158, %s159
    %p163 = pneg %p157
    %p164 = scmp.eq.s32.totalorder %s12, 1
    %p165 = por %p163, %p164
    %p166 = scmp.ne.s32.totalorder %s158, %s161
    %p167 = scmp.eq.s32.totalorder %s12, 0
    %p168 = por %p166, %p167
    %p169 = scmp.ne.s32.totalorder %s158, %s161
    %p170 = scmp.eq.s32.totalorder %s17, 1
    %p171 = por %p169, %p170
    %p172 = scmp.ne.s32.totalorder %s161, %s162
    %p173 = scmp.eq.s32.totalorder %s17, 0
    %p174 = por %p172, %p173
    %p175 = scmp.ne.s32.totalorder %s161, %s162
    %p176 = scmp.eq.s32.totalorder %s18, 1
    %p177 = por %p175, %p176
    %p179 = scmp.ne.s32.totalorder %s162, %s178
    %p180 = scmp.eq.s32.totalorder %s18, 0
    %p181 = por %p179, %p180
    %p182 = scmp.le.s32.totalorder 1, %s12
    %p183 = scmp.lt.s32.totalorder %s12, 3
    %p184 = pnand %p182, %p183
    %p185 = pneg %p184
    // Predicated region
    $region9: #{tpu_custom_call.1} parent=5 // pred_check
      _
    $region10: #{tpu_custom_call.1} parent=5 // pred_check_branch
      %187 = sbr.rel (%p184) target = $region12
    $region11: #{tpu_custom_call.1} parent=5 // pred_region
      %s188 = ssub.s32 %s12, 1
      // Predicated region
      $region13: #{tpu_custom_call.1} parent=11 // pred_check
        %p189 = pneg %p85
      $region14: #{tpu_custom_call.1} parent=11 // pred_check_branch
        %191 = sbr.rel (%p189) target = $region16
      $region15: #{tpu_custom_call.1} parent=11 // pred_region
        _
      $region16: #{tpu_custom_call.1} parent=11 // pred_fallthru
        _
      // Predicated region
      $region17: #{tpu_custom_call.1} parent=11 // pred_check
        %p192 = pneg %p106
      $region18: #{tpu_custom_call.1} parent=11 // pred_check_branch
        %194 = sbr.rel (%p192) target = $region20
      $region19: #{tpu_custom_call.1} parent=11 // pred_region
        _
      $region20: #{tpu_custom_call.1} parent=11 // pred_fallthru
        _
      // Predicated region
      $region21: #{tpu_custom_call.1} parent=11 // pred_check
        %p195 = pneg %p127
      $region22: #{tpu_custom_call.1} parent=11 // pred_check_branch
        %197 = sbr.rel (%p195) target = $region24
      $region23: #{tpu_custom_call.1} parent=11 // pred_region
        _
      $region24: #{tpu_custom_call.1} parent=11 // pred_fallthru
        _
      // Predicated region
      $region25: #{tpu_custom_call.1} parent=11 // pred_check
        %p198 = pneg %p148
      $region26: #{tpu_custom_call.1} parent=11 // pred_check_branch
        %200 = sbr.rel (%p198) target = $region28
      $region27: #{tpu_custom_call.1} parent=11 // pred_region
        _
      $region28: #{tpu_custom_call.1} parent=11 // pred_fallthru
        _
    $region12: #{tpu_custom_call.1} parent=5 // pred_fallthru
      _
    %p201 = scmp.lt.s32.totalorder %s12, 2
    // Predicated region
    $region29: #{tpu_custom_call.1} parent=5 // pred_check
      %p202 = pneg %p201
    $region30: #{tpu_custom_call.1} parent=5 // pred_check_branch
      %204 = sbr.rel (%p202) target = $region32
    $region31: #{tpu_custom_call.1} parent=5 // pred_region
      // Predicated region
      $region33: #{tpu_custom_call.1} parent=31 // pred_check
        %p205 = pneg %p32
      $region34: #{tpu_custom_call.1} parent=31 // pred_check_branch
        %207 = sbr.rel (%p205) target = $region36
      $region35: #{tpu_custom_call.1} parent=31 // pred_region
        %s208 = smul.u32 16, %s12
        %p209 = scmp.lt.s32.totalorder %s208, 31
        %s210 = scalar_select %p209, %s208, 31
        %s211 = smul.addr %s210, 8
        %s212 = scalar_lea.vmem %s0, %s211
        %s213 = smul.u32 16, %s12
      $region36: #{tpu_custom_call.1} parent=31 // pred_fallthru
        _
      // Predicated region
      $region37: #{tpu_custom_call.1} parent=31 // pred_check
        %p214 = pneg %p58
      $region38: #{tpu_custom_call.1} parent=31 // pred_check_branch
        %216 = sbr.rel (%p214) target = $region40
      $region39: #{tpu_custom_call.1} parent=31 // pred_region
        %s217 = smul.u32 2, %s12
        %p218 = scmp.lt.s32.totalorder %s217, 3
        %s219 = scalar_select %p218, %s217, 3
        %s220 = smul.addr %s219, 2
        %s221 = scalar_lea.vmem %s1, %s220
        %s222 = smul.u32 2, %s12
      $region40: #{tpu_custom_call.1} parent=31 // pred_fallthru
        _
    $region32: #{tpu_custom_call.1} parent=5 // pred_fallthru
      _
    %p223 = scmp.le.s32.totalorder 1, %s12
    %p224 = scmp.lt.s32.totalorder %s12, 3
    %p225 = pnand %p223, %p224
    %p226 = pneg %p225
    // Predicated region
    $region41: #{tpu_custom_call.1} parent=5 // pred_check
      _
    $region42: #{tpu_custom_call.1} parent=5 // pred_check_branch
      %228 = sbr.rel (%p225) target = $region44
    $region43: #{tpu_custom_call.1} parent=5 // pred_region
      %s229 = ssub.s32 %s12, 1
      %s230 = smul.u32 16, %s17
      %p231 = scmp.lt.s32.totalorder %s230, 31
      %s232 = scalar_select %p231, %s230, 31
      %s233 = smul.addr %s232, 8
      %s234 = scalar_lea.vmem %s0, %s233
      %p235 = pneg %p38
      %p236 = pneg %p35
      %s237 = smul.u32 2, %s17
      %p238 = scmp.lt.s32.totalorder %s237, 3
      %s239 = scalar_select %p238, %s237, 3
      %s240 = smul.addr %s239, 2
      %s241 = scalar_lea.vmem %s1, %s240
      %p242 = pneg %p64
      %p243 = pneg %p61
      %p244 = pneg %p85
      %p245 = pneg %p82
      %p246 = pneg %p106
      %p247 = pneg %p103
      %p248 = pneg %p127
      %p249 = pneg %p124
      %p250 = pneg %p148
      %p251 = pneg %p145
      %p252 = pneg %p174
      %p253 = pneg %p171
      %s254 = smul.u32 2, %s17
      %p255 = scmp.lt.s32.totalorder %s254, 3
      %s256 = scalar_select %p255, %s254, 3
      %s257 = smul.addr %s256, 9
      %s258 = smul.addr %s257, 8
      %s259 = scalar_lea.vmem %s6, %s258
      %s260 = smul.u32 16, %s17
      %p261 = scmp.lt.s32.totalorder %s260, 31
      %s262 = scalar_select %p261, %s260, 31
      %s263 = smul.addr %s262, 8
      %s264 = scalar_lea.vmem %s0, %s263
      %s265 = smul.u32 16, %s17
      %s266 = smul.u32 2, %s17
      %p267 = scmp.lt.s32.totalorder %s266, 3
      %s268 = scalar_select %p267, %s266, 3
      %s269 = smul.addr %s268, 2
      %s270 = scalar_lea.vmem %s1, %s269
      %s271 = smul.u32 2, %s17
      %s272 = smul.u32 2, %s17
      %p273 = scmp.lt.s32.totalorder %s272, 3
      %s274 = scalar_select %p273, %s272, 3
      %s275 = smul.addr %s274, 9
      %s276 = smul.addr %s275, 8
      %s277 = scalar_lea.vmem %s6, %s276
      %s278 = smul.u32 2, %s17
      %v280 = vld [vmem:[%s2] sm:$0xff]
      %v281 = vld [vmem:[%s2 + $0x8] sm:$0xff]
      %v282 = vld [vmem:[%s2 + $0x10] sm:$0xff]
      %v283 = vld [vmem:[%s2 + $0x18] sm:$0xff]
      %v284 = vld [vmem:[%s2 + $0x20] sm:$0xff]
      %v285 = vld [vmem:[%s2 + $0x28] sm:$0xff]
      %v286 = vld [vmem:[%s2 + $0x30] sm:$0xff]
      %v287 = vld [vmem:[%s2 + $0x38] sm:$0xff]
      %v288 = vld [vmem:[%s2 + $0x40] sm:$0xff]
      %v289 = vld [vmem:[%s2 + $0x48] sm:$0xff]
      %v290 = vld [vmem:[%s2 + $0x50] sm:$0xff]
      %v291 = vld [vmem:[%s2 + $0x58] sm:$0xff]
      %v292 = vld [vmem:[%s2 + $0x60] sm:$0xff]
      %v293 = vld [vmem:[%s2 + $0x68] sm:$0xff]
      %v294 = vld [vmem:[%s2 + $0x70] sm:$0xff]
      %v295 = vld [vmem:[%s2 + $0x78] sm:$0xff]
      %v296 = vld [vmem:[%s264] sm:$0xff]
      %v297 = vld [vmem:[%s264 + $0x8] sm:$0xff]
      %v298 = vld [vmem:[%s264 + $0x10] sm:$0xff]
      %v299 = vld [vmem:[%s264 + $0x18] sm:$0xff]
      %v300 = vld [vmem:[%s264 + $0x20] sm:$0xff]
      %v301 = vld [vmem:[%s264 + $0x28] sm:$0xff]
      %v302 = vld [vmem:[%s264 + $0x30] sm:$0xff]
      %v303 = vld [vmem:[%s264 + $0x38] sm:$0xff]
      %v304 = vld [vmem:[%s264 + $0x40] sm:$0xff]
      %v305 = vld [vmem:[%s264 + $0x48] sm:$0xff]
      %v306 = vld [vmem:[%s264 + $0x50] sm:$0xff]
      %v307 = vld [vmem:[%s264 + $0x58] sm:$0xff]
      %v308 = vld [vmem:[%s264 + $0x60] sm:$0xff]
      %v309 = vld [vmem:[%s264 + $0x68] sm:$0xff]
      %v310 = vld [vmem:[%s264 + $0x70] sm:$0xff]
      %v311 = vld [vmem:[%s264 + $0x78] sm:$0xff]
      %v312 = vld [vmem:[%s3] sm:$0x1]
      %v313 = vld [vmem:[%s3 + $0x1] sm:$0x1]
      %v314 = vld [vmem:[%s3 + $0x2] sm:$0x1]
      %v315 = vld [vmem:[%s3 + $0x3] sm:$0x1]
      %v316 = vld [vmem:[%s3 + $0x4] sm:$0x1]
      %v317 = vld [vmem:[%s3 + $0x5] sm:$0x1]
      %v318 = vld [vmem:[%s3 + $0x6] sm:$0x1]
      %v319 = vld [vmem:[%s3 + $0x7] sm:$0x1]
      %v320 = vld [vmem:[%s3 + $0x8] sm:$0x1]
      %v321 = vld [vmem:[%s3 + $0x9] sm:$0x1]
      %v322 = vld [vmem:[%s3 + $0xa] sm:$0x1]
      %v323 = vld [vmem:[%s3 + $0xb] sm:$0x1]
      %v324 = vld [vmem:[%s3 + $0xc] sm:$0x1]
      %vm325 = vcmask 261120
      %v326 = vsel %vm325, %v296, 0.0
      %v327 = vsel %vm325, %v297, 0.0
      %v328 = vadd.f32 %v326, %v327
      %v329 = vsel %vm325, %v298, 0.0
      %v330 = vadd.f32 %v328, %v329
      %v331 = vsel %vm325, %v299, 0.0
      %v332 = vadd.f32 %v330, %v331
      %v333 = vsel %vm325, %v300, 0.0
      %v334 = vadd.f32 %v332, %v333
      %v335 = vsel %vm325, %v301, 0.0
      %v336 = vadd.f32 %v334, %v335
      %v337 = vsel %vm325, %v302, 0.0
      %v338 = vadd.f32 %v336, %v337
      %v339 = vsel %vm325, %v303, 0.0
      %v340 = vadd.f32 %v338, %v339
      %v341 = vrot.slane %v340, 4
      %v342 = vadd.f32 %v340, %v341
      %v343 = vrot.slane %v342, 2
      %v344 = vadd.f32 %v342, %v343
      %v345 = vrot.slane %v344, 1
      %v346 = vadd.f32 %v344, %v345
      %v347 = vmul.f32 %v296, %v296
      %v348 = vmul.f32 %v297, %v297
      %v349 = vmul.f32 %v298, %v298
      %v350 = vmul.f32 %v299, %v299
      %v351 = vmul.f32 %v300, %v300
      %v352 = vmul.f32 %v301, %v301
      %v353 = vmul.f32 %v302, %v302
      %v354 = vmul.f32 %v303, %v303
      %v355 = vsel %vm325, %v347, 0.0
      %v356 = vsel %vm325, %v348, 0.0
      %v357 = vadd.f32 %v355, %v356
      %v358 = vsel %vm325, %v349, 0.0
      %v359 = vadd.f32 %v357, %v358
      %v360 = vsel %vm325, %v350, 0.0
      %v361 = vadd.f32 %v359, %v360
      %v362 = vsel %vm325, %v351, 0.0
      %v363 = vadd.f32 %v361, %v362
      %v364 = vsel %vm325, %v352, 0.0
      %v365 = vadd.f32 %v363, %v364
      %v366 = vsel %vm325, %v353, 0.0
      %v367 = vadd.f32 %v365, %v366
      %v368 = vsel %vm325, %v354, 0.0
      %v369 = vadd.f32 %v367, %v368
      %v370 = vrot.slane %v369, 4
      %v371 = vadd.f32 %v369, %v370
      %v372 = vrot.slane %v371, 2
      %v373 = vadd.f32 %v371, %v372
      %v374 = vrot.slane %v373, 1
      %v375 = vadd.f32 %v373, %v374
      %v376 = vmul.f32 %v346, 0.015625
      %v377 = vmul.f32 %v375, 0.015625
      %v378 = vmul.f32 %v376, %v376
      %v379 = vsub.f32 %v377, %v378
      %v380 = vadd.f32 %v379, 1e-06
      %v381 = vrsqrt.pop %v380
      %v382 = vmul.f32 %v381, %v312
      %v383 = vmul.f32 %v376, %v382
      %v384 = vsub.f32 %v313, %v383
      %v385 = vlaneseq
      %v386 = vshrl.u32 %v385, 7
      %v387 = vsub.s32 0, %v386
      %v388 = vrot.slane %v382, %v387
      %v389 = vmul.f32 %v296, %v388
      %v390 = vmul.f32 %v297, %v388
      %v391 = vmul.f32 %v298, %v388
      %v392 = vmul.f32 %v299, %v388
      %v393 = vmul.f32 %v300, %v388
      %v394 = vmul.f32 %v301, %v388
      %v395 = vmul.f32 %v302, %v388
      %v396 = vmul.f32 %v303, %v388
      %v397 = vlaneseq
      %v398 = vshrl.u32 %v397, 7
      %v399 = vsub.s32 0, %v398
      %v400 = vrot.slane %v384, %v399
      %v401 = vadd.f32 %v389, %v400
      %v402 = vadd.f32 %v390, %v400
      %v403 = vadd.f32 %v391, %v400
      %v404 = vadd.f32 %v392, %v400
      %v405 = vadd.f32 %v393, %v400
      %v406 = vadd.f32 %v394, %v400
      %v407 = vadd.f32 %v395, %v400
      %v408 = vadd.f32 %v396, %v400
      %v409 = vsel %vm325, %v304, 0.0
      %v410 = vsel %vm325, %v305, 0.0
      %v411 = vadd.f32 %v409, %v410
      %v412 = vsel %vm325, %v306, 0.0
      %v413 = vadd.f32 %v411, %v412
      %v414 = vsel %vm325, %v307, 0.0
      %v415 = vadd.f32 %v413, %v414
      %v416 = vsel %vm325, %v308, 0.0
      %v417 = vadd.f32 %v415, %v416
      %v418 = vsel %vm325, %v309, 0.0
      %v419 = vadd.f32 %v417, %v418
      %v420 = vsel %vm325, %v310, 0.0
      %v421 = vadd.f32 %v419, %v420
      %v422 = vsel %vm325, %v311, 0.0
      %v423 = vadd.f32 %v421, %v422
      %v424 = vrot.slane %v423, 4
      %v425 = vadd.f32 %v423, %v424
      %v426 = vrot.slane %v425, 2
      %v427 = vadd.f32 %v425, %v426
      %v428 = vrot.slane %v427, 1
      %v429 = vadd.f32 %v427, %v428
      %v430 = vmul.f32 %v304, %v304
      %v431 = vmul.f32 %v305, %v305
      %v432 = vmul.f32 %v306, %v306
      %v433 = vmul.f32 %v307, %v307
      %v434 = vmul.f32 %v308, %v308
      %v435 = vmul.f32 %v309, %v309
      %v436 = vmul.f32 %v310, %v310
      %v437 = vmul.f32 %v311, %v311
      %v438 = vsel %vm325, %v430, 0.0
      %v439 = vsel %vm325, %v431, 0.0
      %v440 = vadd.f32 %v438, %v439
      %v441 = vsel %vm325, %v432, 0.0
      %v442 = vadd.f32 %v440, %v441
      %v443 = vsel %vm325, %v433, 0.0
      %v444 = vadd.f32 %v442, %v443
      %v445 = vsel %vm325, %v434, 0.0
      %v446 = vadd.f32 %v444, %v445
      %v447 = vsel %vm325, %v435, 0.0
      %v448 = vadd.f32 %v446, %v447
      %v449 = vsel %vm325, %v436, 0.0
      %v450 = vadd.f32 %v448, %v449
      %v451 = vsel %vm325, %v437, 0.0
      %v452 = vadd.f32 %v450, %v451
      %v453 = vrot.slane %v452, 4
      %v454 = vadd.f32 %v452, %v453
      %v455 = vrot.slane %v454, 2
      %v456 = vadd.f32 %v454, %v455
      %v457 = vrot.slane %v456, 1
      %v458 = vadd.f32 %v456, %v457
      %v459 = vmul.f32 %v429, 0.015625
      %v460 = vmul.f32 %v458, 0.015625
      %v461 = vmul.f32 %v459, %v459
      %v462 = vsub.f32 %v460, %v461
      %v463 = vadd.f32 %v462, 1e-06
      %v464 = vrsqrt.pop %v463
      %v465 = vmul.f32 %v464, %v312
      %v466 = vmul.f32 %v459, %v465
      %v467 = vsub.f32 %v313, %v466
      %v468 = vlaneseq
      %v469 = vshrl.u32 %v468, 7
      %v470 = vsub.s32 0, %v469
      %v471 = vrot.slane %v465, %v470
      %v472 = vmul.f32 %v304, %v471
      %v473 = vmul.f32 %v305, %v471
      %v474 = vmul.f32 %v306, %v471
      %v475 = vmul.f32 %v307, %v471
      %v476 = vmul.f32 %v308, %v471
      %v477 = vmul.f32 %v309, %v471
      %v478 = vmul.f32 %v310, %v471
      %v479 = vmul.f32 %v311, %v471
      %v480 = vlaneseq
      %v481 = vshrl.u32 %v480, 7
      %v482 = vsub.s32 0, %v481
      %v483 = vrot.slane %v467, %v482
      %v484 = vadd.f32 %v472, %v483
      %v485 = vadd.f32 %v473, %v483
      %v486 = vadd.f32 %v474, %v483
      %v487 = vadd.f32 %v475, %v483
      %v488 = vadd.f32 %v476, %v483
      %v489 = vadd.f32 %v477, %v483
      %v490 = vadd.f32 %v478, %v483
      %v491 = vadd.f32 %v479, %v483
      %v492 = vxor.u32 %v401, 2147483648
      %v493 = vxor.u32 %v402, 2147483648
      %v494 = vxor.u32 %v403, 2147483648
      %v495 = vxor.u32 %v404, 2147483648
      %v496 = vxor.u32 %v405, 2147483648
      %v497 = vxor.u32 %v406, 2147483648
      %v498 = vxor.u32 %v407, 2147483648
      %v499 = vxor.u32 %v408, 2147483648
      %v500 = vxor.u32 %v484, 2147483648
      %v501 = vxor.u32 %v485, 2147483648
      %v502 = vxor.u32 %v486, 2147483648
      %v503 = vxor.u32 %v487, 2147483648
      %v504 = vxor.u32 %v488, 2147483648
      %v505 = vxor.u32 %v489, 2147483648
      %v506 = vxor.u32 %v490, 2147483648
      %v507 = vxor.u32 %v491, 2147483648
      %v508 = vmul.f32 %v492, 1.442695
      %v509 = vpow.pop %v508
      %v510 = vmul.f32 %v493, 1.442695
      %v511 = vpow.pop %v510
      %v512 = vmul.f32 %v494, 1.442695
      %v513 = vpow.pop %v512
      %v514 = vmul.f32 %v495, 1.442695
      %v515 = vpow.pop %v514
      %v516 = vmul.f32 %v496, 1.442695
      %v517 = vpow.pop %v516
      %v518 = vmul.f32 %v497, 1.442695
      %v519 = vpow.pop %v518
      %v520 = vmul.f32 %v498, 1.442695
      %v521 = vpow.pop %v520
      %v522 = vmul.f32 %v499, 1.442695
      %v523 = vpow.pop %v522
      %v524 = vmul.f32 %v500, 1.442695
      %v525 = vpow.pop %v524
      %v526 = vmul.f32 %v501, 1.442695
      %v527 = vpow.pop %v526
      %v528 = vmul.f32 %v502, 1.442695
      %v529 = vpow.pop %v528
      %v530 = vmul.f32 %v503, 1.442695
      %v531 = vpow.pop %v530
      %v532 = vmul.f32 %v504, 1.442695
      %v533 = vpow.pop %v532
      %v534 = vmul.f32 %v505, 1.442695
      %v535 = vpow.pop %v534
      %v536 = vmul.f32 %v506, 1.442695
      %v537 = vpow.pop %v536
      %v538 = vmul.f32 %v507, 1.442695
      %v539 = vpow.pop %v538
      %v540 = vadd.f32 %v509, 1.0
      %v541 = vadd.f32 %v511, 1.0
      %v542 = vadd.f32 %v513, 1.0
      %v543 = vadd.f32 %v515, 1.0
      %v544 = vadd.f32 %v517, 1.0
      %v545 = vadd.f32 %v519, 1.0
      %v546 = vadd.f32 %v521, 1.0
      %v547 = vadd.f32 %v523, 1.0
      %v548 = vadd.f32 %v525, 1.0
      %v549 = vadd.f32 %v527, 1.0
      %v550 = vadd.f32 %v529, 1.0
      %v551 = vadd.f32 %v531, 1.0
      %v552 = vadd.f32 %v533, 1.0
      %v553 = vadd.f32 %v535, 1.0
      %v554 = vadd.f32 %v537, 1.0
      %v555 = vadd.f32 %v539, 1.0
      %v556 = vrcp.pop %v540
      %v557 = vmul.f32 1.0, %v556
      %v558 = vrcp.pop %v541
      %v559 = vmul.f32 1.0, %v558
      %v560 = vrcp.pop %v542
      %v561 = vmul.f32 1.0, %v560
      %v562 = vrcp.pop %v543
      %v563 = vmul.f32 1.0, %v562
      %v564 = vrcp.pop %v544
      %v565 = vmul.f32 1.0, %v564
      %v566 = vrcp.pop %v545
      %v567 = vmul.f32 1.0, %v566
      %v568 = vrcp.pop %v546
      %v569 = vmul.f32 1.0, %v568
      %v570 = vrcp.pop %v547
      %v571 = vmul.f32 1.0, %v570
      %v572 = vrcp.pop %v548
      %v573 = vmul.f32 1.0, %v572
      %v574 = vrcp.pop %v549
      %v575 = vmul.f32 1.0, %v574
      %v576 = vrcp.pop %v550
      %v577 = vmul.f32 1.0, %v576
      %v578 = vrcp.pop %v551
      %v579 = vmul.f32 1.0, %v578
      %v580 = vrcp.pop %v552
      %v581 = vmul.f32 1.0, %v580
      %v582 = vrcp.pop %v553
      %v583 = vmul.f32 1.0, %v582
      %v584 = vrcp.pop %v554
      %v585 = vmul.f32 1.0, %v584
      %v586 = vrcp.pop %v555
      %v587 = vmul.f32 1.0, %v586
      %v588 = vmul.f32 %v401, %v557
      %v589 = vmul.f32 %v402, %v559
      %v590 = vmul.f32 %v403, %v561
      %v591 = vmul.f32 %v404, %v563
      %v592 = vmul.f32 %v405, %v565
      %v593 = vmul.f32 %v406, %v567
      %v594 = vmul.f32 %v407, %v569
      %v595 = vmul.f32 %v408, %v571
      %v596 = vmul.f32 %v484, %v573
      %v597 = vmul.f32 %v485, %v575
      %v598 = vmul.f32 %v486, %v577
      %v599 = vmul.f32 %v487, %v579
      %v600 = vmul.f32 %v488, %v581
      %v601 = vmul.f32 %v489, %v583
      %v602 = vmul.f32 %v490, %v585
      %v603 = vmul.f32 %v491, %v587
      %v604 = vrot.slane %v588, 7
      %v605 = vrot.slane %v589, 7
      %v606 = vrot.slane %v590, 7
      %v607 = vrot.slane %v591, 7
      %v608 = vrot.slane %v592, 7
      %v609 = vrot.slane %v593, 7
      %v610 = vrot.slane %v594, 7
      %v611 = vrot.slane %v595, 7
      %v612 = vrot.slane %v596, 7
      %v613 = vrot.slane %v597, 7
      %v614 = vrot.slane %v598, 7
      %v615 = vrot.slane %v599, 7
      %v616 = vrot.slane %v600, 7
      %v617 = vrot.slane %v601, 7
      %v618 = vrot.slane %v602, 7
      %v619 = vrot.slane %v603, 7
      %v620 = vlaneseq
      %v621 = vshrl.u32 %v620, 7
      %vm622 = vcmp.lt.s32.totalorder %v621, 1
      %v623 = vsel %vm622, %v618, %v619
      %v624 = vsel %vm622, %v617, %v618
      %v625 = vsel %vm622, %v616, %v617
      %v626 = vsel %vm622, %v615, %v616
      %v627 = vsel %vm622, %v614, %v615
      %v628 = vsel %vm622, %v613, %v614
      %v629 = vsel %vm622, %v612, %v613
      %v630 = vsel %vm622, %v611, %v612
      %v631 = vsel %vm622, %v610, %v611
      %v632 = vsel %vm622, %v609, %v610
      %v633 = vsel %vm622, %v608, %v609
      %v634 = vsel %vm622, %v607, %v608
      %v635 = vsel %vm622, %v606, %v607
      %v636 = vsel %vm622, %v605, %v606
      %v637 = vsel %vm622, %v604, %v605
      %v638 = vsel %vm622, %v619, %v604
      %640 = vset.pattern.permute.xlu0 0
      %641 = vperm.xlu0 %640, %v280
      %v642 = vpop.permute.xlu0 %641
      %645 = vset.pattern.permute.xlu0 0
      %646 = vperm.xlu0 %645, %v281
      %v647 = vpop.permute.xlu0 %646
      %650 = vset.pattern.permute.xlu0 0
      %651 = vperm.xlu0 %650, %v282
      %v652 = vpop.permute.xlu0 %651
      %655 = vset.pattern.permute.xlu0 0
      %656 = vperm.xlu0 %655, %v283
      %v657 = vpop.permute.xlu0 %656
      %660 = vset.pattern.permute.xlu0 0
      %661 = vperm.xlu0 %660, %v284
      %v662 = vpop.permute.xlu0 %661
      %665 = vset.pattern.permute.xlu0 0
      %666 = vperm.xlu0 %665, %v285
      %v667 = vpop.permute.xlu0 %666
      %670 = vset.pattern.permute.xlu0 0
      %671 = vperm.xlu0 %670, %v286
      %v672 = vpop.permute.xlu0 %671
      %675 = vset.pattern.permute.xlu0 0
      %676 = vperm.xlu0 %675, %v287
      %v677 = vpop.permute.xlu0 %676
      %680 = vset.pattern.permute.xlu0 0
      %681 = vperm.xlu0 %680, %v288
      %v682 = vpop.permute.xlu0 %681
      %685 = vset.pattern.permute.xlu0 0
      %686 = vperm.xlu0 %685, %v289
      %v687 = vpop.permute.xlu0 %686
      %690 = vset.pattern.permute.xlu0 0
      %691 = vperm.xlu0 %690, %v290
      %v692 = vpop.permute.xlu0 %691
      %695 = vset.pattern.permute.xlu0 0
      %696 = vperm.xlu0 %695, %v291
      %v697 = vpop.permute.xlu0 %696
      %700 = vset.pattern.permute.xlu0 0
      %701 = vperm.xlu0 %700, %v292
      %v702 = vpop.permute.xlu0 %701
      %705 = vset.pattern.permute.xlu0 0
      %706 = vperm.xlu0 %705, %v293
      %v707 = vpop.permute.xlu0 %706
      %710 = vset.pattern.permute.xlu0 0
      %711 = vperm.xlu0 %710, %v294
      %v712 = vpop.permute.xlu0 %711
      %715 = vset.pattern.permute.xlu0 0
      %716 = vperm.xlu0 %715, %v295
      %v717 = vpop.permute.xlu0 %716
      %v719 = vmul.f32 %v623, %v642
      %v720 = vmul.f32 %v638, %v647
      %v721 = vmul.f32 %v637, %v652
      %v722 = vmul.f32 %v636, %v657
      %v723 = vmul.f32 %v635, %v662
      %v724 = vmul.f32 %v634, %v667
      %v725 = vmul.f32 %v633, %v672
      %v726 = vmul.f32 %v632, %v677
      %v727 = vmul.f32 %v631, %v682
      %v728 = vmul.f32 %v630, %v687
      %v729 = vmul.f32 %v629, %v692
      %v730 = vmul.f32 %v628, %v697
      %v731 = vmul.f32 %v627, %v702
      %v732 = vmul.f32 %v626, %v707
      %v733 = vmul.f32 %v625, %v712
      %v734 = vmul.f32 %v624, %v717
      %v735 = vld [vmem:[%s5] sm:$0xf]
      %v736 = vld [vmem:[%s5 + $0x4] sm:$0xf]
      %v737 = vld [vmem:[%s5 + $0x8] sm:$0xf]
      %v738 = vld [vmem:[%s5 + $0xc] sm:$0xf]
      %v739 = vpack.c.bf16 %v720, %v719
      %v740 = vpack.c.bf16 %v722, %v721
      %v741 = vpack.c.bf16 %v724, %v723
      %v742 = vpack.c.bf16 %v726, %v725
      %v743 = vpack.c.bf16 %v728, %v727
      %v744 = vpack.c.bf16 %v730, %v729
      %v745 = vpack.c.bf16 %v732, %v731
      %v746 = vpack.c.bf16 %v734, %v733
      %747 = vset.pattern.permute.xlu0 1
      %748 = vperm.xlu0 %747, %v280
      %v749 = vpop.permute.xlu0 %748
      %751 = vset.pattern.permute.xlu0 1
      %752 = vperm.xlu0 %751, %v281
      %v753 = vpop.permute.xlu0 %752
      %755 = vset.pattern.permute.xlu0 1
      %756 = vperm.xlu0 %755, %v282
      %v757 = vpop.permute.xlu0 %756
      %759 = vset.pattern.permute.xlu0 1
      %760 = vperm.xlu0 %759, %v283
      %v761 = vpop.permute.xlu0 %760
      %763 = vset.pattern.permute.xlu0 1
      %764 = vperm.xlu0 %763, %v284
      %v765 = vpop.permute.xlu0 %764
      %767 = vset.pattern.permute.xlu0 1
      %768 = vperm.xlu0 %767, %v285
      %v769 = vpop.permute.xlu0 %768
      %771 = vset.pattern.permute.xlu0 1
      %772 = vperm.xlu0 %771, %v286
      %v773 = vpop.permute.xlu0 %772
      %775 = vset.pattern.permute.xlu0 1
      %776 = vperm.xlu0 %775, %v287
      %v777 = vpop.permute.xlu0 %776
      %779 = vset.pattern.permute.xlu0 1
      %780 = vperm.xlu0 %779, %v288
      %v781 = vpop.permute.xlu0 %780
      %783 = vset.pattern.permute.xlu0 1
      %784 = vperm.xlu0 %783, %v289
      %v785 = vpop.permute.xlu0 %784
      %787 = vset.pattern.permute.xlu0 1
      %788 = vperm.xlu0 %787, %v290
      %v789 = vpop.permute.xlu0 %788
      %791 = vset.pattern.permute.xlu0 1
      %792 = vperm.xlu0 %791, %v291
      %v793 = vpop.permute.xlu0 %792
      %795 = vset.pattern.permute.xlu0 1
      %796 = vperm.xlu0 %795, %v292
      %v797 = vpop.permute.xlu0 %796
      %799 = vset.pattern.permute.xlu0 1
      %800 = vperm.xlu0 %799, %v293
      %v801 = vpop.permute.xlu0 %800
      %803 = vset.pattern.permute.xlu0 1
      %804 = vperm.xlu0 %803, %v294
      %v805 = vpop.permute.xlu0 %804
      %807 = vset.pattern.permute.xlu0 1
      %808 = vperm.xlu0 %807, %v295
      %v809 = vpop.permute.xlu0 %808
      %v811 = vmul.f32 %v603, %v749
      %v812 = vmul.f32 %v588, %v753
      %v813 = vmul.f32 %v589, %v757
      %v814 = vmul.f32 %v590, %v761
      %v815 = vmul.f32 %v591, %v765
      %v816 = vmul.f32 %v592, %v769
      %v817 = vmul.f32 %v593, %v773
      %v818 = vmul.f32 %v594, %v777
      %v819 = vmul.f32 %v595, %v781
      %v820 = vmul.f32 %v596, %v785
      %v821 = vmul.f32 %v597, %v789
      %v822 = vmul.f32 %v598, %v793
      %v823 = vmul.f32 %v599, %v797
      %v824 = vmul.f32 %v600, %v801
      %v825 = vmul.f32 %v601, %v805
      %v826 = vmul.f32 %v602, %v809
      %v827 = vld [vmem:[%s5 + $0x10] sm:$0xf]
      %v828 = vld [vmem:[%s5 + $0x14] sm:$0xf]
      %v829 = vld [vmem:[%s5 + $0x18] sm:$0xf]
      %v830 = vld [vmem:[%s5 + $0x1c] sm:$0xf]
      %v831 = vpack.c.bf16 %v812, %v811
      %v832 = vpack.c.bf16 %v814, %v813
      %v833 = vpack.c.bf16 %v816, %v815
      %v834 = vpack.c.bf16 %v818, %v817
      %v835 = vpack.c.bf16 %v820, %v819
      %v836 = vpack.c.bf16 %v822, %v821
      %v837 = vpack.c.bf16 %v824, %v823
      %v838 = vpack.c.bf16 %v826, %v825
      %v843 = vunpack.c.l.b16 %v827
      %v844 = vunpack.c.l.b16 %v828
      %v845 = vunpack.c.l.b16 %v829
      %v846 = vunpack.c.l.b16 %v830
      %v847 = vpack.c.b16 %v844, %v843
      %v848 = vpack.c.b16 %v846, %v845
      %v852 = vsel %vm325, %v831, 0
      %v855 = vsel %vm325, %v832, 0
      %v858 = vsel %vm325, %v833, 0
      %v861 = vsel %vm325, %v834, 0
      %v864 = vsel %vm325, %v835, 0
      %v867 = vsel %vm325, %v836, 0
      %v870 = vsel %vm325, %v837, 0
      %v873 = vsel %vm325, %v838, 0
      %875 = vmatprep.subr.bf16.mxu0 0
      %876 = vmatpush1.bf16.msra.mxu0 0
      %877 = vmatprep.subr.bf16.mxu0 0
      %878 = vmatpush1.bf16.msra.mxu0 0
      %879 = vmatprep.subr.bf16.mxu0 0
      %880 = vmatpush1.bf16.msra.mxu0 0
      %881 = vmatprep.subr.bf16.mxu0 0
      %882 = vmatpush1.bf16.msra.mxu0 0
      %883 = vmatprep.subr.bf16.mxu0 0
      %884 = vmatpush1.bf16.msra.mxu0 0
      %885 = vmatprep.subr.bf16.mxu0 0
      %886 = vmatpush1.bf16.msra.mxu0 0
      %887 = vmatprep.subr.bf16.mxu0 0
      %888 = vmatpush1.bf16.msra.mxu0 %v848
      %889 = vmatprep.subr.bf16.mxu0 0
      %890 = vmatpush1.bf16.msra.mxu0 %v847
      %891 = vmatprep.subr.bf16.mxu0 0
      %892 = vmatpush2.bf16.msra.mxu0 0
      %893 = vmatprep.subr.bf16.mxu0 0
      %894 = vmatpush2.bf16.msra.mxu0 0
      %895 = vmatprep.subr.bf16.mxu0 0
      %896 = vmatpush2.bf16.msra.mxu0 0
      %897 = vmatprep.subr.bf16.mxu0 0
      %898 = vmatpush2.bf16.msra.mxu0 0
      %899 = vmatprep.subr.bf16.mxu0 0
      %900 = vmatpush2.bf16.msra.mxu0 0
      %901 = vmatprep.subr.bf16.mxu0 0
      %902 = vmatpush2.bf16.msra.mxu0 0
      %903 = vmatprep.subr.bf16.mxu0 0
      %904 = vmatpush2.bf16.msra.mxu0 0
      %905 = vmatprep.subr.bf16.mxu0 0
      %906 = vmatpush2.bf16.msra.mxu0 0
      %907 = vmatprep.mubr.bf16.mxu0 0
      %908 = vmatmul.mubr.bf16.gmra.mxu0 %v852
      %v909 = vpop.f32.mrf.mxu0
      %v910 = vadd.f32 0.0, %v909
      %v911 = vpop.f32.mrf.mxu0
      %v912 = vpop.f32.mrf.mxu0
      %v913 = vadd.f32 0.0, %v912
      %v914 = vpop.f32.mrf.mxu0
      %915 = vmatprep.mubr.bf16.mxu0 0
      %916 = vmatmul.mubr.bf16.gmra.mxu0 %v855
      %v917 = vpop.f32.mrf.mxu0
      %v918 = vadd.f32 0.0, %v917
      %v919 = vpop.f32.mrf.mxu0
      %v920 = vpop.f32.mrf.mxu0
      %v921 = vadd.f32 0.0, %v920
      %v922 = vpop.f32.mrf.mxu0
      %923 = vmatprep.mubr.bf16.mxu0 0
      %924 = vmatmul.mubr.bf16.gmra.mxu0 %v858
      %v925 = vpop.f32.mrf.mxu0
      %v926 = vadd.f32 0.0, %v925
      %v927 = vpop.f32.mrf.mxu0
      %v928 = vpop.f32.mrf.mxu0
      %v929 = vadd.f32 0.0, %v928
      %v930 = vpop.f32.mrf.mxu0
      %931 = vmatprep.mubr.bf16.mxu0 0
      %932 = vmatmul.mubr.bf16.gmra.mxu0 %v861
      %v933 = vpop.f32.mrf.mxu0
      %v934 = vadd.f32 0.0, %v933
      %v935 = vpop.f32.mrf.mxu0
      %v936 = vpop.f32.mrf.mxu0
      %v937 = vadd.f32 0.0, %v936
      %v938 = vpop.f32.mrf.mxu0
      %939 = vmatprep.mubr.bf16.mxu0 0
      %940 = vmatmul.mubr.bf16.gmra.mxu0 %v864
      %v941 = vpop.f32.mrf.mxu0
      %v942 = vadd.f32 0.0, %v941
      %v943 = vpop.f32.mrf.mxu0
      %v944 = vpop.f32.mrf.mxu0
      %v945 = vadd.f32 0.0, %v944
      %v946 = vpop.f32.mrf.mxu0
      %947 = vmatprep.mubr.bf16.mxu0 0
      %948 = vmatmul.mubr.bf16.gmra.mxu0 %v867
      %v949 = vpop.f32.mrf.mxu0
      %v950 = vadd.f32 0.0, %v949
      %v951 = vpop.f32.mrf.mxu0
      %v952 = vpop.f32.mrf.mxu0
      %v953 = vadd.f32 0.0, %v952
      %v954 = vpop.f32.mrf.mxu0
      %955 = vmatprep.mubr.bf16.mxu0 0
      %956 = vmatmul.mubr.bf16.gmra.mxu0 %v870
      %v957 = vpop.f32.mrf.mxu0
      %v958 = vadd.f32 0.0, %v957
      %v959 = vpop.f32.mrf.mxu0
      %v960 = vpop.f32.mrf.mxu0
      %v961 = vadd.f32 0.0, %v960
      %v962 = vpop.f32.mrf.mxu0
      %963 = vmatprep.mubr.bf16.mxu0 0
      %964 = vmatmul.mubr.bf16.gmra.mxu0 %v873
      %v965 = vpop.f32.mrf.mxu0
      %v966 = vadd.f32 0.0, %v965
      %v967 = vpop.f32.mrf.mxu0
      %v968 = vpop.f32.mrf.mxu0
      %v969 = vadd.f32 0.0, %v968
      %v970 = vpop.f32.mrf.mxu0
      %971 = vdwg.mxu0
      %v976 = vunpack.c.l.b16 %v735
      %v977 = vunpack.c.l.b16 %v736
      %v978 = vunpack.c.l.b16 %v737
      %v979 = vunpack.c.l.b16 %v738
      %v980 = vpack.c.b16 %v977, %v976
      %v981 = vpack.c.b16 %v979, %v978
      %v985 = vsel %vm325, %v739, 0
      %v988 = vsel %vm325, %v740, 0
      %v991 = vsel %vm325, %v741, 0
      %v994 = vsel %vm325, %v742, 0
      %v997 = vsel %vm325, %v743, 0
      %v1000 = vsel %vm325, %v744, 0
      %v1003 = vsel %vm325, %v745, 0
      %v1006 = vsel %vm325, %v746, 0
      %1008 = vmatprep.subr.bf16.mxu0 0
      %1009 = vmatpush1.bf16.msra.mxu0 0
      %1010 = vmatprep.subr.bf16.mxu0 0
      %1011 = vmatpush1.bf16.msra.mxu0 0
      %1012 = vmatprep.subr.bf16.mxu0 0
      %1013 = vmatpush1.bf16.msra.mxu0 0
      %1014 = vmatprep.subr.bf16.mxu0 0
      %1015 = vmatpush1.bf16.msra.mxu0 0
      %1016 = vmatprep.subr.bf16.mxu0 0
      %1017 = vmatpush1.bf16.msra.mxu0 0
      %1018 = vmatprep.subr.bf16.mxu0 0
      %1019 = vmatpush1.bf16.msra.mxu0 0
      %1020 = vmatprep.subr.bf16.mxu0 0
      %1021 = vmatpush1.bf16.msra.mxu0 %v981
      %1022 = vmatprep.subr.bf16.mxu0 0
      %1023 = vmatpush1.bf16.msra.mxu0 %v980
      %1024 = vmatprep.subr.bf16.mxu0 0
      %1025 = vmatpush2.bf16.msra.mxu0 0
      %1026 = vmatprep.subr.bf16.mxu0 0
      %1027 = vmatpush2.bf16.msra.mxu0 0
      %1028 = vmatprep.subr.bf16.mxu0 0
      %1029 = vmatpush2.bf16.msra.mxu0 0
      %1030 = vmatprep.subr.bf16.mxu0 0
      %1031 = vmatpush2.bf16.msra.mxu0 0
      %1032 = vmatprep.subr.bf16.mxu0 0
      %1033 = vmatpush2.bf16.msra.mxu0 0
      %1034 = vmatprep.subr.bf16.mxu0 0
      %1035 = vmatpush2.bf16.msra.mxu0 0
      %1036 = vmatprep.subr.bf16.mxu0 0
      %1037 = vmatpush2.bf16.msra.mxu0 0
      %1038 = vmatprep.subr.bf16.mxu0 0
      %1039 = vmatpush2.bf16.msra.mxu0 0
      %1040 = vmatprep.mubr.bf16.mxu0 0
      %1041 = vmatmul.mubr.bf16.gmra.mxu0 %v985
      %v1042 = vpop.f32.mrf.mxu0
      %v1043 = vadd.f32 %v910, %v1042
      %v1044 = vpop.f32.mrf.mxu0
      %v1045 = vpop.f32.mrf.mxu0
      %v1046 = vadd.f32 %v913, %v1045
      %v1047 = vpop.f32.mrf.mxu0
      %1048 = vmatprep.mubr.bf16.mxu0 0
      %1049 = vmatmul.mubr.bf16.gmra.mxu0 %v988
      %v1050 = vpop.f32.mrf.mxu0
      %v1051 = vadd.f32 %v918, %v1050
      %v1052 = vpop.f32.mrf.mxu0
      %v1053 = vpop.f32.mrf.mxu0
      %v1054 = vadd.f32 %v921, %v1053
      %v1055 = vpop.f32.mrf.mxu0
      %1056 = vmatprep.mubr.bf16.mxu0 0
      %1057 = vmatmul.mubr.bf16.gmra.mxu0 %v991
      %v1058 = vpop.f32.mrf.mxu0
      %v1059 = vadd.f32 %v926, %v1058
      %v1060 = vpop.f32.mrf.mxu0
      %v1061 = vpop.f32.mrf.mxu0
      %v1062 = vadd.f32 %v929, %v1061
      %v1063 = vpop.f32.mrf.mxu0
      %1064 = vmatprep.mubr.bf16.mxu0 0
      %1065 = vmatmul.mubr.bf16.gmra.mxu0 %v994
      %v1066 = vpop.f32.mrf.mxu0
      %v1067 = vadd.f32 %v934, %v1066
      %v1068 = vpop.f32.mrf.mxu0
      %v1069 = vpop.f32.mrf.mxu0
      %v1070 = vadd.f32 %v937, %v1069
      %v1071 = vpop.f32.mrf.mxu0
      %1072 = vmatprep.mubr.bf16.mxu0 0
      %1073 = vmatmul.mubr.bf16.gmra.mxu0 %v997
      %v1074 = vpop.f32.mrf.mxu0
      %v1075 = vadd.f32 %v942, %v1074
      %v1076 = vpop.f32.mrf.mxu0
      %v1077 = vpop.f32.mrf.mxu0
      %v1078 = vadd.f32 %v945, %v1077
      %v1079 = vpop.f32.mrf.mxu0
      %1080 = vmatprep.mubr.bf16.mxu0 0
      %1081 = vmatmul.mubr.bf16.gmra.mxu0 %v1000
      %v1082 = vpop.f32.mrf.mxu0
      %v1083 = vadd.f32 %v950, %v1082
      %v1084 = vpop.f32.mrf.mxu0
      %v1085 = vpop.f32.mrf.mxu0
      %v1086 = vadd.f32 %v953, %v1085
      %v1087 = vpop.f32.mrf.mxu0
      %1088 = vmatprep.mubr.bf16.mxu0 0
      %1089 = vmatmul.mubr.bf16.gmra.mxu0 %v1003
      %v1090 = vpop.f32.mrf.mxu0
      %v1091 = vadd.f32 %v958, %v1090
      %v1092 = vpop.f32.mrf.mxu0
      %v1093 = vpop.f32.mrf.mxu0
      %v1094 = vadd.f32 %v961, %v1093
      %v1095 = vpop.f32.mrf.mxu0
      %1096 = vmatprep.mubr.bf16.mxu0 0
      %1097 = vmatmul.mubr.bf16.gmra.mxu0 %v1006
      %v1098 = vpop.f32.mrf.mxu0
      %v1099 = vadd.f32 %v966, %v1098
      %v1100 = vpop.f32.mrf.mxu0
      %v1101 = vpop.f32.mrf.mxu0
      %v1102 = vadd.f32 %v969, %v1101
      %v1103 = vpop.f32.mrf.mxu0
      %1104 = vdwg.mxu0
      %v1105 = vrot.slane %v588, 1
      %v1106 = vrot.slane %v589, 1
      %v1107 = vrot.slane %v590, 1
      %v1108 = vrot.slane %v591, 1
      %v1109 = vrot.slane %v592, 1
      %v1110 = vrot.slane %v593, 1
      %v1111 = vrot.slane %v594, 1
      %v1112 = vrot.slane %v595, 1
      %v1113 = vrot.slane %v596, 1
      %v1114 = vrot.slane %v597, 1
      %v1115 = vrot.slane %v598, 1
      %v1116 = vrot.slane %v599, 1
      %v1117 = vrot.slane %v600, 1
      %v1118 = vrot.slane %v601, 1
      %v1119 = vrot.slane %v602, 1
      %v1120 = vrot.slane %v603, 1
      %vm1121 = vcmp.lt.s32.totalorder %v621, 7
      %v1122 = vsel %vm1121, %v1119, %v1120
      %v1123 = vsel %vm1121, %v1118, %v1119
      %v1124 = vsel %vm1121, %v1117, %v1118
      %v1125 = vsel %vm1121, %v1116, %v1117
      %v1126 = vsel %vm1121, %v1115, %v1116
      %v1127 = vsel %vm1121, %v1114, %v1115
      %v1128 = vsel %vm1121, %v1113, %v1114
      %v1129 = vsel %vm1121, %v1112, %v1113
      %v1130 = vsel %vm1121, %v1111, %v1112
      %v1131 = vsel %vm1121, %v1110, %v1111
      %v1132 = vsel %vm1121, %v1109, %v1110
      %v1133 = vsel %vm1121, %v1108, %v1109
      %v1134 = vsel %vm1121, %v1107, %v1108
      %v1135 = vsel %vm1121, %v1106, %v1107
      %v1136 = vsel %vm1121, %v1105, %v1106
      %v1137 = vsel %vm1121, %v1120, %v1105
      %1138 = vset.pattern.permute.xlu0 2
      %1139 = vperm.xlu0 %1138, %v280
      %v1140 = vpop.permute.xlu0 %1139
      %1142 = vset.pattern.permute.xlu0 2
      %1143 = vperm.xlu0 %1142, %v281
      %v1144 = vpop.permute.xlu0 %1143
      %1146 = vset.pattern.permute.xlu0 2
      %1147 = vperm.xlu0 %1146, %v282
      %v1148 = vpop.permute.xlu0 %1147
      %1150 = vset.pattern.permute.xlu0 2
      %1151 = vperm.xlu0 %1150, %v283
      %v1152 = vpop.permute.xlu0 %1151
      %1154 = vset.pattern.permute.xlu0 2
      %1155 = vperm.xlu0 %1154, %v284
      %v1156 = vpop.permute.xlu0 %1155
      %1158 = vset.pattern.permute.xlu0 2
      %1159 = vperm.xlu0 %1158, %v285
      %v1160 = vpop.permute.xlu0 %1159
      %1162 = vset.pattern.permute.xlu0 2
      %1163 = vperm.xlu0 %1162, %v286
      %v1164 = vpop.permute.xlu0 %1163
      %1166 = vset.pattern.permute.xlu0 2
      %1167 = vperm.xlu0 %1166, %v287
      %v1168 = vpop.permute.xlu0 %1167
      %1170 = vset.pattern.permute.xlu0 2
      %1171 = vperm.xlu0 %1170, %v288
      %v1172 = vpop.permute.xlu0 %1171
      %1174 = vset.pattern.permute.xlu0 2
      %1175 = vperm.xlu0 %1174, %v289
      %v1176 = vpop.permute.xlu0 %1175
      %1178 = vset.pattern.permute.xlu0 2
      %1179 = vperm.xlu0 %1178, %v290
      %v1180 = vpop.permute.xlu0 %1179
      %1182 = vset.pattern.permute.xlu0 2
      %1183 = vperm.xlu0 %1182, %v291
      %v1184 = vpop.permute.xlu0 %1183
      %1186 = vset.pattern.permute.xlu0 2
      %1187 = vperm.xlu0 %1186, %v292
      %v1188 = vpop.permute.xlu0 %1187
      %1190 = vset.pattern.permute.xlu0 2
      %1191 = vperm.xlu0 %1190, %v293
      %v1192 = vpop.permute.xlu0 %1191
      %1194 = vset.pattern.permute.xlu0 2
      %1195 = vperm.xlu0 %1194, %v294
      %v1196 = vpop.permute.xlu0 %1195
      %1198 = vset.pattern.permute.xlu0 2
      %1199 = vperm.xlu0 %1198, %v295
      %v1200 = vpop.permute.xlu0 %1199
      %v1202 = vmul.f32 %v1137, %v1140
      %v1203 = vmul.f32 %v1136, %v1144
      %v1204 = vmul.f32 %v1135, %v1148
      %v1205 = vmul.f32 %v1134, %v1152
      %v1206 = vmul.f32 %v1133, %v1156
      %v1207 = vmul.f32 %v1132, %v1160
      %v1208 = vmul.f32 %v1131, %v1164
      %v1209 = vmul.f32 %v1130, %v1168
      %v1210 = vmul.f32 %v1129, %v1172
      %v1211 = vmul.f32 %v1128, %v1176
      %v1212 = vmul.f32 %v1127, %v1180
      %v1213 = vmul.f32 %v1126, %v1184
      %v1214 = vmul.f32 %v1125, %v1188
      %v1215 = vmul.f32 %v1124, %v1192
      %v1216 = vmul.f32 %v1123, %v1196
      %v1217 = vmul.f32 %v1122, %v1200
      %v1218 = vld [vmem:[%s5 + $0x20] sm:$0xf]
      %v1219 = vld [vmem:[%s5 + $0x24] sm:$0xf]
      %v1220 = vld [vmem:[%s5 + $0x28] sm:$0xf]
      %v1221 = vld [vmem:[%s5 + $0x2c] sm:$0xf]
      %v1222 = vpack.c.bf16 %v1203, %v1202
      %v1223 = vpack.c.bf16 %v1205, %v1204
      %v1224 = vpack.c.bf16 %v1207, %v1206
      %v1225 = vpack.c.bf16 %v1209, %v1208
      %v1226 = vpack.c.bf16 %v1211, %v1210
      %v1227 = vpack.c.bf16 %v1213, %v1212
      %v1228 = vpack.c.bf16 %v1215, %v1214
      %v1229 = vpack.c.bf16 %v1217, %v1216
      %v1234 = vunpack.c.l.b16 %v1218
      %v1235 = vunpack.c.l.b16 %v1219
      %v1236 = vunpack.c.l.b16 %v1220
      %v1237 = vunpack.c.l.b16 %v1221
      %v1238 = vpack.c.b16 %v1235, %v1234
      %v1239 = vpack.c.b16 %v1237, %v1236
      %v1243 = vsel %vm325, %v1222, 0
      %v1246 = vsel %vm325, %v1223, 0
      %v1249 = vsel %vm325, %v1224, 0
      %v1252 = vsel %vm325, %v1225, 0
      %v1255 = vsel %vm325, %v1226, 0
      %v1258 = vsel %vm325, %v1227, 0
      %v1261 = vsel %vm325, %v1228, 0
      %v1264 = vsel %vm325, %v1229, 0
      %1266 = vmatprep.subr.bf16.mxu0 0
      %1267 = vmatpush1.bf16.msra.mxu0 0
      %1268 = vmatprep.subr.bf16.mxu0 0
      %1269 = vmatpush1.bf16.msra.mxu0 0
      %1270 = vmatprep.subr.bf16.mxu0 0
      %1271 = vmatpush1.bf16.msra.mxu0 0
      %1272 = vmatprep.subr.bf16.mxu0 0
      %1273 = vmatpush1.bf16.msra.mxu0 0
      %1274 = vmatprep.subr.bf16.mxu0 0
      %1275 = vmatpush1.bf16.msra.mxu0 0
      %1276 = vmatprep.subr.bf16.mxu0 0
      %1277 = vmatpush1.bf16.msra.mxu0 0
      %1278 = vmatprep.subr.bf16.mxu0 0
      %1279 = vmatpush1.bf16.msra.mxu0 %v1239
      %1280 = vmatprep.subr.bf16.mxu0 0
      %1281 = vmatpush1.bf16.msra.mxu0 %v1238
      %1282 = vmatprep.subr.bf16.mxu0 0
      %1283 = vmatpush2.bf16.msra.mxu0 0
      %1284 = vmatprep.subr.bf16.mxu0 0
      %1285 = vmatpush2.bf16.msra.mxu0 0
      %1286 = vmatprep.subr.bf16.mxu0 0
      %1287 = vmatpush2.bf16.msra.mxu0 0
      %1288 = vmatprep.subr.bf16.mxu0 0
      %1289 = vmatpush2.bf16.msra.mxu0 0
      %1290 = vmatprep.subr.bf16.mxu0 0
      %1291 = vmatpush2.bf16.msra.mxu0 0
      %1292 = vmatprep.subr.bf16.mxu0 0
      %1293 = vmatpush2.bf16.msra.mxu0 0
      %1294 = vmatprep.subr.bf16.mxu0 0
      %1295 = vmatpush2.bf16.msra.mxu0 0
      %1296 = vmatprep.subr.bf16.mxu0 0
      %1297 = vmatpush2.bf16.msra.mxu0 0
      %1298 = vmatprep.mubr.bf16.mxu0 0
      %1299 = vmatmul.mubr.bf16.gmra.mxu0 %v1243
      %v1300 = vpop.f32.mrf.mxu0
      %v1301 = vadd.f32 0.0, %v1300
      %v1302 = vpop.f32.mrf.mxu0
      %v1303 = vpop.f32.mrf.mxu0
      %v1304 = vadd.f32 0.0, %v1303
      %v1305 = vpop.f32.mrf.mxu0
      %1306 = vmatprep.mubr.bf16.mxu0 0
      %1307 = vmatmul.mubr.bf16.gmra.mxu0 %v1246
      %v1308 = vpop.f32.mrf.mxu0
      %v1309 = vadd.f32 0.0, %v1308
      %v1310 = vpop.f32.mrf.mxu0
      %v1311 = vpop.f32.mrf.mxu0
      %v1312 = vadd.f32 0.0, %v1311
      %v1313 = vpop.f32.mrf.mxu0
      %1314 = vmatprep.mubr.bf16.mxu0 0
      %1315 = vmatmul.mubr.bf16.gmra.mxu0 %v1249
      %v1316 = vpop.f32.mrf.mxu0
      %v1317 = vadd.f32 0.0, %v1316
      %v1318 = vpop.f32.mrf.mxu0
      %v1319 = vpop.f32.mrf.mxu0
      %v1320 = vadd.f32 0.0, %v1319
      %v1321 = vpop.f32.mrf.mxu0
      %1322 = vmatprep.mubr.bf16.mxu0 0
      %1323 = vmatmul.mubr.bf16.gmra.mxu0 %v1252
      %v1324 = vpop.f32.mrf.mxu0
      %v1325 = vadd.f32 0.0, %v1324
      %v1326 = vpop.f32.mrf.mxu0
      %v1327 = vpop.f32.mrf.mxu0
      %v1328 = vadd.f32 0.0, %v1327
      %v1329 = vpop.f32.mrf.mxu0
      %1330 = vmatprep.mubr.bf16.mxu0 0
      %1331 = vmatmul.mubr.bf16.gmra.mxu0 %v1255
      %v1332 = vpop.f32.mrf.mxu0
      %v1333 = vadd.f32 0.0, %v1332
      %v1334 = vpop.f32.mrf.mxu0
      %v1335 = vpop.f32.mrf.mxu0
      %v1336 = vadd.f32 0.0, %v1335
      %v1337 = vpop.f32.mrf.mxu0
      %1338 = vmatprep.mubr.bf16.mxu0 0
      %1339 = vmatmul.mubr.bf16.gmra.mxu0 %v1258
      %v1340 = vpop.f32.mrf.mxu0
      %v1341 = vadd.f32 0.0, %v1340
      %v1342 = vpop.f32.mrf.mxu0
      %v1343 = vpop.f32.mrf.mxu0
      %v1344 = vadd.f32 0.0, %v1343
      %v1345 = vpop.f32.mrf.mxu0
      %1346 = vmatprep.mubr.bf16.mxu0 0
      %1347 = vmatmul.mubr.bf16.gmra.mxu0 %v1261
      %v1348 = vpop.f32.mrf.mxu0
      %v1349 = vadd.f32 0.0, %v1348
      %v1350 = vpop.f32.mrf.mxu0
      %v1351 = vpop.f32.mrf.mxu0
      %v1352 = vadd.f32 0.0, %v1351
      %v1353 = vpop.f32.mrf.mxu0
      %1354 = vmatprep.mubr.bf16.mxu0 0
      %1355 = vmatmul.mubr.bf16.gmra.mxu0 %v1264
      %v1356 = vpop.f32.mrf.mxu0
      %v1357 = vadd.f32 0.0, %v1356
      %v1358 = vpop.f32.mrf.mxu0
      %v1359 = vpop.f32.mrf.mxu0
      %v1360 = vadd.f32 0.0, %v1359
      %v1361 = vpop.f32.mrf.mxu0
      %1362 = vdwg.mxu0
      %v1363 = vadd.f32 %v1043, %v1301
      %v1364 = vadd.f32 %v1046, %v1304
      %v1365 = vadd.f32 %v1051, %v1309
      %v1366 = vadd.f32 %v1054, %v1312
      %v1367 = vadd.f32 %v1059, %v1317
      %v1368 = vadd.f32 %v1062, %v1320
      %v1369 = vadd.f32 %v1067, %v1325
      %v1370 = vadd.f32 %v1070, %v1328
      %v1371 = vadd.f32 %v1075, %v1333
      %v1372 = vadd.f32 %v1078, %v1336
      %v1373 = vadd.f32 %v1083, %v1341
      %v1374 = vadd.f32 %v1086, %v1344
      %v1375 = vadd.f32 %v1091, %v1349
      %v1376 = vadd.f32 %v1094, %v1352
      %v1377 = vadd.f32 %v1099, %v1357
      %v1378 = vadd.f32 %v1102, %v1360
      %1379 = vset.pattern.permute.xlu0 3
      %1380 = vperm.xlu0 %1379, %v280
      %v1381 = vpop.permute.xlu0 %1380
      %1383 = vset.pattern.permute.xlu0 3
      %1384 = vperm.xlu0 %1383, %v281
      %v1385 = vpop.permute.xlu0 %1384
      %1387 = vset.pattern.permute.xlu0 3
      %1388 = vperm.xlu0 %1387, %v282
      %v1389 = vpop.permute.xlu0 %1388
      %1391 = vset.pattern.permute.xlu0 3
      %1392 = vperm.xlu0 %1391, %v283
      %v1393 = vpop.permute.xlu0 %1392
      %1395 = vset.pattern.permute.xlu0 3
      %1396 = vperm.xlu0 %1395, %v284
      %v1397 = vpop.permute.xlu0 %1396
      %1399 = vset.pattern.permute.xlu0 3
      %1400 = vperm.xlu0 %1399, %v285
      %v1401 = vpop.permute.xlu0 %1400
      %1403 = vset.pattern.permute.xlu0 3
      %1404 = vperm.xlu0 %1403, %v286
      %v1405 = vpop.permute.xlu0 %1404
      %1407 = vset.pattern.permute.xlu0 3
      %1408 = vperm.xlu0 %1407, %v287
      %v1409 = vpop.permute.xlu0 %1408
      %1411 = vset.pattern.permute.xlu0 3
      %1412 = vperm.xlu0 %1411, %v288
      %v1413 = vpop.permute.xlu0 %1412
      %1415 = vset.pattern.permute.xlu0 3
      %1416 = vperm.xlu0 %1415, %v289
      %v1417 = vpop.permute.xlu0 %1416
      %1419 = vset.pattern.permute.xlu0 3
      %1420 = vperm.xlu0 %1419, %v290
      %v1421 = vpop.permute.xlu0 %1420
      %1423 = vset.pattern.permute.xlu0 3
      %1424 = vperm.xlu0 %1423, %v291
      %v1425 = vpop.permute.xlu0 %1424
      %1427 = vset.pattern.permute.xlu0 3
      %1428 = vperm.xlu0 %1427, %v292
      %v1429 = vpop.permute.xlu0 %1428
      %1431 = vset.pattern.permute.xlu0 3
      %1432 = vperm.xlu0 %1431, %v293
      %v1433 = vpop.permute.xlu0 %1432
      %1435 = vset.pattern.permute.xlu0 3
      %1436 = vperm.xlu0 %1435, %v294
      %v1437 = vpop.permute.xlu0 %1436
      %1439 = vset.pattern.permute.xlu0 3
      %1440 = vperm.xlu0 %1439, %v295
      %v1441 = vpop.permute.xlu0 %1440
      %v1443 = vmul.f32 %v638, %v1381
      %v1444 = vmul.f32 %v637, %v1385
      %v1445 = vmul.f32 %v636, %v1389
      %v1446 = vmul.f32 %v635, %v1393
      %v1447 = vmul.f32 %v634, %v1397
      %v1448 = vmul.f32 %v633, %v1401
      %v1449 = vmul.f32 %v632, %v1405
      %v1450 = vmul.f32 %v631, %v1409
      %v1451 = vmul.f32 %v630, %v1413
      %v1452 = vmul.f32 %v629, %v1417
      %v1453 = vmul.f32 %v628, %v1421
      %v1454 = vmul.f32 %v627, %v1425
      %v1455 = vmul.f32 %v626, %v1429
      %v1456 = vmul.f32 %v625, %v1433
      %v1457 = vmul.f32 %v624, %v1437
      %v1458 = vmul.f32 %v623, %v1441
      %v1459 = vld [vmem:[%s5 + $0x30] sm:$0xf]
      %v1460 = vld [vmem:[%s5 + $0x34] sm:$0xf]
      %v1461 = vld [vmem:[%s5 + $0x38] sm:$0xf]
      %v1462 = vld [vmem:[%s5 + $0x3c] sm:$0xf]
      %v1463 = vpack.c.bf16 %v1444, %v1443
      %v1464 = vpack.c.bf16 %v1446, %v1445
      %v1465 = vpack.c.bf16 %v1448, %v1447
      %v1466 = vpack.c.bf16 %v1450, %v1449
      %v1467 = vpack.c.bf16 %v1452, %v1451
      %v1468 = vpack.c.bf16 %v1454, %v1453
      %v1469 = vpack.c.bf16 %v1456, %v1455
      %v1470 = vpack.c.bf16 %v1458, %v1457
      %v1475 = vunpack.c.l.b16 %v1459
      %v1476 = vunpack.c.l.b16 %v1460
      %v1477 = vunpack.c.l.b16 %v1461
      %v1478 = vunpack.c.l.b16 %v1462
      %v1479 = vpack.c.b16 %v1476, %v1475
      %v1480 = vpack.c.b16 %v1478, %v1477
      %v1484 = vsel %vm325, %v1463, 0
      %v1487 = vsel %vm325, %v1464, 0
      %v1490 = vsel %vm325, %v1465, 0
      %v1493 = vsel %vm325, %v1466, 0
      %v1496 = vsel %vm325, %v1467, 0
      %v1499 = vsel %vm325, %v1468, 0
      %v1502 = vsel %vm325, %v1469, 0
      %v1505 = vsel %vm325, %v1470, 0
      %1507 = vmatprep.subr.bf16.mxu0 0
      %1508 = vmatpush1.bf16.msra.mxu0 0
      %1509 = vmatprep.subr.bf16.mxu0 0
      %1510 = vmatpush1.bf16.msra.mxu0 0
      %1511 = vmatprep.subr.bf16.mxu0 0
      %1512 = vmatpush1.bf16.msra.mxu0 0
      %1513 = vmatprep.subr.bf16.mxu0 0
      %1514 = vmatpush1.bf16.msra.mxu0 0
      %1515 = vmatprep.subr.bf16.mxu0 0
      %1516 = vmatpush1.bf16.msra.mxu0 0
      %1517 = vmatprep.subr.bf16.mxu0 0
      %1518 = vmatpush1.bf16.msra.mxu0 0
      %1519 = vmatprep.subr.bf16.mxu0 0
      %1520 = vmatpush1.bf16.msra.mxu0 %v1480
      %1521 = vmatprep.subr.bf16.mxu0 0
      %1522 = vmatpush1.bf16.msra.mxu0 %v1479
      %1523 = vmatprep.subr.bf16.mxu0 0
      %1524 = vmatpush2.bf16.msra.mxu0 0
      %1525 = vmatprep.subr.bf16.mxu0 0
      %1526 = vmatpush2.bf16.msra.mxu0 0
      %1527 = vmatprep.subr.bf16.mxu0 0
      %1528 = vmatpush2.bf16.msra.mxu0 0
      %1529 = vmatprep.subr.bf16.mxu0 0
      %1530 = vmatpush2.bf16.msra.mxu0 0
      %1531 = vmatprep.subr.bf16.mxu0 0
      %1532 = vmatpush2.bf16.msra.mxu0 0
      %1533 = vmatprep.subr.bf16.mxu0 0
      %1534 = vmatpush2.bf16.msra.mxu0 0
      %1535 = vmatprep.subr.bf16.mxu0 0
      %1536 = vmatpush2.bf16.msra.mxu0 0
      %1537 = vmatprep.subr.bf16.mxu0 0
      %1538 = vmatpush2.bf16.msra.mxu0 0
      %1539 = vmatprep.mubr.bf16.mxu0 0
      %1540 = vmatmul.mubr.bf16.gmra.mxu0 %v1484
      %v1541 = vpop.f32.mrf.mxu0
      %v1542 = vadd.f32 0.0, %v1541
      %v1543 = vpop.f32.mrf.mxu0
      %v1544 = vpop.f32.mrf.mxu0
      %v1545 = vadd.f32 0.0, %v1544
      %v1546 = vpop.f32.mrf.mxu0
      %1547 = vmatprep.mubr.bf16.mxu0 0
      %1548 = vmatmul.mubr.bf16.gmra.mxu0 %v1487
      %v1549 = vpop.f32.mrf.mxu0
      %v1550 = vadd.f32 0.0, %v1549
      %v1551 = vpop.f32.mrf.mxu0
      %v1552 = vpop.f32.mrf.mxu0
      %v1553 = vadd.f32 0.0, %v1552
      %v1554 = vpop.f32.mrf.mxu0
      %1555 = vmatprep.mubr.bf16.mxu0 0
      %1556 = vmatmul.mubr.bf16.gmra.mxu0 %v1490
      %v1557 = vpop.f32.mrf.mxu0
      %v1558 = vadd.f32 0.0, %v1557
      %v1559 = vpop.f32.mrf.mxu0
      %v1560 = vpop.f32.mrf.mxu0
      %v1561 = vadd.f32 0.0, %v1560
      %v1562 = vpop.f32.mrf.mxu0
      %1563 = vmatprep.mubr.bf16.mxu0 0
      %1564 = vmatmul.mubr.bf16.gmra.mxu0 %v1493
      %v1565 = vpop.f32.mrf.mxu0
      %v1566 = vadd.f32 0.0, %v1565
      %v1567 = vpop.f32.mrf.mxu0
      %v1568 = vpop.f32.mrf.mxu0
      %v1569 = vadd.f32 0.0, %v1568
      %v1570 = vpop.f32.mrf.mxu0
      %1571 = vmatprep.mubr.bf16.mxu0 0
      %1572 = vmatmul.mubr.bf16.gmra.mxu0 %v1496
      %v1573 = vpop.f32.mrf.mxu0
      %v1574 = vadd.f32 0.0, %v1573
      %v1575 = vpop.f32.mrf.mxu0
      %v1576 = vpop.f32.mrf.mxu0
      %v1577 = vadd.f32 0.0, %v1576
      %v1578 = vpop.f32.mrf.mxu0
      %1579 = vmatprep.mubr.bf16.mxu0 0
      %1580 = vmatmul.mubr.bf16.gmra.mxu0 %v1499
      %v1581 = vpop.f32.mrf.mxu0
      %v1582 = vadd.f32 0.0, %v1581
      %v1583 = vpop.f32.mrf.mxu0
      %v1584 = vpop.f32.mrf.mxu0
      %v1585 = vadd.f32 0.0, %v1584
      %v1586 = vpop.f32.mrf.mxu0
      %1587 = vmatprep.mubr.bf16.mxu0 0
      %1588 = vmatmul.mubr.bf16.gmra.mxu0 %v1502
      %v1589 = vpop.f32.mrf.mxu0
      %v1590 = vadd.f32 0.0, %v1589
      %v1591 = vpop.f32.mrf.mxu0
      %v1592 = vpop.f32.mrf.mxu0
      %v1593 = vadd.f32 0.0, %v1592
      %v1594 = vpop.f32.mrf.mxu0
      %1595 = vmatprep.mubr.bf16.mxu0 0
      %1596 = vmatmul.mubr.bf16.gmra.mxu0 %v1505
      %v1597 = vpop.f32.mrf.mxu0
      %v1598 = vadd.f32 0.0, %v1597
      %v1599 = vpop.f32.mrf.mxu0
      %v1600 = vpop.f32.mrf.mxu0
      %v1601 = vadd.f32 0.0, %v1600
      %v1602 = vpop.f32.mrf.mxu0
      %1603 = vdwg.mxu0
      %v1604 = vadd.f32 %v1363, %v1542
      %v1605 = vadd.f32 %v1364, %v1545
      %v1606 = vadd.f32 %v1365, %v1550
      %v1607 = vadd.f32 %v1366, %v1553
      %v1608 = vadd.f32 %v1367, %v1558
      %v1609 = vadd.f32 %v1368, %v1561
      %v1610 = vadd.f32 %v1369, %v1566
      %v1611 = vadd.f32 %v1370, %v1569
      %v1612 = vadd.f32 %v1371, %v1574
      %v1613 = vadd.f32 %v1372, %v1577
      %v1614 = vadd.f32 %v1373, %v1582
      %v1615 = vadd.f32 %v1374, %v1585
      %v1616 = vadd.f32 %v1375, %v1590
      %v1617 = vadd.f32 %v1376, %v1593
      %v1618 = vadd.f32 %v1377, %v1598
      %v1619 = vadd.f32 %v1378, %v1601
      %v1620 = vld [vmem:[%s5 + $0x40] sm:$0xf]
      %v1621 = vld [vmem:[%s5 + $0x44] sm:$0xf]
      %v1622 = vld [vmem:[%s5 + $0x48] sm:$0xf]
      %v1623 = vld [vmem:[%s5 + $0x4c] sm:$0xf]
      %v1624 = vpack.c.bf16 %v589, %v588
      %v1625 = vpack.c.bf16 %v591, %v590
      %v1626 = vpack.c.bf16 %v593, %v592
      %v1627 = vpack.c.bf16 %v595, %v594
      %v1628 = vpack.c.bf16 %v597, %v596
      %v1629 = vpack.c.bf16 %v599, %v598
      %v1630 = vpack.c.bf16 %v601, %v600
      %v1631 = vpack.c.bf16 %v603, %v602
      %v1636 = vunpack.c.l.b16 %v1620
      %v1637 = vunpack.c.l.b16 %v1621
      %v1638 = vunpack.c.l.b16 %v1622
      %v1639 = vunpack.c.l.b16 %v1623
      %v1640 = vpack.c.b16 %v1637, %v1636
      %v1641 = vpack.c.b16 %v1639, %v1638
      %v1645 = vsel %vm325, %v1624, 0
      %v1648 = vsel %vm325, %v1625, 0
      %v1651 = vsel %vm325, %v1626, 0
      %v1654 = vsel %vm325, %v1627, 0
      %v1657 = vsel %vm325, %v1628, 0
      %v1660 = vsel %vm325, %v1629, 0
      %v1663 = vsel %vm325, %v1630, 0
      %v1666 = vsel %vm325, %v1631, 0
      %1668 = vmatprep.subr.bf16.mxu0 0
      %1669 = vmatpush1.bf16.msra.mxu0 0
      %1670 = vmatprep.subr.bf16.mxu0 0
      %1671 = vmatpush1.bf16.msra.mxu0 0
      %1672 = vmatprep.subr.bf16.mxu0 0
      %1673 = vmatpush1.bf16.msra.mxu0 0
      %1674 = vmatprep.subr.bf16.mxu0 0
      %1675 = vmatpush1.bf16.msra.mxu0 0
      %1676 = vmatprep.subr.bf16.mxu0 0
      %1677 = vmatpush1.bf16.msra.mxu0 0
      %1678 = vmatprep.subr.bf16.mxu0 0
      %1679 = vmatpush1.bf16.msra.mxu0 0
      %1680 = vmatprep.subr.bf16.mxu0 0
      %1681 = vmatpush1.bf16.msra.mxu0 %v1641
      %1682 = vmatprep.subr.bf16.mxu0 0
      %1683 = vmatpush1.bf16.msra.mxu0 %v1640
      %1684 = vmatprep.subr.bf16.mxu0 0
      %1685 = vmatpush2.bf16.msra.mxu0 0
      %1686 = vmatprep.subr.bf16.mxu0 0
      %1687 = vmatpush2.bf16.msra.mxu0 0
      %1688 = vmatprep.subr.bf16.mxu0 0
      %1689 = vmatpush2.bf16.msra.mxu0 0
      %1690 = vmatprep.subr.bf16.mxu0 0
      %1691 = vmatpush2.bf16.msra.mxu0 0
      %1692 = vmatprep.subr.bf16.mxu0 0
      %1693 = vmatpush2.bf16.msra.mxu0 0
      %1694 = vmatprep.subr.bf16.mxu0 0
      %1695 = vmatpush2.bf16.msra.mxu0 0
      %1696 = vmatprep.subr.bf16.mxu0 0
      %1697 = vmatpush2.bf16.msra.mxu0 0
      %1698 = vmatprep.subr.bf16.mxu0 0
      %1699 = vmatpush2.bf16.msra.mxu0 0
      %1700 = vmatprep.mubr.bf16.mxu0 0
      %1701 = vmatmul.mubr.bf16.gmra.mxu0 %v1645
      %v1702 = vpop.f32.mrf.mxu0
      %v1703 = vadd.f32 0.0, %v1702
      %v1704 = vpop.f32.mrf.mxu0
      %v1705 = vpop.f32.mrf.mxu0
      %v1706 = vadd.f32 0.0, %v1705
      %v1707 = vpop.f32.mrf.mxu0
      %1708 = vmatprep.mubr.bf16.mxu0 0
      %1709 = vmatmul.mubr.bf16.gmra.mxu0 %v1648
      %v1710 = vpop.f32.mrf.mxu0
      %v1711 = vadd.f32 0.0, %v1710
      %v1712 = vpop.f32.mrf.mxu0
      %v1713 = vpop.f32.mrf.mxu0
      %v1714 = vadd.f32 0.0, %v1713
      %v1715 = vpop.f32.mrf.mxu0
      %1716 = vmatprep.mubr.bf16.mxu0 0
      %1717 = vmatmul.mubr.bf16.gmra.mxu0 %v1651
      %v1718 = vpop.f32.mrf.mxu0
      %v1719 = vadd.f32 0.0, %v1718
      %v1720 = vpop.f32.mrf.mxu0
      %v1721 = vpop.f32.mrf.mxu0
      %v1722 = vadd.f32 0.0, %v1721
      %v1723 = vpop.f32.mrf.mxu0
      %1724 = vmatprep.mubr.bf16.mxu0 0
      %1725 = vmatmul.mubr.bf16.gmra.mxu0 %v1654
      %v1726 = vpop.f32.mrf.mxu0
      %v1727 = vadd.f32 0.0, %v1726
      %v1728 = vpop.f32.mrf.mxu0
      %v1729 = vpop.f32.mrf.mxu0
      %v1730 = vadd.f32 0.0, %v1729
      %v1731 = vpop.f32.mrf.mxu0
      %1732 = vmatprep.mubr.bf16.mxu0 0
      %1733 = vmatmul.mubr.bf16.gmra.mxu0 %v1657
      %v1734 = vpop.f32.mrf.mxu0
      %v1735 = vadd.f32 0.0, %v1734
      %v1736 = vpop.f32.mrf.mxu0
      %v1737 = vpop.f32.mrf.mxu0
      %v1738 = vadd.f32 0.0, %v1737
      %v1739 = vpop.f32.mrf.mxu0
      %1740 = vmatprep.mubr.bf16.mxu0 0
      %1741 = vmatmul.mubr.bf16.gmra.mxu0 %v1660
      %v1742 = vpop.f32.mrf.mxu0
      %v1743 = vadd.f32 0.0, %v1742
      %v1744 = vpop.f32.mrf.mxu0
      %v1745 = vpop.f32.mrf.mxu0
      %v1746 = vadd.f32 0.0, %v1745
      %v1747 = vpop.f32.mrf.mxu0
      %1748 = vmatprep.mubr.bf16.mxu0 0
      %1749 = vmatmul.mubr.bf16.gmra.mxu0 %v1663
      %v1750 = vpop.f32.mrf.mxu0
      %v1751 = vadd.f32 0.0, %v1750
      %v1752 = vpop.f32.mrf.mxu0
      %v1753 = vpop.f32.mrf.mxu0
      %v1754 = vadd.f32 0.0, %v1753
      %v1755 = vpop.f32.mrf.mxu0
      %1756 = vmatprep.mubr.bf16.mxu0 0
      %1757 = vmatmul.mubr.bf16.gmra.mxu0 %v1666
      %v1758 = vpop.f32.mrf.mxu0
      %v1759 = vadd.f32 0.0, %v1758
      %v1760 = vpop.f32.mrf.mxu0
      %v1761 = vpop.f32.mrf.mxu0
      %v1762 = vadd.f32 0.0, %v1761
      %v1763 = vpop.f32.mrf.mxu0
      %1764 = vdwg.mxu0
      %v1765 = vadd.f32 %v1604, %v1703
      %v1766 = vadd.f32 %v1605, %v1706
      %v1767 = vadd.f32 %v1606, %v1711
      %v1768 = vadd.f32 %v1607, %v1714
      %v1769 = vadd.f32 %v1608, %v1719
      %v1770 = vadd.f32 %v1609, %v1722
      %v1771 = vadd.f32 %v1610, %v1727
      %v1772 = vadd.f32 %v1611, %v1730
      %v1773 = vadd.f32 %v1612, %v1735
      %v1774 = vadd.f32 %v1613, %v1738
      %v1775 = vadd.f32 %v1614, %v1743
      %v1776 = vadd.f32 %v1615, %v1746
      %v1777 = vadd.f32 %v1616, %v1751
      %v1778 = vadd.f32 %v1617, %v1754
      %v1779 = vadd.f32 %v1618, %v1759
      %v1780 = vadd.f32 %v1619, %v1762
      %1781 = vset.pattern.permute.xlu0 5
      %1782 = vperm.xlu0 %1781, %v280
      %v1783 = vpop.permute.xlu0 %1782
      %1785 = vset.pattern.permute.xlu0 5
      %1786 = vperm.xlu0 %1785, %v281
      %v1787 = vpop.permute.xlu0 %1786
      %1789 = vset.pattern.permute.xlu0 5
      %1790 = vperm.xlu0 %1789, %v282
      %v1791 = vpop.permute.xlu0 %1790
      %1793 = vset.pattern.permute.xlu0 5
      %1794 = vperm.xlu0 %1793, %v283
      %v1795 = vpop.permute.xlu0 %1794
      %1797 = vset.pattern.permute.xlu0 5
      %1798 = vperm.xlu0 %1797, %v284
      %v1799 = vpop.permute.xlu0 %1798
      %1801 = vset.pattern.permute.xlu0 5
      %1802 = vperm.xlu0 %1801, %v285
      %v1803 = vpop.permute.xlu0 %1802
      %1805 = vset.pattern.permute.xlu0 5
      %1806 = vperm.xlu0 %1805, %v286
      %v1807 = vpop.permute.xlu0 %1806
      %1809 = vset.pattern.permute.xlu0 5
      %1810 = vperm.xlu0 %1809, %v287
      %v1811 = vpop.permute.xlu0 %1810
      %1813 = vset.pattern.permute.xlu0 5
      %1814 = vperm.xlu0 %1813, %v288
      %v1815 = vpop.permute.xlu0 %1814
      %1817 = vset.pattern.permute.xlu0 5
      %1818 = vperm.xlu0 %1817, %v289
      %v1819 = vpop.permute.xlu0 %1818
      %1821 = vset.pattern.permute.xlu0 5
      %1822 = vperm.xlu0 %1821, %v290
      %v1823 = vpop.permute.xlu0 %1822
      %1825 = vset.pattern.permute.xlu0 5
      %1826 = vperm.xlu0 %1825, %v291
      %v1827 = vpop.permute.xlu0 %1826
      %1829 = vset.pattern.permute.xlu0 5
      %1830 = vperm.xlu0 %1829, %v292
      %v1831 = vpop.permute.xlu0 %1830
      %1833 = vset.pattern.permute.xlu0 5
      %1834 = vperm.xlu0 %1833, %v293
      %v1835 = vpop.permute.xlu0 %1834
      %1837 = vset.pattern.permute.xlu0 5
      %1838 = vperm.xlu0 %1837, %v294
      %v1839 = vpop.permute.xlu0 %1838
      %1841 = vset.pattern.permute.xlu0 5
      %1842 = vperm.xlu0 %1841, %v295
      %v1843 = vpop.permute.xlu0 %1842
      %v1845 = vmul.f32 %v1136, %v1783
      %v1846 = vmul.f32 %v1135, %v1787
      %v1847 = vmul.f32 %v1134, %v1791
      %v1848 = vmul.f32 %v1133, %v1795
      %v1849 = vmul.f32 %v1132, %v1799
      %v1850 = vmul.f32 %v1131, %v1803
      %v1851 = vmul.f32 %v1130, %v1807
      %v1852 = vmul.f32 %v1129, %v1811
      %v1853 = vmul.f32 %v1128, %v1815
      %v1854 = vmul.f32 %v1127, %v1819
      %v1855 = vmul.f32 %v1126, %v1823
      %v1856 = vmul.f32 %v1125, %v1827
      %v1857 = vmul.f32 %v1124, %v1831
      %v1858 = vmul.f32 %v1123, %v1835
      %v1859 = vmul.f32 %v1122, %v1839
      %v1860 = vmul.f32 %v1137, %v1843
      %v1861 = vld [vmem:[%s5 + $0x50] sm:$0xf]
      %v1862 = vld [vmem:[%s5 + $0x54] sm:$0xf]
      %v1863 = vld [vmem:[%s5 + $0x58] sm:$0xf]
      %v1864 = vld [vmem:[%s5 + $0x5c] sm:$0xf]
      %v1865 = vpack.c.bf16 %v1846, %v1845
      %v1866 = vpack.c.bf16 %v1848, %v1847
      %v1867 = vpack.c.bf16 %v1850, %v1849
      %v1868 = vpack.c.bf16 %v1852, %v1851
      %v1869 = vpack.c.bf16 %v1854, %v1853
      %v1870 = vpack.c.bf16 %v1856, %v1855
      %v1871 = vpack.c.bf16 %v1858, %v1857
      %v1872 = vpack.c.bf16 %v1860, %v1859
      %v1877 = vunpack.c.l.b16 %v1861
      %v1878 = vunpack.c.l.b16 %v1862
      %v1879 = vunpack.c.l.b16 %v1863
      %v1880 = vunpack.c.l.b16 %v1864
      %v1881 = vpack.c.b16 %v1878, %v1877
      %v1882 = vpack.c.b16 %v1880, %v1879
      %v1886 = vsel %vm325, %v1865, 0
      %v1889 = vsel %vm325, %v1866, 0
      %v1892 = vsel %vm325, %v1867, 0
      %v1895 = vsel %vm325, %v1868, 0
      %v1898 = vsel %vm325, %v1869, 0
      %v1901 = vsel %vm325, %v1870, 0
      %v1904 = vsel %vm325, %v1871, 0
      %v1907 = vsel %vm325, %v1872, 0
      %1909 = vmatprep.subr.bf16.mxu0 0
      %1910 = vmatpush1.bf16.msra.mxu0 0
      %1911 = vmatprep.subr.bf16.mxu0 0
      %1912 = vmatpush1.bf16.msra.mxu0 0
      %1913 = vmatprep.subr.bf16.mxu0 0
      %1914 = vmatpush1.bf16.msra.mxu0 0
      %1915 = vmatprep.subr.bf16.mxu0 0
      %1916 = vmatpush1.bf16.msra.mxu0 0
      %1917 = vmatprep.subr.bf16.mxu0 0
      %1918 = vmatpush1.bf16.msra.mxu0 0
      %1919 = vmatprep.subr.bf16.mxu0 0
      %1920 = vmatpush1.bf16.msra.mxu0 0
      %1921 = vmatprep.subr.bf16.mxu0 0
      %1922 = vmatpush1.bf16.msra.mxu0 %v1882
      %1923 = vmatprep.subr.bf16.mxu0 0
      %1924 = vmatpush1.bf16.msra.mxu0 %v1881
      %1925 = vmatprep.subr.bf16.mxu0 0
      %1926 = vmatpush2.bf16.msra.mxu0 0
      %1927 = vmatprep.subr.bf16.mxu0 0
      %1928 = vmatpush2.bf16.msra.mxu0 0
      %1929 = vmatprep.subr.bf16.mxu0 0
      %1930 = vmatpush2.bf16.msra.mxu0 0
      %1931 = vmatprep.subr.bf16.mxu0 0
      %1932 = vmatpush2.bf16.msra.mxu0 0
      %1933 = vmatprep.subr.bf16.mxu0 0
      %1934 = vmatpush2.bf16.msra.mxu0 0
      %1935 = vmatprep.subr.bf16.mxu0 0
      %1936 = vmatpush2.bf16.msra.mxu0 0
      %1937 = vmatprep.subr.bf16.mxu0 0
      %1938 = vmatpush2.bf16.msra.mxu0 0
      %1939 = vmatprep.subr.bf16.mxu0 0
      %1940 = vmatpush2.bf16.msra.mxu0 0
      %1941 = vmatprep.mubr.bf16.mxu0 0
      %1942 = vmatmul.mubr.bf16.gmra.mxu0 %v1886
      %v1943 = vpop.f32.mrf.mxu0
      %v1944 = vadd.f32 0.0, %v1943
      %v1945 = vpop.f32.mrf.mxu0
      %v1946 = vpop.f32.mrf.mxu0
      %v1947 = vadd.f32 0.0, %v1946
      %v1948 = vpop.f32.mrf.mxu0
      %1949 = vmatprep.mubr.bf16.mxu0 0
      %1950 = vmatmul.mubr.bf16.gmra.mxu0 %v1889
      %v1951 = vpop.f32.mrf.mxu0
      %v1952 = vadd.f32 0.0, %v1951
      %v1953 = vpop.f32.mrf.mxu0
      %v1954 = vpop.f32.mrf.mxu0
      %v1955 = vadd.f32 0.0, %v1954
      %v1956 = vpop.f32.mrf.mxu0
      %1957 = vmatprep.mubr.bf16.mxu0 0
      %1958 = vmatmul.mubr.bf16.gmra.mxu0 %v1892
      %v1959 = vpop.f32.mrf.mxu0
      %v1960 = vadd.f32 0.0, %v1959
      %v1961 = vpop.f32.mrf.mxu0
      %v1962 = vpop.f32.mrf.mxu0
      %v1963 = vadd.f32 0.0, %v1962
      %v1964 = vpop.f32.mrf.mxu0
      %1965 = vmatprep.mubr.bf16.mxu0 0
      %1966 = vmatmul.mubr.bf16.gmra.mxu0 %v1895
      %v1967 = vpop.f32.mrf.mxu0
      %v1968 = vadd.f32 0.0, %v1967
      %v1969 = vpop.f32.mrf.mxu0
      %v1970 = vpop.f32.mrf.mxu0
      %v1971 = vadd.f32 0.0, %v1970
      %v1972 = vpop.f32.mrf.mxu0
      %1973 = vmatprep.mubr.bf16.mxu0 0
      %1974 = vmatmul.mubr.bf16.gmra.mxu0 %v1898
      %v1975 = vpop.f32.mrf.mxu0
      %v1976 = vadd.f32 0.0, %v1975
      %v1977 = vpop.f32.mrf.mxu0
      %v1978 = vpop.f32.mrf.mxu0
      %v1979 = vadd.f32 0.0, %v1978
      %v1980 = vpop.f32.mrf.mxu0
      %1981 = vmatprep.mubr.bf16.mxu0 0
      %1982 = vmatmul.mubr.bf16.gmra.mxu0 %v1901
      %v1983 = vpop.f32.mrf.mxu0
      %v1984 = vadd.f32 0.0, %v1983
      %v1985 = vpop.f32.mrf.mxu0
      %v1986 = vpop.f32.mrf.mxu0
      %v1987 = vadd.f32 0.0, %v1986
      %v1988 = vpop.f32.mrf.mxu0
      %1989 = vmatprep.mubr.bf16.mxu0 0
      %1990 = vmatmul.mubr.bf16.gmra.mxu0 %v1904
      %v1991 = vpop.f32.mrf.mxu0
      %v1992 = vadd.f32 0.0, %v1991
      %v1993 = vpop.f32.mrf.mxu0
      %v1994 = vpop.f32.mrf.mxu0
      %v1995 = vadd.f32 0.0, %v1994
      %v1996 = vpop.f32.mrf.mxu0
      %1997 = vmatprep.mubr.bf16.mxu0 0
      %1998 = vmatmul.mubr.bf16.gmra.mxu0 %v1907
      %v1999 = vpop.f32.mrf.mxu0
      %v2000 = vadd.f32 0.0, %v1999
      %v2001 = vpop.f32.mrf.mxu0
      %v2002 = vpop.f32.mrf.mxu0
      %v2003 = vadd.f32 0.0, %v2002
      %v2004 = vpop.f32.mrf.mxu0
      %2005 = vdwg.mxu0
      %v2006 = vadd.f32 %v1765, %v1944
      %v2007 = vadd.f32 %v1766, %v1947
      %v2008 = vadd.f32 %v1767, %v1952
      %v2009 = vadd.f32 %v1768, %v1955
      %v2010 = vadd.f32 %v1769, %v1960
      %v2011 = vadd.f32 %v1770, %v1963
      %v2012 = vadd.f32 %v1771, %v1968
      %v2013 = vadd.f32 %v1772, %v1971
      %v2014 = vadd.f32 %v1773, %v1976
      %v2015 = vadd.f32 %v1774, %v1979
      %v2016 = vadd.f32 %v1775, %v1984
      %v2017 = vadd.f32 %v1776, %v1987
      %v2018 = vadd.f32 %v1777, %v1992
      %v2019 = vadd.f32 %v1778, %v1995
      %v2020 = vadd.f32 %v1779, %v2000
      %v2021 = vadd.f32 %v1780, %v2003
      %2022 = vset.pattern.permute.xlu0 6
      %2023 = vperm.xlu0 %2022, %v280
      %v2024 = vpop.permute.xlu0 %2023
      %2026 = vset.pattern.permute.xlu0 6
      %2027 = vperm.xlu0 %2026, %v281
      %v2028 = vpop.permute.xlu0 %2027
      %2030 = vset.pattern.permute.xlu0 6
      %2031 = vperm.xlu0 %2030, %v282
      %v2032 = vpop.permute.xlu0 %2031
      %2034 = vset.pattern.permute.xlu0 6
      %2035 = vperm.xlu0 %2034, %v283
      %v2036 = vpop.permute.xlu0 %2035
      %2038 = vset.pattern.permute.xlu0 6
      %2039 = vperm.xlu0 %2038, %v284
      %v2040 = vpop.permute.xlu0 %2039
      %2042 = vset.pattern.permute.xlu0 6
      %2043 = vperm.xlu0 %2042, %v285
      %v2044 = vpop.permute.xlu0 %2043
      %2046 = vset.pattern.permute.xlu0 6
      %2047 = vperm.xlu0 %2046, %v286
      %v2048 = vpop.permute.xlu0 %2047
      %2050 = vset.pattern.permute.xlu0 6
      %2051 = vperm.xlu0 %2050, %v287
      %v2052 = vpop.permute.xlu0 %2051
      %2054 = vset.pattern.permute.xlu0 6
      %2055 = vperm.xlu0 %2054, %v288
      %v2056 = vpop.permute.xlu0 %2055
      %2058 = vset.pattern.permute.xlu0 6
      %2059 = vperm.xlu0 %2058, %v289
      %v2060 = vpop.permute.xlu0 %2059
      %2062 = vset.pattern.permute.xlu0 6
      %2063 = vperm.xlu0 %2062, %v290
      %v2064 = vpop.permute.xlu0 %2063
      %2066 = vset.pattern.permute.xlu0 6
      %2067 = vperm.xlu0 %2066, %v291
      %v2068 = vpop.permute.xlu0 %2067
      %2070 = vset.pattern.permute.xlu0 6
      %2071 = vperm.xlu0 %2070, %v292
      %v2072 = vpop.permute.xlu0 %2071
      %2074 = vset.pattern.permute.xlu0 6
      %2075 = vperm.xlu0 %2074, %v293
      %v2076 = vpop.permute.xlu0 %2075
      %2078 = vset.pattern.permute.xlu0 6
      %2079 = vperm.xlu0 %2078, %v294
      %v2080 = vpop.permute.xlu0 %2079
      %2082 = vset.pattern.permute.xlu0 6
      %2083 = vperm.xlu0 %2082, %v295
      %v2084 = vpop.permute.xlu0 %2083
      %v2086 = vmul.f32 %v637, %v2024
      %v2087 = vmul.f32 %v636, %v2028
      %v2088 = vmul.f32 %v635, %v2032
      %v2089 = vmul.f32 %v634, %v2036
      %v2090 = vmul.f32 %v633, %v2040
      %v2091 = vmul.f32 %v632, %v2044
      %v2092 = vmul.f32 %v631, %v2048
      %v2093 = vmul.f32 %v630, %v2052
      %v2094 = vmul.f32 %v629, %v2056
      %v2095 = vmul.f32 %v628, %v2060
      %v2096 = vmul.f32 %v627, %v2064
      %v2097 = vmul.f32 %v626, %v2068
      %v2098 = vmul.f32 %v625, %v2072
      %v2099 = vmul.f32 %v624, %v2076
      %v2100 = vmul.f32 %v623, %v2080
      %v2101 = vmul.f32 %v638, %v2084
      %v2102 = vld [vmem:[%s5 + $0x60] sm:$0xf]
      %v2103 = vld [vmem:[%s5 + $0x64] sm:$0xf]
      %v2104 = vld [vmem:[%s5 + $0x68] sm:$0xf]
      %v2105 = vld [vmem:[%s5 + $0x6c] sm:$0xf]
      %v2106 = vpack.c.bf16 %v2087, %v2086
      %v2107 = vpack.c.bf16 %v2089, %v2088
      %v2108 = vpack.c.bf16 %v2091, %v2090
      %v2109 = vpack.c.bf16 %v2093, %v2092
      %v2110 = vpack.c.bf16 %v2095, %v2094
      %v2111 = vpack.c.bf16 %v2097, %v2096
      %v2112 = vpack.c.bf16 %v2099, %v2098
      %v2113 = vpack.c.bf16 %v2101, %v2100
      %v2118 = vunpack.c.l.b16 %v2102
      %v2119 = vunpack.c.l.b16 %v2103
      %v2120 = vunpack.c.l.b16 %v2104
      %v2121 = vunpack.c.l.b16 %v2105
      %v2122 = vpack.c.b16 %v2119, %v2118
      %v2123 = vpack.c.b16 %v2121, %v2120
      %v2127 = vsel %vm325, %v2106, 0
      %v2130 = vsel %vm325, %v2107, 0
      %v2133 = vsel %vm325, %v2108, 0
      %v2136 = vsel %vm325, %v2109, 0
      %v2139 = vsel %vm325, %v2110, 0
      %v2142 = vsel %vm325, %v2111, 0
      %v2145 = vsel %vm325, %v2112, 0
      %v2148 = vsel %vm325, %v2113, 0
      %2150 = vmatprep.subr.bf16.mxu0 0
      %2151 = vmatpush1.bf16.msra.mxu0 0
      %2152 = vmatprep.subr.bf16.mxu0 0
      %2153 = vmatpush1.bf16.msra.mxu0 0
      %2154 = vmatprep.subr.bf16.mxu0 0
      %2155 = vmatpush1.bf16.msra.mxu0 0
      %2156 = vmatprep.subr.bf16.mxu0 0
      %2157 = vmatpush1.bf16.msra.mxu0 0
      %2158 = vmatprep.subr.bf16.mxu0 0
      %2159 = vmatpush1.bf16.msra.mxu0 0
      %2160 = vmatprep.subr.bf16.mxu0 0
      %2161 = vmatpush1.bf16.msra.mxu0 0
      %2162 = vmatprep.subr.bf16.mxu0 0
      %2163 = vmatpush1.bf16.msra.mxu0 %v2123
      %2164 = vmatprep.subr.bf16.mxu0 0
      %2165 = vmatpush1.bf16.msra.mxu0 %v2122
      %2166 = vmatprep.subr.bf16.mxu0 0
      %2167 = vmatpush2.bf16.msra.mxu0 0
      %2168 = vmatprep.subr.bf16.mxu0 0
      %2169 = vmatpush2.bf16.msra.mxu0 0
      %2170 = vmatprep.subr.bf16.mxu0 0
      %2171 = vmatpush2.bf16.msra.mxu0 0
      %2172 = vmatprep.subr.bf16.mxu0 0
      %2173 = vmatpush2.bf16.msra.mxu0 0
      %2174 = vmatprep.subr.bf16.mxu0 0
      %2175 = vmatpush2.bf16.msra.mxu0 0
      %2176 = vmatprep.subr.bf16.mxu0 0
      %2177 = vmatpush2.bf16.msra.mxu0 0
      %2178 = vmatprep.subr.bf16.mxu0 0
      %2179 = vmatpush2.bf16.msra.mxu0 0
      %2180 = vmatprep.subr.bf16.mxu0 0
      %2181 = vmatpush2.bf16.msra.mxu0 0
      %2182 = vmatprep.mubr.bf16.mxu0 0
      %2183 = vmatmul.mubr.bf16.gmra.mxu0 %v2127
      %v2184 = vpop.f32.mrf.mxu0
      %v2185 = vadd.f32 0.0, %v2184
      %v2186 = vpop.f32.mrf.mxu0
      %v2187 = vpop.f32.mrf.mxu0
      %v2188 = vadd.f32 0.0, %v2187
      %v2189 = vpop.f32.mrf.mxu0
      %2190 = vmatprep.mubr.bf16.mxu0 0
      %2191 = vmatmul.mubr.bf16.gmra.mxu0 %v2130
      %v2192 = vpop.f32.mrf.mxu0
      %v2193 = vadd.f32 0.0, %v2192
      %v2194 = vpop.f32.mrf.mxu0
      %v2195 = vpop.f32.mrf.mxu0
      %v2196 = vadd.f32 0.0, %v2195
      %v2197 = vpop.f32.mrf.mxu0
      %2198 = vmatprep.mubr.bf16.mxu0 0
      %2199 = vmatmul.mubr.bf16.gmra.mxu0 %v2133
      %v2200 = vpop.f32.mrf.mxu0
      %v2201 = vadd.f32 0.0, %v2200
      %v2202 = vpop.f32.mrf.mxu0
      %v2203 = vpop.f32.mrf.mxu0
      %v2204 = vadd.f32 0.0, %v2203
      %v2205 = vpop.f32.mrf.mxu0
      %2206 = vmatprep.mubr.bf16.mxu0 0
      %2207 = vmatmul.mubr.bf16.gmra.mxu0 %v2136
      %v2208 = vpop.f32.mrf.mxu0
      %v2209 = vadd.f32 0.0, %v2208
      %v2210 = vpop.f32.mrf.mxu0
      %v2211 = vpop.f32.mrf.mxu0
      %v2212 = vadd.f32 0.0, %v2211
      %v2213 = vpop.f32.mrf.mxu0
      %2214 = vmatprep.mubr.bf16.mxu0 0
      %2215 = vmatmul.mubr.bf16.gmra.mxu0 %v2139
      %v2216 = vpop.f32.mrf.mxu0
      %v2217 = vadd.f32 0.0, %v2216
      %v2218 = vpop.f32.mrf.mxu0
      %v2219 = vpop.f32.mrf.mxu0
      %v2220 = vadd.f32 0.0, %v2219
      %v2221 = vpop.f32.mrf.mxu0
      %2222 = vmatprep.mubr.bf16.mxu0 0
      %2223 = vmatmul.mubr.bf16.gmra.mxu0 %v2142
      %v2224 = vpop.f32.mrf.mxu0
      %v2225 = vadd.f32 0.0, %v2224
      %v2226 = vpop.f32.mrf.mxu0
      %v2227 = vpop.f32.mrf.mxu0
      %v2228 = vadd.f32 0.0, %v2227
      %v2229 = vpop.f32.mrf.mxu0
      %2230 = vmatprep.mubr.bf16.mxu0 0
      %2231 = vmatmul.mubr.bf16.gmra.mxu0 %v2145
      %v2232 = vpop.f32.mrf.mxu0
      %v2233 = vadd.f32 0.0, %v2232
      %v2234 = vpop.f32.mrf.mxu0
      %v2235 = vpop.f32.mrf.mxu0
      %v2236 = vadd.f32 0.0, %v2235
      %v2237 = vpop.f32.mrf.mxu0
      %2238 = vmatprep.mubr.bf16.mxu0 0
      %2239 = vmatmul.mubr.bf16.gmra.mxu0 %v2148
      %v2240 = vpop.f32.mrf.mxu0
      %v2241 = vadd.f32 0.0, %v2240
      %v2242 = vpop.f32.mrf.mxu0
      %v2243 = vpop.f32.mrf.mxu0
      %v2244 = vadd.f32 0.0, %v2243
      %v2245 = vpop.f32.mrf.mxu0
      %2246 = vdwg.mxu0
      %v2247 = vadd.f32 %v2006, %v2185
      %v2248 = vadd.f32 %v2007, %v2188
      %v2249 = vadd.f32 %v2008, %v2193
      %v2250 = vadd.f32 %v2009, %v2196
      %v2251 = vadd.f32 %v2010, %v2201
      %v2252 = vadd.f32 %v2011, %v2204
      %v2253 = vadd.f32 %v2012, %v2209
      %v2254 = vadd.f32 %v2013, %v2212
      %v2255 = vadd.f32 %v2014, %v2217
      %v2256 = vadd.f32 %v2015, %v2220
      %v2257 = vadd.f32 %v2016, %v2225
      %v2258 = vadd.f32 %v2017, %v2228
      %v2259 = vadd.f32 %v2018, %v2233
      %v2260 = vadd.f32 %v2019, %v2236
      %v2261 = vadd.f32 %v2020, %v2241
      %v2262 = vadd.f32 %v2021, %v2244
      %2263 = vset.pattern.permute.xlu0 7
      %2264 = vperm.xlu0 %2263, %v280
      %v2265 = vpop.permute.xlu0 %2264
      %2267 = vset.pattern.permute.xlu0 7
      %2268 = vperm.xlu0 %2267, %v281
      %v2269 = vpop.permute.xlu0 %2268
      %2271 = vset.pattern.permute.xlu0 7
      %2272 = vperm.xlu0 %2271, %v282
      %v2273 = vpop.permute.xlu0 %2272
      %2275 = vset.pattern.permute.xlu0 7
      %2276 = vperm.xlu0 %2275, %v283
      %v2277 = vpop.permute.xlu0 %2276
      %2279 = vset.pattern.permute.xlu0 7
      %2280 = vperm.xlu0 %2279, %v284
      %v2281 = vpop.permute.xlu0 %2280
      %2283 = vset.pattern.permute.xlu0 7
      %2284 = vperm.xlu0 %2283, %v285
      %v2285 = vpop.permute.xlu0 %2284
      %2287 = vset.pattern.permute.xlu0 7
      %2288 = vperm.xlu0 %2287, %v286
      %v2289 = vpop.permute.xlu0 %2288
      %2291 = vset.pattern.permute.xlu0 7
      %2292 = vperm.xlu0 %2291, %v287
      %v2293 = vpop.permute.xlu0 %2292
      %2295 = vset.pattern.permute.xlu0 7
      %2296 = vperm.xlu0 %2295, %v288
      %v2297 = vpop.permute.xlu0 %2296
      %2299 = vset.pattern.permute.xlu0 7
      %2300 = vperm.xlu0 %2299, %v289
      %v2301 = vpop.permute.xlu0 %2300
      %2303 = vset.pattern.permute.xlu0 7
      %2304 = vperm.xlu0 %2303, %v290
      %v2305 = vpop.permute.xlu0 %2304
      %2307 = vset.pattern.permute.xlu0 7
      %2308 = vperm.xlu0 %2307, %v291
      %v2309 = vpop.permute.xlu0 %2308
      %2311 = vset.pattern.permute.xlu0 7
      %2312 = vperm.xlu0 %2311, %v292
      %v2313 = vpop.permute.xlu0 %2312
      %2315 = vset.pattern.permute.xlu0 7
      %2316 = vperm.xlu0 %2315, %v293
      %v2317 = vpop.permute.xlu0 %2316
      %2319 = vset.pattern.permute.xlu0 7
      %2320 = vperm.xlu0 %2319, %v294
      %v2321 = vpop.permute.xlu0 %2320
      %2323 = vset.pattern.permute.xlu0 7
      %2324 = vperm.xlu0 %2323, %v295
      %v2325 = vpop.permute.xlu0 %2324
      %v2327 = vmul.f32 %v589, %v2265
      %v2328 = vmul.f32 %v590, %v2269
      %v2329 = vmul.f32 %v591, %v2273
      %v2330 = vmul.f32 %v592, %v2277
      %v2331 = vmul.f32 %v593, %v2281
      %v2332 = vmul.f32 %v594, %v2285
      %v2333 = vmul.f32 %v595, %v2289
      %v2334 = vmul.f32 %v596, %v2293
      %v2335 = vmul.f32 %v597, %v2297
      %v2336 = vmul.f32 %v598, %v2301
      %v2337 = vmul.f32 %v599, %v2305
      %v2338 = vmul.f32 %v600, %v2309
      %v2339 = vmul.f32 %v601, %v2313
      %v2340 = vmul.f32 %v602, %v2317
      %v2341 = vmul.f32 %v603, %v2321
      %v2342 = vmul.f32 %v588, %v2325
      %v2343 = vld [vmem:[%s5 + $0x70] sm:$0xf]
      %v2344 = vld [vmem:[%s5 + $0x74] sm:$0xf]
      %v2345 = vld [vmem:[%s5 + $0x78] sm:$0xf]
      %v2346 = vld [vmem:[%s5 + $0x7c] sm:$0xf]
      %v2347 = vpack.c.bf16 %v2328, %v2327
      %v2348 = vpack.c.bf16 %v2330, %v2329
      %v2349 = vpack.c.bf16 %v2332, %v2331
      %v2350 = vpack.c.bf16 %v2334, %v2333
      %v2351 = vpack.c.bf16 %v2336, %v2335
      %v2352 = vpack.c.bf16 %v2338, %v2337
      %v2353 = vpack.c.bf16 %v2340, %v2339
      %v2354 = vpack.c.bf16 %v2342, %v2341
      %v2359 = vunpack.c.l.b16 %v2343
      %v2360 = vunpack.c.l.b16 %v2344
      %v2361 = vunpack.c.l.b16 %v2345
      %v2362 = vunpack.c.l.b16 %v2346
      %v2363 = vpack.c.b16 %v2360, %v2359
      %v2364 = vpack.c.b16 %v2362, %v2361
      %v2368 = vsel %vm325, %v2347, 0
      %v2371 = vsel %vm325, %v2348, 0
      %v2374 = vsel %vm325, %v2349, 0
      %v2377 = vsel %vm325, %v2350, 0
      %v2380 = vsel %vm325, %v2351, 0
      %v2383 = vsel %vm325, %v2352, 0
      %v2386 = vsel %vm325, %v2353, 0
      %v2389 = vsel %vm325, %v2354, 0
      %2391 = vmatprep.subr.bf16.mxu0 0
      %2392 = vmatpush1.bf16.msra.mxu0 0
      %2393 = vmatprep.subr.bf16.mxu0 0
      %2394 = vmatpush1.bf16.msra.mxu0 0
      %2395 = vmatprep.subr.bf16.mxu0 0
      %2396 = vmatpush1.bf16.msra.mxu0 0
      %2397 = vmatprep.subr.bf16.mxu0 0
      %2398 = vmatpush1.bf16.msra.mxu0 0
      %2399 = vmatprep.subr.bf16.mxu0 0
      %2400 = vmatpush1.bf16.msra.mxu0 0
      %2401 = vmatprep.subr.bf16.mxu0 0
      %2402 = vmatpush1.bf16.msra.mxu0 0
      %2403 = vmatprep.subr.bf16.mxu0 0
      %2404 = vmatpush1.bf16.msra.mxu0 %v2364
      %2405 = vmatprep.subr.bf16.mxu0 0
      %2406 = vmatpush1.bf16.msra.mxu0 %v2363
      %2407 = vmatprep.subr.bf16.mxu0 0
      %2408 = vmatpush2.bf16.msra.mxu0 0
      %2409 = vmatprep.subr.bf16.mxu0 0
      %2410 = vmatpush2.bf16.msra.mxu0 0
      %2411 = vmatprep.subr.bf16.mxu0 0
      %2412 = vmatpush2.bf16.msra.mxu0 0
      %2413 = vmatprep.subr.bf16.mxu0 0
      %2414 = vmatpush2.bf16.msra.mxu0 0
      %2415 = vmatprep.subr.bf16.mxu0 0
      %2416 = vmatpush2.bf16.msra.mxu0 0
      %2417 = vmatprep.subr.bf16.mxu0 0
      %2418 = vmatpush2.bf16.msra.mxu0 0
      %2419 = vmatprep.subr.bf16.mxu0 0
      %2420 = vmatpush2.bf16.msra.mxu0 0
      %2421 = vmatprep.subr.bf16.mxu0 0
      %2422 = vmatpush2.bf16.msra.mxu0 0
      %2423 = vmatprep.mubr.bf16.mxu0 0
      %2424 = vmatmul.mubr.bf16.gmra.mxu0 %v2368
      %v2425 = vpop.f32.mrf.mxu0
      %v2426 = vadd.f32 0.0, %v2425
      %v2427 = vpop.f32.mrf.mxu0
      %v2428 = vpop.f32.mrf.mxu0
      %v2429 = vadd.f32 0.0, %v2428
      %v2430 = vpop.f32.mrf.mxu0
      %2431 = vmatprep.mubr.bf16.mxu0 0
      %2432 = vmatmul.mubr.bf16.gmra.mxu0 %v2371
      %v2433 = vpop.f32.mrf.mxu0
      %v2434 = vadd.f32 0.0, %v2433
      %v2435 = vpop.f32.mrf.mxu0
      %v2436 = vpop.f32.mrf.mxu0
      %v2437 = vadd.f32 0.0, %v2436
      %v2438 = vpop.f32.mrf.mxu0
      %2439 = vmatprep.mubr.bf16.mxu0 0
      %2440 = vmatmul.mubr.bf16.gmra.mxu0 %v2374
      %v2441 = vpop.f32.mrf.mxu0
      %v2442 = vadd.f32 0.0, %v2441
      %v2443 = vpop.f32.mrf.mxu0
      %v2444 = vpop.f32.mrf.mxu0
      %v2445 = vadd.f32 0.0, %v2444
      %v2446 = vpop.f32.mrf.mxu0
      %2447 = vmatprep.mubr.bf16.mxu0 0
      %2448 = vmatmul.mubr.bf16.gmra.mxu0 %v2377
      %v2449 = vpop.f32.mrf.mxu0
      %v2450 = vadd.f32 0.0, %v2449
      %v2451 = vpop.f32.mrf.mxu0
      %v2452 = vpop.f32.mrf.mxu0
      %v2453 = vadd.f32 0.0, %v2452
      %v2454 = vpop.f32.mrf.mxu0
      %2455 = vmatprep.mubr.bf16.mxu0 0
      %2456 = vmatmul.mubr.bf16.gmra.mxu0 %v2380
      %v2457 = vpop.f32.mrf.mxu0
      %v2458 = vadd.f32 0.0, %v2457
      %v2459 = vpop.f32.mrf.mxu0
      %v2460 = vpop.f32.mrf.mxu0
      %v2461 = vadd.f32 0.0, %v2460
      %v2462 = vpop.f32.mrf.mxu0
      %2463 = vmatprep.mubr.bf16.mxu0 0
      %2464 = vmatmul.mubr.bf16.gmra.mxu0 %v2383
      %v2465 = vpop.f32.mrf.mxu0
      %v2466 = vadd.f32 0.0, %v2465
      %v2467 = vpop.f32.mrf.mxu0
      %v2468 = vpop.f32.mrf.mxu0
      %v2469 = vadd.f32 0.0, %v2468
      %v2470 = vpop.f32.mrf.mxu0
      %2471 = vmatprep.mubr.bf16.mxu0 0
      %2472 = vmatmul.mubr.bf16.gmra.mxu0 %v2386
      %v2473 = vpop.f32.mrf.mxu0
      %v2474 = vadd.f32 0.0, %v2473
      %v2475 = vpop.f32.mrf.mxu0
      %v2476 = vpop.f32.mrf.mxu0
      %v2477 = vadd.f32 0.0, %v2476
      %v2478 = vpop.f32.mrf.mxu0
      %2479 = vmatprep.mubr.bf16.mxu0 0
      %2480 = vmatmul.mubr.bf16.gmra.mxu0 %v2389
      %v2481 = vpop.f32.mrf.mxu0
      %v2482 = vadd.f32 0.0, %v2481
      %v2483 = vpop.f32.mrf.mxu0
      %v2484 = vpop.f32.mrf.mxu0
      %v2485 = vadd.f32 0.0, %v2484
      %v2486 = vpop.f32.mrf.mxu0
      %2487 = vdwg.mxu0
      %v2488 = vadd.f32 %v2247, %v2426
      %v2489 = vadd.f32 %v2248, %v2429
      %v2490 = vadd.f32 %v2249, %v2434
      %v2491 = vadd.f32 %v2250, %v2437
      %v2492 = vadd.f32 %v2251, %v2442
      %v2493 = vadd.f32 %v2252, %v2445
      %v2494 = vadd.f32 %v2253, %v2450
      %v2495 = vadd.f32 %v2254, %v2453
      %v2496 = vadd.f32 %v2255, %v2458
      %v2497 = vadd.f32 %v2256, %v2461
      %v2498 = vadd.f32 %v2257, %v2466
      %v2499 = vadd.f32 %v2258, %v2469
      %v2500 = vadd.f32 %v2259, %v2474
      %v2501 = vadd.f32 %v2260, %v2477
      %v2502 = vadd.f32 %v2261, %v2482
      %v2503 = vadd.f32 %v2262, %v2485
      %2504 = vset.pattern.permute.xlu0 8
      %2505 = vperm.xlu0 %2504, %v280
      %v2506 = vpop.permute.xlu0 %2505
      %2508 = vset.pattern.permute.xlu0 8
      %2509 = vperm.xlu0 %2508, %v281
      %v2510 = vpop.permute.xlu0 %2509
      %2512 = vset.pattern.permute.xlu0 8
      %2513 = vperm.xlu0 %2512, %v282
      %v2514 = vpop.permute.xlu0 %2513
      %2516 = vset.pattern.permute.xlu0 8
      %2517 = vperm.xlu0 %2516, %v283
      %v2518 = vpop.permute.xlu0 %2517
      %2520 = vset.pattern.permute.xlu0 8
      %2521 = vperm.xlu0 %2520, %v284
      %v2522 = vpop.permute.xlu0 %2521
      %2524 = vset.pattern.permute.xlu0 8
      %2525 = vperm.xlu0 %2524, %v285
      %v2526 = vpop.permute.xlu0 %2525
      %2528 = vset.pattern.permute.xlu0 8
      %2529 = vperm.xlu0 %2528, %v286
      %v2530 = vpop.permute.xlu0 %2529
      %2532 = vset.pattern.permute.xlu0 8
      %2533 = vperm.xlu0 %2532, %v287
      %v2534 = vpop.permute.xlu0 %2533
      %2536 = vset.pattern.permute.xlu0 8
      %2537 = vperm.xlu0 %2536, %v288
      %v2538 = vpop.permute.xlu0 %2537
      %2540 = vset.pattern.permute.xlu0 8
      %2541 = vperm.xlu0 %2540, %v289
      %v2542 = vpop.permute.xlu0 %2541
      %2544 = vset.pattern.permute.xlu0 8
      %2545 = vperm.xlu0 %2544, %v290
      %v2546 = vpop.permute.xlu0 %2545
      %2548 = vset.pattern.permute.xlu0 8
      %2549 = vperm.xlu0 %2548, %v291
      %v2550 = vpop.permute.xlu0 %2549
      %2552 = vset.pattern.permute.xlu0 8
      %2553 = vperm.xlu0 %2552, %v292
      %v2554 = vpop.permute.xlu0 %2553
      %2556 = vset.pattern.permute.xlu0 8
      %2557 = vperm.xlu0 %2556, %v293
      %v2558 = vpop.permute.xlu0 %2557
      %2560 = vset.pattern.permute.xlu0 8
      %2561 = vperm.xlu0 %2560, %v294
      %v2562 = vpop.permute.xlu0 %2561
      %2564 = vset.pattern.permute.xlu0 8
      %2565 = vperm.xlu0 %2564, %v295
      %v2566 = vpop.permute.xlu0 %2565
      %v2568 = vmul.f32 %v1135, %v2506
      %v2569 = vmul.f32 %v1134, %v2510
      %v2570 = vmul.f32 %v1133, %v2514
      %v2571 = vmul.f32 %v1132, %v2518
      %v2572 = vmul.f32 %v1131, %v2522
      %v2573 = vmul.f32 %v1130, %v2526
      %v2574 = vmul.f32 %v1129, %v2530
      %v2575 = vmul.f32 %v1128, %v2534
      %v2576 = vmul.f32 %v1127, %v2538
      %v2577 = vmul.f32 %v1126, %v2542
      %v2578 = vmul.f32 %v1125, %v2546
      %v2579 = vmul.f32 %v1124, %v2550
      %v2580 = vmul.f32 %v1123, %v2554
      %v2581 = vmul.f32 %v1122, %v2558
      %v2582 = vmul.f32 %v1137, %v2562
      %v2583 = vmul.f32 %v1136, %v2566
      %v2584 = vld [vmem:[%s5 + $0x80] sm:$0xf]
      %v2585 = vld [vmem:[%s5 + $0x84] sm:$0xf]
      %v2586 = vld [vmem:[%s5 + $0x88] sm:$0xf]
      %v2587 = vld [vmem:[%s5 + $0x8c] sm:$0xf]
      %v2588 = vpack.c.bf16 %v2569, %v2568
      %v2589 = vpack.c.bf16 %v2571, %v2570
      %v2590 = vpack.c.bf16 %v2573, %v2572
      %v2591 = vpack.c.bf16 %v2575, %v2574
      %v2592 = vpack.c.bf16 %v2577, %v2576
      %v2593 = vpack.c.bf16 %v2579, %v2578
      %v2594 = vpack.c.bf16 %v2581, %v2580
      %v2595 = vpack.c.bf16 %v2583, %v2582
      %v2600 = vunpack.c.l.b16 %v2584
      %v2601 = vunpack.c.l.b16 %v2585
      %v2602 = vunpack.c.l.b16 %v2586
      %v2603 = vunpack.c.l.b16 %v2587
      %v2604 = vpack.c.b16 %v2601, %v2600
      %v2605 = vpack.c.b16 %v2603, %v2602
      %v2609 = vsel %vm325, %v2588, 0
      %v2612 = vsel %vm325, %v2589, 0
      %v2615 = vsel %vm325, %v2590, 0
      %v2618 = vsel %vm325, %v2591, 0
      %v2621 = vsel %vm325, %v2592, 0
      %v2624 = vsel %vm325, %v2593, 0
      %v2627 = vsel %vm325, %v2594, 0
      %v2630 = vsel %vm325, %v2595, 0
      %2632 = vmatprep.subr.bf16.mxu0 0
      %2633 = vmatpush1.bf16.msra.mxu0 0
      %2634 = vmatprep.subr.bf16.mxu0 0
      %2635 = vmatpush1.bf16.msra.mxu0 0
      %2636 = vmatprep.subr.bf16.mxu0 0
      %2637 = vmatpush1.bf16.msra.mxu0 0
      %2638 = vmatprep.subr.bf16.mxu0 0
      %2639 = vmatpush1.bf16.msra.mxu0 0
      %2640 = vmatprep.subr.bf16.mxu0 0
      %2641 = vmatpush1.bf16.msra.mxu0 0
      %2642 = vmatprep.subr.bf16.mxu0 0
      %2643 = vmatpush1.bf16.msra.mxu0 0
      %2644 = vmatprep.subr.bf16.mxu0 0
      %2645 = vmatpush1.bf16.msra.mxu0 %v2605
      %2646 = vmatprep.subr.bf16.mxu0 0
      %2647 = vmatpush1.bf16.msra.mxu0 %v2604
      %2648 = vmatprep.subr.bf16.mxu0 0
      %2649 = vmatpush2.bf16.msra.mxu0 0
      %2650 = vmatprep.subr.bf16.mxu0 0
      %2651 = vmatpush2.bf16.msra.mxu0 0
      %2652 = vmatprep.subr.bf16.mxu0 0
      %2653 = vmatpush2.bf16.msra.mxu0 0
      %2654 = vmatprep.subr.bf16.mxu0 0
      %2655 = vmatpush2.bf16.msra.mxu0 0
      %2656 = vmatprep.subr.bf16.mxu0 0
      %2657 = vmatpush2.bf16.msra.mxu0 0
      %2658 = vmatprep.subr.bf16.mxu0 0
      %2659 = vmatpush2.bf16.msra.mxu0 0
      %2660 = vmatprep.subr.bf16.mxu0 0
      %2661 = vmatpush2.bf16.msra.mxu0 0
      %2662 = vmatprep.subr.bf16.mxu0 0
      %2663 = vmatpush2.bf16.msra.mxu0 0
      %2664 = vmatprep.mubr.bf16.mxu0 0
      %2665 = vmatmul.mubr.bf16.gmra.mxu0 %v2609
      %v2666 = vpop.f32.mrf.mxu0
      %v2667 = vadd.f32 0.0, %v2666
      %v2668 = vpop.f32.mrf.mxu0
      %v2669 = vpop.f32.mrf.mxu0
      %v2670 = vadd.f32 0.0, %v2669
      %v2671 = vpop.f32.mrf.mxu0
      %2672 = vmatprep.mubr.bf16.mxu0 0
      %2673 = vmatmul.mubr.bf16.gmra.mxu0 %v2612
      %v2674 = vpop.f32.mrf.mxu0
      %v2675 = vadd.f32 0.0, %v2674
      %v2676 = vpop.f32.mrf.mxu0
      %v2677 = vpop.f32.mrf.mxu0
      %v2678 = vadd.f32 0.0, %v2677
      %v2679 = vpop.f32.mrf.mxu0
      %2680 = vmatprep.mubr.bf16.mxu0 0
      %2681 = vmatmul.mubr.bf16.gmra.mxu0 %v2615
      %v2682 = vpop.f32.mrf.mxu0
      %v2683 = vadd.f32 0.0, %v2682
      %v2684 = vpop.f32.mrf.mxu0
      %v2685 = vpop.f32.mrf.mxu0
      %v2686 = vadd.f32 0.0, %v2685
      %v2687 = vpop.f32.mrf.mxu0
      %2688 = vmatprep.mubr.bf16.mxu0 0
      %2689 = vmatmul.mubr.bf16.gmra.mxu0 %v2618
      %v2690 = vpop.f32.mrf.mxu0
      %v2691 = vadd.f32 0.0, %v2690
      %v2692 = vpop.f32.mrf.mxu0
      %v2693 = vpop.f32.mrf.mxu0
      %v2694 = vadd.f32 0.0, %v2693
      %v2695 = vpop.f32.mrf.mxu0
      %2696 = vmatprep.mubr.bf16.mxu0 0
      %2697 = vmatmul.mubr.bf16.gmra.mxu0 %v2621
      %v2698 = vpop.f32.mrf.mxu0
      %v2699 = vadd.f32 0.0, %v2698
      %v2700 = vpop.f32.mrf.mxu0
      %v2701 = vpop.f32.mrf.mxu0
      %v2702 = vadd.f32 0.0, %v2701
      %v2703 = vpop.f32.mrf.mxu0
      %2704 = vmatprep.mubr.bf16.mxu0 0
      %2705 = vmatmul.mubr.bf16.gmra.mxu0 %v2624
      %v2706 = vpop.f32.mrf.mxu0
      %v2707 = vadd.f32 0.0, %v2706
      %v2708 = vpop.f32.mrf.mxu0
      %v2709 = vpop.f32.mrf.mxu0
      %v2710 = vadd.f32 0.0, %v2709
      %v2711 = vpop.f32.mrf.mxu0
      %2712 = vmatprep.mubr.bf16.mxu0 0
      %2713 = vmatmul.mubr.bf16.gmra.mxu0 %v2627
      %v2714 = vpop.f32.mrf.mxu0
      %v2715 = vadd.f32 0.0, %v2714
      %v2716 = vpop.f32.mrf.mxu0
      %v2717 = vpop.f32.mrf.mxu0
      %v2718 = vadd.f32 0.0, %v2717
      %v2719 = vpop.f32.mrf.mxu0
      %2720 = vmatprep.mubr.bf16.mxu0 0
      %2721 = vmatmul.mubr.bf16.gmra.mxu0 %v2630
      %v2722 = vpop.f32.mrf.mxu0
      %v2723 = vadd.f32 0.0, %v2722
      %v2724 = vpop.f32.mrf.mxu0
      %v2725 = vpop.f32.mrf.mxu0
      %v2726 = vadd.f32 0.0, %v2725
      %v2727 = vpop.f32.mrf.mxu0
      %2728 = vdwg.mxu0
      %v2729 = vadd.f32 %v2488, %v2667
      %v2730 = vadd.f32 %v2489, %v2670
      %v2731 = vadd.f32 %v2490, %v2675
      %v2732 = vadd.f32 %v2491, %v2678
      %v2733 = vadd.f32 %v2492, %v2683
      %v2734 = vadd.f32 %v2493, %v2686
      %v2735 = vadd.f32 %v2494, %v2691
      %v2736 = vadd.f32 %v2495, %v2694
      %v2737 = vadd.f32 %v2496, %v2699
      %v2738 = vadd.f32 %v2497, %v2702
      %v2739 = vadd.f32 %v2498, %v2707
      %v2740 = vadd.f32 %v2499, %v2710
      %v2741 = vadd.f32 %v2500, %v2715
      %v2742 = vadd.f32 %v2501, %v2718
      %v2743 = vadd.f32 %v2502, %v2723
      %v2744 = vadd.f32 %v2503, %v2726
      %v2745 = vlaneseq
      %v2746 = vshrl.u32 %v2745, 7
      %v2747 = vsub.s32 0, %v2746
      %v2748 = vrot.slane %v314, %v2747
      %v2749 = vadd.f32 %v2729, %v2748
      %v2750 = vadd.f32 %v2730, %v2748
      %v2751 = vadd.f32 %v2731, %v2748
      %v2752 = vadd.f32 %v2732, %v2748
      %v2753 = vadd.f32 %v2733, %v2748
      %v2754 = vadd.f32 %v2734, %v2748
      %v2755 = vadd.f32 %v2735, %v2748
      %v2756 = vadd.f32 %v2736, %v2748
      %v2757 = vadd.f32 %v2737, %v2748
      %v2758 = vadd.f32 %v2738, %v2748
      %v2759 = vadd.f32 %v2739, %v2748
      %v2760 = vadd.f32 %v2740, %v2748
      %v2761 = vadd.f32 %v2741, %v2748
      %v2762 = vadd.f32 %v2742, %v2748
      %v2763 = vadd.f32 %v2743, %v2748
      %v2764 = vadd.f32 %v2744, %v2748
      %v2765 = vld [vmem:[%s4 + $0x20] sm:$0xff]
      %v2766 = vld [vmem:[%s4 + $0x28] sm:$0xff]
      %v2767 = vld [vmem:[%s4 + $0x30] sm:$0xff]
      %v2768 = vld [vmem:[%s4 + $0x38] sm:$0xff]
      %v2769 = vld [vmem:[%s4 + $0x40] sm:$0xff]
      %v2770 = vld [vmem:[%s4 + $0x48] sm:$0xff]
      %v2771 = vld [vmem:[%s4 + $0x50] sm:$0xff]
      %v2772 = vld [vmem:[%s4 + $0x58] sm:$0xff]
      %v2773 = vld [vmem:[%s4 + $0x80] sm:$0xff]
      %v2774 = vld [vmem:[%s4 + $0x88] sm:$0xff]
      %v2775 = vld [vmem:[%s4 + $0x90] sm:$0xff]
      %v2776 = vld [vmem:[%s4 + $0x98] sm:$0xff]
      %vm2777 = vcmask 523264
      %v2778 = vsel %vm2777, %v2749, 0.0
      %v2779 = vsel %vm2777, %v2750, 0.0
      %v2780 = vadd.f32 %v2778, %v2779
      %v2781 = vsel %vm2777, %v2751, 0.0
      %v2782 = vadd.f32 %v2780, %v2781
      %v2783 = vsel %vm2777, %v2752, 0.0
      %v2784 = vadd.f32 %v2782, %v2783
      %v2785 = vsel %vm2777, %v2753, 0.0
      %v2786 = vadd.f32 %v2784, %v2785
      %v2787 = vsel %vm2777, %v2754, 0.0
      %v2788 = vadd.f32 %v2786, %v2787
      %v2789 = vsel %vm2777, %v2755, 0.0
      %v2790 = vadd.f32 %v2788, %v2789
      %v2791 = vsel %vm2777, %v2756, 0.0
      %v2792 = vadd.f32 %v2790, %v2791
      %v2793 = vrot.slane %v2792, 4
      %v2794 = vadd.f32 %v2792, %v2793
      %v2795 = vrot.slane %v2794, 2
      %v2796 = vadd.f32 %v2794, %v2795
      %v2797 = vrot.slane %v2796, 1
      %v2798 = vadd.f32 %v2796, %v2797
      %v2799 = vmul.f32 %v2749, %v2749
      %v2800 = vmul.f32 %v2750, %v2750
      %v2801 = vmul.f32 %v2751, %v2751
      %v2802 = vmul.f32 %v2752, %v2752
      %v2803 = vmul.f32 %v2753, %v2753
      %v2804 = vmul.f32 %v2754, %v2754
      %v2805 = vmul.f32 %v2755, %v2755
      %v2806 = vmul.f32 %v2756, %v2756
      %v2807 = vsel %vm2777, %v2799, 0.0
      %v2808 = vsel %vm2777, %v2800, 0.0
      %v2809 = vadd.f32 %v2807, %v2808
      %v2810 = vsel %vm2777, %v2801, 0.0
      %v2811 = vadd.f32 %v2809, %v2810
      %v2812 = vsel %vm2777, %v2802, 0.0
      %v2813 = vadd.f32 %v2811, %v2812
      %v2814 = vsel %vm2777, %v2803, 0.0
      %v2815 = vadd.f32 %v2813, %v2814
      %v2816 = vsel %vm2777, %v2804, 0.0
      %v2817 = vadd.f32 %v2815, %v2816
      %v2818 = vsel %vm2777, %v2805, 0.0
      %v2819 = vadd.f32 %v2817, %v2818
      %v2820 = vsel %vm2777, %v2806, 0.0
      %v2821 = vadd.f32 %v2819, %v2820
      %v2822 = vrot.slane %v2821, 4
      %v2823 = vadd.f32 %v2821, %v2822
      %v2824 = vrot.slane %v2823, 2
      %v2825 = vadd.f32 %v2823, %v2824
      %v2826 = vrot.slane %v2825, 1
      %v2827 = vadd.f32 %v2825, %v2826
      %vm2828 = vcmask 1040384
      %v2829 = vsel %vm2828, %v2798, %v2827
      %v2831 = vsel %vm2777, %v2829, 0
      %2833 = vmatprep.subr.mxu0 0.0
      %2834 = vmatpush1.msra.mxu0 0.0
      %2835 = vmatprep.subr.mxu0 0.0
      %2836 = vmatpush1.msra.mxu0 0.0
      %2837 = vmatprep.subr.mxu0 0.0
      %2838 = vmatpush1.msra.mxu0 0.0
      %2839 = vmatprep.subr.mxu0 0.0
      %2840 = vmatpush1.msra.mxu0 0.0
      %2841 = vmatprep.subr.mxu0 0.0
      %2842 = vmatpush1.msra.mxu0 0.0
      %2843 = vmatprep.subr.mxu0 0.0
      %2844 = vmatpush1.msra.mxu0 0.0
      %2845 = vmatprep.subr.mxu0 0.0
      %2846 = vmatpush1.msra.mxu0 0.0
      %2847 = vmatprep.subr.mxu0 0.0
      %2848 = vmatpush1.msra.mxu0 0.0
      %2849 = vmatprep.subr.mxu0 0.0
      %2850 = vmatpush1.msra.mxu0 %v2772
      %2851 = vmatprep.subr.mxu0 0.0
      %2852 = vmatpush1.msra.mxu0 %v2771
      %2853 = vmatprep.subr.mxu0 0.0
      %2854 = vmatpush1.msra.mxu0 %v2770
      %2855 = vmatprep.subr.mxu0 0.0
      %2856 = vmatpush1.msra.mxu0 %v2769
      %2857 = vmatprep.subr.mxu0 0.0
      %2858 = vmatpush1.msra.mxu0 %v2768
      %2859 = vmatprep.subr.mxu0 0.0
      %2860 = vmatpush1.msra.mxu0 %v2767
      %2861 = vmatprep.subr.mxu0 0.0
      %2862 = vmatpush1.msra.mxu0 %v2766
      %2863 = vmatprep.subr.mxu0 0.0
      %2864 = vmatpush1.msra.mxu0 %v2765
      %2865 = vmatprep.subr.mxu0 0.0
      %2866 = vmatpush2.msra.mxu0 0.0
      %2867 = vmatprep.subr.mxu0 0.0
      %2868 = vmatpush2.msra.mxu0 0.0
      %2869 = vmatprep.subr.mxu0 0.0
      %2870 = vmatpush2.msra.mxu0 0.0
      %2871 = vmatprep.subr.mxu0 0.0
      %2872 = vmatpush2.msra.mxu0 0.0
      %2873 = vmatprep.subr.mxu0 0.0
      %2874 = vmatpush2.msra.mxu0 0.0
      %2875 = vmatprep.subr.mxu0 0.0
      %2876 = vmatpush2.msra.mxu0 0.0
      %2877 = vmatprep.subr.mxu0 0.0
      %2878 = vmatpush2.msra.mxu0 0.0
      %2879 = vmatprep.subr.mxu0 0.0
      %2880 = vmatpush2.msra.mxu0 0.0
      %2881 = vmatprep.subr.mxu0 0.0
      %2882 = vmatpush2.msra.mxu0 0.0
      %2883 = vmatprep.subr.mxu0 0.0
      %2884 = vmatpush2.msra.mxu0 0.0
      %2885 = vmatprep.subr.mxu0 0.0
      %2886 = vmatpush2.msra.mxu0 0.0
      %2887 = vmatprep.subr.mxu0 0.0
      %2888 = vmatpush2.msra.mxu0 0.0
      %2889 = vmatprep.subr.mxu0 0.0
      %2890 = vmatpush2.msra.mxu0 0.0
      %2891 = vmatprep.subr.mxu0 0.0
      %2892 = vmatpush2.msra.mxu0 0.0
      %2893 = vmatprep.subr.mxu0 0.0
      %2894 = vmatpush2.msra.mxu0 0.0
      %2895 = vmatprep.subr.mxu0 0.0
      %2896 = vmatpush2.msra.mxu0 0.0
      %2897 = vmatprep.mubr.f32.mxu0 0.0
      %2898 = vmatmul.mubr.f32.gmra.mxu0 %v2831
      %v2899 = vpop.f32.mrf.mxu0
      %v2900 = vadd.f32 0.0, %v2899
      %v2901 = vpop.f32.mrf.mxu0
      %2902 = vdwg.mxu0
      %v2903 = vmul.f32 %v2900, 0.0078125
      %v2904 = vmul.f32 %v2903, %v2903
      %v2906 = vrot.slane %v2904, 7
      %v2908 = vsub.f32 %v2903, %v2906
      %v2909 = vadd.f32 %v2908, 1e-06
      %v2910 = vrsqrt.pop %v2909
      %v2911 = vsel %vm2828, %v2903, %v2910
      %v2913 = vsel %vm325, %v2911, 0
      %2915 = vmatprep.subr.mxu0 0.0
      %2916 = vmatpush1.msra.mxu0 0.0
      %2917 = vmatprep.subr.mxu0 0.0
      %2918 = vmatpush1.msra.mxu0 0.0
      %2919 = vmatprep.subr.mxu0 0.0
      %2920 = vmatpush1.msra.mxu0 0.0
      %2921 = vmatprep.subr.mxu0 0.0
      %2922 = vmatpush1.msra.mxu0 0.0
      %2923 = vmatprep.subr.mxu0 0.0
      %2924 = vmatpush1.msra.mxu0 0.0
      %2925 = vmatprep.subr.mxu0 0.0
      %2926 = vmatpush1.msra.mxu0 0.0
      %2927 = vmatprep.subr.mxu0 0.0
      %2928 = vmatpush1.msra.mxu0 0.0
      %2929 = vmatprep.subr.mxu0 0.0
      %2930 = vmatpush1.msra.mxu0 0.0
      %2931 = vmatprep.subr.mxu0 0.0
      %2932 = vmatpush1.msra.mxu0 0.0
      %2933 = vmatprep.subr.mxu0 0.0
      %2934 = vmatpush1.msra.mxu0 0.0
      %2935 = vmatprep.subr.mxu0 0.0
      %2936 = vmatpush1.msra.mxu0 0.0
      %2937 = vmatprep.subr.mxu0 0.0
      %2938 = vmatpush1.msra.mxu0 0.0
      %2939 = vmatprep.subr.mxu0 0.0
      %2940 = vmatpush1.msra.mxu0 %v2776
      %2941 = vmatprep.subr.mxu0 0.0
      %2942 = vmatpush1.msra.mxu0 %v2775
      %2943 = vmatprep.subr.mxu0 0.0
      %2944 = vmatpush1.msra.mxu0 %v2774
      %2945 = vmatprep.subr.mxu0 0.0
      %2946 = vmatpush1.msra.mxu0 %v2773
      %2947 = vmatprep.subr.mxu0 0.0
      %2948 = vmatpush2.msra.mxu0 0.0
      %2949 = vmatprep.subr.mxu0 0.0
      %2950 = vmatpush2.msra.mxu0 0.0
      %2951 = vmatprep.subr.mxu0 0.0
      %2952 = vmatpush2.msra.mxu0 0.0
      %2953 = vmatprep.subr.mxu0 0.0
      %2954 = vmatpush2.msra.mxu0 0.0
      %2955 = vmatprep.subr.mxu0 0.0
      %2956 = vmatpush2.msra.mxu0 0.0
      %2957 = vmatprep.subr.mxu0 0.0
      %2958 = vmatpush2.msra.mxu0 0.0
      %2959 = vmatprep.subr.mxu0 0.0
      %2960 = vmatpush2.msra.mxu0 0.0
      %2961 = vmatprep.subr.mxu0 0.0
      %2962 = vmatpush2.msra.mxu0 0.0
      %2963 = vmatprep.subr.mxu0 0.0
      %2964 = vmatpush2.msra.mxu0 0.0
      %2965 = vmatprep.subr.mxu0 0.0
      %2966 = vmatpush2.msra.mxu0 0.0
      %2967 = vmatprep.subr.mxu0 0.0
      %2968 = vmatpush2.msra.mxu0 0.0
      %2969 = vmatprep.subr.mxu0 0.0
      %2970 = vmatpush2.msra.mxu0 0.0
      %2971 = vmatprep.subr.mxu0 0.0
      %2972 = vmatpush2.msra.mxu0 0.0
      %2973 = vmatprep.subr.mxu0 0.0
      %2974 = vmatpush2.msra.mxu0 0.0
      %2975 = vmatprep.subr.mxu0 0.0
      %2976 = vmatpush2.msra.mxu0 0.0
      %2977 = vmatprep.subr.mxu0 0.0
      %2978 = vmatpush2.msra.mxu0 0.0
      %2979 = vmatprep.mubr.f32.mxu0 0.0
      %2980 = vmatmul.mubr.f32.gmra.mxu0 %v2913
      %v2981 = vpop.f32.mrf.mxu0
      %v2982 = vadd.f32 0.0, %v2981
      %v2983 = vpop.f32.mrf.mxu0
      %2984 = vdwg.mxu0
      %v2986 = vrot.slane %v315, 7
      %v2988 = vmul.f32 %v2982, %v2986
      %v2990 = vrot.slane %v2988, 1
      %v2992 = vmul.f32 %v2982, %v2990
      %v2993 = vsub.f32 %v316, %v2992
      %v2994 = vlaneseq
      %v2995 = vshrl.u32 %v2994, 7
      %v2996 = vsub.s32 1, %v2995
      %v2997 = vrot.slane %v2988, %v2996
      %v2998 = vmul.f32 %v2749, %v2997
      %v2999 = vmul.f32 %v2750, %v2997
      %v3000 = vmul.f32 %v2751, %v2997
      %v3001 = vmul.f32 %v2752, %v2997
      %v3002 = vmul.f32 %v2753, %v2997
      %v3003 = vmul.f32 %v2754, %v2997
      %v3004 = vmul.f32 %v2755, %v2997
      %v3005 = vmul.f32 %v2756, %v2997
      %v3006 = vlaneseq
      %v3007 = vshrl.u32 %v3006, 7
      %v3008 = vsub.s32 0, %v3007
      %v3009 = vrot.slane %v2993, %v3008
      %v3010 = vadd.f32 %v2998, %v3009
      %v3011 = vadd.f32 %v2999, %v3009
      %v3012 = vadd.f32 %v3000, %v3009
      %v3013 = vadd.f32 %v3001, %v3009
      %v3014 = vadd.f32 %v3002, %v3009
      %v3015 = vadd.f32 %v3003, %v3009
      %v3016 = vadd.f32 %v3004, %v3009
      %v3017 = vadd.f32 %v3005, %v3009
      %v3018 = vsel %vm2777, %v2757, 0.0
      %v3019 = vsel %vm2777, %v2758, 0.0
      %v3020 = vadd.f32 %v3018, %v3019
      %v3021 = vsel %vm2777, %v2759, 0.0
      %v3022 = vadd.f32 %v3020, %v3021
      %v3023 = vsel %vm2777, %v2760, 0.0
      %v3024 = vadd.f32 %v3022, %v3023
      %v3025 = vsel %vm2777, %v2761, 0.0
      %v3026 = vadd.f32 %v3024, %v3025
      %v3027 = vsel %vm2777, %v2762, 0.0
      %v3028 = vadd.f32 %v3026, %v3027
      %v3029 = vsel %vm2777, %v2763, 0.0
      %v3030 = vadd.f32 %v3028, %v3029
      %v3031 = vsel %vm2777, %v2764, 0.0
      %v3032 = vadd.f32 %v3030, %v3031
      %v3033 = vrot.slane %v3032, 4
      %v3034 = vadd.f32 %v3032, %v3033
      %v3035 = vrot.slane %v3034, 2
      %v3036 = vadd.f32 %v3034, %v3035
      %v3037 = vrot.slane %v3036, 1
      %v3038 = vadd.f32 %v3036, %v3037
      %v3039 = vmul.f32 %v2757, %v2757
      %v3040 = vmul.f32 %v2758, %v2758
      %v3041 = vmul.f32 %v2759, %v2759
      %v3042 = vmul.f32 %v2760, %v2760
      %v3043 = vmul.f32 %v2761, %v2761
      %v3044 = vmul.f32 %v2762, %v2762
      %v3045 = vmul.f32 %v2763, %v2763
      %v3046 = vmul.f32 %v2764, %v2764
      %v3047 = vsel %vm2777, %v3039, 0.0
      %v3048 = vsel %vm2777, %v3040, 0.0
      %v3049 = vadd.f32 %v3047, %v3048
      %v3050 = vsel %vm2777, %v3041, 0.0
      %v3051 = vadd.f32 %v3049, %v3050
      %v3052 = vsel %vm2777, %v3042, 0.0
      %v3053 = vadd.f32 %v3051, %v3052
      %v3054 = vsel %vm2777, %v3043, 0.0
      %v3055 = vadd.f32 %v3053, %v3054
      %v3056 = vsel %vm2777, %v3044, 0.0
      %v3057 = vadd.f32 %v3055, %v3056
      %v3058 = vsel %vm2777, %v3045, 0.0
      %v3059 = vadd.f32 %v3057, %v3058
      %v3060 = vsel %vm2777, %v3046, 0.0
      %v3061 = vadd.f32 %v3059, %v3060
      %v3062 = vrot.slane %v3061, 4
      %v3063 = vadd.f32 %v3061, %v3062
      %v3064 = vrot.slane %v3063, 2
      %v3065 = vadd.f32 %v3063, %v3064
      %v3066 = vrot.slane %v3065, 1
      %v3067 = vadd.f32 %v3065, %v3066
      %v3068 = vsel %vm2828, %v3038, %v3067
      %v3070 = vsel %vm2777, %v3068, 0
      %3072 = vmatprep.subr.mxu0 0.0
      %3073 = vmatpush1.msra.mxu0 0.0
      %3074 = vmatprep.subr.mxu0 0.0
      %3075 = vmatpush1.msra.mxu0 0.0
      %3076 = vmatprep.subr.mxu0 0.0
      %3077 = vmatpush1.msra.mxu0 0.0
      %3078 = vmatprep.subr.mxu0 0.0
      %3079 = vmatpush1.msra.mxu0 0.0
      %3080 = vmatprep.subr.mxu0 0.0
      %3081 = vmatpush1.msra.mxu0 0.0
      %3082 = vmatprep.subr.mxu0 0.0
      %3083 = vmatpush1.msra.mxu0 0.0
      %3084 = vmatprep.subr.mxu0 0.0
      %3085 = vmatpush1.msra.mxu0 0.0
      %3086 = vmatprep.subr.mxu0 0.0
      %3087 = vmatpush1.msra.mxu0 0.0
      %3088 = vmatprep.subr.mxu0 0.0
      %3089 = vmatpush1.msra.mxu0 %v2772
      %3090 = vmatprep.subr.mxu0 0.0
      %3091 = vmatpush1.msra.mxu0 %v2771
      %3092 = vmatprep.subr.mxu0 0.0
      %3093 = vmatpush1.msra.mxu0 %v2770
      %3094 = vmatprep.subr.mxu0 0.0
      %3095 = vmatpush1.msra.mxu0 %v2769
      %3096 = vmatprep.subr.mxu0 0.0
      %3097 = vmatpush1.msra.mxu0 %v2768
      %3098 = vmatprep.subr.mxu0 0.0
      %3099 = vmatpush1.msra.mxu0 %v2767
      %3100 = vmatprep.subr.mxu0 0.0
      %3101 = vmatpush1.msra.mxu0 %v2766
      %3102 = vmatprep.subr.mxu0 0.0
      %3103 = vmatpush1.msra.mxu0 %v2765
      %3104 = vmatprep.subr.mxu0 0.0
      %3105 = vmatpush2.msra.mxu0 0.0
      %3106 = vmatprep.subr.mxu0 0.0
      %3107 = vmatpush2.msra.mxu0 0.0
      %3108 = vmatprep.subr.mxu0 0.0
      %3109 = vmatpush2.msra.mxu0 0.0
      %3110 = vmatprep.subr.mxu0 0.0
      %3111 = vmatpush2.msra.mxu0 0.0
      %3112 = vmatprep.subr.mxu0 0.0
      %3113 = vmatpush2.msra.mxu0 0.0
      %3114 = vmatprep.subr.mxu0 0.0
      %3115 = vmatpush2.msra.mxu0 0.0
      %3116 = vmatprep.subr.mxu0 0.0
      %3117 = vmatpush2.msra.mxu0 0.0
      %3118 = vmatprep.subr.mxu0 0.0
      %3119 = vmatpush2.msra.mxu0 0.0
      %3120 = vmatprep.subr.mxu0 0.0
      %3121 = vmatpush2.msra.mxu0 0.0
      %3122 = vmatprep.subr.mxu0 0.0
      %3123 = vmatpush2.msra.mxu0 0.0
      %3124 = vmatprep.subr.mxu0 0.0
      %3125 = vmatpush2.msra.mxu0 0.0
      %3126 = vmatprep.subr.mxu0 0.0
      %3127 = vmatpush2.msra.mxu0 0.0
      %3128 = vmatprep.subr.mxu0 0.0
      %3129 = vmatpush2.msra.mxu0 0.0
      %3130 = vmatprep.subr.mxu0 0.0
      %3131 = vmatpush2.msra.mxu0 0.0
      %3132 = vmatprep.subr.mxu0 0.0
      %3133 = vmatpush2.msra.mxu0 0.0
      %3134 = vmatprep.subr.mxu0 0.0
      %3135 = vmatpush2.msra.mxu0 0.0
      %3136 = vmatprep.mubr.f32.mxu0 0.0
      %3137 = vmatmul.mubr.f32.gmra.mxu0 %v3070
      %v3138 = vpop.f32.mrf.mxu0
      %v3139 = vadd.f32 0.0, %v3138
      %v3140 = vpop.f32.mrf.mxu0
      %3141 = vdwg.mxu0
      %v3142 = vmul.f32 %v3139, 0.0078125
      %v3143 = vmul.f32 %v3142, %v3142
      %v3145 = vrot.slane %v3143, 7
      %v3147 = vsub.f32 %v3142, %v3145
      %v3148 = vadd.f32 %v3147, 1e-06
      %v3149 = vrsqrt.pop %v3148
      %v3150 = vsel %vm2828, %v3142, %v3149
      %v3152 = vsel %vm325, %v3150, 0
      %3154 = vmatprep.subr.mxu0 0.0
      %3155 = vmatpush1.msra.mxu0 0.0
      %3156 = vmatprep.subr.mxu0 0.0
      %3157 = vmatpush1.msra.mxu0 0.0
      %3158 = vmatprep.subr.mxu0 0.0
      %3159 = vmatpush1.msra.mxu0 0.0
      %3160 = vmatprep.subr.mxu0 0.0
      %3161 = vmatpush1.msra.mxu0 0.0
      %3162 = vmatprep.subr.mxu0 0.0
      %3163 = vmatpush1.msra.mxu0 0.0
      %3164 = vmatprep.subr.mxu0 0.0
      %3165 = vmatpush1.msra.mxu0 0.0
      %3166 = vmatprep.subr.mxu0 0.0
      %3167 = vmatpush1.msra.mxu0 0.0
      %3168 = vmatprep.subr.mxu0 0.0
      %3169 = vmatpush1.msra.mxu0 0.0
      %3170 = vmatprep.subr.mxu0 0.0
      %3171 = vmatpush1.msra.mxu0 0.0
      %3172 = vmatprep.subr.mxu0 0.0
      %3173 = vmatpush1.msra.mxu0 0.0
      %3174 = vmatprep.subr.mxu0 0.0
      %3175 = vmatpush1.msra.mxu0 0.0
      %3176 = vmatprep.subr.mxu0 0.0
      %3177 = vmatpush1.msra.mxu0 0.0
      %3178 = vmatprep.subr.mxu0 0.0
      %3179 = vmatpush1.msra.mxu0 %v2776
      %3180 = vmatprep.subr.mxu0 0.0
      %3181 = vmatpush1.msra.mxu0 %v2775
      %3182 = vmatprep.subr.mxu0 0.0
      %3183 = vmatpush1.msra.mxu0 %v2774
      %3184 = vmatprep.subr.mxu0 0.0
      %3185 = vmatpush1.msra.mxu0 %v2773
      %3186 = vmatprep.subr.mxu0 0.0
      %3187 = vmatpush2.msra.mxu0 0.0
      %3188 = vmatprep.subr.mxu0 0.0
      %3189 = vmatpush2.msra.mxu0 0.0
      %3190 = vmatprep.subr.mxu0 0.0
      %3191 = vmatpush2.msra.mxu0 0.0
      %3192 = vmatprep.subr.mxu0 0.0
      %3193 = vmatpush2.msra.mxu0 0.0
      %3194 = vmatprep.subr.mxu0 0.0
      %3195 = vmatpush2.msra.mxu0 0.0
      %3196 = vmatprep.subr.mxu0 0.0
      %3197 = vmatpush2.msra.mxu0 0.0
      %3198 = vmatprep.subr.mxu0 0.0
      %3199 = vmatpush2.msra.mxu0 0.0
      %3200 = vmatprep.subr.mxu0 0.0
      %3201 = vmatpush2.msra.mxu0 0.0
      %3202 = vmatprep.subr.mxu0 0.0
      %3203 = vmatpush2.msra.mxu0 0.0
      %3204 = vmatprep.subr.mxu0 0.0
      %3205 = vmatpush2.msra.mxu0 0.0
      %3206 = vmatprep.subr.mxu0 0.0
      %3207 = vmatpush2.msra.mxu0 0.0
      %3208 = vmatprep.subr.mxu0 0.0
      %3209 = vmatpush2.msra.mxu0 0.0
      %3210 = vmatprep.subr.mxu0 0.0
      %3211 = vmatpush2.msra.mxu0 0.0
      %3212 = vmatprep.subr.mxu0 0.0
      %3213 = vmatpush2.msra.mxu0 0.0
      %3214 = vmatprep.subr.mxu0 0.0
      %3215 = vmatpush2.msra.mxu0 0.0
      %3216 = vmatprep.subr.mxu0 0.0
      %3217 = vmatpush2.msra.mxu0 0.0
      %3218 = vmatprep.mubr.f32.mxu0 0.0
      %3219 = vmatmul.mubr.f32.gmra.mxu0 %v3152
      %v3220 = vpop.f32.mrf.mxu0
      %v3221 = vadd.f32 0.0, %v3220
      %v3222 = vpop.f32.mrf.mxu0
      %3223 = vdwg.mxu0
      %v3224 = vmul.f32 %v3221, %v2986
      %v3226 = vrot.slane %v3224, 1
      %v3228 = vmul.f32 %v3221, %v3226
      %v3229 = vsub.f32 %v316, %v3228
      %v3230 = vlaneseq
      %v3231 = vshrl.u32 %v3230, 7
      %v3232 = vsub.s32 1, %v3231
      %v3233 = vrot.slane %v3224, %v3232
      %v3234 = vmul.f32 %v2757, %v3233
      %v3235 = vmul.f32 %v2758, %v3233
      %v3236 = vmul.f32 %v2759, %v3233
      %v3237 = vmul.f32 %v2760, %v3233
      %v3238 = vmul.f32 %v2761, %v3233
      %v3239 = vmul.f32 %v2762, %v3233
      %v3240 = vmul.f32 %v2763, %v3233
      %v3241 = vmul.f32 %v2764, %v3233
      %v3242 = vlaneseq
      %v3243 = vshrl.u32 %v3242, 7
      %v3244 = vsub.s32 0, %v3243
      %v3245 = vrot.slane %v3229, %v3244
      %v3246 = vadd.f32 %v3234, %v3245
      %v3247 = vadd.f32 %v3235, %v3245
      %v3248 = vadd.f32 %v3236, %v3245
      %v3249 = vadd.f32 %v3237, %v3245
      %v3250 = vadd.f32 %v3238, %v3245
      %v3251 = vadd.f32 %v3239, %v3245
      %v3252 = vadd.f32 %v3240, %v3245
      %v3253 = vadd.f32 %v3241, %v3245
      %v3254 = vxor.u32 %v3010, 2147483648
      %v3255 = vxor.u32 %v3011, 2147483648
      %v3256 = vxor.u32 %v3012, 2147483648
      %v3257 = vxor.u32 %v3013, 2147483648
      %v3258 = vxor.u32 %v3014, 2147483648
      %v3259 = vxor.u32 %v3015, 2147483648
      %v3260 = vxor.u32 %v3016, 2147483648
      %v3261 = vxor.u32 %v3017, 2147483648
      %v3262 = vxor.u32 %v3246, 2147483648
      %v3263 = vxor.u32 %v3247, 2147483648
      %v3264 = vxor.u32 %v3248, 2147483648
      %v3265 = vxor.u32 %v3249, 2147483648
      %v3266 = vxor.u32 %v3250, 2147483648
      %v3267 = vxor.u32 %v3251, 2147483648
      %v3268 = vxor.u32 %v3252, 2147483648
      %v3269 = vxor.u32 %v3253, 2147483648
      %v3270 = vmul.f32 %v3254, 1.442695
      %v3271 = vpow.pop %v3270
      %v3272 = vmul.f32 %v3255, 1.442695
      %v3273 = vpow.pop %v3272
      %v3274 = vmul.f32 %v3256, 1.442695
      %v3275 = vpow.pop %v3274
      %v3276 = vmul.f32 %v3257, 1.442695
      %v3277 = vpow.pop %v3276
      %v3278 = vmul.f32 %v3258, 1.442695
      %v3279 = vpow.pop %v3278
      %v3280 = vmul.f32 %v3259, 1.442695
      %v3281 = vpow.pop %v3280
      %v3282 = vmul.f32 %v3260, 1.442695
      %v3283 = vpow.pop %v3282
      %v3284 = vmul.f32 %v3261, 1.442695
      %v3285 = vpow.pop %v3284
      %v3286 = vmul.f32 %v3262, 1.442695
      %v3287 = vpow.pop %v3286
      %v3288 = vmul.f32 %v3263, 1.442695
      %v3289 = vpow.pop %v3288
      %v3290 = vmul.f32 %v3264, 1.442695
      %v3291 = vpow.pop %v3290
      %v3292 = vmul.f32 %v3265, 1.442695
      %v3293 = vpow.pop %v3292
      %v3294 = vmul.f32 %v3266, 1.442695
      %v3295 = vpow.pop %v3294
      %v3296 = vmul.f32 %v3267, 1.442695
      %v3297 = vpow.pop %v3296
      %v3298 = vmul.f32 %v3268, 1.442695
      %v3299 = vpow.pop %v3298
      %v3300 = vmul.f32 %v3269, 1.442695
      %v3301 = vpow.pop %v3300
      %v3302 = vadd.f32 %v3271, 1.0
      %v3303 = vadd.f32 %v3273, 1.0
      %v3304 = vadd.f32 %v3275, 1.0
      %v3305 = vadd.f32 %v3277, 1.0
      %v3306 = vadd.f32 %v3279, 1.0
      %v3307 = vadd.f32 %v3281, 1.0
      %v3308 = vadd.f32 %v3283, 1.0
      %v3309 = vadd.f32 %v3285, 1.0
      %v3310 = vadd.f32 %v3287, 1.0
      %v3311 = vadd.f32 %v3289, 1.0
      %v3312 = vadd.f32 %v3291, 1.0
      %v3313 = vadd.f32 %v3293, 1.0
      %v3314 = vadd.f32 %v3295, 1.0
      %v3315 = vadd.f32 %v3297, 1.0
      %v3316 = vadd.f32 %v3299, 1.0
      %v3317 = vadd.f32 %v3301, 1.0
      %v3318 = vrcp.pop %v3302
      %v3319 = vmul.f32 1.0, %v3318
      %v3320 = vrcp.pop %v3303
      %v3321 = vmul.f32 1.0, %v3320
      %v3322 = vrcp.pop %v3304
      %v3323 = vmul.f32 1.0, %v3322
      %v3324 = vrcp.pop %v3305
      %v3325 = vmul.f32 1.0, %v3324
      %v3326 = vrcp.pop %v3306
      %v3327 = vmul.f32 1.0, %v3326
      %v3328 = vrcp.pop %v3307
      %v3329 = vmul.f32 1.0, %v3328
      %v3330 = vrcp.pop %v3308
      %v3331 = vmul.f32 1.0, %v3330
      %v3332 = vrcp.pop %v3309
      %v3333 = vmul.f32 1.0, %v3332
      %v3334 = vrcp.pop %v3310
      %v3335 = vmul.f32 1.0, %v3334
      %v3336 = vrcp.pop %v3311
      %v3337 = vmul.f32 1.0, %v3336
      %v3338 = vrcp.pop %v3312
      %v3339 = vmul.f32 1.0, %v3338
      %v3340 = vrcp.pop %v3313
      %v3341 = vmul.f32 1.0, %v3340
      %v3342 = vrcp.pop %v3314
      %v3343 = vmul.f32 1.0, %v3342
      %v3344 = vrcp.pop %v3315
      %v3345 = vmul.f32 1.0, %v3344
      %v3346 = vrcp.pop %v3316
      %v3347 = vmul.f32 1.0, %v3346
      %v3348 = vrcp.pop %v3317
      %v3349 = vmul.f32 1.0, %v3348
      %v3350 = vmul.f32 %v3010, %v3319
      %v3351 = vmul.f32 %v3011, %v3321
      %v3352 = vmul.f32 %v3012, %v3323
      %v3353 = vmul.f32 %v3013, %v3325
      %v3354 = vmul.f32 %v3014, %v3327
      %v3355 = vmul.f32 %v3015, %v3329
      %v3356 = vmul.f32 %v3016, %v3331
      %v3357 = vmul.f32 %v3017, %v3333
      %v3358 = vmul.f32 %v3246, %v3335
      %v3359 = vmul.f32 %v3247, %v3337
      %v3360 = vmul.f32 %v3248, %v3339
      %v3361 = vmul.f32 %v3249, %v3341
      %v3362 = vmul.f32 %v3250, %v3343
      %v3363 = vmul.f32 %v3251, %v3345
      %v3364 = vmul.f32 %v3252, %v3347
      %v3365 = vmul.f32 %v3253, %v3349
      %v3366 = vrot.slane %v3350, 7
      %v3367 = vrot.slane %v3351, 7
      %v3368 = vrot.slane %v3352, 7
      %v3369 = vrot.slane %v3353, 7
      %v3370 = vrot.slane %v3354, 7
      %v3371 = vrot.slane %v3355, 7
      %v3372 = vrot.slane %v3356, 7
      %v3373 = vrot.slane %v3357, 7
      %v3374 = vrot.slane %v3358, 7
      %v3375 = vrot.slane %v3359, 7
      %v3376 = vrot.slane %v3360, 7
      %v3377 = vrot.slane %v3361, 7
      %v3378 = vrot.slane %v3362, 7
      %v3379 = vrot.slane %v3363, 7
      %v3380 = vrot.slane %v3364, 7
      %v3381 = vrot.slane %v3365, 7
      %v3382 = vsel %vm622, %v3380, %v3381
      %v3383 = vsel %vm622, %v3379, %v3380
      %v3384 = vsel %vm622, %v3378, %v3379
      %v3385 = vsel %vm622, %v3377, %v3378
      %v3386 = vsel %vm622, %v3376, %v3377
      %v3387 = vsel %vm622, %v3375, %v3376
      %v3388 = vsel %vm622, %v3374, %v3375
      %v3389 = vsel %vm622, %v3373, %v3374
      %v3390 = vsel %vm622, %v3372, %v3373
      %v3391 = vsel %vm622, %v3371, %v3372
      %v3392 = vsel %vm622, %v3370, %v3371
      %v3393 = vsel %vm622, %v3369, %v3370
      %v3394 = vsel %vm622, %v3368, %v3369
      %v3395 = vsel %vm622, %v3367, %v3368
      %v3396 = vsel %vm622, %v3366, %v3367
      %v3397 = vsel %vm622, %v3381, %v3366
      %v3398 = vmul.f32 %v3382, %v642
      %v3399 = vmul.f32 %v3397, %v647
      %v3400 = vmul.f32 %v3396, %v652
      %v3401 = vmul.f32 %v3395, %v657
      %v3402 = vmul.f32 %v3394, %v662
      %v3403 = vmul.f32 %v3393, %v667
      %v3404 = vmul.f32 %v3392, %v672
      %v3405 = vmul.f32 %v3391, %v677
      %v3406 = vmul.f32 %v3390, %v682
      %v3407 = vmul.f32 %v3389, %v687
      %v3408 = vmul.f32 %v3388, %v692
      %v3409 = vmul.f32 %v3387, %v697
      %v3410 = vmul.f32 %v3386, %v702
      %v3411 = vmul.f32 %v3385, %v707
      %v3412 = vmul.f32 %v3384, %v712
      %v3413 = vmul.f32 %v3383, %v717
      %v3414 = vld [vmem:[%s5 + $0x90] sm:$0xf]
      %v3415 = vld [vmem:[%s5 + $0x94] sm:$0xf]
      %v3416 = vld [vmem:[%s5 + $0x98] sm:$0xf]
      %v3417 = vld [vmem:[%s5 + $0x9c] sm:$0xf]
      %v3418 = vld [vmem:[%s5 + $0xa0] sm:$0xf]
      %v3419 = vld [vmem:[%s5 + $0xa4] sm:$0xf]
      %v3420 = vld [vmem:[%s5 + $0xa8] sm:$0xf]
      %v3421 = vld [vmem:[%s5 + $0xac] sm:$0xf]
      %v3422 = vpack.c.bf16 %v3399, %v3398
      %v3423 = vpack.c.bf16 %v3401, %v3400
      %v3424 = vpack.c.bf16 %v3403, %v3402
      %v3425 = vpack.c.bf16 %v3405, %v3404
      %v3426 = vpack.c.bf16 %v3407, %v3406
      %v3427 = vpack.c.bf16 %v3409, %v3408
      %v3428 = vpack.c.bf16 %v3411, %v3410
      %v3429 = vpack.c.bf16 %v3413, %v3412
      %v3430 = vmul.f32 %v3365, %v749
      %v3431 = vmul.f32 %v3350, %v753
      %v3432 = vmul.f32 %v3351, %v757
      %v3433 = vmul.f32 %v3352, %v761
      %v3434 = vmul.f32 %v3353, %v765
      %v3435 = vmul.f32 %v3354, %v769
      %v3436 = vmul.f32 %v3355, %v773
      %v3437 = vmul.f32 %v3356, %v777
      %v3438 = vmul.f32 %v3357, %v781
      %v3439 = vmul.f32 %v3358, %v785
      %v3440 = vmul.f32 %v3359, %v789
      %v3441 = vmul.f32 %v3360, %v793
      %v3442 = vmul.f32 %v3361, %v797
      %v3443 = vmul.f32 %v3362, %v801
      %v3444 = vmul.f32 %v3363, %v805
      %v3445 = vmul.f32 %v3364, %v809
      %v3446 = vld [vmem:[%s5 + $0xb0] sm:$0xf]
      %v3447 = vld [vmem:[%s5 + $0xb4] sm:$0xf]
      %v3448 = vld [vmem:[%s5 + $0xb8] sm:$0xf]
      %v3449 = vld [vmem:[%s5 + $0xbc] sm:$0xf]
      %v3450 = vld [vmem:[%s5 + $0xc0] sm:$0xf]
      %v3451 = vld [vmem:[%s5 + $0xc4] sm:$0xf]
      %v3452 = vld [vmem:[%s5 + $0xc8] sm:$0xf]
      %v3453 = vld [vmem:[%s5 + $0xcc] sm:$0xf]
      %v3454 = vpack.c.bf16 %v3431, %v3430
      %v3455 = vpack.c.bf16 %v3433, %v3432
      %v3456 = vpack.c.bf16 %v3435, %v3434
      %v3457 = vpack.c.bf16 %v3437, %v3436
      %v3458 = vpack.c.bf16 %v3439, %v3438
      %v3459 = vpack.c.bf16 %v3441, %v3440
      %v3460 = vpack.c.bf16 %v3443, %v3442
      %v3461 = vpack.c.bf16 %v3445, %v3444
      %v3470 = vunpack.c.l.b16 %v3446
      %v3471 = vunpack.c.l.b16 %v3447
      %v3472 = vunpack.c.l.b16 %v3448
      %v3473 = vunpack.c.l.b16 %v3449
      %v3474 = vunpack.c.l.b16 %v3450
      %v3475 = vunpack.c.l.b16 %v3451
      %v3476 = vunpack.c.l.b16 %v3452
      %v3477 = vunpack.c.l.b16 %v3453
      %v3478 = vpack.c.b16 %v3471, %v3470
      %v3479 = vpack.c.b16 %v3473, %v3472
      %v3480 = vpack.c.b16 %v3475, %v3474
      %v3481 = vpack.c.b16 %v3477, %v3476
      %v3487 = vsel %vm2777, %v3454, 0
      %v3490 = vsel %vm2777, %v3455, 0
      %v3493 = vsel %vm2777, %v3456, 0
      %v3496 = vsel %vm2777, %v3457, 0
      %v3499 = vsel %vm2777, %v3458, 0
      %v3502 = vsel %vm2777, %v3459, 0
      %v3505 = vsel %vm2777, %v3460, 0
      %v3508 = vsel %vm2777, %v3461, 0
      %3510 = vmatprep.subr.bf16.mxu0 0
      %3511 = vmatpush1.bf16.msra.mxu0 0
      %3512 = vmatprep.subr.bf16.mxu0 0
      %3513 = vmatpush1.bf16.msra.mxu0 0
      %3514 = vmatprep.subr.bf16.mxu0 0
      %3515 = vmatpush1.bf16.msra.mxu0 0
      %3516 = vmatprep.subr.bf16.mxu0 0
      %3517 = vmatpush1.bf16.msra.mxu0 0
      %3518 = vmatprep.subr.bf16.mxu0 0
      %3519 = vmatpush1.bf16.msra.mxu0 %v3481
      %3520 = vmatprep.subr.bf16.mxu0 0
      %3521 = vmatpush1.bf16.msra.mxu0 %v3480
      %3522 = vmatprep.subr.bf16.mxu0 0
      %3523 = vmatpush1.bf16.msra.mxu0 %v3479
      %3524 = vmatprep.subr.bf16.mxu0 0
      %3525 = vmatpush1.bf16.msra.mxu0 %v3478
      %3526 = vmatprep.subr.bf16.mxu0 0
      %3527 = vmatpush2.bf16.msra.mxu0 0
      %3528 = vmatprep.subr.bf16.mxu0 0
      %3529 = vmatpush2.bf16.msra.mxu0 0
      %3530 = vmatprep.subr.bf16.mxu0 0
      %3531 = vmatpush2.bf16.msra.mxu0 0
      %3532 = vmatprep.subr.bf16.mxu0 0
      %3533 = vmatpush2.bf16.msra.mxu0 0
      %3534 = vmatprep.subr.bf16.mxu0 0
      %3535 = vmatpush2.bf16.msra.mxu0 0
      %3536 = vmatprep.subr.bf16.mxu0 0
      %3537 = vmatpush2.bf16.msra.mxu0 0
      %3538 = vmatprep.subr.bf16.mxu0 0
      %3539 = vmatpush2.bf16.msra.mxu0 0
      %3540 = vmatprep.subr.bf16.mxu0 0
      %3541 = vmatpush2.bf16.msra.mxu0 0
      %3542 = vmatprep.mubr.bf16.mxu0 0
      %3543 = vmatmul.mubr.bf16.gmra.mxu0 %v3487
      %v3544 = vpop.f32.mrf.mxu0
      %v3545 = vadd.f32 0.0, %v3544
      %v3546 = vpop.f32.mrf.mxu0
      %v3547 = vpop.f32.mrf.mxu0
      %v3548 = vadd.f32 0.0, %v3547
      %v3549 = vpop.f32.mrf.mxu0
      %3550 = vmatprep.mubr.bf16.mxu0 0
      %3551 = vmatmul.mubr.bf16.gmra.mxu0 %v3490
      %v3552 = vpop.f32.mrf.mxu0
      %v3553 = vadd.f32 0.0, %v3552
      %v3554 = vpop.f32.mrf.mxu0
      %v3555 = vpop.f32.mrf.mxu0
      %v3556 = vadd.f32 0.0, %v3555
      %v3557 = vpop.f32.mrf.mxu0
      %3558 = vmatprep.mubr.bf16.mxu0 0
      %3559 = vmatmul.mubr.bf16.gmra.mxu0 %v3493
      %v3560 = vpop.f32.mrf.mxu0
      %v3561 = vadd.f32 0.0, %v3560
      %v3562 = vpop.f32.mrf.mxu0
      %v3563 = vpop.f32.mrf.mxu0
      %v3564 = vadd.f32 0.0, %v3563
      %v3565 = vpop.f32.mrf.mxu0
      %3566 = vmatprep.mubr.bf16.mxu0 0
      %3567 = vmatmul.mubr.bf16.gmra.mxu0 %v3496
      %v3568 = vpop.f32.mrf.mxu0
      %v3569 = vadd.f32 0.0, %v3568
      %v3570 = vpop.f32.mrf.mxu0
      %v3571 = vpop.f32.mrf.mxu0
      %v3572 = vadd.f32 0.0, %v3571
      %v3573 = vpop.f32.mrf.mxu0
      %3574 = vmatprep.mubr.bf16.mxu0 0
      %3575 = vmatmul.mubr.bf16.gmra.mxu0 %v3499
      %v3576 = vpop.f32.mrf.mxu0
      %v3577 = vadd.f32 0.0, %v3576
      %v3578 = vpop.f32.mrf.mxu0
      %v3579 = vpop.f32.mrf.mxu0
      %v3580 = vadd.f32 0.0, %v3579
      %v3581 = vpop.f32.mrf.mxu0
      %3582 = vmatprep.mubr.bf16.mxu0 0
      %3583 = vmatmul.mubr.bf16.gmra.mxu0 %v3502
      %v3584 = vpop.f32.mrf.mxu0
      %v3585 = vadd.f32 0.0, %v3584
      %v3586 = vpop.f32.mrf.mxu0
      %v3587 = vpop.f32.mrf.mxu0
      %v3588 = vadd.f32 0.0, %v3587
      %v3589 = vpop.f32.mrf.mxu0
      %3590 = vmatprep.mubr.bf16.mxu0 0
      %3591 = vmatmul.mubr.bf16.gmra.mxu0 %v3505
      %v3592 = vpop.f32.mrf.mxu0
      %v3593 = vadd.f32 0.0, %v3592
      %v3594 = vpop.f32.mrf.mxu0
      %v3595 = vpop.f32.mrf.mxu0
      %v3596 = vadd.f32 0.0, %v3595
      %v3597 = vpop.f32.mrf.mxu0
      %3598 = vmatprep.mubr.bf16.mxu0 0
      %3599 = vmatmul.mubr.bf16.gmra.mxu0 %v3508
      %v3600 = vpop.f32.mrf.mxu0
      %v3601 = vadd.f32 0.0, %v3600
      %v3602 = vpop.f32.mrf.mxu0
      %v3603 = vpop.f32.mrf.mxu0
      %v3604 = vadd.f32 0.0, %v3603
      %v3605 = vpop.f32.mrf.mxu0
      %3606 = vdwg.mxu0
      %v3615 = vunpack.c.l.b16 %v3414
      %v3616 = vunpack.c.l.b16 %v3415
      %v3617 = vunpack.c.l.b16 %v3416
      %v3618 = vunpack.c.l.b16 %v3417
      %v3619 = vunpack.c.l.b16 %v3418
      %v3620 = vunpack.c.l.b16 %v3419
      %v3621 = vunpack.c.l.b16 %v3420
      %v3622 = vunpack.c.l.b16 %v3421
      %v3623 = vpack.c.b16 %v3616, %v3615
      %v3624 = vpack.c.b16 %v3618, %v3617
      %v3625 = vpack.c.b16 %v3620, %v3619
      %v3626 = vpack.c.b16 %v3622, %v3621
      %v3632 = vsel %vm2777, %v3422, 0
      %v3635 = vsel %vm2777, %v3423, 0
      %v3638 = vsel %vm2777, %v3424, 0
      %v3641 = vsel %vm2777, %v3425, 0
      %v3644 = vsel %vm2777, %v3426, 0
      %v3647 = vsel %vm2777, %v3427, 0
      %v3650 = vsel %vm2777, %v3428, 0
      %v3653 = vsel %vm2777, %v3429, 0
      %3655 = vmatprep.subr.bf16.mxu0 0
      %3656 = vmatpush1.bf16.msra.mxu0 0
      %3657 = vmatprep.subr.bf16.mxu0 0
      %3658 = vmatpush1.bf16.msra.mxu0 0
      %3659 = vmatprep.subr.bf16.mxu0 0
      %3660 = vmatpush1.bf16.msra.mxu0 0
      %3661 = vmatprep.subr.bf16.mxu0 0
      %3662 = vmatpush1.bf16.msra.mxu0 0
      %3663 = vmatprep.subr.bf16.mxu0 0
      %3664 = vmatpush1.bf16.msra.mxu0 %v3626
      %3665 = vmatprep.subr.bf16.mxu0 0
      %3666 = vmatpush1.bf16.msra.mxu0 %v3625
      %3667 = vmatprep.subr.bf16.mxu0 0
      %3668 = vmatpush1.bf16.msra.mxu0 %v3624
      %3669 = vmatprep.subr.bf16.mxu0 0
      %3670 = vmatpush1.bf16.msra.mxu0 %v3623
      %3671 = vmatprep.subr.bf16.mxu0 0
      %3672 = vmatpush2.bf16.msra.mxu0 0
      %3673 = vmatprep.subr.bf16.mxu0 0
      %3674 = vmatpush2.bf16.msra.mxu0 0
      %3675 = vmatprep.subr.bf16.mxu0 0
      %3676 = vmatpush2.bf16.msra.mxu0 0
      %3677 = vmatprep.subr.bf16.mxu0 0
      %3678 = vmatpush2.bf16.msra.mxu0 0
      %3679 = vmatprep.subr.bf16.mxu0 0
      %3680 = vmatpush2.bf16.msra.mxu0 0
      %3681 = vmatprep.subr.bf16.mxu0 0
      %3682 = vmatpush2.bf16.msra.mxu0 0
      %3683 = vmatprep.subr.bf16.mxu0 0
      %3684 = vmatpush2.bf16.msra.mxu0 0
      %3685 = vmatprep.subr.bf16.mxu0 0
      %3686 = vmatpush2.bf16.msra.mxu0 0
      %3687 = vmatprep.mubr.bf16.mxu0 0
      %3688 = vmatmul.mubr.bf16.gmra.mxu0 %v3632
      %v3689 = vpop.f32.mrf.mxu0
      %v3690 = vadd.f32 %v3545, %v3689
      %v3691 = vpop.f32.mrf.mxu0
      %v3692 = vpop.f32.mrf.mxu0
      %v3693 = vadd.f32 %v3548, %v3692
      %v3694 = vpop.f32.mrf.mxu0
      %3695 = vmatprep.mubr.bf16.mxu0 0
      %3696 = vmatmul.mubr.bf16.gmra.mxu0 %v3635
      %v3697 = vpop.f32.mrf.mxu0
      %v3698 = vadd.f32 %v3553, %v3697
      %v3699 = vpop.f32.mrf.mxu0
      %v3700 = vpop.f32.mrf.mxu0
      %v3701 = vadd.f32 %v3556, %v3700
      %v3702 = vpop.f32.mrf.mxu0
      %3703 = vmatprep.mubr.bf16.mxu0 0
      %3704 = vmatmul.mubr.bf16.gmra.mxu0 %v3638
      %v3705 = vpop.f32.mrf.mxu0
      %v3706 = vadd.f32 %v3561, %v3705
      %v3707 = vpop.f32.mrf.mxu0
      %v3708 = vpop.f32.mrf.mxu0
      %v3709 = vadd.f32 %v3564, %v3708
      %v3710 = vpop.f32.mrf.mxu0
      %3711 = vmatprep.mubr.bf16.mxu0 0
      %3712 = vmatmul.mubr.bf16.gmra.mxu0 %v3641
      %v3713 = vpop.f32.mrf.mxu0
      %v3714 = vadd.f32 %v3569, %v3713
      %v3715 = vpop.f32.mrf.mxu0
      %v3716 = vpop.f32.mrf.mxu0
      %v3717 = vadd.f32 %v3572, %v3716
      %v3718 = vpop.f32.mrf.mxu0
      %3719 = vmatprep.mubr.bf16.mxu0 0
      %3720 = vmatmul.mubr.bf16.gmra.mxu0 %v3644
      %v3721 = vpop.f32.mrf.mxu0
      %v3722 = vadd.f32 %v3577, %v3721
      %v3723 = vpop.f32.mrf.mxu0
      %v3724 = vpop.f32.mrf.mxu0
      %v3725 = vadd.f32 %v3580, %v3724
      %v3726 = vpop.f32.mrf.mxu0
      %3727 = vmatprep.mubr.bf16.mxu0 0
      %3728 = vmatmul.mubr.bf16.gmra.mxu0 %v3647
      %v3729 = vpop.f32.mrf.mxu0
      %v3730 = vadd.f32 %v3585, %v3729
      %v3731 = vpop.f32.mrf.mxu0
      %v3732 = vpop.f32.mrf.mxu0
      %v3733 = vadd.f32 %v3588, %v3732
      %v3734 = vpop.f32.mrf.mxu0
      %3735 = vmatprep.mubr.bf16.mxu0 0
      %3736 = vmatmul.mubr.bf16.gmra.mxu0 %v3650
      %v3737 = vpop.f32.mrf.mxu0
      %v3738 = vadd.f32 %v3593, %v3737
      %v3739 = vpop.f32.mrf.mxu0
      %v3740 = vpop.f32.mrf.mxu0
      %v3741 = vadd.f32 %v3596, %v3740
      %v3742 = vpop.f32.mrf.mxu0
      %3743 = vmatprep.mubr.bf16.mxu0 0
      %3744 = vmatmul.mubr.bf16.gmra.mxu0 %v3653
      %v3745 = vpop.f32.mrf.mxu0
      %v3746 = vadd.f32 %v3601, %v3745
      %v3747 = vpop.f32.mrf.mxu0
      %v3748 = vpop.f32.mrf.mxu0
      %v3749 = vadd.f32 %v3604, %v3748
      %v3750 = vpop.f32.mrf.mxu0
      %3751 = vdwg.mxu0
      %v3752 = vrot.slane %v3350, 1
      %v3753 = vrot.slane %v3351, 1
      %v3754 = vrot.slane %v3352, 1
      %v3755 = vrot.slane %v3353, 1
      %v3756 = vrot.slane %v3354, 1
      %v3757 = vrot.slane %v3355, 1
      %v3758 = vrot.slane %v3356, 1
      %v3759 = vrot.slane %v3357, 1
      %v3760 = vrot.slane %v3358, 1
      %v3761 = vrot.slane %v3359, 1
      %v3762 = vrot.slane %v3360, 1
      %v3763 = vrot.slane %v3361, 1
      %v3764 = vrot.slane %v3362, 1
      %v3765 = vrot.slane %v3363, 1
      %v3766 = vrot.slane %v3364, 1
      %v3767 = vrot.slane %v3365, 1
      %v3768 = vsel %vm1121, %v3766, %v3767
      %v3769 = vsel %vm1121, %v3765, %v3766
      %v3770 = vsel %vm1121, %v3764, %v3765
      %v3771 = vsel %vm1121, %v3763, %v3764
      %v3772 = vsel %vm1121, %v3762, %v3763
      %v3773 = vsel %vm1121, %v3761, %v3762
      %v3774 = vsel %vm1121, %v3760, %v3761
      %v3775 = vsel %vm1121, %v3759, %v3760
      %v3776 = vsel %vm1121, %v3758, %v3759
      %v3777 = vsel %vm1121, %v3757, %v3758
      %v3778 = vsel %vm1121, %v3756, %v3757
      %v3779 = vsel %vm1121, %v3755, %v3756
      %v3780 = vsel %vm1121, %v3754, %v3755
      %v3781 = vsel %vm1121, %v3753, %v3754
      %v3782 = vsel %vm1121, %v3752, %v3753
      %v3783 = vsel %vm1121, %v3767, %v3752
      %v3784 = vmul.f32 %v3783, %v1140
      %v3785 = vmul.f32 %v3782, %v1144
      %v3786 = vmul.f32 %v3781, %v1148
      %v3787 = vmul.f32 %v3780, %v1152
      %v3788 = vmul.f32 %v3779, %v1156
      %v3789 = vmul.f32 %v3778, %v1160
      %v3790 = vmul.f32 %v3777, %v1164
      %v3791 = vmul.f32 %v3776, %v1168
      %v3792 = vmul.f32 %v3775, %v1172
      %v3793 = vmul.f32 %v3774, %v1176
      %v3794 = vmul.f32 %v3773, %v1180
      %v3795 = vmul.f32 %v3772, %v1184
      %v3796 = vmul.f32 %v3771, %v1188
      %v3797 = vmul.f32 %v3770, %v1192
      %v3798 = vmul.f32 %v3769, %v1196
      %v3799 = vmul.f32 %v3768, %v1200
      %v3800 = vld [vmem:[%s5 + $0xd0] sm:$0xf]
      %v3801 = vld [vmem:[%s5 + $0xd4] sm:$0xf]
      %v3802 = vld [vmem:[%s5 + $0xd8] sm:$0xf]
      %v3803 = vld [vmem:[%s5 + $0xdc] sm:$0xf]
      %v3804 = vld [vmem:[%s5 + $0xe0] sm:$0xf]
      %v3805 = vld [vmem:[%s5 + $0xe4] sm:$0xf]
      %v3806 = vld [vmem:[%s5 + $0xe8] sm:$0xf]
      %v3807 = vld [vmem:[%s5 + $0xec] sm:$0xf]
      %v3808 = vpack.c.bf16 %v3785, %v3784
      %v3809 = vpack.c.bf16 %v3787, %v3786
      %v3810 = vpack.c.bf16 %v3789, %v3788
      %v3811 = vpack.c.bf16 %v3791, %v3790
      %v3812 = vpack.c.bf16 %v3793, %v3792
      %v3813 = vpack.c.bf16 %v3795, %v3794
      %v3814 = vpack.c.bf16 %v3797, %v3796
      %v3815 = vpack.c.bf16 %v3799, %v3798
      %v3824 = vunpack.c.l.b16 %v3800
      %v3825 = vunpack.c.l.b16 %v3801
      %v3826 = vunpack.c.l.b16 %v3802
      %v3827 = vunpack.c.l.b16 %v3803
      %v3828 = vunpack.c.l.b16 %v3804
      %v3829 = vunpack.c.l.b16 %v3805
      %v3830 = vunpack.c.l.b16 %v3806
      %v3831 = vunpack.c.l.b16 %v3807
      %v3832 = vpack.c.b16 %v3825, %v3824
      %v3833 = vpack.c.b16 %v3827, %v3826
      %v3834 = vpack.c.b16 %v3829, %v3828
      %v3835 = vpack.c.b16 %v3831, %v3830
      %v3841 = vsel %vm2777, %v3808, 0
      %v3844 = vsel %vm2777, %v3809, 0
      %v3847 = vsel %vm2777, %v3810, 0
      %v3850 = vsel %vm2777, %v3811, 0
      %v3853 = vsel %vm2777, %v3812, 0
      %v3856 = vsel %vm2777, %v3813, 0
      %v3859 = vsel %vm2777, %v3814, 0
      %v3862 = vsel %vm2777, %v3815, 0
      %3864 = vmatprep.subr.bf16.mxu0 0
      %3865 = vmatpush1.bf16.msra.mxu0 0
      %3866 = vmatprep.subr.bf16.mxu0 0
      %3867 = vmatpush1.bf16.msra.mxu0 0
      %3868 = vmatprep.subr.bf16.mxu0 0
      %3869 = vmatpush1.bf16.msra.mxu0 0
      %3870 = vmatprep.subr.bf16.mxu0 0
      %3871 = vmatpush1.bf16.msra.mxu0 0
      %3872 = vmatprep.subr.bf16.mxu0 0
      %3873 = vmatpush1.bf16.msra.mxu0 %v3835
      %3874 = vmatprep.subr.bf16.mxu0 0
      %3875 = vmatpush1.bf16.msra.mxu0 %v3834
      %3876 = vmatprep.subr.bf16.mxu0 0
      %3877 = vmatpush1.bf16.msra.mxu0 %v3833
      %3878 = vmatprep.subr.bf16.mxu0 0
      %3879 = vmatpush1.bf16.msra.mxu0 %v3832
      %3880 = vmatprep.subr.bf16.mxu0 0
      %3881 = vmatpush2.bf16.msra.mxu0 0
      %3882 = vmatprep.subr.bf16.mxu0 0
      %3883 = vmatpush2.bf16.msra.mxu0 0
      %3884 = vmatprep.subr.bf16.mxu0 0
      %3885 = vmatpush2.bf16.msra.mxu0 0
      %3886 = vmatprep.subr.bf16.mxu0 0
      %3887 = vmatpush2.bf16.msra.mxu0 0
      %3888 = vmatprep.subr.bf16.mxu0 0
      %3889 = vmatpush2.bf16.msra.mxu0 0
      %3890 = vmatprep.subr.bf16.mxu0 0
      %3891 = vmatpush2.bf16.msra.mxu0 0
      %3892 = vmatprep.subr.bf16.mxu0 0
      %3893 = vmatpush2.bf16.msra.mxu0 0
      %3894 = vmatprep.subr.bf16.mxu0 0
      %3895 = vmatpush2.bf16.msra.mxu0 0
      %3896 = vmatprep.mubr.bf16.mxu0 0
      %3897 = vmatmul.mubr.bf16.gmra.mxu0 %v3841
      %v3898 = vpop.f32.mrf.mxu0
      %v3899 = vadd.f32 0.0, %v3898
      %v3900 = vpop.f32.mrf.mxu0
      %v3901 = vpop.f32.mrf.mxu0
      %v3902 = vadd.f32 0.0, %v3901
      %v3903 = vpop.f32.mrf.mxu0
      %3904 = vmatprep.mubr.bf16.mxu0 0
      %3905 = vmatmul.mubr.bf16.gmra.mxu0 %v3844
      %v3906 = vpop.f32.mrf.mxu0
      %v3907 = vadd.f32 0.0, %v3906
      %v3908 = vpop.f32.mrf.mxu0
      %v3909 = vpop.f32.mrf.mxu0
      %v3910 = vadd.f32 0.0, %v3909
      %v3911 = vpop.f32.mrf.mxu0
      %3912 = vmatprep.mubr.bf16.mxu0 0
      %3913 = vmatmul.mubr.bf16.gmra.mxu0 %v3847
      %v3914 = vpop.f32.mrf.mxu0
      %v3915 = vadd.f32 0.0, %v3914
      %v3916 = vpop.f32.mrf.mxu0
      %v3917 = vpop.f32.mrf.mxu0
      %v3918 = vadd.f32 0.0, %v3917
      %v3919 = vpop.f32.mrf.mxu0
      %3920 = vmatprep.mubr.bf16.mxu0 0
      %3921 = vmatmul.mubr.bf16.gmra.mxu0 %v3850
      %v3922 = vpop.f32.mrf.mxu0
      %v3923 = vadd.f32 0.0, %v3922
      %v3924 = vpop.f32.mrf.mxu0
      %v3925 = vpop.f32.mrf.mxu0
      %v3926 = vadd.f32 0.0, %v3925
      %v3927 = vpop.f32.mrf.mxu0
      %3928 = vmatprep.mubr.bf16.mxu0 0
      %3929 = vmatmul.mubr.bf16.gmra.mxu0 %v3853
      %v3930 = vpop.f32.mrf.mxu0
      %v3931 = vadd.f32 0.0, %v3930
      %v3932 = vpop.f32.mrf.mxu0
      %v3933 = vpop.f32.mrf.mxu0
      %v3934 = vadd.f32 0.0, %v3933
      %v3935 = vpop.f32.mrf.mxu0
      %3936 = vmatprep.mubr.bf16.mxu0 0
      %3937 = vmatmul.mubr.bf16.gmra.mxu0 %v3856
      %v3938 = vpop.f32.mrf.mxu0
      %v3939 = vadd.f32 0.0, %v3938
      %v3940 = vpop.f32.mrf.mxu0
      %v3941 = vpop.f32.mrf.mxu0
      %v3942 = vadd.f32 0.0, %v3941
      %v3943 = vpop.f32.mrf.mxu0
      %3944 = vmatprep.mubr.bf16.mxu0 0
      %3945 = vmatmul.mubr.bf16.gmra.mxu0 %v3859
      %v3946 = vpop.f32.mrf.mxu0
      %v3947 = vadd.f32 0.0, %v3946
      %v3948 = vpop.f32.mrf.mxu0
      %v3949 = vpop.f32.mrf.mxu0
      %v3950 = vadd.f32 0.0, %v3949
      %v3951 = vpop.f32.mrf.mxu0
      %3952 = vmatprep.mubr.bf16.mxu0 0
      %3953 = vmatmul.mubr.bf16.gmra.mxu0 %v3862
      %v3954 = vpop.f32.mrf.mxu0
      %v3955 = vadd.f32 0.0, %v3954
      %v3956 = vpop.f32.mrf.mxu0
      %v3957 = vpop.f32.mrf.mxu0
      %v3958 = vadd.f32 0.0, %v3957
      %v3959 = vpop.f32.mrf.mxu0
      %3960 = vdwg.mxu0
      %v3961 = vadd.f32 %v3690, %v3899
      %v3962 = vadd.f32 %v3693, %v3902
      %v3963 = vadd.f32 %v3698, %v3907
      %v3964 = vadd.f32 %v3701, %v3910
      %v3965 = vadd.f32 %v3706, %v3915
      %v3966 = vadd.f32 %v3709, %v3918
      %v3967 = vadd.f32 %v3714, %v3923
      %v3968 = vadd.f32 %v3717, %v3926
      %v3969 = vadd.f32 %v3722, %v3931
      %v3970 = vadd.f32 %v3725, %v3934
      %v3971 = vadd.f32 %v3730, %v3939
      %v3972 = vadd.f32 %v3733, %v3942
      %v3973 = vadd.f32 %v3738, %v3947
      %v3974 = vadd.f32 %v3741, %v3950
      %v3975 = vadd.f32 %v3746, %v3955
      %v3976 = vadd.f32 %v3749, %v3958
      %v3977 = vmul.f32 %v3397, %v1381
      %v3978 = vmul.f32 %v3396, %v1385
      %v3979 = vmul.f32 %v3395, %v1389
      %v3980 = vmul.f32 %v3394, %v1393
      %v3981 = vmul.f32 %v3393, %v1397
      %v3982 = vmul.f32 %v3392, %v1401
      %v3983 = vmul.f32 %v3391, %v1405
      %v3984 = vmul.f32 %v3390, %v1409
      %v3985 = vmul.f32 %v3389, %v1413
      %v3986 = vmul.f32 %v3388, %v1417
      %v3987 = vmul.f32 %v3387, %v1421
      %v3988 = vmul.f32 %v3386, %v1425
      %v3989 = vmul.f32 %v3385, %v1429
      %v3990 = vmul.f32 %v3384, %v1433
      %v3991 = vmul.f32 %v3383, %v1437
      %v3992 = vmul.f32 %v3382, %v1441
      %v3993 = vld [vmem:[%s5 + $0xf0] sm:$0xf]
      %v3994 = vld [vmem:[%s5 + $0xf4] sm:$0xf]
      %v3995 = vld [vmem:[%s5 + $0xf8] sm:$0xf]
      %v3996 = vld [vmem:[%s5 + $0xfc] sm:$0xf]
      %v3997 = vld [vmem:[%s5 + $0x100] sm:$0xf]
      %v3998 = vld [vmem:[%s5 + $0x104] sm:$0xf]
      %v3999 = vld [vmem:[%s5 + $0x108] sm:$0xf]
      %v4000 = vld [vmem:[%s5 + $0x10c] sm:$0xf]
      %v4001 = vpack.c.bf16 %v3978, %v3977
      %v4002 = vpack.c.bf16 %v3980, %v3979
      %v4003 = vpack.c.bf16 %v3982, %v3981
      %v4004 = vpack.c.bf16 %v3984, %v3983
      %v4005 = vpack.c.bf16 %v3986, %v3985
      %v4006 = vpack.c.bf16 %v3988, %v3987
      %v4007 = vpack.c.bf16 %v3990, %v3989
      %v4008 = vpack.c.bf16 %v3992, %v3991
      %v4017 = vunpack.c.l.b16 %v3993
      %v4018 = vunpack.c.l.b16 %v3994
      %v4019 = vunpack.c.l.b16 %v3995
      %v4020 = vunpack.c.l.b16 %v3996
      %v4021 = vunpack.c.l.b16 %v3997
      %v4022 = vunpack.c.l.b16 %v3998
      %v4023 = vunpack.c.l.b16 %v3999
      %v4024 = vunpack.c.l.b16 %v4000
      %v4025 = vpack.c.b16 %v4018, %v4017
      %v4026 = vpack.c.b16 %v4020, %v4019
      %v4027 = vpack.c.b16 %v4022, %v4021
      %v4028 = vpack.c.b16 %v4024, %v4023
      %v4034 = vsel %vm2777, %v4001, 0
      %v4037 = vsel %vm2777, %v4002, 0
      %v4040 = vsel %vm2777, %v4003, 0
      %v4043 = vsel %vm2777, %v4004, 0
      %v4046 = vsel %vm2777, %v4005, 0
      %v4049 = vsel %vm2777, %v4006, 0
      %v4052 = vsel %vm2777, %v4007, 0
      %v4055 = vsel %vm2777, %v4008, 0
      %4057 = vmatprep.subr.bf16.mxu0 0
      %4058 = vmatpush1.bf16.msra.mxu0 0
      %4059 = vmatprep.subr.bf16.mxu0 0
      %4060 = vmatpush1.bf16.msra.mxu0 0
      %4061 = vmatprep.subr.bf16.mxu0 0
      %4062 = vmatpush1.bf16.msra.mxu0 0
      %4063 = vmatprep.subr.bf16.mxu0 0
      %4064 = vmatpush1.bf16.msra.mxu0 0
      %4065 = vmatprep.subr.bf16.mxu0 0
      %4066 = vmatpush1.bf16.msra.mxu0 %v4028
      %4067 = vmatprep.subr.bf16.mxu0 0
      %4068 = vmatpush1.bf16.msra.mxu0 %v4027
      %4069 = vmatprep.subr.bf16.mxu0 0
      %4070 = vmatpush1.bf16.msra.mxu0 %v4026
      %4071 = vmatprep.subr.bf16.mxu0 0
      %4072 = vmatpush1.bf16.msra.mxu0 %v4025
      %4073 = vmatprep.subr.bf16.mxu0 0
      %4074 = vmatpush2.bf16.msra.mxu0 0
      %4075 = vmatprep.subr.bf16.mxu0 0
      %4076 = vmatpush2.bf16.msra.mxu0 0
      %4077 = vmatprep.subr.bf16.mxu0 0
      %4078 = vmatpush2.bf16.msra.mxu0 0
      %4079 = vmatprep.subr.bf16.mxu0 0
      %4080 = vmatpush2.bf16.msra.mxu0 0
      %4081 = vmatprep.subr.bf16.mxu0 0
      %4082 = vmatpush2.bf16.msra.mxu0 0
      %4083 = vmatprep.subr.bf16.mxu0 0
      %4084 = vmatpush2.bf16.msra.mxu0 0
      %4085 = vmatprep.subr.bf16.mxu0 0
      %4086 = vmatpush2.bf16.msra.mxu0 0
      %4087 = vmatprep.subr.bf16.mxu0 0
      %4088 = vmatpush2.bf16.msra.mxu0 0
      %4089 = vmatprep.mubr.bf16.mxu0 0
      %4090 = vmatmul.mubr.bf16.gmra.mxu0 %v4034
      %v4091 = vpop.f32.mrf.mxu0
      %v4092 = vadd.f32 0.0, %v4091
      %v4093 = vpop.f32.mrf.mxu0
      %v4094 = vpop.f32.mrf.mxu0
      %v4095 = vadd.f32 0.0, %v4094
      %v4096 = vpop.f32.mrf.mxu0
      %4097 = vmatprep.mubr.bf16.mxu0 0
      %4098 = vmatmul.mubr.bf16.gmra.mxu0 %v4037
      %v4099 = vpop.f32.mrf.mxu0
      %v4100 = vadd.f32 0.0, %v4099
      %v4101 = vpop.f32.mrf.mxu0
      %v4102 = vpop.f32.mrf.mxu0
      %v4103 = vadd.f32 0.0, %v4102
      %v4104 = vpop.f32.mrf.mxu0
      %4105 = vmatprep.mubr.bf16.mxu0 0
      %4106 = vmatmul.mubr.bf16.gmra.mxu0 %v4040
      %v4107 = vpop.f32.mrf.mxu0
      %v4108 = vadd.f32 0.0, %v4107
      %v4109 = vpop.f32.mrf.mxu0
      %v4110 = vpop.f32.mrf.mxu0
      %v4111 = vadd.f32 0.0, %v4110
      %v4112 = vpop.f32.mrf.mxu0
      %4113 = vmatprep.mubr.bf16.mxu0 0
      %4114 = vmatmul.mubr.bf16.gmra.mxu0 %v4043
      %v4115 = vpop.f32.mrf.mxu0
      %v4116 = vadd.f32 0.0, %v4115
      %v4117 = vpop.f32.mrf.mxu0
      %v4118 = vpop.f32.mrf.mxu0
      %v4119 = vadd.f32 0.0, %v4118
      %v4120 = vpop.f32.mrf.mxu0
      %4121 = vmatprep.mubr.bf16.mxu0 0
      %4122 = vmatmul.mubr.bf16.gmra.mxu0 %v4046
      %v4123 = vpop.f32.mrf.mxu0
      %v4124 = vadd.f32 0.0, %v4123
      %v4125 = vpop.f32.mrf.mxu0
      %v4126 = vpop.f32.mrf.mxu0
      %v4127 = vadd.f32 0.0, %v4126
      %v4128 = vpop.f32.mrf.mxu0
      %4129 = vmatprep.mubr.bf16.mxu0 0
      %4130 = vmatmul.mubr.bf16.gmra.mxu0 %v4049
      %v4131 = vpop.f32.mrf.mxu0
      %v4132 = vadd.f32 0.0, %v4131
      %v4133 = vpop.f32.mrf.mxu0
      %v4134 = vpop.f32.mrf.mxu0
      %v4135 = vadd.f32 0.0, %v4134
      %v4136 = vpop.f32.mrf.mxu0
      %4137 = vmatprep.mubr.bf16.mxu0 0
      %4138 = vmatmul.mubr.bf16.gmra.mxu0 %v4052
      %v4139 = vpop.f32.mrf.mxu0
      %v4140 = vadd.f32 0.0, %v4139
      %v4141 = vpop.f32.mrf.mxu0
      %v4142 = vpop.f32.mrf.mxu0
      %v4143 = vadd.f32 0.0, %v4142
      %v4144 = vpop.f32.mrf.mxu0
      %4145 = vmatprep.mubr.bf16.mxu0 0
      %4146 = vmatmul.mubr.bf16.gmra.mxu0 %v4055
      %v4147 = vpop.f32.mrf.mxu0
      %v4148 = vadd.f32 0.0, %v4147
      %v4149 = vpop.f32.mrf.mxu0
      %v4150 = vpop.f32.mrf.mxu0
      %v4151 = vadd.f32 0.0, %v4150
      %v4152 = vpop.f32.mrf.mxu0
      %4153 = vdwg.mxu0
      %v4154 = vadd.f32 %v3961, %v4092
      %v4155 = vadd.f32 %v3962, %v4095
      %v4156 = vadd.f32 %v3963, %v4100
      %v4157 = vadd.f32 %v3964, %v4103
      %v4158 = vadd.f32 %v3965, %v4108
      %v4159 = vadd.f32 %v3966, %v4111
      %v4160 = vadd.f32 %v3967, %v4116
      %v4161 = vadd.f32 %v3968, %v4119
      %v4162 = vadd.f32 %v3969, %v4124
      %v4163 = vadd.f32 %v3970, %v4127
      %v4164 = vadd.f32 %v3971, %v4132
      %v4165 = vadd.f32 %v3972, %v4135
      %v4166 = vadd.f32 %v3973, %v4140
      %v4167 = vadd.f32 %v3974, %v4143
      %v4168 = vadd.f32 %v3975, %v4148
      %v4169 = vadd.f32 %v3976, %v4151
      %v4170 = vld [vmem:[%s5 + $0x110] sm:$0xf]
      %v4171 = vld [vmem:[%s5 + $0x114] sm:$0xf]
      %v4172 = vld [vmem:[%s5 + $0x118] sm:$0xf]
      %v4173 = vld [vmem:[%s5 + $0x11c] sm:$0xf]
      %v4174 = vld [vmem:[%s5 + $0x120] sm:$0xf]
      %v4175 = vld [vmem:[%s5 + $0x124] sm:$0xf]
      %v4176 = vld [vmem:[%s5 + $0x128] sm:$0xf]
      %v4177 = vld [vmem:[%s5 + $0x12c] sm:$0xf]
      %v4178 = vpack.c.bf16 %v3351, %v3350
      %v4179 = vpack.c.bf16 %v3353, %v3352
      %v4180 = vpack.c.bf16 %v3355, %v3354
      %v4181 = vpack.c.bf16 %v3357, %v3356
      %v4182 = vpack.c.bf16 %v3359, %v3358
      %v4183 = vpack.c.bf16 %v3361, %v3360
      %v4184 = vpack.c.bf16 %v3363, %v3362
      %v4185 = vpack.c.bf16 %v3365, %v3364
      %v4194 = vunpack.c.l.b16 %v4170
      %v4195 = vunpack.c.l.b16 %v4171
      %v4196 = vunpack.c.l.b16 %v4172
      %v4197 = vunpack.c.l.b16 %v4173
      %v4198 = vunpack.c.l.b16 %v4174
      %v4199 = vunpack.c.l.b16 %v4175
      %v4200 = vunpack.c.l.b16 %v4176
      %v4201 = vunpack.c.l.b16 %v4177
      %v4202 = vpack.c.b16 %v4195, %v4194
      %v4203 = vpack.c.b16 %v4197, %v4196
      %v4204 = vpack.c.b16 %v4199, %v4198
      %v4205 = vpack.c.b16 %v4201, %v4200
      %v4211 = vsel %vm2777, %v4178, 0
      %v4214 = vsel %vm2777, %v4179, 0
      %v4217 = vsel %vm2777, %v4180, 0
      %v4220 = vsel %vm2777, %v4181, 0
      %v4223 = vsel %vm2777, %v4182, 0
      %v4226 = vsel %vm2777, %v4183, 0
      %v4229 = vsel %vm2777, %v4184, 0
      %v4232 = vsel %vm2777, %v4185, 0
      %4234 = vmatprep.subr.bf16.mxu0 0
      %4235 = vmatpush1.bf16.msra.mxu0 0
      %4236 = vmatprep.subr.bf16.mxu0 0
      %4237 = vmatpush1.bf16.msra.mxu0 0
      %4238 = vmatprep.subr.bf16.mxu0 0
      %4239 = vmatpush1.bf16.msra.mxu0 0
      %4240 = vmatprep.subr.bf16.mxu0 0
      %4241 = vmatpush1.bf16.msra.mxu0 0
      %4242 = vmatprep.subr.bf16.mxu0 0
      %4243 = vmatpush1.bf16.msra.mxu0 %v4205
      %4244 = vmatprep.subr.bf16.mxu0 0
      %4245 = vmatpush1.bf16.msra.mxu0 %v4204
      %4246 = vmatprep.subr.bf16.mxu0 0
      %4247 = vmatpush1.bf16.msra.mxu0 %v4203
      %4248 = vmatprep.subr.bf16.mxu0 0
      %4249 = vmatpush1.bf16.msra.mxu0 %v4202
      %4250 = vmatprep.subr.bf16.mxu0 0
      %4251 = vmatpush2.bf16.msra.mxu0 0
      %4252 = vmatprep.subr.bf16.mxu0 0
      %4253 = vmatpush2.bf16.msra.mxu0 0
      %4254 = vmatprep.subr.bf16.mxu0 0
      %4255 = vmatpush2.bf16.msra.mxu0 0
      %4256 = vmatprep.subr.bf16.mxu0 0
      %4257 = vmatpush2.bf16.msra.mxu0 0
      %4258 = vmatprep.subr.bf16.mxu0 0
      %4259 = vmatpush2.bf16.msra.mxu0 0
      %4260 = vmatprep.subr.bf16.mxu0 0
      %4261 = vmatpush2.bf16.msra.mxu0 0
      %4262 = vmatprep.subr.bf16.mxu0 0
      %4263 = vmatpush2.bf16.msra.mxu0 0
      %4264 = vmatprep.subr.bf16.mxu0 0
      %4265 = vmatpush2.bf16.msra.mxu0 0
      %4266 = vmatprep.mubr.bf16.mxu0 0
      %4267 = vmatmul.mubr.bf16.gmra.mxu0 %v4211
      %v4268 = vpop.f32.mrf.mxu0
      %v4269 = vadd.f32 0.0, %v4268
      %v4270 = vpop.f32.mrf.mxu0
      %v4271 = vpop.f32.mrf.mxu0
      %v4272 = vadd.f32 0.0, %v4271
      %v4273 = vpop.f32.mrf.mxu0
      %4274 = vmatprep.mubr.bf16.mxu0 0
      %4275 = vmatmul.mubr.bf16.gmra.mxu0 %v4214
      %v4276 = vpop.f32.mrf.mxu0
      %v4277 = vadd.f32 0.0, %v4276
      %v4278 = vpop.f32.mrf.mxu0
      %v4279 = vpop.f32.mrf.mxu0
      %v4280 = vadd.f32 0.0, %v4279
      %v4281 = vpop.f32.mrf.mxu0
      %4282 = vmatprep.mubr.bf16.mxu0 0
      %4283 = vmatmul.mubr.bf16.gmra.mxu0 %v4217
      %v4284 = vpop.f32.mrf.mxu0
      %v4285 = vadd.f32 0.0, %v4284
      %v4286 = vpop.f32.mrf.mxu0
      %v4287 = vpop.f32.mrf.mxu0
      %v4288 = vadd.f32 0.0, %v4287
      %v4289 = vpop.f32.mrf.mxu0
      %4290 = vmatprep.mubr.bf16.mxu0 0
      %4291 = vmatmul.mubr.bf16.gmra.mxu0 %v4220
      %v4292 = vpop.f32.mrf.mxu0
      %v4293 = vadd.f32 0.0, %v4292
      %v4294 = vpop.f32.mrf.mxu0
      %v4295 = vpop.f32.mrf.mxu0
      %v4296 = vadd.f32 0.0, %v4295
      %v4297 = vpop.f32.mrf.mxu0
      %4298 = vmatprep.mubr.bf16.mxu0 0
      %4299 = vmatmul.mubr.bf16.gmra.mxu0 %v4223
      %v4300 = vpop.f32.mrf.mxu0
      %v4301 = vadd.f32 0.0, %v4300
      %v4302 = vpop.f32.mrf.mxu0
      %v4303 = vpop.f32.mrf.mxu0
      %v4304 = vadd.f32 0.0, %v4303
      %v4305 = vpop.f32.mrf.mxu0
      %4306 = vmatprep.mubr.bf16.mxu0 0
      %4307 = vmatmul.mubr.bf16.gmra.mxu0 %v4226
      %v4308 = vpop.f32.mrf.mxu0
      %v4309 = vadd.f32 0.0, %v4308
      %v4310 = vpop.f32.mrf.mxu0
      %v4311 = vpop.f32.mrf.mxu0
      %v4312 = vadd.f32 0.0, %v4311
      %v4313 = vpop.f32.mrf.mxu0
      %4314 = vmatprep.mubr.bf16.mxu0 0
      %4315 = vmatmul.mubr.bf16.gmra.mxu0 %v4229
      %v4316 = vpop.f32.mrf.mxu0
      %v4317 = vadd.f32 0.0, %v4316
      %v4318 = vpop.f32.mrf.mxu0
      %v4319 = vpop.f32.mrf.mxu0
      %v4320 = vadd.f32 0.0, %v4319
      %v4321 = vpop.f32.mrf.mxu0
      %4322 = vmatprep.mubr.bf16.mxu0 0
      %4323 = vmatmul.mubr.bf16.gmra.mxu0 %v4232
      %v4324 = vpop.f32.mrf.mxu0
      %v4325 = vadd.f32 0.0, %v4324
      %v4326 = vpop.f32.mrf.mxu0
      %v4327 = vpop.f32.mrf.mxu0
      %v4328 = vadd.f32 0.0, %v4327
      %v4329 = vpop.f32.mrf.mxu0
      %4330 = vdwg.mxu0
      %v4331 = vadd.f32 %v4154, %v4269
      %v4332 = vadd.f32 %v4155, %v4272
      %v4333 = vadd.f32 %v4156, %v4277
      %v4334 = vadd.f32 %v4157, %v4280
      %v4335 = vadd.f32 %v4158, %v4285
      %v4336 = vadd.f32 %v4159, %v4288
      %v4337 = vadd.f32 %v4160, %v4293
      %v4338 = vadd.f32 %v4161, %v4296
      %v4339 = vadd.f32 %v4162, %v4301
      %v4340 = vadd.f32 %v4163, %v4304
      %v4341 = vadd.f32 %v4164, %v4309
      %v4342 = vadd.f32 %v4165, %v4312
      %v4343 = vadd.f32 %v4166, %v4317
      %v4344 = vadd.f32 %v4167, %v4320
      %v4345 = vadd.f32 %v4168, %v4325
      %v4346 = vadd.f32 %v4169, %v4328
      %v4347 = vmul.f32 %v3782, %v1783
      %v4348 = vmul.f32 %v3781, %v1787
      %v4349 = vmul.f32 %v3780, %v1791
      %v4350 = vmul.f32 %v3779, %v1795
      %v4351 = vmul.f32 %v3778, %v1799
      %v4352 = vmul.f32 %v3777, %v1803
      %v4353 = vmul.f32 %v3776, %v1807
      %v4354 = vmul.f32 %v3775, %v1811
      %v4355 = vmul.f32 %v3774, %v1815
      %v4356 = vmul.f32 %v3773, %v1819
      %v4357 = vmul.f32 %v3772, %v1823
      %v4358 = vmul.f32 %v3771, %v1827
      %v4359 = vmul.f32 %v3770, %v1831
      %v4360 = vmul.f32 %v3769, %v1835
      %v4361 = vmul.f32 %v3768, %v1839
      %v4362 = vmul.f32 %v3783, %v1843
      %v4363 = vld [vmem:[%s5 + $0x130] sm:$0xf]
      %v4364 = vld [vmem:[%s5 + $0x134] sm:$0xf]
      %v4365 = vld [vmem:[%s5 + $0x138] sm:$0xf]
      %v4366 = vld [vmem:[%s5 + $0x13c] sm:$0xf]
      %v4367 = vld [vmem:[%s5 + $0x140] sm:$0xf]
      %v4368 = vld [vmem:[%s5 + $0x144] sm:$0xf]
      %v4369 = vld [vmem:[%s5 + $0x148] sm:$0xf]
      %v4370 = vld [vmem:[%s5 + $0x14c] sm:$0xf]
      %v4371 = vpack.c.bf16 %v4348, %v4347
      %v4372 = vpack.c.bf16 %v4350, %v4349
      %v4373 = vpack.c.bf16 %v4352, %v4351
      %v4374 = vpack.c.bf16 %v4354, %v4353
      %v4375 = vpack.c.bf16 %v4356, %v4355
      %v4376 = vpack.c.bf16 %v4358, %v4357
      %v4377 = vpack.c.bf16 %v4360, %v4359
      %v4378 = vpack.c.bf16 %v4362, %v4361
      %v4387 = vunpack.c.l.b16 %v4363
      %v4388 = vunpack.c.l.b16 %v4364
      %v4389 = vunpack.c.l.b16 %v4365
      %v4390 = vunpack.c.l.b16 %v4366
      %v4391 = vunpack.c.l.b16 %v4367
      %v4392 = vunpack.c.l.b16 %v4368
      %v4393 = vunpack.c.l.b16 %v4369
      %v4394 = vunpack.c.l.b16 %v4370
      %v4395 = vpack.c.b16 %v4388, %v4387
      %v4396 = vpack.c.b16 %v4390, %v4389
      %v4397 = vpack.c.b16 %v4392, %v4391
      %v4398 = vpack.c.b16 %v4394, %v4393
      %v4404 = vsel %vm2777, %v4371, 0
      %v4407 = vsel %vm2777, %v4372, 0
      %v4410 = vsel %vm2777, %v4373, 0
      %v4413 = vsel %vm2777, %v4374, 0
      %v4416 = vsel %vm2777, %v4375, 0
      %v4419 = vsel %vm2777, %v4376, 0
      %v4422 = vsel %vm2777, %v4377, 0
      %v4425 = vsel %vm2777, %v4378, 0
      %4427 = vmatprep.subr.bf16.mxu0 0
      %4428 = vmatpush1.bf16.msra.mxu0 0
      %4429 = vmatprep.subr.bf16.mxu0 0
      %4430 = vmatpush1.bf16.msra.mxu0 0
      %4431 = vmatprep.subr.bf16.mxu0 0
      %4432 = vmatpush1.bf16.msra.mxu0 0
      %4433 = vmatprep.subr.bf16.mxu0 0
      %4434 = vmatpush1.bf16.msra.mxu0 0
      %4435 = vmatprep.subr.bf16.mxu0 0
      %4436 = vmatpush1.bf16.msra.mxu0 %v4398
      %4437 = vmatprep.subr.bf16.mxu0 0
      %4438 = vmatpush1.bf16.msra.mxu0 %v4397
      %4439 = vmatprep.subr.bf16.mxu0 0
      %4440 = vmatpush1.bf16.msra.mxu0 %v4396
      %4441 = vmatprep.subr.bf16.mxu0 0
      %4442 = vmatpush1.bf16.msra.mxu0 %v4395
      %4443 = vmatprep.subr.bf16.mxu0 0
      %4444 = vmatpush2.bf16.msra.mxu0 0
      %4445 = vmatprep.subr.bf16.mxu0 0
      %4446 = vmatpush2.bf16.msra.mxu0 0
      %4447 = vmatprep.subr.bf16.mxu0 0
      %4448 = vmatpush2.bf16.msra.mxu0 0
      %4449 = vmatprep.subr.bf16.mxu0 0
      %4450 = vmatpush2.bf16.msra.mxu0 0
      %4451 = vmatprep.subr.bf16.mxu0 0
      %4452 = vmatpush2.bf16.msra.mxu0 0
      %4453 = vmatprep.subr.bf16.mxu0 0
      %4454 = vmatpush2.bf16.msra.mxu0 0
      %4455 = vmatprep.subr.bf16.mxu0 0
      %4456 = vmatpush2.bf16.msra.mxu0 0
      %4457 = vmatprep.subr.bf16.mxu0 0
      %4458 = vmatpush2.bf16.msra.mxu0 0
      %4459 = vmatprep.mubr.bf16.mxu0 0
      %4460 = vmatmul.mubr.bf16.gmra.mxu0 %v4404
      %v4461 = vpop.f32.mrf.mxu0
      %v4462 = vadd.f32 0.0, %v4461
      %v4463 = vpop.f32.mrf.mxu0
      %v4464 = vpop.f32.mrf.mxu0
      %v4465 = vadd.f32 0.0, %v4464
      %v4466 = vpop.f32.mrf.mxu0
      %4467 = vmatprep.mubr.bf16.mxu0 0
      %4468 = vmatmul.mubr.bf16.gmra.mxu0 %v4407
      %v4469 = vpop.f32.mrf.mxu0
      %v4470 = vadd.f32 0.0, %v4469
      %v4471 = vpop.f32.mrf.mxu0
      %v4472 = vpop.f32.mrf.mxu0
      %v4473 = vadd.f32 0.0, %v4472
      %v4474 = vpop.f32.mrf.mxu0
      %4475 = vmatprep.mubr.bf16.mxu0 0
      %4476 = vmatmul.mubr.bf16.gmra.mxu0 %v4410
      %v4477 = vpop.f32.mrf.mxu0
      %v4478 = vadd.f32 0.0, %v4477
      %v4479 = vpop.f32.mrf.mxu0
      %v4480 = vpop.f32.mrf.mxu0
      %v4481 = vadd.f32 0.0, %v4480
      %v4482 = vpop.f32.mrf.mxu0
      %4483 = vmatprep.mubr.bf16.mxu0 0
      %4484 = vmatmul.mubr.bf16.gmra.mxu0 %v4413
      %v4485 = vpop.f32.mrf.mxu0
      %v4486 = vadd.f32 0.0, %v4485
      %v4487 = vpop.f32.mrf.mxu0
      %v4488 = vpop.f32.mrf.mxu0
      %v4489 = vadd.f32 0.0, %v4488
      %v4490 = vpop.f32.mrf.mxu0
      %4491 = vmatprep.mubr.bf16.mxu0 0
      %4492 = vmatmul.mubr.bf16.gmra.mxu0 %v4416
      %v4493 = vpop.f32.mrf.mxu0
      %v4494 = vadd.f32 0.0, %v4493
      %v4495 = vpop.f32.mrf.mxu0
      %v4496 = vpop.f32.mrf.mxu0
      %v4497 = vadd.f32 0.0, %v4496
      %v4498 = vpop.f32.mrf.mxu0
      %4499 = vmatprep.mubr.bf16.mxu0 0
      %4500 = vmatmul.mubr.bf16.gmra.mxu0 %v4419
      %v4501 = vpop.f32.mrf.mxu0
      %v4502 = vadd.f32 0.0, %v4501
      %v4503 = vpop.f32.mrf.mxu0
      %v4504 = vpop.f32.mrf.mxu0
      %v4505 = vadd.f32 0.0, %v4504
      %v4506 = vpop.f32.mrf.mxu0
      %4507 = vmatprep.mubr.bf16.mxu0 0
      %4508 = vmatmul.mubr.bf16.gmra.mxu0 %v4422
      %v4509 = vpop.f32.mrf.mxu0
      %v4510 = vadd.f32 0.0, %v4509
      %v4511 = vpop.f32.mrf.mxu0
      %v4512 = vpop.f32.mrf.mxu0
      %v4513 = vadd.f32 0.0, %v4512
      %v4514 = vpop.f32.mrf.mxu0
      %4515 = vmatprep.mubr.bf16.mxu0 0
      %4516 = vmatmul.mubr.bf16.gmra.mxu0 %v4425
      %v4517 = vpop.f32.mrf.mxu0
      %v4518 = vadd.f32 0.0, %v4517
      %v4519 = vpop.f32.mrf.mxu0
      %v4520 = vpop.f32.mrf.mxu0
      %v4521 = vadd.f32 0.0, %v4520
      %v4522 = vpop.f32.mrf.mxu0
      %4523 = vdwg.mxu0
      %v4524 = vadd.f32 %v4331, %v4462
      %v4525 = vadd.f32 %v4332, %v4465
      %v4526 = vadd.f32 %v4333, %v4470
      %v4527 = vadd.f32 %v4334, %v4473
      %v4528 = vadd.f32 %v4335, %v4478
      %v4529 = vadd.f32 %v4336, %v4481
      %v4530 = vadd.f32 %v4337, %v4486
      %v4531 = vadd.f32 %v4338, %v4489
      %v4532 = vadd.f32 %v4339, %v4494
      %v4533 = vadd.f32 %v4340, %v4497
      %v4534 = vadd.f32 %v4341, %v4502
      %v4535 = vadd.f32 %v4342, %v4505
      %v4536 = vadd.f32 %v4343, %v4510
      %v4537 = vadd.f32 %v4344, %v4513
      %v4538 = vadd.f32 %v4345, %v4518
      %v4539 = vadd.f32 %v4346, %v4521
      %v4540 = vmul.f32 %v3396, %v2024
      %v4541 = vmul.f32 %v3395, %v2028
      %v4542 = vmul.f32 %v3394, %v2032
      %v4543 = vmul.f32 %v3393, %v2036
      %v4544 = vmul.f32 %v3392, %v2040
      %v4545 = vmul.f32 %v3391, %v2044
      %v4546 = vmul.f32 %v3390, %v2048
      %v4547 = vmul.f32 %v3389, %v2052
      %v4548 = vmul.f32 %v3388, %v2056
      %v4549 = vmul.f32 %v3387, %v2060
      %v4550 = vmul.f32 %v3386, %v2064
      %v4551 = vmul.f32 %v3385, %v2068
      %v4552 = vmul.f32 %v3384, %v2072
      %v4553 = vmul.f32 %v3383, %v2076
      %v4554 = vmul.f32 %v3382, %v2080
      %v4555 = vmul.f32 %v3397, %v2084
      %v4556 = vld [vmem:[%s5 + $0x150] sm:$0xf]
      %v4557 = vld [vmem:[%s5 + $0x154] sm:$0xf]
      %v4558 = vld [vmem:[%s5 + $0x158] sm:$0xf]
      %v4559 = vld [vmem:[%s5 + $0x15c] sm:$0xf]
      %v4560 = vld [vmem:[%s5 + $0x160] sm:$0xf]
      %v4561 = vld [vmem:[%s5 + $0x164] sm:$0xf]
      %v4562 = vld [vmem:[%s5 + $0x168] sm:$0xf]
      %v4563 = vld [vmem:[%s5 + $0x16c] sm:$0xf]
      %v4564 = vpack.c.bf16 %v4541, %v4540
      %v4565 = vpack.c.bf16 %v4543, %v4542
      %v4566 = vpack.c.bf16 %v4545, %v4544
      %v4567 = vpack.c.bf16 %v4547, %v4546
      %v4568 = vpack.c.bf16 %v4549, %v4548
      %v4569 = vpack.c.bf16 %v4551, %v4550
      %v4570 = vpack.c.bf16 %v4553, %v4552
      %v4571 = vpack.c.bf16 %v4555, %v4554
      %v4580 = vunpack.c.l.b16 %v4556
      %v4581 = vunpack.c.l.b16 %v4557
      %v4582 = vunpack.c.l.b16 %v4558
      %v4583 = vunpack.c.l.b16 %v4559
      %v4584 = vunpack.c.l.b16 %v4560
      %v4585 = vunpack.c.l.b16 %v4561
      %v4586 = vunpack.c.l.b16 %v4562
      %v4587 = vunpack.c.l.b16 %v4563
      %v4588 = vpack.c.b16 %v4581, %v4580
      %v4589 = vpack.c.b16 %v4583, %v4582
      %v4590 = vpack.c.b16 %v4585, %v4584
      %v4591 = vpack.c.b16 %v4587, %v4586
      %v4597 = vsel %vm2777, %v4564, 0
      %v4600 = vsel %vm2777, %v4565, 0
      %v4603 = vsel %vm2777, %v4566, 0
      %v4606 = vsel %vm2777, %v4567, 0
      %v4609 = vsel %vm2777, %v4568, 0
      %v4612 = vsel %vm2777, %v4569, 0
      %v4615 = vsel %vm2777, %v4570, 0
      %v4618 = vsel %vm2777, %v4571, 0
      %4620 = vmatprep.subr.bf16.mxu0 0
      %4621 = vmatpush1.bf16.msra.mxu0 0
      %4622 = vmatprep.subr.bf16.mxu0 0
      %4623 = vmatpush1.bf16.msra.mxu0 0
      %4624 = vmatprep.subr.bf16.mxu0 0
      %4625 = vmatpush1.bf16.msra.mxu0 0
      %4626 = vmatprep.subr.bf16.mxu0 0
      %4627 = vmatpush1.bf16.msra.mxu0 0
      %4628 = vmatprep.subr.bf16.mxu0 0
      %4629 = vmatpush1.bf16.msra.mxu0 %v4591
      %4630 = vmatprep.subr.bf16.mxu0 0
      %4631 = vmatpush1.bf16.msra.mxu0 %v4590
      %4632 = vmatprep.subr.bf16.mxu0 0
      %4633 = vmatpush1.bf16.msra.mxu0 %v4589
      %4634 = vmatprep.subr.bf16.mxu0 0
      %4635 = vmatpush1.bf16.msra.mxu0 %v4588
      %4636 = vmatprep.subr.bf16.mxu0 0
      %4637 = vmatpush2.bf16.msra.mxu0 0
      %4638 = vmatprep.subr.bf16.mxu0 0
      %4639 = vmatpush2.bf16.msra.mxu0 0
      %4640 = vmatprep.subr.bf16.mxu0 0
      %4641 = vmatpush2.bf16.msra.mxu0 0
      %4642 = vmatprep.subr.bf16.mxu0 0
      %4643 = vmatpush2.bf16.msra.mxu0 0
      %4644 = vmatprep.subr.bf16.mxu0 0
      %4645 = vmatpush2.bf16.msra.mxu0 0
      %4646 = vmatprep.subr.bf16.mxu0 0
      %4647 = vmatpush2.bf16.msra.mxu0 0
      %4648 = vmatprep.subr.bf16.mxu0 0
      %4649 = vmatpush2.bf16.msra.mxu0 0
      %4650 = vmatprep.subr.bf16.mxu0 0
      %4651 = vmatpush2.bf16.msra.mxu0 0
      %4652 = vmatprep.mubr.bf16.mxu0 0
      %4653 = vmatmul.mubr.bf16.gmra.mxu0 %v4597
      %v4654 = vpop.f32.mrf.mxu0
      %v4655 = vadd.f32 0.0, %v4654
      %v4656 = vpop.f32.mrf.mxu0
      %v4657 = vpop.f32.mrf.mxu0
      %v4658 = vadd.f32 0.0, %v4657
      %v4659 = vpop.f32.mrf.mxu0
      %4660 = vmatprep.mubr.bf16.mxu0 0
      %4661 = vmatmul.mubr.bf16.gmra.mxu0 %v4600
      %v4662 = vpop.f32.mrf.mxu0
      %v4663 = vadd.f32 0.0, %v4662
      %v4664 = vpop.f32.mrf.mxu0
      %v4665 = vpop.f32.mrf.mxu0
      %v4666 = vadd.f32 0.0, %v4665
      %v4667 = vpop.f32.mrf.mxu0
      %4668 = vmatprep.mubr.bf16.mxu0 0
      %4669 = vmatmul.mubr.bf16.gmra.mxu0 %v4603
      %v4670 = vpop.f32.mrf.mxu0
      %v4671 = vadd.f32 0.0, %v4670
      %v4672 = vpop.f32.mrf.mxu0
      %v4673 = vpop.f32.mrf.mxu0
      %v4674 = vadd.f32 0.0, %v4673
      %v4675 = vpop.f32.mrf.mxu0
      %4676 = vmatprep.mubr.bf16.mxu0 0
      %4677 = vmatmul.mubr.bf16.gmra.mxu0 %v4606
      %v4678 = vpop.f32.mrf.mxu0
      %v4679 = vadd.f32 0.0, %v4678
      %v4680 = vpop.f32.mrf.mxu0
      %v4681 = vpop.f32.mrf.mxu0
      %v4682 = vadd.f32 0.0, %v4681
      %v4683 = vpop.f32.mrf.mxu0
      %4684 = vmatprep.mubr.bf16.mxu0 0
      %4685 = vmatmul.mubr.bf16.gmra.mxu0 %v4609
      %v4686 = vpop.f32.mrf.mxu0
      %v4687 = vadd.f32 0.0, %v4686
      %v4688 = vpop.f32.mrf.mxu0
      %v4689 = vpop.f32.mrf.mxu0
      %v4690 = vadd.f32 0.0, %v4689
      %v4691 = vpop.f32.mrf.mxu0
      %4692 = vmatprep.mubr.bf16.mxu0 0
      %4693 = vmatmul.mubr.bf16.gmra.mxu0 %v4612
      %v4694 = vpop.f32.mrf.mxu0
      %v4695 = vadd.f32 0.0, %v4694
      %v4696 = vpop.f32.mrf.mxu0
      %v4697 = vpop.f32.mrf.mxu0
      %v4698 = vadd.f32 0.0, %v4697
      %v4699 = vpop.f32.mrf.mxu0
      %4700 = vmatprep.mubr.bf16.mxu0 0
      %4701 = vmatmul.mubr.bf16.gmra.mxu0 %v4615
      %v4702 = vpop.f32.mrf.mxu0
      %v4703 = vadd.f32 0.0, %v4702
      %v4704 = vpop.f32.mrf.mxu0
      %v4705 = vpop.f32.mrf.mxu0
      %v4706 = vadd.f32 0.0, %v4705
      %v4707 = vpop.f32.mrf.mxu0
      %4708 = vmatprep.mubr.bf16.mxu0 0
      %4709 = vmatmul.mubr.bf16.gmra.mxu0 %v4618
      %v4710 = vpop.f32.mrf.mxu0
      %v4711 = vadd.f32 0.0, %v4710
      %v4712 = vpop.f32.mrf.mxu0
      %v4713 = vpop.f32.mrf.mxu0
      %v4714 = vadd.f32 0.0, %v4713
      %v4715 = vpop.f32.mrf.mxu0
      %4716 = vdwg.mxu0
      %v4717 = vadd.f32 %v4524, %v4655
      %v4718 = vadd.f32 %v4525, %v4658
      %v4719 = vadd.f32 %v4526, %v4663
      %v4720 = vadd.f32 %v4527, %v4666
      %v4721 = vadd.f32 %v4528, %v4671
      %v4722 = vadd.f32 %v4529, %v4674
      %v4723 = vadd.f32 %v4530, %v4679
      %v4724 = vadd.f32 %v4531, %v4682
      %v4725 = vadd.f32 %v4532, %v4687
      %v4726 = vadd.f32 %v4533, %v4690
      %v4727 = vadd.f32 %v4534, %v4695
      %v4728 = vadd.f32 %v4535, %v4698
      %v4729 = vadd.f32 %v4536, %v4703
      %v4730 = vadd.f32 %v4537, %v4706
      %v4731 = vadd.f32 %v4538, %v4711
      %v4732 = vadd.f32 %v4539, %v4714
      %v4733 = vmul.f32 %v3351, %v2265
      %v4734 = vmul.f32 %v3352, %v2269
      %v4735 = vmul.f32 %v3353, %v2273
      %v4736 = vmul.f32 %v3354, %v2277
      %v4737 = vmul.f32 %v3355, %v2281
      %v4738 = vmul.f32 %v3356, %v2285
      %v4739 = vmul.f32 %v3357, %v2289
      %v4740 = vmul.f32 %v3358, %v2293
      %v4741 = vmul.f32 %v3359, %v2297
      %v4742 = vmul.f32 %v3360, %v2301
      %v4743 = vmul.f32 %v3361, %v2305
      %v4744 = vmul.f32 %v3362, %v2309
      %v4745 = vmul.f32 %v3363, %v2313
      %v4746 = vmul.f32 %v3364, %v2317
      %v4747 = vmul.f32 %v3365, %v2321
      %v4748 = vmul.f32 %v3350, %v2325
      %v4749 = vld [vmem:[%s5 + $0x170] sm:$0xf]
      %v4750 = vld [vmem:[%s5 + $0x174] sm:$0xf]
      %v4751 = vld [vmem:[%s5 + $0x178] sm:$0xf]
      %v4752 = vld [vmem:[%s5 + $0x17c] sm:$0xf]
      %v4753 = vld [vmem:[%s5 + $0x180] sm:$0xf]
      %v4754 = vld [vmem:[%s5 + $0x184] sm:$0xf]
      %v4755 = vld [vmem:[%s5 + $0x188] sm:$0xf]
      %v4756 = vld [vmem:[%s5 + $0x18c] sm:$0xf]
      %v4757 = vpack.c.bf16 %v4734, %v4733
      %v4758 = vpack.c.bf16 %v4736, %v4735
      %v4759 = vpack.c.bf16 %v4738, %v4737
      %v4760 = vpack.c.bf16 %v4740, %v4739
      %v4761 = vpack.c.bf16 %v4742, %v4741
      %v4762 = vpack.c.bf16 %v4744, %v4743
      %v4763 = vpack.c.bf16 %v4746, %v4745
      %v4764 = vpack.c.bf16 %v4748, %v4747
      %v4773 = vunpack.c.l.b16 %v4749
      %v4774 = vunpack.c.l.b16 %v4750
      %v4775 = vunpack.c.l.b16 %v4751
      %v4776 = vunpack.c.l.b16 %v4752
      %v4777 = vunpack.c.l.b16 %v4753
      %v4778 = vunpack.c.l.b16 %v4754
      %v4779 = vunpack.c.l.b16 %v4755
      %v4780 = vunpack.c.l.b16 %v4756
      %v4781 = vpack.c.b16 %v4774, %v4773
      %v4782 = vpack.c.b16 %v4776, %v4775
      %v4783 = vpack.c.b16 %v4778, %v4777
      %v4784 = vpack.c.b16 %v4780, %v4779
      %v4790 = vsel %vm2777, %v4757, 0
      %v4793 = vsel %vm2777, %v4758, 0
      %v4796 = vsel %vm2777, %v4759, 0
      %v4799 = vsel %vm2777, %v4760, 0
      %v4802 = vsel %vm2777, %v4761, 0
      %v4805 = vsel %vm2777, %v4762, 0
      %v4808 = vsel %vm2777, %v4763, 0
      %v4811 = vsel %vm2777, %v4764, 0
      %4813 = vmatprep.subr.bf16.mxu0 0
      %4814 = vmatpush1.bf16.msra.mxu0 0
      %4815 = vmatprep.subr.bf16.mxu0 0
      %4816 = vmatpush1.bf16.msra.mxu0 0
      %4817 = vmatprep.subr.bf16.mxu0 0
      %4818 = vmatpush1.bf16.msra.mxu0 0
      %4819 = vmatprep.subr.bf16.mxu0 0
      %4820 = vmatpush1.bf16.msra.mxu0 0
      %4821 = vmatprep.subr.bf16.mxu0 0
      %4822 = vmatpush1.bf16.msra.mxu0 %v4784
      %4823 = vmatprep.subr.bf16.mxu0 0
      %4824 = vmatpush1.bf16.msra.mxu0 %v4783
      %4825 = vmatprep.subr.bf16.mxu0 0
      %4826 = vmatpush1.bf16.msra.mxu0 %v4782
      %4827 = vmatprep.subr.bf16.mxu0 0
      %4828 = vmatpush1.bf16.msra.mxu0 %v4781
      %4829 = vmatprep.subr.bf16.mxu0 0
      %4830 = vmatpush2.bf16.msra.mxu0 0
      %4831 = vmatprep.subr.bf16.mxu0 0
      %4832 = vmatpush2.bf16.msra.mxu0 0
      %4833 = vmatprep.subr.bf16.mxu0 0
      %4834 = vmatpush2.bf16.msra.mxu0 0
      %4835 = vmatprep.subr.bf16.mxu0 0
      %4836 = vmatpush2.bf16.msra.mxu0 0
      %4837 = vmatprep.subr.bf16.mxu0 0
      %4838 = vmatpush2.bf16.msra.mxu0 0
      %4839 = vmatprep.subr.bf16.mxu0 0
      %4840 = vmatpush2.bf16.msra.mxu0 0
      %4841 = vmatprep.subr.bf16.mxu0 0
      %4842 = vmatpush2.bf16.msra.mxu0 0
      %4843 = vmatprep.subr.bf16.mxu0 0
      %4844 = vmatpush2.bf16.msra.mxu0 0
      %4845 = vmatprep.mubr.bf16.mxu0 0
      %4846 = vmatmul.mubr.bf16.gmra.mxu0 %v4790
      %v4847 = vpop.f32.mrf.mxu0
      %v4848 = vadd.f32 0.0, %v4847
      %v4849 = vpop.f32.mrf.mxu0
      %v4850 = vpop.f32.mrf.mxu0
      %v4851 = vadd.f32 0.0, %v4850
      %v4852 = vpop.f32.mrf.mxu0
      %4853 = vmatprep.mubr.bf16.mxu0 0
      %4854 = vmatmul.mubr.bf16.gmra.mxu0 %v4793
      %v4855 = vpop.f32.mrf.mxu0
      %v4856 = vadd.f32 0.0, %v4855
      %v4857 = vpop.f32.mrf.mxu0
      %v4858 = vpop.f32.mrf.mxu0
      %v4859 = vadd.f32 0.0, %v4858
      %v4860 = vpop.f32.mrf.mxu0
      %4861 = vmatprep.mubr.bf16.mxu0 0
      %4862 = vmatmul.mubr.bf16.gmra.mxu0 %v4796
      %v4863 = vpop.f32.mrf.mxu0
      %v4864 = vadd.f32 0.0, %v4863
      %v4865 = vpop.f32.mrf.mxu0
      %v4866 = vpop.f32.mrf.mxu0
      %v4867 = vadd.f32 0.0, %v4866
      %v4868 = vpop.f32.mrf.mxu0
      %4869 = vmatprep.mubr.bf16.mxu0 0
      %4870 = vmatmul.mubr.bf16.gmra.mxu0 %v4799
      %v4871 = vpop.f32.mrf.mxu0
      %v4872 = vadd.f32 0.0, %v4871
      %v4873 = vpop.f32.mrf.mxu0
      %v4874 = vpop.f32.mrf.mxu0
      %v4875 = vadd.f32 0.0, %v4874
      %v4876 = vpop.f32.mrf.mxu0
      %4877 = vmatprep.mubr.bf16.mxu0 0
      %4878 = vmatmul.mubr.bf16.gmra.mxu0 %v4802
      %v4879 = vpop.f32.mrf.mxu0
      %v4880 = vadd.f32 0.0, %v4879
      %v4881 = vpop.f32.mrf.mxu0
      %v4882 = vpop.f32.mrf.mxu0
      %v4883 = vadd.f32 0.0, %v4882
      %v4884 = vpop.f32.mrf.mxu0
      %4885 = vmatprep.mubr.bf16.mxu0 0
      %4886 = vmatmul.mubr.bf16.gmra.mxu0 %v4805
      %v4887 = vpop.f32.mrf.mxu0
      %v4888 = vadd.f32 0.0, %v4887
      %v4889 = vpop.f32.mrf.mxu0
      %v4890 = vpop.f32.mrf.mxu0
      %v4891 = vadd.f32 0.0, %v4890
      %v4892 = vpop.f32.mrf.mxu0
      %4893 = vmatprep.mubr.bf16.mxu0 0
      %4894 = vmatmul.mubr.bf16.gmra.mxu0 %v4808
      %v4895 = vpop.f32.mrf.mxu0
      %v4896 = vadd.f32 0.0, %v4895
      %v4897 = vpop.f32.mrf.mxu0
      %v4898 = vpop.f32.mrf.mxu0
      %v4899 = vadd.f32 0.0, %v4898
      %v4900 = vpop.f32.mrf.mxu0
      %4901 = vmatprep.mubr.bf16.mxu0 0
      %4902 = vmatmul.mubr.bf16.gmra.mxu0 %v4811
      %v4903 = vpop.f32.mrf.mxu0
      %v4904 = vadd.f32 0.0, %v4903
      %v4905 = vpop.f32.mrf.mxu0
      %v4906 = vpop.f32.mrf.mxu0
      %v4907 = vadd.f32 0.0, %v4906
      %v4908 = vpop.f32.mrf.mxu0
      %4909 = vdwg.mxu0
      %v4910 = vadd.f32 %v4717, %v4848
      %v4911 = vadd.f32 %v4718, %v4851
      %v4912 = vadd.f32 %v4719, %v4856
      %v4913 = vadd.f32 %v4720, %v4859
      %v4914 = vadd.f32 %v4721, %v4864
      %v4915 = vadd.f32 %v4722, %v4867
      %v4916 = vadd.f32 %v4723, %v4872
      %v4917 = vadd.f32 %v4724, %v4875
      %v4918 = vadd.f32 %v4725, %v4880
      %v4919 = vadd.f32 %v4726, %v4883
      %v4920 = vadd.f32 %v4727, %v4888
      %v4921 = vadd.f32 %v4728, %v4891
      %v4922 = vadd.f32 %v4729, %v4896
      %v4923 = vadd.f32 %v4730, %v4899
      %v4924 = vadd.f32 %v4731, %v4904
      %v4925 = vadd.f32 %v4732, %v4907
      %v4926 = vmul.f32 %v3781, %v2506
      %v4927 = vmul.f32 %v3780, %v2510
      %v4928 = vmul.f32 %v3779, %v2514
      %v4929 = vmul.f32 %v3778, %v2518
      %v4930 = vmul.f32 %v3777, %v2522
      %v4931 = vmul.f32 %v3776, %v2526
      %v4932 = vmul.f32 %v3775, %v2530
      %v4933 = vmul.f32 %v3774, %v2534
      %v4934 = vmul.f32 %v3773, %v2538
      %v4935 = vmul.f32 %v3772, %v2542
      %v4936 = vmul.f32 %v3771, %v2546
      %v4937 = vmul.f32 %v3770, %v2550
      %v4938 = vmul.f32 %v3769, %v2554
      %v4939 = vmul.f32 %v3768, %v2558
      %v4940 = vmul.f32 %v3783, %v2562
      %v4941 = vmul.f32 %v3782, %v2566
      %v4942 = vld [vmem:[%s5 + $0x190] sm:$0xf]
      %v4943 = vld [vmem:[%s5 + $0x194] sm:$0xf]
      %v4944 = vld [vmem:[%s5 + $0x198] sm:$0xf]
      %v4945 = vld [vmem:[%s5 + $0x19c] sm:$0xf]
      %v4946 = vld [vmem:[%s5 + $0x1a0] sm:$0xf]
      %v4947 = vld [vmem:[%s5 + $0x1a4] sm:$0xf]
      %v4948 = vld [vmem:[%s5 + $0x1a8] sm:$0xf]
      %v4949 = vld [vmem:[%s5 + $0x1ac] sm:$0xf]
      %v4950 = vpack.c.bf16 %v4927, %v4926
      %v4951 = vpack.c.bf16 %v4929, %v4928
      %v4952 = vpack.c.bf16 %v4931, %v4930
      %v4953 = vpack.c.bf16 %v4933, %v4932
      %v4954 = vpack.c.bf16 %v4935, %v4934
      %v4955 = vpack.c.bf16 %v4937, %v4936
      %v4956 = vpack.c.bf16 %v4939, %v4938
      %v4957 = vpack.c.bf16 %v4941, %v4940
      %v4966 = vunpack.c.l.b16 %v4942
      %v4967 = vunpack.c.l.b16 %v4943
      %v4968 = vunpack.c.l.b16 %v4944
      %v4969 = vunpack.c.l.b16 %v4945
      %v4970 = vunpack.c.l.b16 %v4946
      %v4971 = vunpack.c.l.b16 %v4947
      %v4972 = vunpack.c.l.b16 %v4948
      %v4973 = vunpack.c.l.b16 %v4949
      %v4974 = vpack.c.b16 %v4967, %v4966
      %v4975 = vpack.c.b16 %v4969, %v4968
      %v4976 = vpack.c.b16 %v4971, %v4970
      %v4977 = vpack.c.b16 %v4973, %v4972
      %v4983 = vsel %vm2777, %v4950, 0
      %v4986 = vsel %vm2777, %v4951, 0
      %v4989 = vsel %vm2777, %v4952, 0
      %v4992 = vsel %vm2777, %v4953, 0
      %v4995 = vsel %vm2777, %v4954, 0
      %v4998 = vsel %vm2777, %v4955, 0
      %v5001 = vsel %vm2777, %v4956, 0
      %v5004 = vsel %vm2777, %v4957, 0
      %5006 = vmatprep.subr.bf16.mxu0 0
      %5007 = vmatpush1.bf16.msra.mxu0 0
      %5008 = vmatprep.subr.bf16.mxu0 0
      %5009 = vmatpush1.bf16.msra.mxu0 0
      %5010 = vmatprep.subr.bf16.mxu0 0
      %5011 = vmatpush1.bf16.msra.mxu0 0
      %5012 = vmatprep.subr.bf16.mxu0 0
      %5013 = vmatpush1.bf16.msra.mxu0 0
      %5014 = vmatprep.subr.bf16.mxu0 0
      %5015 = vmatpush1.bf16.msra.mxu0 %v4977
      %5016 = vmatprep.subr.bf16.mxu0 0
      %5017 = vmatpush1.bf16.msra.mxu0 %v4976
      %5018 = vmatprep.subr.bf16.mxu0 0
      %5019 = vmatpush1.bf16.msra.mxu0 %v4975
      %5020 = vmatprep.subr.bf16.mxu0 0
      %5021 = vmatpush1.bf16.msra.mxu0 %v4974
      %5022 = vmatprep.subr.bf16.mxu0 0
      %5023 = vmatpush2.bf16.msra.mxu0 0
      %5024 = vmatprep.subr.bf16.mxu0 0
      %5025 = vmatpush2.bf16.msra.mxu0 0
      %5026 = vmatprep.subr.bf16.mxu0 0
      %5027 = vmatpush2.bf16.msra.mxu0 0
      %5028 = vmatprep.subr.bf16.mxu0 0
      %5029 = vmatpush2.bf16.msra.mxu0 0
      %5030 = vmatprep.subr.bf16.mxu0 0
      %5031 = vmatpush2.bf16.msra.mxu0 0
      %5032 = vmatprep.subr.bf16.mxu0 0
      %5033 = vmatpush2.bf16.msra.mxu0 0
      %5034 = vmatprep.subr.bf16.mxu0 0
      %5035 = vmatpush2.bf16.msra.mxu0 0
      %5036 = vmatprep.subr.bf16.mxu0 0
      %5037 = vmatpush2.bf16.msra.mxu0 0
      %5038 = vmatprep.mubr.bf16.mxu0 0
      %5039 = vmatmul.mubr.bf16.gmra.mxu0 %v4983
      %v5040 = vpop.f32.mrf.mxu0
      %v5041 = vadd.f32 0.0, %v5040
      %v5042 = vpop.f32.mrf.mxu0
      %v5043 = vpop.f32.mrf.mxu0
      %v5044 = vadd.f32 0.0, %v5043
      %v5045 = vpop.f32.mrf.mxu0
      %5046 = vmatprep.mubr.bf16.mxu0 0
      %5047 = vmatmul.mubr.bf16.gmra.mxu0 %v4986
      %v5048 = vpop.f32.mrf.mxu0
      %v5049 = vadd.f32 0.0, %v5048
      %v5050 = vpop.f32.mrf.mxu0
      %v5051 = vpop.f32.mrf.mxu0
      %v5052 = vadd.f32 0.0, %v5051
      %v5053 = vpop.f32.mrf.mxu0
      %5054 = vmatprep.mubr.bf16.mxu0 0
      %5055 = vmatmul.mubr.bf16.gmra.mxu0 %v4989
      %v5056 = vpop.f32.mrf.mxu0
      %v5057 = vadd.f32 0.0, %v5056
      %v5058 = vpop.f32.mrf.mxu0
      %v5059 = vpop.f32.mrf.mxu0
      %v5060 = vadd.f32 0.0, %v5059
      %v5061 = vpop.f32.mrf.mxu0
      %5062 = vmatprep.mubr.bf16.mxu0 0
      %5063 = vmatmul.mubr.bf16.gmra.mxu0 %v4992
      %v5064 = vpop.f32.mrf.mxu0
      %v5065 = vadd.f32 0.0, %v5064
      %v5066 = vpop.f32.mrf.mxu0
      %v5067 = vpop.f32.mrf.mxu0
      %v5068 = vadd.f32 0.0, %v5067
      %v5069 = vpop.f32.mrf.mxu0
      %5070 = vmatprep.mubr.bf16.mxu0 0
      %5071 = vmatmul.mubr.bf16.gmra.mxu0 %v4995
      %v5072 = vpop.f32.mrf.mxu0
      %v5073 = vadd.f32 0.0, %v5072
      %v5074 = vpop.f32.mrf.mxu0
      %v5075 = vpop.f32.mrf.mxu0
      %v5076 = vadd.f32 0.0, %v5075
      %v5077 = vpop.f32.mrf.mxu0
      %5078 = vmatprep.mubr.bf16.mxu0 0
      %5079 = vmatmul.mubr.bf16.gmra.mxu0 %v4998
      %v5080 = vpop.f32.mrf.mxu0
      %v5081 = vadd.f32 0.0, %v5080
      %v5082 = vpop.f32.mrf.mxu0
      %v5083 = vpop.f32.mrf.mxu0
      %v5084 = vadd.f32 0.0, %v5083
      %v5085 = vpop.f32.mrf.mxu0
      %5086 = vmatprep.mubr.bf16.mxu0 0
      %5087 = vmatmul.mubr.bf16.gmra.mxu0 %v5001
      %v5088 = vpop.f32.mrf.mxu0
      %v5089 = vadd.f32 0.0, %v5088
      %v5090 = vpop.f32.mrf.mxu0
      %v5091 = vpop.f32.mrf.mxu0
      %v5092 = vadd.f32 0.0, %v5091
      %v5093 = vpop.f32.mrf.mxu0
      %5094 = vmatprep.mubr.bf16.mxu0 0
      %5095 = vmatmul.mubr.bf16.gmra.mxu0 %v5004
      %v5096 = vpop.f32.mrf.mxu0
      %v5097 = vadd.f32 0.0, %v5096
      %v5098 = vpop.f32.mrf.mxu0
      %v5099 = vpop.f32.mrf.mxu0
      %v5100 = vadd.f32 0.0, %v5099
      %v5101 = vpop.f32.mrf.mxu0
      %5102 = vdwg.mxu0
      %v5103 = vadd.f32 %v4910, %v5041
      %v5104 = vadd.f32 %v4911, %v5044
      %v5105 = vadd.f32 %v4912, %v5049
      %v5106 = vadd.f32 %v4913, %v5052
      %v5107 = vadd.f32 %v4914, %v5057
      %v5108 = vadd.f32 %v4915, %v5060
      %v5109 = vadd.f32 %v4916, %v5065
      %v5110 = vadd.f32 %v4917, %v5068
      %v5111 = vadd.f32 %v4918, %v5073
      %v5112 = vadd.f32 %v4919, %v5076
      %v5113 = vadd.f32 %v4920, %v5081
      %v5114 = vadd.f32 %v4921, %v5084
      %v5115 = vadd.f32 %v4922, %v5089
      %v5116 = vadd.f32 %v4923, %v5092
      %v5117 = vadd.f32 %v4924, %v5097
      %v5118 = vadd.f32 %v4925, %v5100
      %v5119 = vlaneseq
      %v5120 = vshrl.u32 %v5119, 7
      %v5121 = vsub.s32 0, %v5120
      %v5122 = vrot.slane %v317, %v5121
      %v5123 = vadd.f32 %v5103, %v5122
      %v5124 = vadd.f32 %v5104, %v5122
      %v5125 = vadd.f32 %v5105, %v5122
      %v5126 = vadd.f32 %v5106, %v5122
      %v5127 = vadd.f32 %v5107, %v5122
      %v5128 = vadd.f32 %v5108, %v5122
      %v5129 = vadd.f32 %v5109, %v5122
      %v5130 = vadd.f32 %v5110, %v5122
      %v5131 = vadd.f32 %v5111, %v5122
      %v5132 = vadd.f32 %v5112, %v5122
      %v5133 = vadd.f32 %v5113, %v5122
      %v5134 = vadd.f32 %v5114, %v5122
      %v5135 = vadd.f32 %v5115, %v5122
      %v5136 = vadd.f32 %v5116, %v5122
      %v5137 = vadd.f32 %v5117, %v5122
      %v5138 = vadd.f32 %v5118, %v5122
      %v5139 = vpack.c.bf16 %v297, %v296
      %v5140 = vpack.c.bf16 %v299, %v298
      %v5141 = vpack.c.bf16 %v301, %v300
      %v5142 = vpack.c.bf16 %v303, %v302
      %v5143 = vpack.c.bf16 %v305, %v304
      %v5144 = vpack.c.bf16 %v307, %v306
      %v5145 = vpack.c.bf16 %v309, %v308
      %v5146 = vpack.c.bf16 %v311, %v310
      %v5147 = vld [vmem:[%s5 + $0x1b0] sm:$0xf]
      %v5148 = vld [vmem:[%s5 + $0x1b4] sm:$0xf]
      %v5149 = vld [vmem:[%s5 + $0x1b8] sm:$0xf]
      %v5150 = vld [vmem:[%s5 + $0x1bc] sm:$0xf]
      %v5151 = vlaneseq
      %v5152 = vshrl.u32 %v5151, 7
      %v5153 = vsub.s32 0, %v5152
      %v5154 = vrot.slane %v318, %v5153
      %v5159 = vunpack.c.l.b16 %v5147
      %v5160 = vunpack.c.l.b16 %v5148
      %v5161 = vunpack.c.l.b16 %v5149
      %v5162 = vunpack.c.l.b16 %v5150
      %v5163 = vpack.c.b16 %v5160, %v5159
      %v5164 = vpack.c.b16 %v5162, %v5161
      %v5168 = vsel %vm325, %v5139, 0
      %v5171 = vsel %vm325, %v5140, 0
      %v5174 = vsel %vm325, %v5141, 0
      %v5177 = vsel %vm325, %v5142, 0
      %v5180 = vsel %vm325, %v5143, 0
      %v5183 = vsel %vm325, %v5144, 0
      %v5186 = vsel %vm325, %v5145, 0
      %v5189 = vsel %vm325, %v5146, 0
      %5191 = vmatprep.subr.bf16.mxu0 0
      %5192 = vmatpush1.bf16.msra.mxu0 0
      %5193 = vmatprep.subr.bf16.mxu0 0
      %5194 = vmatpush1.bf16.msra.mxu0 0
      %5195 = vmatprep.subr.bf16.mxu0 0
      %5196 = vmatpush1.bf16.msra.mxu0 0
      %5197 = vmatprep.subr.bf16.mxu0 0
      %5198 = vmatpush1.bf16.msra.mxu0 0
      %5199 = vmatprep.subr.bf16.mxu0 0
      %5200 = vmatpush1.bf16.msra.mxu0 0
      %5201 = vmatprep.subr.bf16.mxu0 0
      %5202 = vmatpush1.bf16.msra.mxu0 0
      %5203 = vmatprep.subr.bf16.mxu0 0
      %5204 = vmatpush1.bf16.msra.mxu0 %v5164
      %5205 = vmatprep.subr.bf16.mxu0 0
      %5206 = vmatpush1.bf16.msra.mxu0 %v5163
      %5207 = vmatprep.subr.bf16.mxu0 0
      %5208 = vmatpush2.bf16.msra.mxu0 0
      %5209 = vmatprep.subr.bf16.mxu0 0
      %5210 = vmatpush2.bf16.msra.mxu0 0
      %5211 = vmatprep.subr.bf16.mxu0 0
      %5212 = vmatpush2.bf16.msra.mxu0 0
      %5213 = vmatprep.subr.bf16.mxu0 0
      %5214 = vmatpush2.bf16.msra.mxu0 0
      %5215 = vmatprep.subr.bf16.mxu0 0
      %5216 = vmatpush2.bf16.msra.mxu0 0
      %5217 = vmatprep.subr.bf16.mxu0 0
      %5218 = vmatpush2.bf16.msra.mxu0 0
      %5219 = vmatprep.subr.bf16.mxu0 0
      %5220 = vmatpush2.bf16.msra.mxu0 0
      %5221 = vmatprep.subr.bf16.mxu0 0
      %5222 = vmatpush2.bf16.msra.mxu0 0
      %5223 = vmatprep.mubr.bf16.mxu0 0
      %5224 = vmatmul.mubr.bf16.gmra.mxu0 %v5168
      %v5225 = vpop.f32.mrf.mxu0
      %v5226 = vadd.f32 %v5154, %v5225
      %v5227 = vpop.f32.mrf.mxu0
      %v5228 = vpop.f32.mrf.mxu0
      %v5229 = vadd.f32 %v5154, %v5228
      %v5230 = vpop.f32.mrf.mxu0
      %5231 = vmatprep.mubr.bf16.mxu0 0
      %5232 = vmatmul.mubr.bf16.gmra.mxu0 %v5171
      %v5233 = vpop.f32.mrf.mxu0
      %v5234 = vadd.f32 %v5154, %v5233
      %v5235 = vpop.f32.mrf.mxu0
      %v5236 = vpop.f32.mrf.mxu0
      %v5237 = vadd.f32 %v5154, %v5236
      %v5238 = vpop.f32.mrf.mxu0
      %5239 = vmatprep.mubr.bf16.mxu0 0
      %5240 = vmatmul.mubr.bf16.gmra.mxu0 %v5174
      %v5241 = vpop.f32.mrf.mxu0
      %v5242 = vadd.f32 %v5154, %v5241
      %v5243 = vpop.f32.mrf.mxu0
      %v5244 = vpop.f32.mrf.mxu0
      %v5245 = vadd.f32 %v5154, %v5244
      %v5246 = vpop.f32.mrf.mxu0
      %5247 = vmatprep.mubr.bf16.mxu0 0
      %5248 = vmatmul.mubr.bf16.gmra.mxu0 %v5177
      %v5249 = vpop.f32.mrf.mxu0
      %v5250 = vadd.f32 %v5154, %v5249
      %v5251 = vpop.f32.mrf.mxu0
      %v5252 = vpop.f32.mrf.mxu0
      %v5253 = vadd.f32 %v5154, %v5252
      %v5254 = vpop.f32.mrf.mxu0
      %5255 = vmatprep.mubr.bf16.mxu0 0
      %5256 = vmatmul.mubr.bf16.gmra.mxu0 %v5180
      %v5257 = vpop.f32.mrf.mxu0
      %v5258 = vadd.f32 %v5154, %v5257
      %v5259 = vpop.f32.mrf.mxu0
      %v5260 = vpop.f32.mrf.mxu0
      %v5261 = vadd.f32 %v5154, %v5260
      %v5262 = vpop.f32.mrf.mxu0
      %5263 = vmatprep.mubr.bf16.mxu0 0
      %5264 = vmatmul.mubr.bf16.gmra.mxu0 %v5183
      %v5265 = vpop.f32.mrf.mxu0
      %v5266 = vadd.f32 %v5154, %v5265
      %v5267 = vpop.f32.mrf.mxu0
      %v5268 = vpop.f32.mrf.mxu0
      %v5269 = vadd.f32 %v5154, %v5268
      %v5270 = vpop.f32.mrf.mxu0
      %5271 = vmatprep.mubr.bf16.mxu0 0
      %5272 = vmatmul.mubr.bf16.gmra.mxu0 %v5186
      %v5273 = vpop.f32.mrf.mxu0
      %v5274 = vadd.f32 %v5154, %v5273
      %v5275 = vpop.f32.mrf.mxu0
      %v5276 = vpop.f32.mrf.mxu0
      %v5277 = vadd.f32 %v5154, %v5276
      %v5278 = vpop.f32.mrf.mxu0
      %5279 = vmatprep.mubr.bf16.mxu0 0
      %5280 = vmatmul.mubr.bf16.gmra.mxu0 %v5189
      %v5281 = vpop.f32.mrf.mxu0
      %v5282 = vadd.f32 %v5154, %v5281
      %v5283 = vpop.f32.mrf.mxu0
      %v5284 = vpop.f32.mrf.mxu0
      %v5285 = vadd.f32 %v5154, %v5284
      %v5286 = vpop.f32.mrf.mxu0
      %5287 = vdwg.mxu0
      %v5288 = vadd.f32 %v5226, %v5123
      %v5289 = vadd.f32 %v5229, %v5124
      %v5290 = vadd.f32 %v5234, %v5125
      %v5291 = vadd.f32 %v5237, %v5126
      %v5292 = vadd.f32 %v5242, %v5127
      %v5293 = vadd.f32 %v5245, %v5128
      %v5294 = vadd.f32 %v5250, %v5129
      %v5295 = vadd.f32 %v5253, %v5130
      %v5296 = vadd.f32 %v5258, %v5131
      %v5297 = vadd.f32 %v5261, %v5132
      %v5298 = vadd.f32 %v5266, %v5133
      %v5299 = vadd.f32 %v5269, %v5134
      %v5300 = vadd.f32 %v5274, %v5135
      %v5301 = vadd.f32 %v5277, %v5136
      %v5302 = vadd.f32 %v5282, %v5137
      %v5303 = vadd.f32 %v5285, %v5138
      %v5304 = vsel %vm2777, %v5288, 0.0
      %v5305 = vsel %vm2777, %v5289, 0.0
      %v5306 = vadd.f32 %v5304, %v5305
      %v5307 = vsel %vm2777, %v5290, 0.0
      %v5308 = vadd.f32 %v5306, %v5307
      %v5309 = vsel %vm2777, %v5291, 0.0
      %v5310 = vadd.f32 %v5308, %v5309
      %v5311 = vsel %vm2777, %v5292, 0.0
      %v5312 = vadd.f32 %v5310, %v5311
      %v5313 = vsel %vm2777, %v5293, 0.0
      %v5314 = vadd.f32 %v5312, %v5313
      %v5315 = vsel %vm2777, %v5294, 0.0
      %v5316 = vadd.f32 %v5314, %v5315
      %v5317 = vsel %vm2777, %v5295, 0.0
      %v5318 = vadd.f32 %v5316, %v5317
      %v5319 = vrot.slane %v5318, 4
      %v5320 = vadd.f32 %v5318, %v5319
      %v5321 = vrot.slane %v5320, 2
      %v5322 = vadd.f32 %v5320, %v5321
      %v5323 = vrot.slane %v5322, 1
      %v5324 = vadd.f32 %v5322, %v5323
      %v5325 = vmul.f32 %v5288, %v5288
      %v5326 = vmul.f32 %v5289, %v5289
      %v5327 = vmul.f32 %v5290, %v5290
      %v5328 = vmul.f32 %v5291, %v5291
      %v5329 = vmul.f32 %v5292, %v5292
      %v5330 = vmul.f32 %v5293, %v5293
      %v5331 = vmul.f32 %v5294, %v5294
      %v5332 = vmul.f32 %v5295, %v5295
      %v5333 = vsel %vm2777, %v5325, 0.0
      %v5334 = vsel %vm2777, %v5326, 0.0
      %v5335 = vadd.f32 %v5333, %v5334
      %v5336 = vsel %vm2777, %v5327, 0.0
      %v5337 = vadd.f32 %v5335, %v5336
      %v5338 = vsel %vm2777, %v5328, 0.0
      %v5339 = vadd.f32 %v5337, %v5338
      %v5340 = vsel %vm2777, %v5329, 0.0
      %v5341 = vadd.f32 %v5339, %v5340
      %v5342 = vsel %vm2777, %v5330, 0.0
      %v5343 = vadd.f32 %v5341, %v5342
      %v5344 = vsel %vm2777, %v5331, 0.0
      %v5345 = vadd.f32 %v5343, %v5344
      %v5346 = vsel %vm2777, %v5332, 0.0
      %v5347 = vadd.f32 %v5345, %v5346
      %v5348 = vrot.slane %v5347, 4
      %v5349 = vadd.f32 %v5347, %v5348
      %v5350 = vrot.slane %v5349, 2
      %v5351 = vadd.f32 %v5349, %v5350
      %v5352 = vrot.slane %v5351, 1
      %v5353 = vadd.f32 %v5351, %v5352
      %v5354 = vsel %vm2828, %v5324, %v5353
      %v5356 = vsel %vm2777, %v5354, 0
      %5358 = vmatprep.subr.mxu0 0.0
      %5359 = vmatpush1.msra.mxu0 0.0
      %5360 = vmatprep.subr.mxu0 0.0
      %5361 = vmatpush1.msra.mxu0 0.0
      %5362 = vmatprep.subr.mxu0 0.0
      %5363 = vmatpush1.msra.mxu0 0.0
      %5364 = vmatprep.subr.mxu0 0.0
      %5365 = vmatpush1.msra.mxu0 0.0
      %5366 = vmatprep.subr.mxu0 0.0
      %5367 = vmatpush1.msra.mxu0 0.0
      %5368 = vmatprep.subr.mxu0 0.0
      %5369 = vmatpush1.msra.mxu0 0.0
      %5370 = vmatprep.subr.mxu0 0.0
      %5371 = vmatpush1.msra.mxu0 0.0
      %5372 = vmatprep.subr.mxu0 0.0
      %5373 = vmatpush1.msra.mxu0 0.0
      %5374 = vmatprep.subr.mxu0 0.0
      %5375 = vmatpush1.msra.mxu0 %v2772
      %5376 = vmatprep.subr.mxu0 0.0
      %5377 = vmatpush1.msra.mxu0 %v2771
      %5378 = vmatprep.subr.mxu0 0.0
      %5379 = vmatpush1.msra.mxu0 %v2770
      %5380 = vmatprep.subr.mxu0 0.0
      %5381 = vmatpush1.msra.mxu0 %v2769
      %5382 = vmatprep.subr.mxu0 0.0
      %5383 = vmatpush1.msra.mxu0 %v2768
      %5384 = vmatprep.subr.mxu0 0.0
      %5385 = vmatpush1.msra.mxu0 %v2767
      %5386 = vmatprep.subr.mxu0 0.0
      %5387 = vmatpush1.msra.mxu0 %v2766
      %5388 = vmatprep.subr.mxu0 0.0
      %5389 = vmatpush1.msra.mxu0 %v2765
      %5390 = vmatprep.subr.mxu0 0.0
      %5391 = vmatpush2.msra.mxu0 0.0
      %5392 = vmatprep.subr.mxu0 0.0
      %5393 = vmatpush2.msra.mxu0 0.0
      %5394 = vmatprep.subr.mxu0 0.0
      %5395 = vmatpush2.msra.mxu0 0.0
      %5396 = vmatprep.subr.mxu0 0.0
      %5397 = vmatpush2.msra.mxu0 0.0
      %5398 = vmatprep.subr.mxu0 0.0
      %5399 = vmatpush2.msra.mxu0 0.0
      %5400 = vmatprep.subr.mxu0 0.0
      %5401 = vmatpush2.msra.mxu0 0.0
      %5402 = vmatprep.subr.mxu0 0.0
      %5403 = vmatpush2.msra.mxu0 0.0
      %5404 = vmatprep.subr.mxu0 0.0
      %5405 = vmatpush2.msra.mxu0 0.0
      %5406 = vmatprep.subr.mxu0 0.0
      %5407 = vmatpush2.msra.mxu0 0.0
      %5408 = vmatprep.subr.mxu0 0.0
      %5409 = vmatpush2.msra.mxu0 0.0
      %5410 = vmatprep.subr.mxu0 0.0
      %5411 = vmatpush2.msra.mxu0 0.0
      %5412 = vmatprep.subr.mxu0 0.0
      %5413 = vmatpush2.msra.mxu0 0.0
      %5414 = vmatprep.subr.mxu0 0.0
      %5415 = vmatpush2.msra.mxu0 0.0
      %5416 = vmatprep.subr.mxu0 0.0
      %5417 = vmatpush2.msra.mxu0 0.0
      %5418 = vmatprep.subr.mxu0 0.0
      %5419 = vmatpush2.msra.mxu0 0.0
      %5420 = vmatprep.subr.mxu0 0.0
      %5421 = vmatpush2.msra.mxu0 0.0
      %5422 = vmatprep.mubr.f32.mxu0 0.0
      %5423 = vmatmul.mubr.f32.gmra.mxu0 %v5356
      %v5424 = vpop.f32.mrf.mxu0
      %v5425 = vadd.f32 0.0, %v5424
      %v5426 = vpop.f32.mrf.mxu0
      %5427 = vdwg.mxu0
      %v5428 = vmul.f32 %v5425, 0.0078125
      %v5429 = vmul.f32 %v5428, %v5428
      %v5431 = vrot.slane %v5429, 7
      %v5433 = vsub.f32 %v5428, %v5431
      %v5434 = vadd.f32 %v5433, 1e-06
      %v5435 = vrsqrt.pop %v5434
      %v5436 = vsel %vm2828, %v5428, %v5435
      %v5438 = vsel %vm325, %v5436, 0
      %5440 = vmatprep.subr.mxu0 0.0
      %5441 = vmatpush1.msra.mxu0 0.0
      %5442 = vmatprep.subr.mxu0 0.0
      %5443 = vmatpush1.msra.mxu0 0.0
      %5444 = vmatprep.subr.mxu0 0.0
      %5445 = vmatpush1.msra.mxu0 0.0
      %5446 = vmatprep.subr.mxu0 0.0
      %5447 = vmatpush1.msra.mxu0 0.0
      %5448 = vmatprep.subr.mxu0 0.0
      %5449 = vmatpush1.msra.mxu0 0.0
      %5450 = vmatprep.subr.mxu0 0.0
      %5451 = vmatpush1.msra.mxu0 0.0
      %5452 = vmatprep.subr.mxu0 0.0
      %5453 = vmatpush1.msra.mxu0 0.0
      %5454 = vmatprep.subr.mxu0 0.0
      %5455 = vmatpush1.msra.mxu0 0.0
      %5456 = vmatprep.subr.mxu0 0.0
      %5457 = vmatpush1.msra.mxu0 0.0
      %5458 = vmatprep.subr.mxu0 0.0
      %5459 = vmatpush1.msra.mxu0 0.0
      %5460 = vmatprep.subr.mxu0 0.0
      %5461 = vmatpush1.msra.mxu0 0.0
      %5462 = vmatprep.subr.mxu0 0.0
      %5463 = vmatpush1.msra.mxu0 0.0
      %5464 = vmatprep.subr.mxu0 0.0
      %5465 = vmatpush1.msra.mxu0 %v2776
      %5466 = vmatprep.subr.mxu0 0.0
      %5467 = vmatpush1.msra.mxu0 %v2775
      %5468 = vmatprep.subr.mxu0 0.0
      %5469 = vmatpush1.msra.mxu0 %v2774
      %5470 = vmatprep.subr.mxu0 0.0
      %5471 = vmatpush1.msra.mxu0 %v2773
      %5472 = vmatprep.subr.mxu0 0.0
      %5473 = vmatpush2.msra.mxu0 0.0
      %5474 = vmatprep.subr.mxu0 0.0
      %5475 = vmatpush2.msra.mxu0 0.0
      %5476 = vmatprep.subr.mxu0 0.0
      %5477 = vmatpush2.msra.mxu0 0.0
      %5478 = vmatprep.subr.mxu0 0.0
      %5479 = vmatpush2.msra.mxu0 0.0
      %5480 = vmatprep.subr.mxu0 0.0
      %5481 = vmatpush2.msra.mxu0 0.0
      %5482 = vmatprep.subr.mxu0 0.0
      %5483 = vmatpush2.msra.mxu0 0.0
      %5484 = vmatprep.subr.mxu0 0.0
      %5485 = vmatpush2.msra.mxu0 0.0
      %5486 = vmatprep.subr.mxu0 0.0
      %5487 = vmatpush2.msra.mxu0 0.0
      %5488 = vmatprep.subr.mxu0 0.0
      %5489 = vmatpush2.msra.mxu0 0.0
      %5490 = vmatprep.subr.mxu0 0.0
      %5491 = vmatpush2.msra.mxu0 0.0
      %5492 = vmatprep.subr.mxu0 0.0
      %5493 = vmatpush2.msra.mxu0 0.0
      %5494 = vmatprep.subr.mxu0 0.0
      %5495 = vmatpush2.msra.mxu0 0.0
      %5496 = vmatprep.subr.mxu0 0.0
      %5497 = vmatpush2.msra.mxu0 0.0
      %5498 = vmatprep.subr.mxu0 0.0
      %5499 = vmatpush2.msra.mxu0 0.0
      %5500 = vmatprep.subr.mxu0 0.0
      %5501 = vmatpush2.msra.mxu0 0.0
      %5502 = vmatprep.subr.mxu0 0.0
      %5503 = vmatpush2.msra.mxu0 0.0
      %5504 = vmatprep.mubr.f32.mxu0 0.0
      %5505 = vmatmul.mubr.f32.gmra.mxu0 %v5438
      %v5506 = vpop.f32.mrf.mxu0
      %v5507 = vadd.f32 0.0, %v5506
      %v5508 = vpop.f32.mrf.mxu0
      %5509 = vdwg.mxu0
      %v5511 = vrot.slane %v319, 7
      %v5513 = vmul.f32 %v5507, %v5511
      %v5515 = vrot.slane %v5513, 1
      %v5517 = vmul.f32 %v5507, %v5515
      %v5518 = vsub.f32 %v320, %v5517
      %v5519 = vlaneseq
      %v5520 = vshrl.u32 %v5519, 7
      %v5521 = vsub.s32 1, %v5520
      %v5522 = vrot.slane %v5513, %v5521
      %v5523 = vmul.f32 %v5288, %v5522
      %v5524 = vmul.f32 %v5289, %v5522
      %v5525 = vmul.f32 %v5290, %v5522
      %v5526 = vmul.f32 %v5291, %v5522
      %v5527 = vmul.f32 %v5292, %v5522
      %v5528 = vmul.f32 %v5293, %v5522
      %v5529 = vmul.f32 %v5294, %v5522
      %v5530 = vmul.f32 %v5295, %v5522
      %v5531 = vlaneseq
      %v5532 = vshrl.u32 %v5531, 7
      %v5533 = vsub.s32 0, %v5532
      %v5534 = vrot.slane %v5518, %v5533
      %v5535 = vadd.f32 %v5523, %v5534
      %v5536 = vadd.f32 %v5524, %v5534
      %v5537 = vadd.f32 %v5525, %v5534
      %v5538 = vadd.f32 %v5526, %v5534
      %v5539 = vadd.f32 %v5527, %v5534
      %v5540 = vadd.f32 %v5528, %v5534
      %v5541 = vadd.f32 %v5529, %v5534
      %v5542 = vadd.f32 %v5530, %v5534
      %v5543 = vsel %vm2777, %v5296, 0.0
      %v5544 = vsel %vm2777, %v5297, 0.0
      %v5545 = vadd.f32 %v5543, %v5544
      %v5546 = vsel %vm2777, %v5298, 0.0
      %v5547 = vadd.f32 %v5545, %v5546
      %v5548 = vsel %vm2777, %v5299, 0.0
      %v5549 = vadd.f32 %v5547, %v5548
      %v5550 = vsel %vm2777, %v5300, 0.0
      %v5551 = vadd.f32 %v5549, %v5550
      %v5552 = vsel %vm2777, %v5301, 0.0
      %v5553 = vadd.f32 %v5551, %v5552
      %v5554 = vsel %vm2777, %v5302, 0.0
      %v5555 = vadd.f32 %v5553, %v5554
      %v5556 = vsel %vm2777, %v5303, 0.0
      %v5557 = vadd.f32 %v5555, %v5556
      %v5558 = vrot.slane %v5557, 4
      %v5559 = vadd.f32 %v5557, %v5558
      %v5560 = vrot.slane %v5559, 2
      %v5561 = vadd.f32 %v5559, %v5560
      %v5562 = vrot.slane %v5561, 1
      %v5563 = vadd.f32 %v5561, %v5562
      %v5564 = vmul.f32 %v5296, %v5296
      %v5565 = vmul.f32 %v5297, %v5297
      %v5566 = vmul.f32 %v5298, %v5298
      %v5567 = vmul.f32 %v5299, %v5299
      %v5568 = vmul.f32 %v5300, %v5300
      %v5569 = vmul.f32 %v5301, %v5301
      %v5570 = vmul.f32 %v5302, %v5302
      %v5571 = vmul.f32 %v5303, %v5303
      %v5572 = vsel %vm2777, %v5564, 0.0
      %v5573 = vsel %vm2777, %v5565, 0.0
      %v5574 = vadd.f32 %v5572, %v5573
      %v5575 = vsel %vm2777, %v5566, 0.0
      %v5576 = vadd.f32 %v5574, %v5575
      %v5577 = vsel %vm2777, %v5567, 0.0
      %v5578 = vadd.f32 %v5576, %v5577
      %v5579 = vsel %vm2777, %v5568, 0.0
      %v5580 = vadd.f32 %v5578, %v5579
      %v5581 = vsel %vm2777, %v5569, 0.0
      %v5582 = vadd.f32 %v5580, %v5581
      %v5583 = vsel %vm2777, %v5570, 0.0
      %v5584 = vadd.f32 %v5582, %v5583
      %v5585 = vsel %vm2777, %v5571, 0.0
      %v5586 = vadd.f32 %v5584, %v5585
      %v5587 = vrot.slane %v5586, 4
      %v5588 = vadd.f32 %v5586, %v5587
      %v5589 = vrot.slane %v5588, 2
      %v5590 = vadd.f32 %v5588, %v5589
      %v5591 = vrot.slane %v5590, 1
      %v5592 = vadd.f32 %v5590, %v5591
      %v5593 = vsel %vm2828, %v5563, %v5592
      %v5595 = vsel %vm2777, %v5593, 0
      %5597 = vmatprep.subr.mxu0 0.0
      %5598 = vmatpush1.msra.mxu0 0.0
      %5599 = vmatprep.subr.mxu0 0.0
      %5600 = vmatpush1.msra.mxu0 0.0
      %5601 = vmatprep.subr.mxu0 0.0
      %5602 = vmatpush1.msra.mxu0 0.0
      %5603 = vmatprep.subr.mxu0 0.0
      %5604 = vmatpush1.msra.mxu0 0.0
      %5605 = vmatprep.subr.mxu0 0.0
      %5606 = vmatpush1.msra.mxu0 0.0
      %5607 = vmatprep.subr.mxu0 0.0
      %5608 = vmatpush1.msra.mxu0 0.0
      %5609 = vmatprep.subr.mxu0 0.0
      %5610 = vmatpush1.msra.mxu0 0.0
      %5611 = vmatprep.subr.mxu0 0.0
      %5612 = vmatpush1.msra.mxu0 0.0
      %5613 = vmatprep.subr.mxu0 0.0
      %5614 = vmatpush1.msra.mxu0 %v2772
      %5615 = vmatprep.subr.mxu0 0.0
      %5616 = vmatpush1.msra.mxu0 %v2771
      %5617 = vmatprep.subr.mxu0 0.0
      %5618 = vmatpush1.msra.mxu0 %v2770
      %5619 = vmatprep.subr.mxu0 0.0
      %5620 = vmatpush1.msra.mxu0 %v2769
      %5621 = vmatprep.subr.mxu0 0.0
      %5622 = vmatpush1.msra.mxu0 %v2768
      %5623 = vmatprep.subr.mxu0 0.0
      %5624 = vmatpush1.msra.mxu0 %v2767
      %5625 = vmatprep.subr.mxu0 0.0
      %5626 = vmatpush1.msra.mxu0 %v2766
      %5627 = vmatprep.subr.mxu0 0.0
      %5628 = vmatpush1.msra.mxu0 %v2765
      %5629 = vmatprep.subr.mxu0 0.0
      %5630 = vmatpush2.msra.mxu0 0.0
      %5631 = vmatprep.subr.mxu0 0.0
      %5632 = vmatpush2.msra.mxu0 0.0
      %5633 = vmatprep.subr.mxu0 0.0
      %5634 = vmatpush2.msra.mxu0 0.0
      %5635 = vmatprep.subr.mxu0 0.0
      %5636 = vmatpush2.msra.mxu0 0.0
      %5637 = vmatprep.subr.mxu0 0.0
      %5638 = vmatpush2.msra.mxu0 0.0
      %5639 = vmatprep.subr.mxu0 0.0
      %5640 = vmatpush2.msra.mxu0 0.0
      %5641 = vmatprep.subr.mxu0 0.0
      %5642 = vmatpush2.msra.mxu0 0.0
      %5643 = vmatprep.subr.mxu0 0.0
      %5644 = vmatpush2.msra.mxu0 0.0
      %5645 = vmatprep.subr.mxu0 0.0
      %5646 = vmatpush2.msra.mxu0 0.0
      %5647 = vmatprep.subr.mxu0 0.0
      %5648 = vmatpush2.msra.mxu0 0.0
      %5649 = vmatprep.subr.mxu0 0.0
      %5650 = vmatpush2.msra.mxu0 0.0
      %5651 = vmatprep.subr.mxu0 0.0
      %5652 = vmatpush2.msra.mxu0 0.0
      %5653 = vmatprep.subr.mxu0 0.0
      %5654 = vmatpush2.msra.mxu0 0.0
      %5655 = vmatprep.subr.mxu0 0.0
      %5656 = vmatpush2.msra.mxu0 0.0
      %5657 = vmatprep.subr.mxu0 0.0
      %5658 = vmatpush2.msra.mxu0 0.0
      %5659 = vmatprep.subr.mxu0 0.0
      %5660 = vmatpush2.msra.mxu0 0.0
      %5661 = vmatprep.mubr.f32.mxu0 0.0
      %5662 = vmatmul.mubr.f32.gmra.mxu0 %v5595
      %v5663 = vpop.f32.mrf.mxu0
      %v5664 = vadd.f32 0.0, %v5663
      %v5665 = vpop.f32.mrf.mxu0
      %5666 = vdwg.mxu0
      %v5667 = vmul.f32 %v5664, 0.0078125
      %v5668 = vmul.f32 %v5667, %v5667
      %v5670 = vrot.slane %v5668, 7
      %v5672 = vsub.f32 %v5667, %v5670
      %v5673 = vadd.f32 %v5672, 1e-06
      %v5674 = vrsqrt.pop %v5673
      %v5675 = vsel %vm2828, %v5667, %v5674
      %v5677 = vsel %vm325, %v5675, 0
      %5679 = vmatprep.subr.mxu0 0.0
      %5680 = vmatpush1.msra.mxu0 0.0
      %5681 = vmatprep.subr.mxu0 0.0
      %5682 = vmatpush1.msra.mxu0 0.0
      %5683 = vmatprep.subr.mxu0 0.0
      %5684 = vmatpush1.msra.mxu0 0.0
      %5685 = vmatprep.subr.mxu0 0.0
      %5686 = vmatpush1.msra.mxu0 0.0
      %5687 = vmatprep.subr.mxu0 0.0
      %5688 = vmatpush1.msra.mxu0 0.0
      %5689 = vmatprep.subr.mxu0 0.0
      %5690 = vmatpush1.msra.mxu0 0.0
      %5691 = vmatprep.subr.mxu0 0.0
      %5692 = vmatpush1.msra.mxu0 0.0
      %5693 = vmatprep.subr.mxu0 0.0
      %5694 = vmatpush1.msra.mxu0 0.0
      %5695 = vmatprep.subr.mxu0 0.0
      %5696 = vmatpush1.msra.mxu0 0.0
      %5697 = vmatprep.subr.mxu0 0.0
      %5698 = vmatpush1.msra.mxu0 0.0
      %5699 = vmatprep.subr.mxu0 0.0
      %5700 = vmatpush1.msra.mxu0 0.0
      %5701 = vmatprep.subr.mxu0 0.0
      %5702 = vmatpush1.msra.mxu0 0.0
      %5703 = vmatprep.subr.mxu0 0.0
      %5704 = vmatpush1.msra.mxu0 %v2776
      %5705 = vmatprep.subr.mxu0 0.0
      %5706 = vmatpush1.msra.mxu0 %v2775
      %5707 = vmatprep.subr.mxu0 0.0
      %5708 = vmatpush1.msra.mxu0 %v2774
      %5709 = vmatprep.subr.mxu0 0.0
      %5710 = vmatpush1.msra.mxu0 %v2773
      %5711 = vmatprep.subr.mxu0 0.0
      %5712 = vmatpush2.msra.mxu0 0.0
      %5713 = vmatprep.subr.mxu0 0.0
      %5714 = vmatpush2.msra.mxu0 0.0
      %5715 = vmatprep.subr.mxu0 0.0
      %5716 = vmatpush2.msra.mxu0 0.0
      %5717 = vmatprep.subr.mxu0 0.0
      %5718 = vmatpush2.msra.mxu0 0.0
      %5719 = vmatprep.subr.mxu0 0.0
      %5720 = vmatpush2.msra.mxu0 0.0
      %5721 = vmatprep.subr.mxu0 0.0
      %5722 = vmatpush2.msra.mxu0 0.0
      %5723 = vmatprep.subr.mxu0 0.0
      %5724 = vmatpush2.msra.mxu0 0.0
      %5725 = vmatprep.subr.mxu0 0.0
      %5726 = vmatpush2.msra.mxu0 0.0
      %5727 = vmatprep.subr.mxu0 0.0
      %5728 = vmatpush2.msra.mxu0 0.0
      %5729 = vmatprep.subr.mxu0 0.0
      %5730 = vmatpush2.msra.mxu0 0.0
      %5731 = vmatprep.subr.mxu0 0.0
      %5732 = vmatpush2.msra.mxu0 0.0
      %5733 = vmatprep.subr.mxu0 0.0
      %5734 = vmatpush2.msra.mxu0 0.0
      %5735 = vmatprep.subr.mxu0 0.0
      %5736 = vmatpush2.msra.mxu0 0.0
      %5737 = vmatprep.subr.mxu0 0.0
      %5738 = vmatpush2.msra.mxu0 0.0
      %5739 = vmatprep.subr.mxu0 0.0
      %5740 = vmatpush2.msra.mxu0 0.0
      %5741 = vmatprep.subr.mxu0 0.0
      %5742 = vmatpush2.msra.mxu0 0.0
      %5743 = vmatprep.mubr.f32.mxu0 0.0
      %5744 = vmatmul.mubr.f32.gmra.mxu0 %v5677
      %v5745 = vpop.f32.mrf.mxu0
      %v5746 = vadd.f32 0.0, %v5745
      %v5747 = vpop.f32.mrf.mxu0
      %5748 = vdwg.mxu0
      %v5749 = vmul.f32 %v5746, %v5511
      %v5751 = vrot.slane %v5749, 1
      %v5753 = vmul.f32 %v5746, %v5751
      %v5754 = vsub.f32 %v320, %v5753
      %v5755 = vlaneseq
      %v5756 = vshrl.u32 %v5755, 7
      %v5757 = vsub.s32 1, %v5756
      %v5758 = vrot.slane %v5749, %v5757
      %v5759 = vmul.f32 %v5296, %v5758
      %v5760 = vmul.f32 %v5297, %v5758
      %v5761 = vmul.f32 %v5298, %v5758
      %v5762 = vmul.f32 %v5299, %v5758
      %v5763 = vmul.f32 %v5300, %v5758
      %v5764 = vmul.f32 %v5301, %v5758
      %v5765 = vmul.f32 %v5302, %v5758
      %v5766 = vmul.f32 %v5303, %v5758
      %v5767 = vlaneseq
      %v5768 = vshrl.u32 %v5767, 7
      %v5769 = vsub.s32 0, %v5768
      %v5770 = vrot.slane %v5754, %v5769
      %v5771 = vadd.f32 %v5759, %v5770
      %v5772 = vadd.f32 %v5760, %v5770
      %v5773 = vadd.f32 %v5761, %v5770
      %v5774 = vadd.f32 %v5762, %v5770
      %v5775 = vadd.f32 %v5763, %v5770
      %v5776 = vadd.f32 %v5764, %v5770
      %v5777 = vadd.f32 %v5765, %v5770
      %v5778 = vadd.f32 %v5766, %v5770
      %v5779 = vpack.c.bf16 %v5536, %v5535
      %v5780 = vpack.c.bf16 %v5538, %v5537
      %v5781 = vpack.c.bf16 %v5540, %v5539
      %v5782 = vpack.c.bf16 %v5542, %v5541
      %v5783 = vpack.c.bf16 %v5772, %v5771
      %v5784 = vpack.c.bf16 %v5774, %v5773
      %v5785 = vpack.c.bf16 %v5776, %v5775
      %v5786 = vpack.c.bf16 %v5778, %v5777
      %v5787 = vld [vmem:[%s5 + $0x1c0] sm:$0xf]
      %v5788 = vld [vmem:[%s5 + $0x1c4] sm:$0xf]
      %v5789 = vld [vmem:[%s5 + $0x1c8] sm:$0xf]
      %v5790 = vld [vmem:[%s5 + $0x1cc] sm:$0xf]
      %v5791 = vld [vmem:[%s5 + $0x1d0] sm:$0xf]
      %v5792 = vld [vmem:[%s5 + $0x1d4] sm:$0xf]
      %v5793 = vld [vmem:[%s5 + $0x1d8] sm:$0xf]
      %v5794 = vld [vmem:[%s5 + $0x1dc] sm:$0xf]
      %v5795 = vlaneseq
      %v5796 = vshrl.u32 %v5795, 7
      %v5797 = vsub.s32 0, %v5796
      %v5798 = vrot.slane %v321, %v5797
      %v5807 = vunpack.c.l.b16 %v5787
      %v5808 = vunpack.c.l.b16 %v5788
      %v5809 = vunpack.c.l.b16 %v5789
      %v5810 = vunpack.c.l.b16 %v5790
      %v5811 = vunpack.c.l.b16 %v5791
      %v5812 = vunpack.c.l.b16 %v5792
      %v5813 = vunpack.c.l.b16 %v5793
      %v5814 = vunpack.c.l.b16 %v5794
      %v5815 = vpack.c.b16 %v5808, %v5807
      %v5816 = vpack.c.b16 %v5810, %v5809
      %v5817 = vpack.c.b16 %v5812, %v5811
      %v5818 = vpack.c.b16 %v5814, %v5813
      %v5824 = vsel %vm2777, %v5779, 0
      %v5827 = vsel %vm2777, %v5780, 0
      %v5830 = vsel %vm2777, %v5781, 0
      %v5833 = vsel %vm2777, %v5782, 0
      %v5836 = vsel %vm2777, %v5783, 0
      %v5839 = vsel %vm2777, %v5784, 0
      %v5842 = vsel %vm2777, %v5785, 0
      %v5845 = vsel %vm2777, %v5786, 0
      %5847 = vmatprep.subr.bf16.mxu0 0
      %5848 = vmatpush1.bf16.msra.mxu0 0
      %5849 = vmatprep.subr.bf16.mxu0 0
      %5850 = vmatpush1.bf16.msra.mxu0 0
      %5851 = vmatprep.subr.bf16.mxu0 0
      %5852 = vmatpush1.bf16.msra.mxu0 0
      %5853 = vmatprep.subr.bf16.mxu0 0
      %5854 = vmatpush1.bf16.msra.mxu0 0
      %5855 = vmatprep.subr.bf16.mxu0 0
      %5856 = vmatpush1.bf16.msra.mxu0 %v5818
      %5857 = vmatprep.subr.bf16.mxu0 0
      %5858 = vmatpush1.bf16.msra.mxu0 %v5817
      %5859 = vmatprep.subr.bf16.mxu0 0
      %5860 = vmatpush1.bf16.msra.mxu0 %v5816
      %5861 = vmatprep.subr.bf16.mxu0 0
      %5862 = vmatpush1.bf16.msra.mxu0 %v5815
      %5863 = vmatprep.subr.bf16.mxu0 0
      %5864 = vmatpush2.bf16.msra.mxu0 0
      %5865 = vmatprep.subr.bf16.mxu0 0
      %5866 = vmatpush2.bf16.msra.mxu0 0
      %5867 = vmatprep.subr.bf16.mxu0 0
      %5868 = vmatpush2.bf16.msra.mxu0 0
      %5869 = vmatprep.subr.bf16.mxu0 0
      %5870 = vmatpush2.bf16.msra.mxu0 0
      %5871 = vmatprep.subr.bf16.mxu0 0
      %5872 = vmatpush2.bf16.msra.mxu0 0
      %5873 = vmatprep.subr.bf16.mxu0 0
      %5874 = vmatpush2.bf16.msra.mxu0 0
      %5875 = vmatprep.subr.bf16.mxu0 0
      %5876 = vmatpush2.bf16.msra.mxu0 0
      %5877 = vmatprep.subr.bf16.mxu0 0
      %5878 = vmatpush2.bf16.msra.mxu0 0
      %5879 = vmatprep.mubr.bf16.mxu0 0
      %5880 = vmatmul.mubr.bf16.gmra.mxu0 %v5824
      %v5881 = vpop.f32.mrf.mxu0
      %v5882 = vadd.f32 %v5798, %v5881
      %v5883 = vpop.f32.mrf.mxu0
      %v5884 = vpop.f32.mrf.mxu0
      %v5885 = vadd.f32 %v5798, %v5884
      %v5886 = vpop.f32.mrf.mxu0
      %5887 = vmatprep.mubr.bf16.mxu0 0
      %5888 = vmatmul.mubr.bf16.gmra.mxu0 %v5827
      %v5889 = vpop.f32.mrf.mxu0
      %v5890 = vadd.f32 %v5798, %v5889
      %v5891 = vpop.f32.mrf.mxu0
      %v5892 = vpop.f32.mrf.mxu0
      %v5893 = vadd.f32 %v5798, %v5892
      %v5894 = vpop.f32.mrf.mxu0
      %5895 = vmatprep.mubr.bf16.mxu0 0
      %5896 = vmatmul.mubr.bf16.gmra.mxu0 %v5830
      %v5897 = vpop.f32.mrf.mxu0
      %v5898 = vadd.f32 %v5798, %v5897
      %v5899 = vpop.f32.mrf.mxu0
      %v5900 = vpop.f32.mrf.mxu0
      %v5901 = vadd.f32 %v5798, %v5900
      %v5902 = vpop.f32.mrf.mxu0
      %5903 = vmatprep.mubr.bf16.mxu0 0
      %5904 = vmatmul.mubr.bf16.gmra.mxu0 %v5833
      %v5905 = vpop.f32.mrf.mxu0
      %v5906 = vadd.f32 %v5798, %v5905
      %v5907 = vpop.f32.mrf.mxu0
      %v5908 = vpop.f32.mrf.mxu0
      %v5909 = vadd.f32 %v5798, %v5908
      %v5910 = vpop.f32.mrf.mxu0
      %5911 = vmatprep.mubr.bf16.mxu0 0
      %5912 = vmatmul.mubr.bf16.gmra.mxu0 %v5836
      %v5913 = vpop.f32.mrf.mxu0
      %v5914 = vadd.f32 %v5798, %v5913
      %v5915 = vpop.f32.mrf.mxu0
      %v5916 = vpop.f32.mrf.mxu0
      %v5917 = vadd.f32 %v5798, %v5916
      %v5918 = vpop.f32.mrf.mxu0
      %5919 = vmatprep.mubr.bf16.mxu0 0
      %5920 = vmatmul.mubr.bf16.gmra.mxu0 %v5839
      %v5921 = vpop.f32.mrf.mxu0
      %v5922 = vadd.f32 %v5798, %v5921
      %v5923 = vpop.f32.mrf.mxu0
      %v5924 = vpop.f32.mrf.mxu0
      %v5925 = vadd.f32 %v5798, %v5924
      %v5926 = vpop.f32.mrf.mxu0
      %5927 = vmatprep.mubr.bf16.mxu0 0
      %5928 = vmatmul.mubr.bf16.gmra.mxu0 %v5842
      %v5929 = vpop.f32.mrf.mxu0
      %v5930 = vadd.f32 %v5798, %v5929
      %v5931 = vpop.f32.mrf.mxu0
      %v5932 = vpop.f32.mrf.mxu0
      %v5933 = vadd.f32 %v5798, %v5932
      %v5934 = vpop.f32.mrf.mxu0
      %5935 = vmatprep.mubr.bf16.mxu0 0
      %5936 = vmatmul.mubr.bf16.gmra.mxu0 %v5845
      %v5937 = vpop.f32.mrf.mxu0
      %v5938 = vadd.f32 %v5798, %v5937
      %v5939 = vpop.f32.mrf.mxu0
      %v5940 = vpop.f32.mrf.mxu0
      %v5941 = vadd.f32 %v5798, %v5940
      %v5942 = vpop.f32.mrf.mxu0
      %5943 = vdwg.mxu0
      %v5944 = vld [vmem:[%s5 + $0x1e0] sm:$0xf]
      %v5945 = vld [vmem:[%s5 + $0x1e4] sm:$0xf]
      %v5946 = vld [vmem:[%s5 + $0x1e8] sm:$0xf]
      %v5947 = vld [vmem:[%s5 + $0x1ec] sm:$0xf]
      %v5948 = vld [vmem:[%s5 + $0x1f0] sm:$0xf]
      %v5949 = vld [vmem:[%s5 + $0x1f4] sm:$0xf]
      %v5950 = vld [vmem:[%s5 + $0x1f8] sm:$0xf]
      %v5951 = vld [vmem:[%s5 + $0x1fc] sm:$0xf]
      %v5952 = vlaneseq
      %v5953 = vshrl.u32 %v5952, 7
      %v5954 = vsub.s32 0, %v5953
      %v5955 = vrot.slane %v322, %v5954
      %v5964 = vunpack.c.l.b16 %v5944
      %v5965 = vunpack.c.l.b16 %v5945
      %v5966 = vunpack.c.l.b16 %v5946
      %v5967 = vunpack.c.l.b16 %v5947
      %v5968 = vunpack.c.l.b16 %v5948
      %v5969 = vunpack.c.l.b16 %v5949
      %v5970 = vunpack.c.l.b16 %v5950
      %v5971 = vunpack.c.l.b16 %v5951
      %v5972 = vpack.c.b16 %v5965, %v5964
      %v5973 = vpack.c.b16 %v5967, %v5966
      %v5974 = vpack.c.b16 %v5969, %v5968
      %v5975 = vpack.c.b16 %v5971, %v5970
      %5980 = vmatprep.subr.bf16.mxu0 0
      %5981 = vmatpush1.bf16.msra.mxu0 0
      %5982 = vmatprep.subr.bf16.mxu0 0
      %5983 = vmatpush1.bf16.msra.mxu0 0
      %5984 = vmatprep.subr.bf16.mxu0 0
      %5985 = vmatpush1.bf16.msra.mxu0 0
      %5986 = vmatprep.subr.bf16.mxu0 0
      %5987 = vmatpush1.bf16.msra.mxu0 0
      %5988 = vmatprep.subr.bf16.mxu0 0
      %5989 = vmatpush1.bf16.msra.mxu0 %v5975
      %5990 = vmatprep.subr.bf16.mxu0 0
      %5991 = vmatpush1.bf16.msra.mxu0 %v5974
      %5992 = vmatprep.subr.bf16.mxu0 0
      %5993 = vmatpush1.bf16.msra.mxu0 %v5973
      %5994 = vmatprep.subr.bf16.mxu0 0
      %5995 = vmatpush1.bf16.msra.mxu0 %v5972
      %5996 = vmatprep.subr.bf16.mxu0 0
      %5997 = vmatpush2.bf16.msra.mxu0 0
      %5998 = vmatprep.subr.bf16.mxu0 0
      %5999 = vmatpush2.bf16.msra.mxu0 0
      %6000 = vmatprep.subr.bf16.mxu0 0
      %6001 = vmatpush2.bf16.msra.mxu0 0
      %6002 = vmatprep.subr.bf16.mxu0 0
      %6003 = vmatpush2.bf16.msra.mxu0 0
      %6004 = vmatprep.subr.bf16.mxu0 0
      %6005 = vmatpush2.bf16.msra.mxu0 0
      %6006 = vmatprep.subr.bf16.mxu0 0
      %6007 = vmatpush2.bf16.msra.mxu0 0
      %6008 = vmatprep.subr.bf16.mxu0 0
      %6009 = vmatpush2.bf16.msra.mxu0 0
      %6010 = vmatprep.subr.bf16.mxu0 0
      %6011 = vmatpush2.bf16.msra.mxu0 0
      %6012 = vmatprep.mubr.bf16.mxu0 0
      %6013 = vmatmul.mubr.bf16.gmra.mxu0 %v5824
      %v6014 = vpop.f32.mrf.mxu0
      %v6015 = vadd.f32 %v5955, %v6014
      %v6016 = vpop.f32.mrf.mxu0
      %v6017 = vpop.f32.mrf.mxu0
      %v6018 = vadd.f32 %v5955, %v6017
      %v6019 = vpop.f32.mrf.mxu0
      %6020 = vmatprep.mubr.bf16.mxu0 0
      %6021 = vmatmul.mubr.bf16.gmra.mxu0 %v5827
      %v6022 = vpop.f32.mrf.mxu0
      %v6023 = vadd.f32 %v5955, %v6022
      %v6024 = vpop.f32.mrf.mxu0
      %v6025 = vpop.f32.mrf.mxu0
      %v6026 = vadd.f32 %v5955, %v6025
      %v6027 = vpop.f32.mrf.mxu0
      %6028 = vmatprep.mubr.bf16.mxu0 0
      %6029 = vmatmul.mubr.bf16.gmra.mxu0 %v5830
      %v6030 = vpop.f32.mrf.mxu0
      %v6031 = vadd.f32 %v5955, %v6030
      %v6032 = vpop.f32.mrf.mxu0
      %v6033 = vpop.f32.mrf.mxu0
      %v6034 = vadd.f32 %v5955, %v6033
      %v6035 = vpop.f32.mrf.mxu0
      %6036 = vmatprep.mubr.bf16.mxu0 0
      %6037 = vmatmul.mubr.bf16.gmra.mxu0 %v5833
      %v6038 = vpop.f32.mrf.mxu0
      %v6039 = vadd.f32 %v5955, %v6038
      %v6040 = vpop.f32.mrf.mxu0
      %v6041 = vpop.f32.mrf.mxu0
      %v6042 = vadd.f32 %v5955, %v6041
      %v6043 = vpop.f32.mrf.mxu0
      %6044 = vmatprep.mubr.bf16.mxu0 0
      %6045 = vmatmul.mubr.bf16.gmra.mxu0 %v5836
      %v6046 = vpop.f32.mrf.mxu0
      %v6047 = vadd.f32 %v5955, %v6046
      %v6048 = vpop.f32.mrf.mxu0
      %v6049 = vpop.f32.mrf.mxu0
      %v6050 = vadd.f32 %v5955, %v6049
      %v6051 = vpop.f32.mrf.mxu0
      %6052 = vmatprep.mubr.bf16.mxu0 0
      %6053 = vmatmul.mubr.bf16.gmra.mxu0 %v5839
      %v6054 = vpop.f32.mrf.mxu0
      %v6055 = vadd.f32 %v5955, %v6054
      %v6056 = vpop.f32.mrf.mxu0
      %v6057 = vpop.f32.mrf.mxu0
      %v6058 = vadd.f32 %v5955, %v6057
      %v6059 = vpop.f32.mrf.mxu0
      %6060 = vmatprep.mubr.bf16.mxu0 0
      %6061 = vmatmul.mubr.bf16.gmra.mxu0 %v5842
      %v6062 = vpop.f32.mrf.mxu0
      %v6063 = vadd.f32 %v5955, %v6062
      %v6064 = vpop.f32.mrf.mxu0
      %v6065 = vpop.f32.mrf.mxu0
      %v6066 = vadd.f32 %v5955, %v6065
      %v6067 = vpop.f32.mrf.mxu0
      %6068 = vmatprep.mubr.bf16.mxu0 0
      %6069 = vmatmul.mubr.bf16.gmra.mxu0 %v5845
      %v6070 = vpop.f32.mrf.mxu0
      %v6071 = vadd.f32 %v5955, %v6070
      %v6072 = vpop.f32.mrf.mxu0
      %v6073 = vpop.f32.mrf.mxu0
      %v6074 = vadd.f32 %v5955, %v6073
      %v6075 = vpop.f32.mrf.mxu0
      %6076 = vdwg.mxu0
      %v6077 = vld [vmem:[%s5 + $0x200] sm:$0xf]
      %v6078 = vld [vmem:[%s5 + $0x204] sm:$0xf]
      %v6079 = vld [vmem:[%s5 + $0x208] sm:$0xf]
      %v6080 = vld [vmem:[%s5 + $0x20c] sm:$0xf]
      %v6081 = vld [vmem:[%s5 + $0x210] sm:$0xf]
      %v6082 = vld [vmem:[%s5 + $0x214] sm:$0xf]
      %v6083 = vld [vmem:[%s5 + $0x218] sm:$0xf]
      %v6084 = vld [vmem:[%s5 + $0x21c] sm:$0xf]
      %v6085 = vlaneseq
      %v6086 = vshrl.u32 %v6085, 7
      %v6087 = vsub.s32 0, %v6086
      %v6088 = vrot.slane %v323, %v6087
      %v6097 = vunpack.c.l.b16 %v6077
      %v6098 = vunpack.c.l.b16 %v6078
      %v6099 = vunpack.c.l.b16 %v6079
      %v6100 = vunpack.c.l.b16 %v6080
      %v6101 = vunpack.c.l.b16 %v6081
      %v6102 = vunpack.c.l.b16 %v6082
      %v6103 = vunpack.c.l.b16 %v6083
      %v6104 = vunpack.c.l.b16 %v6084
      %v6105 = vpack.c.b16 %v6098, %v6097
      %v6106 = vpack.c.b16 %v6100, %v6099
      %v6107 = vpack.c.b16 %v6102, %v6101
      %v6108 = vpack.c.b16 %v6104, %v6103
      %6113 = vmatprep.subr.bf16.mxu0 0
      %6114 = vmatpush1.bf16.msra.mxu0 0
      %6115 = vmatprep.subr.bf16.mxu0 0
      %6116 = vmatpush1.bf16.msra.mxu0 0
      %6117 = vmatprep.subr.bf16.mxu0 0
      %6118 = vmatpush1.bf16.msra.mxu0 0
      %6119 = vmatprep.subr.bf16.mxu0 0
      %6120 = vmatpush1.bf16.msra.mxu0 0
      %6121 = vmatprep.subr.bf16.mxu0 0
      %6122 = vmatpush1.bf16.msra.mxu0 %v6108
      %6123 = vmatprep.subr.bf16.mxu0 0
      %6124 = vmatpush1.bf16.msra.mxu0 %v6107
      %6125 = vmatprep.subr.bf16.mxu0 0
      %6126 = vmatpush1.bf16.msra.mxu0 %v6106
      %6127 = vmatprep.subr.bf16.mxu0 0
      %6128 = vmatpush1.bf16.msra.mxu0 %v6105
      %6129 = vmatprep.subr.bf16.mxu0 0
      %6130 = vmatpush2.bf16.msra.mxu0 0
      %6131 = vmatprep.subr.bf16.mxu0 0
      %6132 = vmatpush2.bf16.msra.mxu0 0
      %6133 = vmatprep.subr.bf16.mxu0 0
      %6134 = vmatpush2.bf16.msra.mxu0 0
      %6135 = vmatprep.subr.bf16.mxu0 0
      %6136 = vmatpush2.bf16.msra.mxu0 0
      %6137 = vmatprep.subr.bf16.mxu0 0
      %6138 = vmatpush2.bf16.msra.mxu0 0
      %6139 = vmatprep.subr.bf16.mxu0 0
      %6140 = vmatpush2.bf16.msra.mxu0 0
      %6141 = vmatprep.subr.bf16.mxu0 0
      %6142 = vmatpush2.bf16.msra.mxu0 0
      %6143 = vmatprep.subr.bf16.mxu0 0
      %6144 = vmatpush2.bf16.msra.mxu0 0
      %6145 = vmatprep.mubr.bf16.mxu0 0
      %6146 = vmatmul.mubr.bf16.gmra.mxu0 %v5824
      %v6147 = vpop.f32.mrf.mxu0
      %v6148 = vadd.f32 %v6088, %v6147
      %v6149 = vpop.f32.mrf.mxu0
      %v6150 = vpop.f32.mrf.mxu0
      %v6151 = vadd.f32 %v6088, %v6150
      %v6152 = vpop.f32.mrf.mxu0
      %6153 = vmatprep.mubr.bf16.mxu0 0
      %6154 = vmatmul.mubr.bf16.gmra.mxu0 %v5827
      %v6155 = vpop.f32.mrf.mxu0
      %v6156 = vadd.f32 %v6088, %v6155
      %v6157 = vpop.f32.mrf.mxu0
      %v6158 = vpop.f32.mrf.mxu0
      %v6159 = vadd.f32 %v6088, %v6158
      %v6160 = vpop.f32.mrf.mxu0
      %6161 = vmatprep.mubr.bf16.mxu0 0
      %6162 = vmatmul.mubr.bf16.gmra.mxu0 %v5830
      %v6163 = vpop.f32.mrf.mxu0
      %v6164 = vadd.f32 %v6088, %v6163
      %v6165 = vpop.f32.mrf.mxu0
      %v6166 = vpop.f32.mrf.mxu0
      %v6167 = vadd.f32 %v6088, %v6166
      %v6168 = vpop.f32.mrf.mxu0
      %6169 = vmatprep.mubr.bf16.mxu0 0
      %6170 = vmatmul.mubr.bf16.gmra.mxu0 %v5833
      %v6171 = vpop.f32.mrf.mxu0
      %v6172 = vadd.f32 %v6088, %v6171
      %v6173 = vpop.f32.mrf.mxu0
      %v6174 = vpop.f32.mrf.mxu0
      %v6175 = vadd.f32 %v6088, %v6174
      %v6176 = vpop.f32.mrf.mxu0
      %6177 = vmatprep.mubr.bf16.mxu0 0
      %6178 = vmatmul.mubr.bf16.gmra.mxu0 %v5836
      %v6179 = vpop.f32.mrf.mxu0
      %v6180 = vadd.f32 %v6088, %v6179
      %v6181 = vpop.f32.mrf.mxu0
      %v6182 = vpop.f32.mrf.mxu0
      %v6183 = vadd.f32 %v6088, %v6182
      %v6184 = vpop.f32.mrf.mxu0
      %6185 = vmatprep.mubr.bf16.mxu0 0
      %6186 = vmatmul.mubr.bf16.gmra.mxu0 %v5839
      %v6187 = vpop.f32.mrf.mxu0
      %v6188 = vadd.f32 %v6088, %v6187
      %v6189 = vpop.f32.mrf.mxu0
      %v6190 = vpop.f32.mrf.mxu0
      %v6191 = vadd.f32 %v6088, %v6190
      %v6192 = vpop.f32.mrf.mxu0
      %6193 = vmatprep.mubr.bf16.mxu0 0
      %6194 = vmatmul.mubr.bf16.gmra.mxu0 %v5842
      %v6195 = vpop.f32.mrf.mxu0
      %v6196 = vadd.f32 %v6088, %v6195
      %v6197 = vpop.f32.mrf.mxu0
      %v6198 = vpop.f32.mrf.mxu0
      %v6199 = vadd.f32 %v6088, %v6198
      %v6200 = vpop.f32.mrf.mxu0
      %6201 = vmatprep.mubr.bf16.mxu0 0
      %6202 = vmatmul.mubr.bf16.gmra.mxu0 %v5845
      %v6203 = vpop.f32.mrf.mxu0
      %v6204 = vadd.f32 %v6088, %v6203
      %v6205 = vpop.f32.mrf.mxu0
      %v6206 = vpop.f32.mrf.mxu0
      %v6207 = vadd.f32 %v6088, %v6206
      %v6208 = vpop.f32.mrf.mxu0
      %6209 = vdwg.mxu0
      %v6210 = vpack.c.bf16 %v5885, %v5882
      %v6211 = vpack.c.bf16 %v5893, %v5890
      %v6212 = vpack.c.bf16 %v5901, %v5898
      %v6213 = vpack.c.bf16 %v5909, %v5906
      %v6214 = vpack.c.bf16 %v5917, %v5914
      %v6215 = vpack.c.bf16 %v5925, %v5922
      %v6216 = vpack.c.bf16 %v5933, %v5930
      %v6217 = vpack.c.bf16 %v5941, %v5938
      %v6218 = vpack.c.bf16 %v6018, %v6015
      %v6219 = vpack.c.bf16 %v6026, %v6023
      %v6220 = vpack.c.bf16 %v6034, %v6031
      %v6221 = vpack.c.bf16 %v6042, %v6039
      %v6222 = vpack.c.bf16 %v6050, %v6047
      %v6223 = vpack.c.bf16 %v6058, %v6055
      %v6224 = vpack.c.bf16 %v6066, %v6063
      %v6225 = vpack.c.bf16 %v6074, %v6071
      %v6226 = vpack.c.bf16 %v6151, %v6148
      %v6227 = vpack.c.bf16 %v6159, %v6156
      %v6228 = vpack.c.bf16 %v6167, %v6164
      %v6229 = vpack.c.bf16 %v6175, %v6172
      %v6230 = vpack.c.bf16 %v6183, %v6180
      %v6231 = vpack.c.bf16 %v6191, %v6188
      %v6232 = vpack.c.bf16 %v6199, %v6196
      %v6233 = vpack.c.bf16 %v6207, %v6204
      %v6235 = vsel %vm2777, %v6210, 0
      %v6238 = vsel %vm2777, %v6211, 0
      %v6241 = vsel %vm2777, %v6212, 0
      %v6244 = vsel %vm2777, %v6213, 0
      %v6247 = vsel %vm2777, %v6218, 0
      %v6250 = vsel %vm2777, %v6219, 0
      %v6253 = vsel %vm2777, %v6220, 0
      %v6256 = vsel %vm2777, %v6221, 0
      %6258 = vmatprep.subr.bf16.mxu0 0
      %6259 = vmatpush1.bf16.xpose.msra.mxu0 0
      %6260 = vmatprep.subr.bf16.mxu0 0
      %6261 = vmatpush1.bf16.xpose.msra.mxu0 0
      %6262 = vmatprep.subr.bf16.mxu0 0
      %6263 = vmatpush1.bf16.xpose.msra.mxu0 0
      %6264 = vmatprep.subr.bf16.mxu0 0
      %6265 = vmatpush1.bf16.xpose.msra.mxu0 0
      %6266 = vmatprep.subr.bf16.mxu0 0
      %6267 = vmatpush1.bf16.xpose.msra.mxu0 %v6256
      %6268 = vmatprep.subr.bf16.mxu0 0
      %6269 = vmatpush1.bf16.xpose.msra.mxu0 %v6253
      %6270 = vmatprep.subr.bf16.mxu0 0
      %6271 = vmatpush1.bf16.xpose.msra.mxu0 %v6250
      %6272 = vmatprep.subr.bf16.mxu0 0
      %6273 = vmatpush1.bf16.xpose.msra.mxu0 %v6247
      %6274 = vmatprep.subr.bf16.mxu0 0
      %6275 = vmatpush2.bf16.xpose.msra.mxu0 0
      %6276 = vmatprep.subr.bf16.mxu0 0
      %6277 = vmatpush2.bf16.xpose.msra.mxu0 0
      %6278 = vmatprep.subr.bf16.mxu0 0
      %6279 = vmatpush2.bf16.xpose.msra.mxu0 0
      %6280 = vmatprep.subr.bf16.mxu0 0
      %6281 = vmatpush2.bf16.xpose.msra.mxu0 0
      %6282 = vmatprep.subr.bf16.mxu0 0
      %6283 = vmatpush2.bf16.xpose.msra.mxu0 0
      %6284 = vmatprep.subr.bf16.mxu0 0
      %6285 = vmatpush2.bf16.xpose.msra.mxu0 0
      %6286 = vmatprep.subr.bf16.mxu0 0
      %6287 = vmatpush2.bf16.xpose.msra.mxu0 0
      %6288 = vmatprep.subr.bf16.mxu0 0
      %6289 = vmatpush2.bf16.xpose.msra.mxu0 0
      %6290 = vmatprep.mubr.bf16.mxu0 0
      %6291 = vmatmul.mubr.bf16.gmra.mxu0 %v6235
      %v6292 = vpop.f32.mrf.mxu0
      %v6293 = vadd.f32 0.0, %v6292
      %v6294 = vpop.f32.mrf.mxu0
      %v6295 = vpop.f32.mrf.mxu0
      %v6296 = vadd.f32 0.0, %v6295
      %v6297 = vpop.f32.mrf.mxu0
      %6298 = vmatprep.mubr.bf16.mxu0 0
      %6299 = vmatmul.mubr.bf16.gmra.mxu0 %v6238
      %v6300 = vpop.f32.mrf.mxu0
      %v6301 = vadd.f32 0.0, %v6300
      %v6302 = vpop.f32.mrf.mxu0
      %v6303 = vpop.f32.mrf.mxu0
      %v6304 = vadd.f32 0.0, %v6303
      %v6305 = vpop.f32.mrf.mxu0
      %6306 = vmatprep.mubr.bf16.mxu0 0
      %6307 = vmatmul.mubr.bf16.gmra.mxu0 %v6241
      %v6308 = vpop.f32.mrf.mxu0
      %v6309 = vadd.f32 0.0, %v6308
      %v6310 = vpop.f32.mrf.mxu0
      %v6311 = vpop.f32.mrf.mxu0
      %v6312 = vadd.f32 0.0, %v6311
      %v6313 = vpop.f32.mrf.mxu0
      %6314 = vmatprep.mubr.bf16.mxu0 0
      %6315 = vmatmul.mubr.bf16.gmra.mxu0 %v6244
      %v6316 = vpop.f32.mrf.mxu0
      %v6317 = vadd.f32 0.0, %v6316
      %v6318 = vpop.f32.mrf.mxu0
      %v6319 = vpop.f32.mrf.mxu0
      %v6320 = vadd.f32 0.0, %v6319
      %v6321 = vpop.f32.mrf.mxu0
      %6322 = vdwg.mxu0
      %v6323 = vmul.f32 %v6293, 0.125
      %v6324 = vmul.f32 %v6296, 0.125
      %v6325 = vmul.f32 %v6301, 0.125
      %v6326 = vmul.f32 %v6304, 0.125
      %v6327 = vmul.f32 %v6309, 0.125
      %v6328 = vmul.f32 %v6312, 0.125
      %v6329 = vmul.f32 %v6317, 0.125
      %v6330 = vmul.f32 %v6320, 0.125
      %v6331 = vsel %vm2777, %v6323, -inf
      %6332 = vmax.xlane.f32.xlu0 %v6331
      %v6333 = vpop.xlane.xlu0 %6332
      %v6334 = vsel %vm2777, %v6324, -inf
      %6335 = vmax.xlane.f32.xlu0 %v6334
      %v6336 = vpop.xlane.xlu0 %6335
      %v6337 = vsel %vm2777, %v6325, -inf
      %6338 = vmax.xlane.f32.xlu0 %v6337
      %v6339 = vpop.xlane.xlu0 %6338
      %v6340 = vsel %vm2777, %v6326, -inf
      %6341 = vmax.xlane.f32.xlu0 %v6340
      %v6342 = vpop.xlane.xlu0 %6341
      %v6343 = vsel %vm2777, %v6327, -inf
      %6344 = vmax.xlane.f32.xlu0 %v6343
      %v6345 = vpop.xlane.xlu0 %6344
      %v6346 = vsel %vm2777, %v6328, -inf
      %6347 = vmax.xlane.f32.xlu0 %v6346
      %v6348 = vpop.xlane.xlu0 %6347
      %v6349 = vsel %vm2777, %v6329, -inf
      %6350 = vmax.xlane.f32.xlu0 %v6349
      %v6351 = vpop.xlane.xlu0 %6350
      %v6352 = vsel %vm2777, %v6330, -inf
      %6353 = vmax.xlane.f32.xlu0 %v6352
      %v6354 = vpop.xlane.xlu0 %6353
      %v6355 = vsub.f32 %v6323, %v6333
      %v6356 = vsub.f32 %v6324, %v6336
      %v6357 = vsub.f32 %v6325, %v6339
      %v6358 = vsub.f32 %v6326, %v6342
      %v6359 = vsub.f32 %v6327, %v6345
      %v6360 = vsub.f32 %v6328, %v6348
      %v6361 = vsub.f32 %v6329, %v6351
      %v6362 = vsub.f32 %v6330, %v6354
      %v6363 = vmul.f32 %v6355, 1.442695
      %v6364 = vpow.pop %v6363
      %v6365 = vmul.f32 %v6356, 1.442695
      %v6366 = vpow.pop %v6365
      %v6367 = vmul.f32 %v6357, 1.442695
      %v6368 = vpow.pop %v6367
      %v6369 = vmul.f32 %v6358, 1.442695
      %v6370 = vpow.pop %v6369
      %v6371 = vmul.f32 %v6359, 1.442695
      %v6372 = vpow.pop %v6371
      %v6373 = vmul.f32 %v6360, 1.442695
      %v6374 = vpow.pop %v6373
      %v6375 = vmul.f32 %v6361, 1.442695
      %v6376 = vpow.pop %v6375
      %v6377 = vmul.f32 %v6362, 1.442695
      %v6378 = vpow.pop %v6377
      %v6379 = vsel %vm2777, %v6364, 0.0
      %6380 = vadd.xlane.f32.xlu0 %v6379
      %v6381 = vpop.xlane.xlu0 %6380
      %v6382 = vsel %vm2777, %v6366, 0.0
      %6383 = vadd.xlane.f32.xlu0 %v6382
      %v6384 = vpop.xlane.xlu0 %6383
      %v6385 = vsel %vm2777, %v6368, 0.0
      %6386 = vadd.xlane.f32.xlu0 %v6385
      %v6387 = vpop.xlane.xlu0 %6386
      %v6388 = vsel %vm2777, %v6370, 0.0
      %6389 = vadd.xlane.f32.xlu0 %v6388
      %v6390 = vpop.xlane.xlu0 %6389
      %v6391 = vsel %vm2777, %v6372, 0.0
      %6392 = vadd.xlane.f32.xlu0 %v6391
      %v6393 = vpop.xlane.xlu0 %6392
      %v6394 = vsel %vm2777, %v6374, 0.0
      %6395 = vadd.xlane.f32.xlu0 %v6394
      %v6396 = vpop.xlane.xlu0 %6395
      %v6397 = vsel %vm2777, %v6376, 0.0
      %6398 = vadd.xlane.f32.xlu0 %v6397
      %v6399 = vpop.xlane.xlu0 %6398
      %v6400 = vsel %vm2777, %v6378, 0.0
      %6401 = vadd.xlane.f32.xlu0 %v6400
      %v6402 = vpop.xlane.xlu0 %6401
      %v6403 = vrcp.pop %v6381
      %v6404 = vrcp.pop %v6384
      %v6405 = vrcp.pop %v6387
      %v6406 = vrcp.pop %v6390
      %v6407 = vrcp.pop %v6393
      %v6408 = vrcp.pop %v6396
      %v6409 = vrcp.pop %v6399
      %v6410 = vrcp.pop %v6402
      %v6411 = vmul.f32 %v6364, %v6403
      %v6412 = vmul.f32 %v6366, %v6404
      %v6413 = vmul.f32 %v6368, %v6405
      %v6414 = vmul.f32 %v6370, %v6406
      %v6415 = vmul.f32 %v6372, %v6407
      %v6416 = vmul.f32 %v6374, %v6408
      %v6417 = vmul.f32 %v6376, %v6409
      %v6418 = vmul.f32 %v6378, %v6410
      %v6419 = vpack.c.bf16 %v6412, %v6411
      %v6420 = vpack.c.bf16 %v6414, %v6413
      %v6421 = vpack.c.bf16 %v6416, %v6415
      %v6422 = vpack.c.bf16 %v6418, %v6417
      %v6424 = vsel %vm2777, %v6419, 0
      %v6427 = vsel %vm2777, %v6420, 0
      %v6430 = vsel %vm2777, %v6421, 0
      %v6433 = vsel %vm2777, %v6422, 0
      %6435 = vmatprep.subr.bf16.mxu0 0
      %6436 = vmatpush1.bf16.msra.mxu0 0
      %6437 = vmatprep.subr.bf16.mxu0 0
      %6438 = vmatpush1.bf16.msra.mxu0 0
      %6439 = vmatprep.subr.bf16.mxu0 0
      %6440 = vmatpush1.bf16.msra.mxu0 0
      %6441 = vmatprep.subr.bf16.mxu0 0
      %6442 = vmatpush1.bf16.msra.mxu0 0
      %6443 = vmatprep.subr.bf16.mxu0 0
      %6444 = vmatpush1.bf16.msra.mxu0 %v6229
      %6445 = vmatprep.subr.bf16.mxu0 0
      %6446 = vmatpush1.bf16.msra.mxu0 %v6228
      %6447 = vmatprep.subr.bf16.mxu0 0
      %6448 = vmatpush1.bf16.msra.mxu0 %v6227
      %6449 = vmatprep.subr.bf16.mxu0 0
      %6450 = vmatpush1.bf16.msra.mxu0 %v6226
      %6451 = vmatprep.subr.bf16.mxu0 0
      %6452 = vmatpush2.bf16.msra.mxu0 0
      %6453 = vmatprep.subr.bf16.mxu0 0
      %6454 = vmatpush2.bf16.msra.mxu0 0
      %6455 = vmatprep.subr.bf16.mxu0 0
      %6456 = vmatpush2.bf16.msra.mxu0 0
      %6457 = vmatprep.subr.bf16.mxu0 0
      %6458 = vmatpush2.bf16.msra.mxu0 0
      %6459 = vmatprep.subr.bf16.mxu0 0
      %6460 = vmatpush2.bf16.msra.mxu0 0
      %6461 = vmatprep.subr.bf16.mxu0 0
      %6462 = vmatpush2.bf16.msra.mxu0 0
      %6463 = vmatprep.subr.bf16.mxu0 0
      %6464 = vmatpush2.bf16.msra.mxu0 0
      %6465 = vmatprep.subr.bf16.mxu0 0
      %6466 = vmatpush2.bf16.msra.mxu0 0
      %6467 = vmatprep.mubr.bf16.mxu0 0
      %6468 = vmatmul.mubr.bf16.gmra.mxu0 %v6424
      %v6469 = vpop.f32.mrf.mxu0
      %v6470 = vadd.f32 0.0, %v6469
      %v6471 = vpop.f32.mrf.mxu0
      %v6472 = vpop.f32.mrf.mxu0
      %v6473 = vadd.f32 0.0, %v6472
      %v6474 = vpop.f32.mrf.mxu0
      %6475 = vmatprep.mubr.bf16.mxu0 0
      %6476 = vmatmul.mubr.bf16.gmra.mxu0 %v6427
      %v6477 = vpop.f32.mrf.mxu0
      %v6478 = vadd.f32 0.0, %v6477
      %v6479 = vpop.f32.mrf.mxu0
      %v6480 = vpop.f32.mrf.mxu0
      %v6481 = vadd.f32 0.0, %v6480
      %v6482 = vpop.f32.mrf.mxu0
      %6483 = vmatprep.mubr.bf16.mxu0 0
      %6484 = vmatmul.mubr.bf16.gmra.mxu0 %v6430
      %v6485 = vpop.f32.mrf.mxu0
      %v6486 = vadd.f32 0.0, %v6485
      %v6487 = vpop.f32.mrf.mxu0
      %v6488 = vpop.f32.mrf.mxu0
      %v6489 = vadd.f32 0.0, %v6488
      %v6490 = vpop.f32.mrf.mxu0
      %6491 = vmatprep.mubr.bf16.mxu0 0
      %6492 = vmatmul.mubr.bf16.gmra.mxu0 %v6433
      %v6493 = vpop.f32.mrf.mxu0
      %v6494 = vadd.f32 0.0, %v6493
      %v6495 = vpop.f32.mrf.mxu0
      %v6496 = vpop.f32.mrf.mxu0
      %v6497 = vadd.f32 0.0, %v6496
      %v6498 = vpop.f32.mrf.mxu0
      %6499 = vdwg.mxu0
      %v6501 = vsel %vm2777, %v6214, 0
      %v6504 = vsel %vm2777, %v6215, 0
      %v6507 = vsel %vm2777, %v6216, 0
      %v6510 = vsel %vm2777, %v6217, 0
      %v6513 = vsel %vm2777, %v6222, 0
      %v6516 = vsel %vm2777, %v6223, 0
      %v6519 = vsel %vm2777, %v6224, 0
      %v6522 = vsel %vm2777, %v6225, 0
      %6524 = vmatprep.subr.bf16.mxu0 0
      %6525 = vmatpush1.bf16.xpose.msra.mxu0 0
      %6526 = vmatprep.subr.bf16.mxu0 0
      %6527 = vmatpush1.bf16.xpose.msra.mxu0 0
      %6528 = vmatprep.subr.bf16.mxu0 0
      %6529 = vmatpush1.bf16.xpose.msra.mxu0 0
      %6530 = vmatprep.subr.bf16.mxu0 0
      %6531 = vmatpush1.bf16.xpose.msra.mxu0 0
      %6532 = vmatprep.subr.bf16.mxu0 0
      %6533 = vmatpush1.bf16.xpose.msra.mxu0 %v6522
      %6534 = vmatprep.subr.bf16.mxu0 0
      %6535 = vmatpush1.bf16.xpose.msra.mxu0 %v6519
      %6536 = vmatprep.subr.bf16.mxu0 0
      %6537 = vmatpush1.bf16.xpose.msra.mxu0 %v6516
      %6538 = vmatprep.subr.bf16.mxu0 0
      %6539 = vmatpush1.bf16.xpose.msra.mxu0 %v6513
      %6540 = vmatprep.subr.bf16.mxu0 0
      %6541 = vmatpush2.bf16.xpose.msra.mxu0 0
      %6542 = vmatprep.subr.bf16.mxu0 0
      %6543 = vmatpush2.bf16.xpose.msra.mxu0 0
      %6544 = vmatprep.subr.bf16.mxu0 0
      %6545 = vmatpush2.bf16.xpose.msra.mxu0 0
      %6546 = vmatprep.subr.bf16.mxu0 0
      %6547 = vmatpush2.bf16.xpose.msra.mxu0 0
      %6548 = vmatprep.subr.bf16.mxu0 0
      %6549 = vmatpush2.bf16.xpose.msra.mxu0 0
      %6550 = vmatprep.subr.bf16.mxu0 0
      %6551 = vmatpush2.bf16.xpose.msra.mxu0 0
      %6552 = vmatprep.subr.bf16.mxu0 0
      %6553 = vmatpush2.bf16.xpose.msra.mxu0 0
      %6554 = vmatprep.subr.bf16.mxu0 0
      %6555 = vmatpush2.bf16.xpose.msra.mxu0 0
      %6556 = vmatprep.mubr.bf16.mxu0 0
      %6557 = vmatmul.mubr.bf16.gmra.mxu0 %v6501
      %v6558 = vpop.f32.mrf.mxu0
      %v6559 = vadd.f32 0.0, %v6558
      %v6560 = vpop.f32.mrf.mxu0
      %v6561 = vpop.f32.mrf.mxu0
      %v6562 = vadd.f32 0.0, %v6561
      %v6563 = vpop.f32.mrf.mxu0
      %6564 = vmatprep.mubr.bf16.mxu0 0
      %6565 = vmatmul.mubr.bf16.gmra.mxu0 %v6504
      %v6566 = vpop.f32.mrf.mxu0
      %v6567 = vadd.f32 0.0, %v6566
      %v6568 = vpop.f32.mrf.mxu0
      %v6569 = vpop.f32.mrf.mxu0
      %v6570 = vadd.f32 0.0, %v6569
      %v6571 = vpop.f32.mrf.mxu0
      %6572 = vmatprep.mubr.bf16.mxu0 0
      %6573 = vmatmul.mubr.bf16.gmra.mxu0 %v6507
      %v6574 = vpop.f32.mrf.mxu0
      %v6575 = vadd.f32 0.0, %v6574
      %v6576 = vpop.f32.mrf.mxu0
      %v6577 = vpop.f32.mrf.mxu0
      %v6578 = vadd.f32 0.0, %v6577
      %v6579 = vpop.f32.mrf.mxu0
      %6580 = vmatprep.mubr.bf16.mxu0 0
      %6581 = vmatmul.mubr.bf16.gmra.mxu0 %v6510
      %v6582 = vpop.f32.mrf.mxu0
      %v6583 = vadd.f32 0.0, %v6582
      %v6584 = vpop.f32.mrf.mxu0
      %v6585 = vpop.f32.mrf.mxu0
      %v6586 = vadd.f32 0.0, %v6585
      %v6587 = vpop.f32.mrf.mxu0
      %6588 = vdwg.mxu0
      %v6589 = vmul.f32 %v6559, 0.125
      %v6590 = vmul.f32 %v6562, 0.125
      %v6591 = vmul.f32 %v6567, 0.125
      %v6592 = vmul.f32 %v6570, 0.125
      %v6593 = vmul.f32 %v6575, 0.125
      %v6594 = vmul.f32 %v6578, 0.125
      %v6595 = vmul.f32 %v6583, 0.125
      %v6596 = vmul.f32 %v6586, 0.125
      %v6597 = vsel %vm2777, %v6589, -inf
      %6598 = vmax.xlane.f32.xlu0 %v6597
      %v6599 = vpop.xlane.xlu0 %6598
      %v6600 = vsel %vm2777, %v6590, -inf
      %6601 = vmax.xlane.f32.xlu0 %v6600
      %v6602 = vpop.xlane.xlu0 %6601
      %v6603 = vsel %vm2777, %v6591, -inf
      %6604 = vmax.xlane.f32.xlu0 %v6603
      %v6605 = vpop.xlane.xlu0 %6604
      %v6606 = vsel %vm2777, %v6592, -inf
      %6607 = vmax.xlane.f32.xlu0 %v6606
      %v6608 = vpop.xlane.xlu0 %6607
      %v6609 = vsel %vm2777, %v6593, -inf
      %6610 = vmax.xlane.f32.xlu0 %v6609
      %v6611 = vpop.xlane.xlu0 %6610
      %v6612 = vsel %vm2777, %v6594, -inf
      %6613 = vmax.xlane.f32.xlu0 %v6612
      %v6614 = vpop.xlane.xlu0 %6613
      %v6615 = vsel %vm2777, %v6595, -inf
      %6616 = vmax.xlane.f32.xlu0 %v6615
      %v6617 = vpop.xlane.xlu0 %6616
      %v6618 = vsel %vm2777, %v6596, -inf
      %6619 = vmax.xlane.f32.xlu0 %v6618
      %v6620 = vpop.xlane.xlu0 %6619
      %v6621 = vsub.f32 %v6589, %v6599
      %v6622 = vsub.f32 %v6590, %v6602
      %v6623 = vsub.f32 %v6591, %v6605
      %v6624 = vsub.f32 %v6592, %v6608
      %v6625 = vsub.f32 %v6593, %v6611
      %v6626 = vsub.f32 %v6594, %v6614
      %v6627 = vsub.f32 %v6595, %v6617
      %v6628 = vsub.f32 %v6596, %v6620
      %v6629 = vmul.f32 %v6621, 1.442695
      %v6630 = vpow.pop %v6629
      %v6631 = vmul.f32 %v6622, 1.442695
      %v6632 = vpow.pop %v6631
      %v6633 = vmul.f32 %v6623, 1.442695
      %v6634 = vpow.pop %v6633
      %v6635 = vmul.f32 %v6624, 1.442695
      %v6636 = vpow.pop %v6635
      %v6637 = vmul.f32 %v6625, 1.442695
      %v6638 = vpow.pop %v6637
      %v6639 = vmul.f32 %v6626, 1.442695
      %v6640 = vpow.pop %v6639
      %v6641 = vmul.f32 %v6627, 1.442695
      %v6642 = vpow.pop %v6641
      %v6643 = vmul.f32 %v6628, 1.442695
      %v6644 = vpow.pop %v6643
      %v6645 = vsel %vm2777, %v6630, 0.0
      %6646 = vadd.xlane.f32.xlu0 %v6645
      %v6647 = vpop.xlane.xlu0 %6646
      %v6648 = vsel %vm2777, %v6632, 0.0
      %6649 = vadd.xlane.f32.xlu0 %v6648
      %v6650 = vpop.xlane.xlu0 %6649
      %v6651 = vsel %vm2777, %v6634, 0.0
      %6652 = vadd.xlane.f32.xlu0 %v6651
      %v6653 = vpop.xlane.xlu0 %6652
      %v6654 = vsel %vm2777, %v6636, 0.0
      %6655 = vadd.xlane.f32.xlu0 %v6654
      %v6656 = vpop.xlane.xlu0 %6655
      %v6657 = vsel %vm2777, %v6638, 0.0
      %6658 = vadd.xlane.f32.xlu0 %v6657
      %v6659 = vpop.xlane.xlu0 %6658
      %v6660 = vsel %vm2777, %v6640, 0.0
      %6661 = vadd.xlane.f32.xlu0 %v6660
      %v6662 = vpop.xlane.xlu0 %6661
      %v6663 = vsel %vm2777, %v6642, 0.0
      %6664 = vadd.xlane.f32.xlu0 %v6663
      %v6665 = vpop.xlane.xlu0 %6664
      %v6666 = vsel %vm2777, %v6644, 0.0
      %6667 = vadd.xlane.f32.xlu0 %v6666
      %v6668 = vpop.xlane.xlu0 %6667
      %v6669 = vrcp.pop %v6647
      %v6670 = vrcp.pop %v6650
      %v6671 = vrcp.pop %v6653
      %v6672 = vrcp.pop %v6656
      %v6673 = vrcp.pop %v6659
      %v6674 = vrcp.pop %v6662
      %v6675 = vrcp.pop %v6665
      %v6676 = vrcp.pop %v6668
      %v6677 = vmul.f32 %v6630, %v6669
      %v6678 = vmul.f32 %v6632, %v6670
      %v6679 = vmul.f32 %v6634, %v6671
      %v6680 = vmul.f32 %v6636, %v6672
      %v6681 = vmul.f32 %v6638, %v6673
      %v6682 = vmul.f32 %v6640, %v6674
      %v6683 = vmul.f32 %v6642, %v6675
      %v6684 = vmul.f32 %v6644, %v6676
      %v6685 = vpack.c.bf16 %v6678, %v6677
      %v6686 = vpack.c.bf16 %v6680, %v6679
      %v6687 = vpack.c.bf16 %v6682, %v6681
      %v6688 = vpack.c.bf16 %v6684, %v6683
      %v6690 = vsel %vm2777, %v6685, 0
      %v6693 = vsel %vm2777, %v6686, 0
      %v6696 = vsel %vm2777, %v6687, 0
      %v6699 = vsel %vm2777, %v6688, 0
      %6701 = vmatprep.subr.bf16.mxu0 0
      %6702 = vmatpush1.bf16.msra.mxu0 0
      %6703 = vmatprep.subr.bf16.mxu0 0
      %6704 = vmatpush1.bf16.msra.mxu0 0
      %6705 = vmatprep.subr.bf16.mxu0 0
      %6706 = vmatpush1.bf16.msra.mxu0 0
      %6707 = vmatprep.subr.bf16.mxu0 0
      %6708 = vmatpush1.bf16.msra.mxu0 0
      %6709 = vmatprep.subr.bf16.mxu0 0
      %6710 = vmatpush1.bf16.msra.mxu0 %v6233
      %6711 = vmatprep.subr.bf16.mxu0 0
      %6712 = vmatpush1.bf16.msra.mxu0 %v6232
      %6713 = vmatprep.subr.bf16.mxu0 0
      %6714 = vmatpush1.bf16.msra.mxu0 %v6231
      %6715 = vmatprep.subr.bf16.mxu0 0
      %6716 = vmatpush1.bf16.msra.mxu0 %v6230
      %6717 = vmatprep.subr.bf16.mxu0 0
      %6718 = vmatpush2.bf16.msra.mxu0 0
      %6719 = vmatprep.subr.bf16.mxu0 0
      %6720 = vmatpush2.bf16.msra.mxu0 0
      %6721 = vmatprep.subr.bf16.mxu0 0
      %6722 = vmatpush2.bf16.msra.mxu0 0
      %6723 = vmatprep.subr.bf16.mxu0 0
      %6724 = vmatpush2.bf16.msra.mxu0 0
      %6725 = vmatprep.subr.bf16.mxu0 0
      %6726 = vmatpush2.bf16.msra.mxu0 0
      %6727 = vmatprep.subr.bf16.mxu0 0
      %6728 = vmatpush2.bf16.msra.mxu0 0
      %6729 = vmatprep.subr.bf16.mxu0 0
      %6730 = vmatpush2.bf16.msra.mxu0 0
      %6731 = vmatprep.subr.bf16.mxu0 0
      %6732 = vmatpush2.bf16.msra.mxu0 0
      %6733 = vmatprep.mubr.bf16.mxu0 0
      %6734 = vmatmul.mubr.bf16.gmra.mxu0 %v6690
      %v6735 = vpop.f32.mrf.mxu0
      %v6736 = vadd.f32 0.0, %v6735
      %v6737 = vpop.f32.mrf.mxu0
      %v6738 = vpop.f32.mrf.mxu0
      %v6739 = vadd.f32 0.0, %v6738
      %v6740 = vpop.f32.mrf.mxu0
      %6741 = vmatprep.mubr.bf16.mxu0 0
      %6742 = vmatmul.mubr.bf16.gmra.mxu0 %v6693
      %v6743 = vpop.f32.mrf.mxu0
      %v6744 = vadd.f32 0.0, %v6743
      %v6745 = vpop.f32.mrf.mxu0
      %v6746 = vpop.f32.mrf.mxu0
      %v6747 = vadd.f32 0.0, %v6746
      %v6748 = vpop.f32.mrf.mxu0
      %6749 = vmatprep.mubr.bf16.mxu0 0
      %6750 = vmatmul.mubr.bf16.gmra.mxu0 %v6696
      %v6751 = vpop.f32.mrf.mxu0
      %v6752 = vadd.f32 0.0, %v6751
      %v6753 = vpop.f32.mrf.mxu0
      %v6754 = vpop.f32.mrf.mxu0
      %v6755 = vadd.f32 0.0, %v6754
      %v6756 = vpop.f32.mrf.mxu0
      %6757 = vmatprep.mubr.bf16.mxu0 0
      %6758 = vmatmul.mubr.bf16.gmra.mxu0 %v6699
      %v6759 = vpop.f32.mrf.mxu0
      %v6760 = vadd.f32 0.0, %v6759
      %v6761 = vpop.f32.mrf.mxu0
      %v6762 = vpop.f32.mrf.mxu0
      %v6763 = vadd.f32 0.0, %v6762
      %v6764 = vpop.f32.mrf.mxu0
      %6765 = vdwg.mxu0
      %v6766 = vpack.c.bf16 %v6473, %v6470
      %v6767 = vpack.c.bf16 %v6481, %v6478
      %v6768 = vpack.c.bf16 %v6489, %v6486
      %v6769 = vpack.c.bf16 %v6497, %v6494
      %v6770 = vpack.c.bf16 %v6739, %v6736
      %v6771 = vpack.c.bf16 %v6747, %v6744
      %v6772 = vpack.c.bf16 %v6755, %v6752
      %v6773 = vpack.c.bf16 %v6763, %v6760
      %v6774 = vld [vmem:[%s5 + $0x220] sm:$0xf]
      %v6775 = vld [vmem:[%s5 + $0x224] sm:$0xf]
      %v6776 = vld [vmem:[%s5 + $0x228] sm:$0xf]
      %v6777 = vld [vmem:[%s5 + $0x22c] sm:$0xf]
      %v6778 = vld [vmem:[%s5 + $0x230] sm:$0xf]
      %v6779 = vld [vmem:[%s5 + $0x234] sm:$0xf]
      %v6780 = vld [vmem:[%s5 + $0x238] sm:$0xf]
      %v6781 = vld [vmem:[%s5 + $0x23c] sm:$0xf]
      %v6782 = vlaneseq
      %v6783 = vshrl.u32 %v6782, 7
      %v6784 = vsub.s32 0, %v6783
      %v6785 = vrot.slane %v324, %v6784
      %v6794 = vunpack.c.l.b16 %v6774
      %v6795 = vunpack.c.l.b16 %v6775
      %v6796 = vunpack.c.l.b16 %v6776
      %v6797 = vunpack.c.l.b16 %v6777
      %v6798 = vunpack.c.l.b16 %v6778
      %v6799 = vunpack.c.l.b16 %v6779
      %v6800 = vunpack.c.l.b16 %v6780
      %v6801 = vunpack.c.l.b16 %v6781
      %v6802 = vpack.c.b16 %v6795, %v6794
      %v6803 = vpack.c.b16 %v6797, %v6796
      %v6804 = vpack.c.b16 %v6799, %v6798
      %v6805 = vpack.c.b16 %v6801, %v6800
      %v6811 = vsel %vm2777, %v6766, 0
      %v6814 = vsel %vm2777, %v6767, 0
      %v6817 = vsel %vm2777, %v6768, 0
      %v6820 = vsel %vm2777, %v6769, 0
      %v6823 = vsel %vm2777, %v6770, 0
      %v6826 = vsel %vm2777, %v6771, 0
      %v6829 = vsel %vm2777, %v6772, 0
      %v6832 = vsel %vm2777, %v6773, 0
      %6834 = vmatprep.subr.bf16.mxu0 0
      %6835 = vmatpush1.bf16.msra.mxu0 0
      %6836 = vmatprep.subr.bf16.mxu0 0
      %6837 = vmatpush1.bf16.msra.mxu0 0
      %6838 = vmatprep.subr.bf16.mxu0 0
      %6839 = vmatpush1.bf16.msra.mxu0 0
      %6840 = vmatprep.subr.bf16.mxu0 0
      %6841 = vmatpush1.bf16.msra.mxu0 0
      %6842 = vmatprep.subr.bf16.mxu0 0
      %6843 = vmatpush1.bf16.msra.mxu0 %v6805
      %6844 = vmatprep.subr.bf16.mxu0 0
      %6845 = vmatpush1.bf16.msra.mxu0 %v6804
      %6846 = vmatprep.subr.bf16.mxu0 0
      %6847 = vmatpush1.bf16.msra.mxu0 %v6803
      %6848 = vmatprep.subr.bf16.mxu0 0
      %6849 = vmatpush1.bf16.msra.mxu0 %v6802
      %6850 = vmatprep.subr.bf16.mxu0 0
      %6851 = vmatpush2.bf16.msra.mxu0 0
      %6852 = vmatprep.subr.bf16.mxu0 0
      %6853 = vmatpush2.bf16.msra.mxu0 0
      %6854 = vmatprep.subr.bf16.mxu0 0
      %6855 = vmatpush2.bf16.msra.mxu0 0
      %6856 = vmatprep.subr.bf16.mxu0 0
      %6857 = vmatpush2.bf16.msra.mxu0 0
      %6858 = vmatprep.subr.bf16.mxu0 0
      %6859 = vmatpush2.bf16.msra.mxu0 0
      %6860 = vmatprep.subr.bf16.mxu0 0
      %6861 = vmatpush2.bf16.msra.mxu0 0
      %6862 = vmatprep.subr.bf16.mxu0 0
      %6863 = vmatpush2.bf16.msra.mxu0 0
      %6864 = vmatprep.subr.bf16.mxu0 0
      %6865 = vmatpush2.bf16.msra.mxu0 0
      %6866 = vmatprep.mubr.bf16.mxu0 0
      %6867 = vmatmul.mubr.bf16.gmra.mxu0 %v6811
      %v6868 = vpop.f32.mrf.mxu0
      %v6869 = vadd.f32 %v6785, %v6868
      %v6870 = vpop.f32.mrf.mxu0
      %v6871 = vpop.f32.mrf.mxu0
      %v6872 = vadd.f32 %v6785, %v6871
      %v6873 = vpop.f32.mrf.mxu0
      %6874 = vmatprep.mubr.bf16.mxu0 0
      %6875 = vmatmul.mubr.bf16.gmra.mxu0 %v6814
      %v6876 = vpop.f32.mrf.mxu0
      %v6877 = vadd.f32 %v6785, %v6876
      %v6878 = vpop.f32.mrf.mxu0
      %v6879 = vpop.f32.mrf.mxu0
      %v6880 = vadd.f32 %v6785, %v6879
      %v6881 = vpop.f32.mrf.mxu0
      %6882 = vmatprep.mubr.bf16.mxu0 0
      %6883 = vmatmul.mubr.bf16.gmra.mxu0 %v6817
      %v6884 = vpop.f32.mrf.mxu0
      %v6885 = vadd.f32 %v6785, %v6884
      %v6886 = vpop.f32.mrf.mxu0
      %v6887 = vpop.f32.mrf.mxu0
      %v6888 = vadd.f32 %v6785, %v6887
      %v6889 = vpop.f32.mrf.mxu0
      %6890 = vmatprep.mubr.bf16.mxu0 0
      %6891 = vmatmul.mubr.bf16.gmra.mxu0 %v6820
      %v6892 = vpop.f32.mrf.mxu0
      %v6893 = vadd.f32 %v6785, %v6892
      %v6894 = vpop.f32.mrf.mxu0
      %v6895 = vpop.f32.mrf.mxu0
      %v6896 = vadd.f32 %v6785, %v6895
      %v6897 = vpop.f32.mrf.mxu0
      %6898 = vmatprep.mubr.bf16.mxu0 0
      %6899 = vmatmul.mubr.bf16.gmra.mxu0 %v6823
      %v6900 = vpop.f32.mrf.mxu0
      %v6901 = vadd.f32 %v6785, %v6900
      %v6902 = vpop.f32.mrf.mxu0
      %v6903 = vpop.f32.mrf.mxu0
      %v6904 = vadd.f32 %v6785, %v6903
      %v6905 = vpop.f32.mrf.mxu0
      %6906 = vmatprep.mubr.bf16.mxu0 0
      %6907 = vmatmul.mubr.bf16.gmra.mxu0 %v6826
      %v6908 = vpop.f32.mrf.mxu0
      %v6909 = vadd.f32 %v6785, %v6908
      %v6910 = vpop.f32.mrf.mxu0
      %v6911 = vpop.f32.mrf.mxu0
      %v6912 = vadd.f32 %v6785, %v6911
      %v6913 = vpop.f32.mrf.mxu0
      %6914 = vmatprep.mubr.bf16.mxu0 0
      %6915 = vmatmul.mubr.bf16.gmra.mxu0 %v6829
      %v6916 = vpop.f32.mrf.mxu0
      %v6917 = vadd.f32 %v6785, %v6916
      %v6918 = vpop.f32.mrf.mxu0
      %v6919 = vpop.f32.mrf.mxu0
      %v6920 = vadd.f32 %v6785, %v6919
      %v6921 = vpop.f32.mrf.mxu0
      %6922 = vmatprep.mubr.bf16.mxu0 0
      %6923 = vmatmul.mubr.bf16.gmra.mxu0 %v6832
      %v6924 = vpop.f32.mrf.mxu0
      %v6925 = vadd.f32 %v6785, %v6924
      %v6926 = vpop.f32.mrf.mxu0
      %v6927 = vpop.f32.mrf.mxu0
      %v6928 = vadd.f32 %v6785, %v6927
      %v6929 = vpop.f32.mrf.mxu0
      %6930 = vdwg.mxu0
      %v6931 = vadd.f32 %v5288, %v6869
      %v6932 = vadd.f32 %v5289, %v6872
      %v6933 = vadd.f32 %v5290, %v6877
      %v6934 = vadd.f32 %v5291, %v6880
      %v6935 = vadd.f32 %v5292, %v6885
      %v6936 = vadd.f32 %v5293, %v6888
      %v6937 = vadd.f32 %v5294, %v6893
      %v6938 = vadd.f32 %v5295, %v6896
      %v6939 = vadd.f32 %v5296, %v6901
      %v6940 = vadd.f32 %v5297, %v6904
      %v6941 = vadd.f32 %v5298, %v6909
      %v6942 = vadd.f32 %v5299, %v6912
      %v6943 = vadd.f32 %v5300, %v6917
      %v6944 = vadd.f32 %v5301, %v6920
      %v6945 = vadd.f32 %v5302, %v6925
      %v6946 = vadd.f32 %v5303, %v6928
      %6947 = vst.msk [vmem:[%s277] sm:$0xff] %vm2777, %v6931
      %6948 = vst.msk [vmem:[%s277 + $0x8] sm:$0xff] %vm2777, %v6932
      %6949 = vst.msk [vmem:[%s277 + $0x10] sm:$0xff] %vm2777, %v6933
      %6950 = vst.msk [vmem:[%s277 + $0x18] sm:$0xff] %vm2777, %v6934
      %6951 = vst.msk [vmem:[%s277 + $0x20] sm:$0xff] %vm2777, %v6935
      %6952 = vst.msk [vmem:[%s277 + $0x28] sm:$0xff] %vm2777, %v6936
      %6953 = vst.msk [vmem:[%s277 + $0x30] sm:$0xff] %vm2777, %v6937
      %6954 = vst.msk [vmem:[%s277 + $0x38] sm:$0xff] %vm2777, %v6938
      %v6955 = vld [vmem:[%s270] sm:$0x3]
      %vm6956 = vcmask 517120
      %6957 = vst.msk [vmem:[%s277 + $0x40] sm:$0x3] %vm6956, %v6955
      %s6958 = scalar_lea.vmem %s277, 72
      %6959 = vst.msk [vmem:[%s6958] sm:$0xff] %vm2777, %v6939
      %6960 = vst.msk [vmem:[%s6958 + $0x8] sm:$0xff] %vm2777, %v6940
      %6961 = vst.msk [vmem:[%s6958 + $0x10] sm:$0xff] %vm2777, %v6941
      %6962 = vst.msk [vmem:[%s6958 + $0x18] sm:$0xff] %vm2777, %v6942
      %6963 = vst.msk [vmem:[%s6958 + $0x20] sm:$0xff] %vm2777, %v6943
      %6964 = vst.msk [vmem:[%s6958 + $0x28] sm:$0xff] %vm2777, %v6944
      %6965 = vst.msk [vmem:[%s6958 + $0x30] sm:$0xff] %vm2777, %v6945
      %6966 = vst.msk [vmem:[%s6958 + $0x38] sm:$0xff] %vm2777, %v6946
      %s6967 = scalar_lea.vmem %s270, 2
      %v6968 = vld [vmem:[%s6967] sm:$0x3]
      %6969 = vst.msk [vmem:[%s6958 + $0x40] sm:$0x3] %vm6956, %v6968
      %s6970 = smul.u32 2, %s17
      %p6971 = scmp.lt.s32.totalorder %s6970, 3
      %s6972 = scalar_select %p6971, %s6970, 3
      %s6973 = smul.addr %s6972, 9
      %s6974 = smul.addr %s6973, 8
      %s6975 = scalar_lea.vmem %s6, %s6974
      // Predicated region
      $region45: #{tpu_custom_call.1} parent=43 // pred_check
        %p6976 = pneg %p171
      $region46: #{tpu_custom_call.1} parent=43 // pred_check_branch
        %6978 = sbr.rel (%p6976) target = $region48
      $region47: #{tpu_custom_call.1} parent=43 // pred_region
        %s6979 = smul.u32 2, %s17
      $region48: #{tpu_custom_call.1} parent=43 // pred_fallthru
        _
    $region44: #{tpu_custom_call.1} parent=5 // pred_fallthru
      _
    %p6980 = scmp.le.s32.totalorder 2, %s12
    // Predicated region
    $region49: #{tpu_custom_call.1} parent=5 // pred_check
      %p6981 = pneg %p6980
    $region50: #{tpu_custom_call.1} parent=5 // pred_check_branch
      %6983 = sbr.rel (%p6981) target = $region52
    $region51: #{tpu_custom_call.1} parent=5 // pred_region
      %s6984 = ssub.s32 %s12, 2
      // Predicated region
      $region53: #{tpu_custom_call.1} parent=51 // pred_check
        %p6985 = pneg %p177
      $region54: #{tpu_custom_call.1} parent=51 // pred_check_branch
        %6987 = sbr.rel (%p6985) target = $region56
      $region55: #{tpu_custom_call.1} parent=51 // pred_region
        %s6988 = smul.u32 2, %s18
        %p6989 = scmp.lt.s32.totalorder %s6988, 3
        %s6990 = scalar_select %p6989, %s6988, 3
        %s6991 = smul.addr %s6990, 9
        %s6992 = smul.addr %s6991, 8
        %s6993 = scalar_lea.vmem %s6, %s6992
      $region56: #{tpu_custom_call.1} parent=51 // pred_fallthru
        _
    $region52: #{tpu_custom_call.1} parent=5 // pred_fallthru
      _
  $region6: #{tpu_custom_call.1} parent=0 // loop_footer
    %s16 = sadd.s32 1, %s12
  $region7: #{tpu_custom_call.1} parent=0 // loop_footer_branch
    %11 = sbr.rel target = $region3
  $region8: #{tpu_custom_call.1} parent=0 // loop_exit
    _

</llo_original>
